<compile_context>
chip_gen: v5e
topology: v5e:2x2
jax: 0.10.0
libtpu: 0.0.40
codegen_flags: <defaults>
</compile_context>

<pallas_src>
import functools

import jax
import jax.numpy as jnp
from jax.experimental import pallas as pl
from jax.experimental.pallas import tpu as pltpu

EPS = 1e-5
LANES = 128
VMEM_LIMIT = 32 * 1024 * 1024


def _round_up(x, m):
    return (x + m - 1) // m * m


def _pad2(x, rows, cols):
    r, c = x.shape
    if r == rows and c == cols:
        return x
    return jnp.pad(x, ((0, rows - r), (0, cols - c)))


def _vmem_spec():
    return pl.BlockSpec(memory_space=pltpu.MemorySpace.VMEM)


# ---------------------------------------------------------------------------
# Pallas kernels
# ---------------------------------------------------------------------------
def _mm_kernel(a_ref, w_ref, b_ref, o_ref, *, apply_relu):
    # out = act(a @ w + bias); BN scale already folded into w.
    acc = jnp.dot(a_ref[...], w_ref[...], preferred_element_type=jnp.float32)
    y = acc + b_ref[...]
    if apply_relu:
        y = jnp.maximum(y, 0.0)
    o_ref[...] = y.astype(o_ref.dtype)


def _mm_res_kernel(a_ref, w_ref, b_ref, r_ref, o_ref):
    # out = relu(a @ w + bias + residual)
    acc = jnp.dot(a_ref[...], w_ref[...], preferred_element_type=jnp.float32)
    y = acc + b_ref[...] + r_ref[...].astype(jnp.float32)
    o_ref[...] = jnp.maximum(y, 0.0).astype(o_ref.dtype)


def _mm_down_kernel(a_ref, w_ref, b_ref, xs_ref, wd_ref, bd_ref, o_ref):
    # out = relu(a @ w + bias + xs @ wd + bd)
    # The 1x1-conv+BN downsample of the identity is fused as a second dot
    # on the same M tile (no separate pallas_call / HBM round trip).
    acc = jnp.dot(a_ref[...], w_ref[...], preferred_element_type=jnp.float32)
    idn = jnp.dot(xs_ref[...], wd_ref[...], preferred_element_type=jnp.float32)
    y = acc + b_ref[...] + idn + bd_ref[...]
    o_ref[...] = jnp.maximum(y, 0.0).astype(o_ref.dtype)


def _pool_fc_kernel(x_ref, w_ref, b_ref, o_ref):
    # x_ref: (B, H*W, Cp) bf16  ->  global average pool  ->  fc (f32)
    pooled = jnp.mean(x_ref[...].astype(jnp.float32), axis=1)        # (B, Cp)
    y = jnp.dot(pooled, w_ref[...], preferred_element_type=jnp.float32)
    o_ref[...] = y + b_ref[...]


# ---------------------------------------------------------------------------
# Tiled fused GEMM wrapper
# ---------------------------------------------------------------------------
def fused_matmul(a, w, bias, *, residual=None, down=None, apply_relu=True,
                 out_dtype=jnp.bfloat16):
    """out = act(a @ w + bias [+ residual | + xs @ wd + bd]).

    a: (M, Kp) bf16, w: (Kp, Np) bf16 with Kp, Np multiples of 128.
    Grid tiles M; K and N are carried whole (small for this network).
    """
    M, Kp = a.shape
    Np = w.shape[1]
    tm = 512 if M >= 512 else _round_up(M, 8)
    Mp = _round_up(M, tm)
    pad_m = Mp - M
    if pad_m:
        a = jnp.pad(a, ((0, pad_m), (0, 0)))
    bias2 = bias.reshape(1, Np).astype(jnp.float32)

    grid = (Mp // tm,)
    a_spec = pl.BlockSpec((tm, Kp), lambda i: (i, 0))
    w_spec = pl.BlockSpec((Kp, Np), lambda i: (0, 0))
    b_spec = pl.BlockSpec((1, Np), lambda i: (0, 0))
    o_spec = pl.BlockSpec((tm, Np), lambda i: (i, 0))
    out_shape = jax.ShapeDtypeStruct((Mp, Np), out_dtype)
    cparams = pltpu.CompilerParams(
        dimension_semantics=("parallel",),
        vmem_limit_bytes=VMEM_LIMIT,
    )

    if down is not None:
        xs, wd, bd = down
        cxp = xs.shape[1]
        if pad_m:
            xs = jnp.pad(xs, ((0, pad_m), (0, 0)))
        bd2 = bd.reshape(1, Np).astype(jnp.float32)
        y = pl.pallas_call(
            _mm_down_kernel,
            grid=grid,
            out_shape=out_shape,
            in_specs=[a_spec, w_spec, b_spec,
                      pl.BlockSpec((tm, cxp), lambda i: (i, 0)),
                      pl.BlockSpec((cxp, Np), lambda i: (0, 0)),
                      b_spec],
            out_specs=o_spec,
            compiler_params=cparams,
        )(a, w, bias2, xs, wd, bd2)
    elif residual is not None:
        if pad_m:
            residual = jnp.pad(residual, ((0, pad_m), (0, 0)))
        y = pl.pallas_call(
            _mm_res_kernel,
            grid=grid,
            out_shape=out_shape,
            in_specs=[a_spec, w_spec, b_spec,
                      pl.BlockSpec((tm, Np), lambda i: (i, 0))],
            out_specs=o_spec,
            compiler_params=cparams,
        )(a, w, bias2, residual)
    else:
        y = pl.pallas_call(
            functools.partial(_mm_kernel, apply_relu=apply_relu),
            grid=grid,
            out_shape=out_shape,
            in_specs=[a_spec, w_spec, b_spec],
            out_specs=o_spec,
            compiler_params=cparams,
        )(a, w, bias2)
    return y[:M] if pad_m else y


# ---------------------------------------------------------------------------
# Glue: im2col patch extraction, conv+bn wrappers (parameter folding)
# ---------------------------------------------------------------------------
def im2col(x, kh, kw, stride, pad):
    """x: (B, H, W, C) bf16 -> patches (B*Ho*Wo, kh*kw*C), PyTorch conv geometry."""
    # TODO(synk): extract patches inside the kernel (overlapping BlockSpec
    # windows on a resident row band) to remove the kh*kw HBM read amplification.
    B, H, W, C = x.shape
    xp = jnp.pad(x, ((0, 0), (pad, pad), (pad, pad), (0, 0)))
    Hp, Wp = H + 2 * pad, W + 2 * pad
    Ho = (Hp - kh) // stride + 1
    Wo = (Wp - kw) // stride + 1
    cols = []
    for i in range(kh):
        for j in range(kw):
            cols.append(xp[:, i:i + stride * Ho:stride, j:j + stride * Wo:stride, :])
    patches = jnp.concatenate(cols, axis=-1)            # (B, Ho, Wo, kh*kw*C)
    return patches.reshape(B * Ho * Wo, kh * kw * C), (B, Ho, Wo)


def _bn_fold(conv_b, bn):
    scale = bn["gamma"] / jnp.sqrt(bn["var"] + EPS)
    bias = (conv_b - bn["mean"]) * scale + bn["beta"]
    return scale, bias


def conv_bn(x, conv, bn, stride, pad, *, residual=None, down=None, apply_relu=True):
    """Conv2d(kxk, stride, pad) + BN (folded into weights) [+ residual] [+ ReLU].

    x carries channel-padded activations; only the logical in_c channels are
    used to build patches (padded channels are exactly zero anyway).
    Returns (B, Ho, Wo, Np) bf16 with Np = round_up(out_c, 128).
    """
    w, b = conv["w"], conv["b"]               # w: (out, in, kh, kw)  PyTorch layout
    out_c, in_c, kh, kw = w.shape
    patches, (B, Ho, Wo) = im2col(x[..., :in_c], kh, kw, stride, pad)
    K = kh * kw * in_c
    Kp = _round_up(K, LANES)
    Np = _round_up(out_c, LANES)

    scale, bias = _bn_fold(b, bn)
    w_mat = jnp.transpose(w, (2, 3, 1, 0)).reshape(K, out_c) * scale[None, :]
    w_mat = _pad2(w_mat, Kp, Np).astype(jnp.bfloat16)
    bias_p = jnp.pad(bias, (0, Np - out_c))
    if Kp != K:
        patches = jnp.pad(patches, ((0, 0), (0, Kp - K)))

    y = fused_matmul(patches, w_mat, bias_p,
                     residual=residual, down=down, apply_relu=apply_relu)
    return y.reshape(B, Ho, Wo, Np)


def res_block(x, p, stride):
    """ResBlock: conv3x3(s=1)+bn+relu [dropout=id] -> conv3x3(s)+bn + identity -> relu."""
    B, H, W, Cp = x.shape
    out_c = p["conv1"]["w"].shape[0]
    Np = _round_up(out_c, LANES)

    h = conv_bn(x, p["conv1"], p["bn1"], stride=1, pad=1, apply_relu=True)

    if p["down"] is not None:
        # identity = Conv2d(1x1, stride) + BN, fused into the conv2 kernel.
        dw = p["down"]["conv"]["w"]                       # (out_c, in_c, 1, 1)
        d_in = dw.shape[1]
        dscale, dbias = _bn_fold(p["down"]["conv"]["b"], p["down"]["bn"])
        wd = dw.reshape(out_c, d_in).T * dscale[None, :]  # (in_c, out_c)
        wd = _pad2(wd, Cp, Np).astype(jnp.bfloat16)
        bd = jnp.pad(dbias, (0, Np - out_c))
        xs = x[:, ::stride, ::stride, :]
        xs_flat = xs.reshape(-1, Cp)
        out = conv_bn(h, p["conv2"], p["bn2"], stride=stride, pad=1,
                      down=(xs_flat, wd, bd), apply_relu=True)
    else:
        # no downsample ==> stride == 1 and in_c == out_c
        res = x.reshape(-1, Cp)
        out = conv_bn(h, p["conv2"], p["bn2"], stride=stride, pad=1,
                      residual=res, apply_relu=True)
    return out


def pool_fc(x, fc_w, fc_b):
    """AdaptiveAvgPool2d((1,1)) + Flatten + Dropout(eval=id) + Linear, one kernel."""
    B, H, W, Cp = x.shape
    xf = x.reshape(B, H * W, Cp)
    num_classes = fc_w.shape[0]
    Ncp = _round_up(num_classes, LANES)
    w_p = _pad2(fc_w.T.astype(jnp.float32), Cp, Ncp)       # (Cp, Ncp)
    b_p = jnp.pad(fc_b.astype(jnp.float32), (0, Ncp - num_classes)).reshape(1, Ncp)
    logits = pl.pallas_call(
        _pool_fc_kernel,
        out_shape=jax.ShapeDtypeStruct((B, Ncp), jnp.float32),
        in_specs=[_vmem_spec()] * 3,
        out_specs=_vmem_spec(),
        compiler_params=pltpu.CompilerParams(vmem_limit_bytes=VMEM_LIMIT),
    )(xf, w_p, b_p)
    return logits[:, :num_classes]


# ---------------------------------------------------------------------------
# Full ResNet forward
# ---------------------------------------------------------------------------
def resnet_forward(x_nchw, params):
    # layout: input NCHW (PyTorch) -> NHWC internally, bf16 activations
    x = jnp.transpose(x_nchw, (0, 2, 3, 1)).astype(jnp.bfloat16)

    # conv1 (6x6, stride 2, pad 2) + bn1 + relu
    x = conv_bn(x, params["conv1"], params["bn1"], stride=2, pad=2, apply_relu=True)
    # (self.maxpool is defined in __init__ but never called in forward)

    for layer_params, stride in zip(params["layers"], (1, 2, 2)):
        for bi, bp in enumerate(layer_params):
            x = res_block(x, bp, stride if bi == 0 else 1)

    # avgpool + flatten + dropout (eval) + fc -> (B, num_classes)
    return pool_fc(x, params["fc"]["w"], params["fc"]["b"])


# ---------------------------------------------------------------------------
# Deterministic parameter construction (shapes per the module's __init__)
# ---------------------------------------------------------------------------
def init_params(key, image_channels=3, num_classes=10, layers=(1, 1, 1)):
    keys = iter(jax.random.split(key, 256))

    def conv_p(in_c, out_c, k):
        return {"w": 0.05 * jax.random.normal(next(keys), (out_c, in_c, k, k), jnp.float32),
                "b": 0.05 * jax.random.normal(next(keys), (out_c,), jnp.float32)}

    def bn_p(c):
        return {"gamma": 1.0 + 0.1 * jax.random.normal(next(keys), (c,), jnp.float32),
                "beta": 0.1 * jax.random.normal(next(keys), (c,), jnp.float32),
                "mean": jnp.zeros((c,), jnp.float32),
                "var": jnp.ones((c,), jnp.float32)}

    params = {"conv1": conv_p(image_channels, 16, 6), "bn1": bn_p(16)}

    in_c = 16
    layer_list = []
    for num_blocks, out_c, stride in zip(layers, (32, 64, 128), (1, 2, 2)):
        blocks = []
        for bi in range(num_blocks):
            bin_c = in_c if bi == 0 else out_c
            p = {"conv1": conv_p(bin_c, out_c, 3), "bn1": bn_p(out_c),
                 "conv2": conv_p(out_c, out_c, 3), "bn2": bn_p(out_c)}
            if bi == 0 and (stride != 1 or in_c != out_c):
                p["down"] = {"conv": conv_p(in_c, out_c, 1), "bn": bn_p(out_c)}
            else:
                p["down"] = None
            blocks.append(p)
        layer_list.append(blocks)
        in_c = out_c
    params["layers"] = layer_list

    params["fc"] = {"w": 0.05 * jax.random.normal(next(keys), (num_classes, 128), jnp.float32),
                    "b": 0.05 * jax.random.normal(next(keys), (num_classes,), jnp.float32)}
    return params


if __name__ == "__main__":
    key = jax.random.PRNGKey(0)
    pkey, xkey = jax.random.split(key)

    # CIFAR-10-like input: batch=2, 3 channels, 32x32 spatial (NCHW).
    # layers=(2,1,1) exercises both the fused-downsample and the plain-residual kernels.
    params = init_params(pkey, image_channels=3, num_classes=10, layers=(2, 1, 1))
    x = jax.random.normal(xkey, (2, 3, 32, 32), jnp.float32)

    fwd = jax.jit(resnet_forward)
    logits = jax.block_until_ready(fwd(x, params))

    assert logits.shape == (2, 10), logits.shape
    assert jnp.all(jnp.isfinite(logits))
    print("KERNEL_OK")
</pallas_src>

<mosaic_0001>
module attributes {stable_mosaic.version = 11 : i64} {
  func.func @_mm_kernel(%arg0: i32, %arg1: memref<512x128xbf16, #tpu.memory_space<vmem>>, %arg2: memref<128x128xbf16, #tpu.memory_space<vmem>>, %arg3: memref<1x128xf32, #tpu.memory_space<vmem>>, %arg4: memref<512x128xbf16, #tpu.memory_space<vmem>>) attributes {dimension_semantics = [#tpu.dimension_semantics<parallel>], iteration_bounds = array<i64: 1>, scalar_prefetch = 0 : i64, scratch_operands = 0 : i64, tpu.core_type = #tpu.core_type<tc>, window_params = [{transform_indices = @transform_0, window_bounds = array<i64: 512, 128>}, {pipeline_mode = #tpu.pipeline_mode<synchronous>, transform_indices = @transform_1, window_bounds = array<i64: 128, 128>}, {pipeline_mode = #tpu.pipeline_mode<synchronous>, transform_indices = @transform_2, window_bounds = array<i64: 1, 128>}, {transform_indices = @transform_3, window_bounds = array<i64: 512, 128>}]} {
    %c0 = arith.constant 0 : index
    %c0_0 = arith.constant 0 : index
    %0 = vector.load %arg1[%c0, %c0_0] : memref<512x128xbf16, #tpu.memory_space<vmem>>, vector<512x128xbf16>
    %c0_1 = arith.constant 0 : index
    %c0_2 = arith.constant 0 : index
    %1 = vector.load %arg2[%c0_1, %c0_2] : memref<128x128xbf16, #tpu.memory_space<vmem>>, vector<128x128xbf16>
    %cst = arith.constant dense<0.000000e+00> : vector<512x128xf32>
    %2 = tpu.matmul %0, %1, %cst {dimension_numbers = #tpu.dot_dimension_numbers<[1], [0], [0], [1], [0, 0, 1, 1], [], []>} : vector<512x128xbf16>, vector<128x128xbf16>, vector<512x128xf32> -> vector<512x128xf32>
    %c0_3 = arith.constant 0 : index
    %c0_4 = arith.constant 0 : index
    %3 = vector.load %arg3[%c0_3, %c0_4] : memref<1x128xf32, #tpu.memory_space<vmem>>, vector<1x128xf32>
    %4 = vector.broadcast %3 : vector<1x128xf32> to vector<512x128xf32>
    %5 = arith.addf %2, %4 : vector<512x128xf32>
    %cst_5 = arith.constant 0.000000e+00 : f32
    %6 = vector.broadcast %cst_5 : f32 to vector<512x128xf32>
    %7 = arith.maximumf %5, %6 : vector<512x128xf32>
    %8 = arith.truncf %7 : vector<512x128xf32> to vector<512x128xbf16>
    %c0_6 = arith.constant 0 : index
    %c0_7 = arith.constant 0 : index
    %9 = vector.load %arg4[%c0_6, %c0_7] : memref<512x128xbf16, #tpu.memory_space<vmem>>, vector<512x128xbf16>
    tpu.vector_store %arg4[%c0_6, %c0_7], %8 {strides = array<i32>} : memref<512x128xbf16, #tpu.memory_space<vmem>>, vector<512x128xbf16>,
    return
  }
  func.func @transform_0(%arg0: i32) -> (i32, i32) {
    %c0_i32 = arith.constant 0 : i32
    %c0_i32_0 = arith.constant 0 : i32
    return %arg0, %c0_i32 : i32, i32
  }
  func.func @transform_1(%arg0: i32) -> (i32, i32) {
    %c0_i32 = arith.constant 0 : i32
    %c0_i32_0 = arith.constant 0 : i32
    %c0_i32_1 = arith.constant 0 : i32
    return %c0_i32, %c0_i32_0 : i32, i32
  }
  func.func @transform_2(%arg0: i32) -> (i32, i32) {
    %c0_i32 = arith.constant 0 : i32
    %c0_i32_0 = arith.constant 0 : i32
    %c0_i32_1 = arith.constant 0 : i32
    return %c0_i32, %c0_i32_0 : i32, i32
  }
  func.func @transform_3(%arg0: i32) -> (i32, i32) {
    %c0_i32 = arith.constant 0 : i32
    %c0_i32_0 = arith.constant 0 : i32
    return %arg0, %c0_i32 : i32, i32
  }
}

module attributes {stable_mosaic.version = 11 : i64} {
  func.func @_mm_kernel(%arg0: i32, %arg1: memref<512x256xbf16, #tpu.memory_space<vmem>>, %arg2: memref<256x128xbf16, #tpu.memory_space<vmem>>, %arg3: memref<1x128xf32, #tpu.memory_space<vmem>>, %arg4: memref<512x128xbf16, #tpu.memory_space<vmem>>) attributes {dimension_semantics = [#tpu.dimension_semantics<parallel>], iteration_bounds = array<i64: 1>, scalar_prefetch = 0 : i64, scratch_operands = 0 : i64, tpu.core_type = #tpu.core_type<tc>, window_params = [{transform_indices = @transform_0, window_bounds = array<i64: 512, 256>}, {pipeline_mode = #tpu.pipeline_mode<synchronous>, transform_indices = @transform_1, window_bounds = array<i64: 256, 128>}, {pipeline_mode = #tpu.pipeline_mode<synchronous>, transform_indices = @transform_2, window_bounds = array<i64: 1, 128>}, {transform_indices = @transform_3, window_bounds = array<i64: 512, 128>}]} {
    %c0 = arith.constant 0 : index
    %c0_0 = arith.constant 0 : index
    %0 = vector.load %arg1[%c0, %c0_0] : memref<512x256xbf16, #tpu.memory_space<vmem>>, vector<512x256xbf16>
    %c0_1 = arith.constant 0 : index
    %c0_2 = arith.constant 0 : index
    %1 = vector.load %arg2[%c0_1, %c0_2] : memref<256x128xbf16, #tpu.memory_space<vmem>>, vector<256x128xbf16>
    %cst = arith.constant dense<0.000000e+00> : vector<512x128xf32>
    %2 = tpu.matmul %0, %1, %cst {dimension_numbers = #tpu.dot_dimension_numbers<[1], [0], [0], [1], [0, 0, 1, 1], [], []>} : vector<512x256xbf16>, vector<256x128xbf16>, vector<512x128xf32> -> vector<512x128xf32>
    %c0_3 = arith.constant 0 : index
    %c0_4 = arith.constant 0 : index
    %3 = vector.load %arg3[%c0_3, %c0_4] : memref<1x128xf32, #tpu.memory_space<vmem>>, vector<1x128xf32>
    %4 = vector.broadcast %3 : vector<1x128xf32> to vector<512x128xf32>
    %5 = arith.addf %2, %4 : vector<512x128xf32>
    %cst_5 = arith.constant 0.000000e+00 : f32
    %6 = vector.broadcast %cst_5 : f32 to vector<512x128xf32>
    %7 = arith.maximumf %5, %6 : vector<512x128xf32>
    %8 = arith.truncf %7 : vector<512x128xf32> to vector<512x128xbf16>
    %c0_6 = arith.constant 0 : index
    %c0_7 = arith.constant 0 : index
    %9 = vector.load %arg4[%c0_6, %c0_7] : memref<512x128xbf16, #tpu.memory_space<vmem>>, vector<512x128xbf16>
    tpu.vector_store %arg4[%c0_6, %c0_7], %8 {strides = array<i32>} : memref<512x128xbf16, #tpu.memory_space<vmem>>, vector<512x128xbf16>,
    return
  }
  func.func @transform_0(%arg0: i32) -> (i32, i32) {
    %c0_i32 = arith.constant 0 : i32
    %c0_i32_0 = arith.constant 0 : i32
    return %arg0, %c0_i32 : i32, i32
  }
  func.func @transform_1(%arg0: i32) -> (i32, i32) {
    %c0_i32 = arith.constant 0 : i32
    %c0_i32_0 = arith.constant 0 : i32
    %c0_i32_1 = arith.constant 0 : i32
    return %c0_i32, %c0_i32_0 : i32, i32
  }
  func.func @transform_2(%arg0: i32) -> (i32, i32) {
    %c0_i32 = arith.constant 0 : i32
    %c0_i32_0 = arith.constant 0 : i32
    %c0_i32_1 = arith.constant 0 : i32
    return %c0_i32, %c0_i32_0 : i32, i32
  }
  func.func @transform_3(%arg0: i32) -> (i32, i32) {
    %c0_i32 = arith.constant 0 : i32
    %c0_i32_0 = arith.constant 0 : i32
    return %arg0, %c0_i32 : i32, i32
  }
}

module attributes {stable_mosaic.version = 11 : i64} {
  func.func @_mm_down_kernel(%arg0: i32, %arg1: memref<512x384xbf16, #tpu.memory_space<vmem>>, %arg2: memref<384x128xbf16, #tpu.memory_space<vmem>>, %arg3: memref<1x128xf32, #tpu.memory_space<vmem>>, %arg4: memref<512x128xbf16, #tpu.memory_space<vmem>>, %arg5: memref<128x128xbf16, #tpu.memory_space<vmem>>, %arg6: memref<1x128xf32, #tpu.memory_space<vmem>>, %arg7: memref<512x128xbf16, #tpu.memory_space<vmem>>) attributes {dimension_semantics = [#tpu.dimension_semantics<parallel>], iteration_bounds = array<i64: 1>, scalar_prefetch = 0 : i64, scratch_operands = 0 : i64, tpu.core_type = #tpu.core_type<tc>, window_params = [{transform_indices = @transform_0, window_bounds = array<i64: 512, 384>}, {pipeline_mode = #tpu.pipeline_mode<synchronous>, transform_indices = @transform_1, window_bounds = array<i64: 384, 128>}, {pipeline_mode = #tpu.pipeline_mode<synchronous>, transform_indices = @transform_2, window_bounds = array<i64: 1, 128>}, {transform_indices = @transform_3, window_bounds = array<i64: 512, 128>}, {pipeline_mode = #tpu.pipeline_mode<synchronous>, transform_indices = @transform_4, window_bounds = array<i64: 128, 128>}, {pipeline_mode = #tpu.pipeline_mode<synchronous>, transform_indices = @transform_5, window_bounds = array<i64: 1, 128>}, {transform_indices = @transform_6, window_bounds = array<i64: 512, 128>}]} {
    %c0 = arith.constant 0 : index
    %c0_0 = arith.constant 0 : index
    %0 = vector.load %arg1[%c0, %c0_0] : memref<512x384xbf16, #tpu.memory_space<vmem>>, vector<512x384xbf16>
    %c0_1 = arith.constant 0 : index
    %c0_2 = arith.constant 0 : index
    %1 = vector.load %arg2[%c0_1, %c0_2] : memref<384x128xbf16, #tpu.memory_space<vmem>>, vector<384x128xbf16>
    %cst = arith.constant dense<0.000000e+00> : vector<512x128xf32>
    %2 = tpu.matmul %0, %1, %cst {dimension_numbers = #tpu.dot_dimension_numbers<[1], [0], [0], [1], [0, 0, 1, 1], [], []>} : vector<512x384xbf16>, vector<384x128xbf16>, vector<512x128xf32> -> vector<512x128xf32>
    %c0_3 = arith.constant 0 : index
    %c0_4 = arith.constant 0 : index
    %3 = vector.load %arg4[%c0_3, %c0_4] : memref<512x128xbf16, #tpu.memory_space<vmem>>, vector<512x128xbf16>
    %c0_5 = arith.constant 0 : index
    %c0_6 = arith.constant 0 : index
    %4 = vector.load %arg5[%c0_5, %c0_6] : memref<128x128xbf16, #tpu.memory_space<vmem>>, vector<128x128xbf16>
    %cst_7 = arith.constant dense<0.000000e+00> : vector<512x128xf32>
    %5 = tpu.matmul %3, %4, %cst_7 {dimension_numbers = #tpu.dot_dimension_numbers<[1], [0], [0], [1], [0, 0, 1, 1], [], []>} : vector<512x128xbf16>, vector<128x128xbf16>, vector<512x128xf32> -> vector<512x128xf32>
    %c0_8 = arith.constant 0 : index
    %c0_9 = arith.constant 0 : index
    %6 = vector.load %arg3[%c0_8, %c0_9] : memref<1x128xf32, #tpu.memory_space<vmem>>, vector<1x128xf32>
    %7 = vector.broadcast %6 : vector<1x128xf32> to vector<512x128xf32>
    %8 = arith.addf %2, %7 : vector<512x128xf32>
    %9 = arith.addf %8, %5 : vector<512x128xf32>
    %c0_10 = arith.constant 0 : index
    %c0_11 = arith.constant 0 : index
    %10 = vector.load %arg6[%c0_10, %c0_11] : memref<1x128xf32, #tpu.memory_space<vmem>>, vector<1x128xf32>
    %11 = vector.broadcast %10 : vector<1x128xf32> to vector<512x128xf32>
    %12 = arith.addf %9, %11 : vector<512x128xf32>
    %cst_12 = arith.constant 0.000000e+00 : f32
    %13 = vector.broadcast %cst_12 : f32 to vector<512x128xf32>
    %14 = arith.maximumf %12, %13 : vector<512x128xf32>
    %15 = arith.truncf %14 : vector<512x128xf32> to vector<512x128xbf16>
    %c0_13 = arith.constant 0 : index
    %c0_14 = arith.constant 0 : index
    %16 = vector.load %arg7[%c0_13, %c0_14] : memref<512x128xbf16, #tpu.memory_space<vmem>>, vector<512x128xbf16>
    tpu.vector_store %arg7[%c0_13, %c0_14], %15 {strides = array<i32>} : memref<512x128xbf16, #tpu.memory_space<vmem>>, vector<512x128xbf16>,
    return
  }
  func.func @transform_0(%arg0: i32) -> (i32, i32) {
    %c0_i32 = arith.constant 0 : i32
    %c0_i32_0 = arith.constant 0 : i32
    return %arg0, %c0_i32 : i32, i32
  }
  func.func @transform_1(%arg0: i32) -> (i32, i32) {
    %c0_i32 = arith.constant 0 : i32
    %c0_i32_0 = arith.constant 0 : i32
    %c0_i32_1 = arith.constant 0 : i32
    return %c0_i32, %c0_i32_0 : i32, i32
  }
  func.func @transform_2(%arg0: i32) -> (i32, i32) {
    %c0_i32 = arith.constant 0 : i32
    %c0_i32_0 = arith.constant 0 : i32
    %c0_i32_1 = arith.constant 0 : i32
    return %c0_i32, %c0_i32_0 : i32, i32
  }
  func.func @transform_3(%arg0: i32) -> (i32, i32) {
    %c0_i32 = arith.constant 0 : i32
    %c0_i32_0 = arith.constant 0 : i32
    return %arg0, %c0_i32 : i32, i32
  }
  func.func @transform_4(%arg0: i32) -> (i32, i32) {
    %c0_i32 = arith.constant 0 : i32
    %c0_i32_0 = arith.constant 0 : i32
    %c0_i32_1 = arith.constant 0 : i32
    return %c0_i32, %c0_i32_0 : i32, i32
  }
  func.func @transform_5(%arg0: i32) -> (i32, i32) {
    %c0_i32 = arith.constant 0 : i32
    %c0_i32_0 = arith.constant 0 : i32
    %c0_i32_1 = arith.constant 0 : i32
    return %c0_i32, %c0_i32_0 : i32, i32
  }
  func.func @transform_6(%arg0: i32) -> (i32, i32) {
    %c0_i32 = arith.constant 0 : i32
    %c0_i32_0 = arith.constant 0 : i32
    return %arg0, %c0_i32 : i32, i32
  }
}

module attributes {stable_mosaic.version = 11 : i64} {
  func.func @_mm_res_kernel(%arg0: i32, %arg1: memref<512x384xbf16, #tpu.memory_space<vmem>>, %arg2: memref<384x128xbf16, #tpu.memory_space<vmem>>, %arg3: memref<1x128xf32, #tpu.memory_space<vmem>>, %arg4: memref<512x128xbf16, #tpu.memory_space<vmem>>, %arg5: memref<512x128xbf16, #tpu.memory_space<vmem>>) attributes {dimension_semantics = [#tpu.dimension_semantics<parallel>], iteration_bounds = array<i64: 1>, scalar_prefetch = 0 : i64, scratch_operands = 0 : i64, tpu.core_type = #tpu.core_type<tc>, window_params = [{transform_indices = @transform_0, window_bounds = array<i64: 512, 384>}, {pipeline_mode = #tpu.pipeline_mode<synchronous>, transform_indices = @transform_1, window_bounds = array<i64: 384, 128>}, {pipeline_mode = #tpu.pipeline_mode<synchronous>, transform_indices = @transform_2, window_bounds = array<i64: 1, 128>}, {transform_indices = @transform_3, window_bounds = array<i64: 512, 128>}, {transform_indices = @transform_4, window_bounds = array<i64: 512, 128>}]} {
    %c0 = arith.constant 0 : index
    %c0_0 = arith.constant 0 : index
    %0 = vector.load %arg1[%c0, %c0_0] : memref<512x384xbf16, #tpu.memory_space<vmem>>, vector<512x384xbf16>
    %c0_1 = arith.constant 0 : index
    %c0_2 = arith.constant 0 : index
    %1 = vector.load %arg2[%c0_1, %c0_2] : memref<384x128xbf16, #tpu.memory_space<vmem>>, vector<384x128xbf16>
    %cst = arith.constant dense<0.000000e+00> : vector<512x128xf32>
    %2 = tpu.matmul %0, %1, %cst {dimension_numbers = #tpu.dot_dimension_numbers<[1], [0], [0], [1], [0, 0, 1, 1], [], []>} : vector<512x384xbf16>, vector<384x128xbf16>, vector<512x128xf32> -> vector<512x128xf32>
    %c0_3 = arith.constant 0 : index
    %c0_4 = arith.constant 0 : index
    %3 = vector.load %arg3[%c0_3, %c0_4] : memref<1x128xf32, #tpu.memory_space<vmem>>, vector<1x128xf32>
    %4 = vector.broadcast %3 : vector<1x128xf32> to vector<512x128xf32>
    %5 = arith.addf %2, %4 : vector<512x128xf32>
    %c0_5 = arith.constant 0 : index
    %c0_6 = arith.constant 0 : index
    %6 = vector.load %arg4[%c0_5, %c0_6] : memref<512x128xbf16, #tpu.memory_space<vmem>>, vector<512x128xbf16>
    %7 = arith.extf %6 : vector<512x128xbf16> to vector<512x128xf32>
    %8 = arith.addf %5, %7 : vector<512x128xf32>
    %cst_7 = arith.constant 0.000000e+00 : f32
    %9 = vector.broadcast %cst_7 : f32 to vector<512x128xf32>
    %10 = arith.maximumf %8, %9 : vector<512x128xf32>
    %11 = arith.truncf %10 : vector<512x128xf32> to vector<512x128xbf16>
    %c0_8 = arith.constant 0 : index
    %c0_9 = arith.constant 0 : index
    %12 = vector.load %arg5[%c0_8, %c0_9] : memref<512x128xbf16, #tpu.memory_space<vmem>>, vector<512x128xbf16>
    tpu.vector_store %arg5[%c0_8, %c0_9], %11 {strides = array<i32>} : memref<512x128xbf16, #tpu.memory_space<vmem>>, vector<512x128xbf16>,
    return
  }
  func.func @transform_0(%arg0: i32) -> (i32, i32) {
    %c0_i32 = arith.constant 0 : i32
    %c0_i32_0 = arith.constant 0 : i32
    return %arg0, %c0_i32 : i32, i32
  }
  func.func @transform_1(%arg0: i32) -> (i32, i32) {
    %c0_i32 = arith.constant 0 : i32
    %c0_i32_0 = arith.constant 0 : i32
    %c0_i32_1 = arith.constant 0 : i32
    return %c0_i32, %c0_i32_0 : i32, i32
  }
  func.func @transform_2(%arg0: i32) -> (i32, i32) {
    %c0_i32 = arith.constant 0 : i32
    %c0_i32_0 = arith.constant 0 : i32
    %c0_i32_1 = arith.constant 0 : i32
    return %c0_i32, %c0_i32_0 : i32, i32
  }
  func.func @transform_3(%arg0: i32) -> (i32, i32) {
    %c0_i32 = arith.constant 0 : i32
    %c0_i32_0 = arith.constant 0 : i32
    return %arg0, %c0_i32 : i32, i32
  }
  func.func @transform_4(%arg0: i32) -> (i32, i32) {
    %c0_i32 = arith.constant 0 : i32
    %c0_i32_0 = arith.constant 0 : i32
    return %arg0, %c0_i32 : i32, i32
  }
}

module attributes {stable_mosaic.version = 11 : i64} {
  func.func @_mm_kernel(%arg0: i32, %arg1: memref<512x384xbf16, #tpu.memory_space<vmem>>, %arg2: memref<384x128xbf16, #tpu.memory_space<vmem>>, %arg3: memref<1x128xf32, #tpu.memory_space<vmem>>, %arg4: memref<512x128xbf16, #tpu.memory_space<vmem>>) attributes {dimension_semantics = [#tpu.dimension_semantics<parallel>], iteration_bounds = array<i64: 1>, scalar_prefetch = 0 : i64, scratch_operands = 0 : i64, tpu.core_type = #tpu.core_type<tc>, window_params = [{transform_indices = @transform_0, window_bounds = array<i64: 512, 384>}, {pipeline_mode = #tpu.pipeline_mode<synchronous>, transform_indices = @transform_1, window_bounds = array<i64: 384, 128>}, {pipeline_mode = #tpu.pipeline_mode<synchronous>, transform_indices = @transform_2, window_bounds = array<i64: 1, 128>}, {transform_indices = @transform_3, window_bounds = array<i64: 512, 128>}]} {
    %c0 = arith.constant 0 : index
    %c0_0 = arith.constant 0 : index
    %0 = vector.load %arg1[%c0, %c0_0] : memref<512x384xbf16, #tpu.memory_space<vmem>>, vector<512x384xbf16>
    %c0_1 = arith.constant 0 : index
    %c0_2 = arith.constant 0 : index
    %1 = vector.load %arg2[%c0_1, %c0_2] : memref<384x128xbf16, #tpu.memory_space<vmem>>, vector<384x128xbf16>
    %cst = arith.constant dense<0.000000e+00> : vector<512x128xf32>
    %2 = tpu.matmul %0, %1, %cst {dimension_numbers = #tpu.dot_dimension_numbers<[1], [0], [0], [1], [0, 0, 1, 1], [], []>} : vector<512x384xbf16>, vector<384x128xbf16>, vector<512x128xf32> -> vector<512x128xf32>
    %c0_3 = arith.constant 0 : index
    %c0_4 = arith.constant 0 : index
    %3 = vector.load %arg3[%c0_3, %c0_4] : memref<1x128xf32, #tpu.memory_space<vmem>>, vector<1x128xf32>
    %4 = vector.broadcast %3 : vector<1x128xf32> to vector<512x128xf32>
    %5 = arith.addf %2, %4 : vector<512x128xf32>
    %cst_5 = arith.constant 0.000000e+00 : f32
    %6 = vector.broadcast %cst_5 : f32 to vector<512x128xf32>
    %7 = arith.maximumf %5, %6 : vector<512x128xf32>
    %8 = arith.truncf %7 : vector<512x128xf32> to vector<512x128xbf16>
    %c0_6 = arith.constant 0 : index
    %c0_7 = arith.constant 0 : index
    %9 = vector.load %arg4[%c0_6, %c0_7] : memref<512x128xbf16, #tpu.memory_space<vmem>>, vector<512x128xbf16>
    tpu.vector_store %arg4[%c0_6, %c0_7], %8 {strides = array<i32>} : memref<512x128xbf16, #tpu.memory_space<vmem>>, vector<512x128xbf16>,
    return
  }
  func.func @transform_0(%arg0: i32) -> (i32, i32) {
    %c0_i32 = arith.constant 0 : i32
    %c0_i32_0 = arith.constant 0 : i32
    return %arg0, %c0_i32 : i32, i32
  }
  func.func @transform_1(%arg0: i32) -> (i32, i32) {
    %c0_i32 = arith.constant 0 : i32
    %c0_i32_0 = arith.constant 0 : i32
    %c0_i32_1 = arith.constant 0 : i32
    return %c0_i32, %c0_i32_0 : i32, i32
  }
  func.func @transform_2(%arg0: i32) -> (i32, i32) {
    %c0_i32 = arith.constant 0 : i32
    %c0_i32_0 = arith.constant 0 : i32
    %c0_i32_1 = arith.constant 0 : i32
    return %c0_i32, %c0_i32_0 : i32, i32
  }
  func.func @transform_3(%arg0: i32) -> (i32, i32) {
    %c0_i32 = arith.constant 0 : i32
    %c0_i32_0 = arith.constant 0 : i32
    return %arg0, %c0_i32 : i32, i32
  }
}

module attributes {stable_mosaic.version = 11 : i64} {
  func.func @_mm_down_kernel(%arg0: i32, %arg1: memref<128x640xbf16, #tpu.memory_space<vmem>>, %arg2: memref<640x128xbf16, #tpu.memory_space<vmem>>, %arg3: memref<1x128xf32, #tpu.memory_space<vmem>>, %arg4: memref<128x128xbf16, #tpu.memory_space<vmem>>, %arg5: memref<128x128xbf16, #tpu.memory_space<vmem>>, %arg6: memref<1x128xf32, #tpu.memory_space<vmem>>, %arg7: memref<128x128xbf16, #tpu.memory_space<vmem>>) attributes {dimension_semantics = [#tpu.dimension_semantics<parallel>], iteration_bounds = array<i64: 1>, scalar_prefetch = 0 : i64, scratch_operands = 0 : i64, tpu.core_type = #tpu.core_type<tc>, window_params = [{transform_indices = @transform_0, window_bounds = array<i64: 128, 640>}, {pipeline_mode = #tpu.pipeline_mode<synchronous>, transform_indices = @transform_1, window_bounds = array<i64: 640, 128>}, {pipeline_mode = #tpu.pipeline_mode<synchronous>, transform_indices = @transform_2, window_bounds = array<i64: 1, 128>}, {transform_indices = @transform_3, window_bounds = array<i64: 128, 128>}, {pipeline_mode = #tpu.pipeline_mode<synchronous>, transform_indices = @transform_4, window_bounds = array<i64: 128, 128>}, {pipeline_mode = #tpu.pipeline_mode<synchronous>, transform_indices = @transform_5, window_bounds = array<i64: 1, 128>}, {transform_indices = @transform_6, window_bounds = array<i64: 128, 128>}]} {
    %c0 = arith.constant 0 : index
    %c0_0 = arith.constant 0 : index
    %0 = vector.load %arg1[%c0, %c0_0] : memref<128x640xbf16, #tpu.memory_space<vmem>>, vector<128x640xbf16>
    %c0_1 = arith.constant 0 : index
    %c0_2 = arith.constant 0 : index
    %1 = vector.load %arg2[%c0_1, %c0_2] : memref<640x128xbf16, #tpu.memory_space<vmem>>, vector<640x128xbf16>
    %cst = arith.constant dense<0.000000e+00> : vector<128x128xf32>
    %2 = tpu.matmul %0, %1, %cst {dimension_numbers = #tpu.dot_dimension_numbers<[1], [0], [0], [1], [0, 0, 1, 1], [], []>} : vector<128x640xbf16>, vector<640x128xbf16>, vector<128x128xf32> -> vector<128x128xf32>
    %c0_3 = arith.constant 0 : index
    %c0_4 = arith.constant 0 : index
    %3 = vector.load %arg4[%c0_3, %c0_4] : memref<128x128xbf16, #tpu.memory_space<vmem>>, vector<128x128xbf16>
    %c0_5 = arith.constant 0 : index
    %c0_6 = arith.constant 0 : index
    %4 = vector.load %arg5[%c0_5, %c0_6] : memref<128x128xbf16, #tpu.memory_space<vmem>>, vector<128x128xbf16>
    %cst_7 = arith.constant dense<0.000000e+00> : vector<128x128xf32>
    %5 = tpu.matmul %3, %4, %cst_7 {dimension_numbers = #tpu.dot_dimension_numbers<[1], [0], [0], [1], [0, 0, 1, 1], [], []>} : vector<128x128xbf16>, vector<128x128xbf16>, vector<128x128xf32> -> vector<128x128xf32>
    %c0_8 = arith.constant 0 : index
    %c0_9 = arith.constant 0 : index
    %6 = vector.load %arg3[%c0_8, %c0_9] : memref<1x128xf32, #tpu.memory_space<vmem>>, vector<1x128xf32>
    %7 = vector.broadcast %6 : vector<1x128xf32> to vector<128x128xf32>
    %8 = arith.addf %2, %7 : vector<128x128xf32>
    %9 = arith.addf %8, %5 : vector<128x128xf32>
    %c0_10 = arith.constant 0 : index
    %c0_11 = arith.constant 0 : index
    %10 = vector.load %arg6[%c0_10, %c0_11] : memref<1x128xf32, #tpu.memory_space<vmem>>, vector<1x128xf32>
    %11 = vector.broadcast %10 : vector<1x128xf32> to vector<128x128xf32>
    %12 = arith.addf %9, %11 : vector<128x128xf32>
    %cst_12 = arith.constant 0.000000e+00 : f32
    %13 = vector.broadcast %cst_12 : f32 to vector<128x128xf32>
    %14 = arith.maximumf %12, %13 : vector<128x128xf32>
    %15 = arith.truncf %14 : vector<128x128xf32> to vector<128x128xbf16>
    %c0_13 = arith.constant 0 : index
    %c0_14 = arith.constant 0 : index
    %16 = vector.load %arg7[%c0_13, %c0_14] : memref<128x128xbf16, #tpu.memory_space<vmem>>, vector<128x128xbf16>
    tpu.vector_store %arg7[%c0_13, %c0_14], %15 {strides = array<i32>} : memref<128x128xbf16, #tpu.memory_space<vmem>>, vector<128x128xbf16>,
    return
  }
  func.func @transform_0(%arg0: i32) -> (i32, i32) {
    %c0_i32 = arith.constant 0 : i32
    %c0_i32_0 = arith.constant 0 : i32
    return %arg0, %c0_i32 : i32, i32
  }
  func.func @transform_1(%arg0: i32) -> (i32, i32) {
    %c0_i32 = arith.constant 0 : i32
    %c0_i32_0 = arith.constant 0 : i32
    %c0_i32_1 = arith.constant 0 : i32
    return %c0_i32, %c0_i32_0 : i32, i32
  }
  func.func @transform_2(%arg0: i32) -> (i32, i32) {
    %c0_i32 = arith.constant 0 : i32
    %c0_i32_0 = arith.constant 0 : i32
    %c0_i32_1 = arith.constant 0 : i32
    return %c0_i32, %c0_i32_0 : i32, i32
  }
  func.func @transform_3(%arg0: i32) -> (i32, i32) {
    %c0_i32 = arith.constant 0 : i32
    %c0_i32_0 = arith.constant 0 : i32
    return %arg0, %c0_i32 : i32, i32
  }
  func.func @transform_4(%arg0: i32) -> (i32, i32) {
    %c0_i32 = arith.constant 0 : i32
    %c0_i32_0 = arith.constant 0 : i32
    %c0_i32_1 = arith.constant 0 : i32
    return %c0_i32, %c0_i32_0 : i32, i32
  }
  func.func @transform_5(%arg0: i32) -> (i32, i32) {
    %c0_i32 = arith.constant 0 : i32
    %c0_i32_0 = arith.constant 0 : i32
    %c0_i32_1 = arith.constant 0 : i32
    return %c0_i32, %c0_i32_0 : i32, i32
  }
  func.func @transform_6(%arg0: i32) -> (i32, i32) {
    %c0_i32 = arith.constant 0 : i32
    %c0_i32_0 = arith.constant 0 : i32
    return %arg0, %c0_i32 : i32, i32
  }
}

module attributes {stable_mosaic.version = 11 : i64} {
  func.func @_mm_kernel(%arg0: i32, %arg1: memref<128x640xbf16, #tpu.memory_space<vmem>>, %arg2: memref<640x128xbf16, #tpu.memory_space<vmem>>, %arg3: memref<1x128xf32, #tpu.memory_space<vmem>>, %arg4: memref<128x128xbf16, #tpu.memory_space<vmem>>) attributes {dimension_semantics = [#tpu.dimension_semantics<parallel>], iteration_bounds = array<i64: 1>, scalar_prefetch = 0 : i64, scratch_operands = 0 : i64, tpu.core_type = #tpu.core_type<tc>, window_params = [{transform_indices = @transform_0, window_bounds = array<i64: 128, 640>}, {pipeline_mode = #tpu.pipeline_mode<synchronous>, transform_indices = @transform_1, window_bounds = array<i64: 640, 128>}, {pipeline_mode = #tpu.pipeline_mode<synchronous>, transform_indices = @transform_2, window_bounds = array<i64: 1, 128>}, {transform_indices = @transform_3, window_bounds = array<i64: 128, 128>}]} {
    %c0 = arith.constant 0 : index
    %c0_0 = arith.constant 0 : index
    %0 = vector.load %arg1[%c0, %c0_0] : memref<128x640xbf16, #tpu.memory_space<vmem>>, vector<128x640xbf16>
    %c0_1 = arith.constant 0 : index
    %c0_2 = arith.constant 0 : index
    %1 = vector.load %arg2[%c0_1, %c0_2] : memref<640x128xbf16, #tpu.memory_space<vmem>>, vector<640x128xbf16>
    %cst = arith.constant dense<0.000000e+00> : vector<128x128xf32>
    %2 = tpu.matmul %0, %1, %cst {dimension_numbers = #tpu.dot_dimension_numbers<[1], [0], [0], [1], [0, 0, 1, 1], [], []>} : vector<128x640xbf16>, vector<640x128xbf16>, vector<128x128xf32> -> vector<128x128xf32>
    %c0_3 = arith.constant 0 : index
    %c0_4 = arith.constant 0 : index
    %3 = vector.load %arg3[%c0_3, %c0_4] : memref<1x128xf32, #tpu.memory_space<vmem>>, vector<1x128xf32>
    %4 = vector.broadcast %3 : vector<1x128xf32> to vector<128x128xf32>
    %5 = arith.addf %2, %4 : vector<128x128xf32>
    %cst_5 = arith.constant 0.000000e+00 : f32
    %6 = vector.broadcast %cst_5 : f32 to vector<128x128xf32>
    %7 = arith.maximumf %5, %6 : vector<128x128xf32>
    %8 = arith.truncf %7 : vector<128x128xf32> to vector<128x128xbf16>
    %c0_6 = arith.constant 0 : index
    %c0_7 = arith.constant 0 : index
    %9 = vector.load %arg4[%c0_6, %c0_7] : memref<128x128xbf16, #tpu.memory_space<vmem>>, vector<128x128xbf16>
    tpu.vector_store %arg4[%c0_6, %c0_7], %8 {strides = array<i32>} : memref<128x128xbf16, #tpu.memory_space<vmem>>, vector<128x128xbf16>,
    return
  }
  func.func @transform_0(%arg0: i32) -> (i32, i32) {
    %c0_i32 = arith.constant 0 : i32
    %c0_i32_0 = arith.constant 0 : i32
    return %arg0, %c0_i32 : i32, i32
  }
  func.func @transform_1(%arg0: i32) -> (i32, i32) {
    %c0_i32 = arith.constant 0 : i32
    %c0_i32_0 = arith.constant 0 : i32
    %c0_i32_1 = arith.constant 0 : i32
    return %c0_i32, %c0_i32_0 : i32, i32
  }
  func.func @transform_2(%arg0: i32) -> (i32, i32) {
    %c0_i32 = arith.constant 0 : i32
    %c0_i32_0 = arith.constant 0 : i32
    %c0_i32_1 = arith.constant 0 : i32
    return %c0_i32, %c0_i32_0 : i32, i32
  }
  func.func @transform_3(%arg0: i32) -> (i32, i32) {
    %c0_i32 = arith.constant 0 : i32
    %c0_i32_0 = arith.constant 0 : i32
    return %arg0, %c0_i32 : i32, i32
  }
}

module attributes {stable_mosaic.version = 11 : i64} {
  func.func @_mm_down_kernel(%arg0: i32, %arg1: memref<32x1152xbf16, #tpu.memory_space<vmem>>, %arg2: memref<1152x128xbf16, #tpu.memory_space<vmem>>, %arg3: memref<1x128xf32, #tpu.memory_space<vmem>>, %arg4: memref<32x128xbf16, #tpu.memory_space<vmem>>, %arg5: memref<128x128xbf16, #tpu.memory_space<vmem>>, %arg6: memref<1x128xf32, #tpu.memory_space<vmem>>, %arg7: memref<32x128xbf16, #tpu.memory_space<vmem>>) attributes {dimension_semantics = [#tpu.dimension_semantics<parallel>], iteration_bounds = array<i64: 1>, scalar_prefetch = 0 : i64, scratch_operands = 0 : i64, tpu.core_type = #tpu.core_type<tc>, window_params = [{transform_indices = @transform_0, window_bounds = array<i64: 32, 1152>}, {pipeline_mode = #tpu.pipeline_mode<synchronous>, transform_indices = @transform_1, window_bounds = array<i64: 1152, 128>}, {pipeline_mode = #tpu.pipeline_mode<synchronous>, transform_indices = @transform_2, window_bounds = array<i64: 1, 128>}, {transform_indices = @transform_3, window_bounds = array<i64: 32, 128>}, {pipeline_mode = #tpu.pipeline_mode<synchronous>, transform_indices = @transform_4, window_bounds = array<i64: 128, 128>}, {pipeline_mode = #tpu.pipeline_mode<synchronous>, transform_indices = @transform_5, window_bounds = array<i64: 1, 128>}, {transform_indices = @transform_6, window_bounds = array<i64: 32, 128>}]} {
    %c0 = arith.constant 0 : index
    %c0_0 = arith.constant 0 : index
    %0 = vector.load %arg1[%c0, %c0_0] : memref<32x1152xbf16, #tpu.memory_space<vmem>>, vector<32x1152xbf16>
    %c0_1 = arith.constant 0 : index
    %c0_2 = arith.constant 0 : index
    %1 = vector.load %arg2[%c0_1, %c0_2] : memref<1152x128xbf16, #tpu.memory_space<vmem>>, vector<1152x128xbf16>
    %cst = arith.constant dense<0.000000e+00> : vector<32x128xf32>
    %2 = tpu.matmul %0, %1, %cst {dimension_numbers = #tpu.dot_dimension_numbers<[1], [0], [0], [1], [0, 0, 1, 1], [], []>} : vector<32x1152xbf16>, vector<1152x128xbf16>, vector<32x128xf32> -> vector<32x128xf32>
    %c0_3 = arith.constant 0 : index
    %c0_4 = arith.constant 0 : index
    %3 = vector.load %arg4[%c0_3, %c0_4] : memref<32x128xbf16, #tpu.memory_space<vmem>>, vector<32x128xbf16>
    %c0_5 = arith.constant 0 : index
    %c0_6 = arith.constant 0 : index
    %4 = vector.load %arg5[%c0_5, %c0_6] : memref<128x128xbf16, #tpu.memory_space<vmem>>, vector<128x128xbf16>
    %cst_7 = arith.constant dense<0.000000e+00> : vector<32x128xf32>
    %5 = tpu.matmul %3, %4, %cst_7 {dimension_numbers = #tpu.dot_dimension_numbers<[1], [0], [0], [1], [0, 0, 1, 1], [], []>} : vector<32x128xbf16>, vector<128x128xbf16>, vector<32x128xf32> -> vector<32x128xf32>
    %c0_8 = arith.constant 0 : index
    %c0_9 = arith.constant 0 : index
    %6 = vector.load %arg3[%c0_8, %c0_9] : memref<1x128xf32, #tpu.memory_space<vmem>>, vector<1x128xf32>
    %7 = vector.broadcast %6 : vector<1x128xf32> to vector<32x128xf32>
    %8 = arith.addf %2, %7 : vector<32x128xf32>
    %9 = arith.addf %8, %5 : vector<32x128xf32>
    %c0_10 = arith.constant 0 : index
    %c0_11 = arith.constant 0 : index
    %10 = vector.load %arg6[%c0_10, %c0_11] : memref<1x128xf32, #tpu.memory_space<vmem>>, vector<1x128xf32>
    %11 = vector.broadcast %10 : vector<1x128xf32> to vector<32x128xf32>
    %12 = arith.addf %9, %11 : vector<32x128xf32>
    %cst_12 = arith.constant 0.000000e+00 : f32
    %13 = vector.broadcast %cst_12 : f32 to vector<32x128xf32>
    %14 = arith.maximumf %12, %13 : vector<32x128xf32>
    %15 = arith.truncf %14 : vector<32x128xf32> to vector<32x128xbf16>
    %c0_13 = arith.constant 0 : index
    %c0_14 = arith.constant 0 : index
    %16 = vector.load %arg7[%c0_13, %c0_14] : memref<32x128xbf16, #tpu.memory_space<vmem>>, vector<32x128xbf16>
    tpu.vector_store %arg7[%c0_13, %c0_14], %15 {strides = array<i32>} : memref<32x128xbf16, #tpu.memory_space<vmem>>, vector<32x128xbf16>,
    return
  }
  func.func @transform_0(%arg0: i32) -> (i32, i32) {
    %c0_i32 = arith.constant 0 : i32
    %c0_i32_0 = arith.constant 0 : i32
    return %arg0, %c0_i32 : i32, i32
  }
  func.func @transform_1(%arg0: i32) -> (i32, i32) {
    %c0_i32 = arith.constant 0 : i32
    %c0_i32_0 = arith.constant 0 : i32
    %c0_i32_1 = arith.constant 0 : i32
    return %c0_i32, %c0_i32_0 : i32, i32
  }
  func.func @transform_2(%arg0: i32) -> (i32, i32) {
    %c0_i32 = arith.constant 0 : i32
    %c0_i32_0 = arith.constant 0 : i32
    %c0_i32_1 = arith.constant 0 : i32
    return %c0_i32, %c0_i32_0 : i32, i32
  }
  func.func @transform_3(%arg0: i32) -> (i32, i32) {
    %c0_i32 = arith.constant 0 : i32
    %c0_i32_0 = arith.constant 0 : i32
    return %arg0, %c0_i32 : i32, i32
  }
  func.func @transform_4(%arg0: i32) -> (i32, i32) {
    %c0_i32 = arith.constant 0 : i32
    %c0_i32_0 = arith.constant 0 : i32
    %c0_i32_1 = arith.constant 0 : i32
    return %c0_i32, %c0_i32_0 : i32, i32
  }
  func.func @transform_5(%arg0: i32) -> (i32, i32) {
    %c0_i32 = arith.constant 0 : i32
    %c0_i32_0 = arith.constant 0 : i32
    %c0_i32_1 = arith.constant 0 : i32
    return %c0_i32, %c0_i32_0 : i32, i32
  }
  func.func @transform_6(%arg0: i32) -> (i32, i32) {
    %c0_i32 = arith.constant 0 : i32
    %c0_i32_0 = arith.constant 0 : i32
    return %arg0, %c0_i32 : i32, i32
  }
}

module attributes {stable_mosaic.version = 11 : i64} {
  func.func @_pool_fc_kernel(%arg0: memref<2x16x128xbf16, #tpu.memory_space<vmem>>, %arg1: memref<128x128xf32, #tpu.memory_space<vmem>>, %arg2: memref<1x128xf32, #tpu.memory_space<vmem>>, %arg3: memref<2x128xf32, #tpu.memory_space<vmem>>) attributes {dimension_semantics = [], scalar_prefetch = 0 : i64, scratch_operands = 0 : i64, tpu.core_type = #tpu.core_type<tc>} {
    %c0 = arith.constant 0 : index
    %c0_0 = arith.constant 0 : index
    %c0_1 = arith.constant 0 : index
    %0 = vector.load %arg0[%c0, %c0_0, %c0_1] : memref<2x16x128xbf16, #tpu.memory_space<vmem>>, vector<2x16x128xbf16>
    %1 = arith.extf %0 : vector<2x16x128xbf16> to vector<2x16x128xf32>
    %cst = arith.constant dense<0.000000e+00> : vector<2x128xf32>
    %2 = vector.multi_reduction <add>, %1, %cst [1] : vector<2x16x128xf32> to vector<2x128xf32>
    %cst_2 = arith.constant 1.600000e+01 : f32
    %3 = vector.broadcast %cst_2 : f32 to vector<2x128xf32>
    %4 = arith.divf %2, %3 : vector<2x128xf32>
    %c0_3 = arith.constant 0 : index
    %c0_4 = arith.constant 0 : index
    %5 = vector.load %arg1[%c0_3, %c0_4] : memref<128x128xf32, #tpu.memory_space<vmem>>, vector<128x128xf32>
    %cst_5 = arith.constant dense<0.000000e+00> : vector<2x128xf32>
    %6 = tpu.matmul %4, %5, %cst_5 {dimension_numbers = #tpu.dot_dimension_numbers<[1], [0], [0], [1], [0, 0, 1, 1], [], []>} : vector<2x128xf32>, vector<128x128xf32>, vector<2x128xf32> -> vector<2x128xf32>
    %c0_6 = arith.constant 0 : index
    %c0_7 = arith.constant 0 : index
    %7 = vector.load %arg2[%c0_6, %c0_7] : memref<1x128xf32, #tpu.memory_space<vmem>>, vector<1x128xf32>
    %8 = vector.broadcast %7 : vector<1x128xf32> to vector<2x128xf32>
    %9 = arith.addf %6, %8 : vector<2x128xf32>
    %c0_8 = arith.constant 0 : index
    %c0_9 = arith.constant 0 : index
    %10 = vector.load %arg3[%c0_8, %c0_9] : memref<2x128xf32, #tpu.memory_space<vmem>>, vector<2x128xf32>
    tpu.vector_store %arg3[%c0_8, %c0_9], %9 {strides = array<i32>} : memref<2x128xf32, #tpu.memory_space<vmem>>, vector<2x128xf32>,
    return
  }
}

</mosaic_0001>

<llo_original>
// kernel: resnet_forward.10
$region0: #{resnet_forward.10}
  #allocation0 [shape = 'u32[]', space=smem, size = 0x4, offset = 0x4, fixed_abs, tag = 'smem constant byte address 0x4 - core index']
  #allocation1 [shape = 'u32[72,128]{1,0:T(1,128)}', space=vmem, size = 0x9000, scoped, tag = 'internal scratch']
  %s0 = inlined_call_operand.vmem [shape: bf16[512,128], index: 0, kind: input, shape index: {}]
  %s1 = inlined_call_operand.vmem [shape: bf16[128,128], index: 1, kind: input, shape index: {}]
  %s2 = inlined_call_operand.vmem [shape: f32[1,128], index: 2, kind: input, shape index: {}]
  %s3 = inlined_call_operand.vmem [shape: bf16[512,128], index: 3, kind: output, shape index: {}]
  %s4 = sld [smem:[#allocation0]]
  $region22: #{resnet_forward.10} parent=0
    _
  %s6 = ssub.s32 1, %s4
  %s7 = scalar_select 0, %s6, %s4
  // Predicated region
  $region2: #{resnet_forward.10} parent=0 // pred_check
    _
  $region3: #{resnet_forward.10} parent=0 // pred_check_branch
    %9 = sbr.rel (0) target = $region5
  $region4: #{resnet_forward.10} parent=0 // pred_region
    _
  $region5: #{resnet_forward.10} parent=0 // pred_fallthru
    _
  // Predicated region
  $region6: #{resnet_forward.10} parent=0 // pred_check
    _
  $region7: #{resnet_forward.10} parent=0 // pred_check_branch
    %11 = sbr.rel (0) target = $region9
  $region8: #{resnet_forward.10} parent=0 // pred_region
    _
  $region9: #{resnet_forward.10} parent=0 // pred_fallthru
    _
  // Predicated region
  $region10: #{resnet_forward.10} parent=0 // pred_check
    _
  $region11: #{resnet_forward.10} parent=0 // pred_check_branch
    %13 = sbr.rel (0) target = $region13
  $region12: #{resnet_forward.10} parent=0 // pred_region
    _
  $region13: #{resnet_forward.10} parent=0 // pred_fallthru
    _
  %v14 = vld [vmem:[%s0] sm:$0xf]
  %v15 = vld [vmem:[%s0 + $0x4] sm:$0xf]
  %v16 = vld [vmem:[%s0 + $0x8] sm:$0xf]
  %v17 = vld [vmem:[%s0 + $0xc] sm:$0xf]
  %v18 = vld [vmem:[%s0 + $0x10] sm:$0xf]
  %v19 = vld [vmem:[%s0 + $0x14] sm:$0xf]
  %v20 = vld [vmem:[%s0 + $0x18] sm:$0xf]
  %v21 = vld [vmem:[%s0 + $0x1c] sm:$0xf]
  %v22 = vld [vmem:[%s0 + $0x20] sm:$0xf]
  %v23 = vld [vmem:[%s0 + $0x24] sm:$0xf]
  %v24 = vld [vmem:[%s0 + $0x28] sm:$0xf]
  %v25 = vld [vmem:[%s0 + $0x2c] sm:$0xf]
  %v26 = vld [vmem:[%s0 + $0x30] sm:$0xf]
  %v27 = vld [vmem:[%s0 + $0x34] sm:$0xf]
  %v28 = vld [vmem:[%s0 + $0x38] sm:$0xf]
  %v29 = vld [vmem:[%s0 + $0x3c] sm:$0xf]
  %v30 = vld [vmem:[%s0 + $0x40] sm:$0xf]
  %v31 = vld [vmem:[%s0 + $0x44] sm:$0xf]
  %v32 = vld [vmem:[%s0 + $0x48] sm:$0xf]
  %v33 = vld [vmem:[%s0 + $0x4c] sm:$0xf]
  %v34 = vld [vmem:[%s0 + $0x50] sm:$0xf]
  %v35 = vld [vmem:[%s0 + $0x54] sm:$0xf]
  %v36 = vld [vmem:[%s0 + $0x58] sm:$0xf]
  %v37 = vld [vmem:[%s0 + $0x5c] sm:$0xf]
  %v38 = vld [vmem:[%s0 + $0x60] sm:$0xf]
  %v39 = vld [vmem:[%s0 + $0x64] sm:$0xf]
  %v40 = vld [vmem:[%s0 + $0x68] sm:$0xf]
  %v41 = vld [vmem:[%s0 + $0x6c] sm:$0xf]
  %v42 = vld [vmem:[%s0 + $0x70] sm:$0xf]
  %v43 = vld [vmem:[%s0 + $0x74] sm:$0xf]
  %v44 = vld [vmem:[%s0 + $0x78] sm:$0xf]
  %v45 = vld [vmem:[%s0 + $0x7c] sm:$0xf]
  %v46 = vld [vmem:[%s0 + $0x80] sm:$0xf]
  %v47 = vld [vmem:[%s0 + $0x84] sm:$0xf]
  %v48 = vld [vmem:[%s0 + $0x88] sm:$0xf]
  %v49 = vld [vmem:[%s0 + $0x8c] sm:$0xf]
  %v50 = vld [vmem:[%s0 + $0x90] sm:$0xf]
  %v51 = vld [vmem:[%s0 + $0x94] sm:$0xf]
  %v52 = vld [vmem:[%s0 + $0x98] sm:$0xf]
  %v53 = vld [vmem:[%s0 + $0x9c] sm:$0xf]
  %v54 = vld [vmem:[%s0 + $0xa0] sm:$0xf]
  %v55 = vld [vmem:[%s0 + $0xa4] sm:$0xf]
  %v56 = vld [vmem:[%s0 + $0xa8] sm:$0xf]
  %v57 = vld [vmem:[%s0 + $0xac] sm:$0xf]
  %v58 = vld [vmem:[%s0 + $0xb0] sm:$0xf]
  %v59 = vld [vmem:[%s0 + $0xb4] sm:$0xf]
  %v60 = vld [vmem:[%s0 + $0xb8] sm:$0xf]
  %v61 = vld [vmem:[%s0 + $0xbc] sm:$0xf]
  %v62 = vld [vmem:[%s0 + $0xc0] sm:$0xf]
  %v63 = vld [vmem:[%s0 + $0xc4] sm:$0xf]
  %v64 = vld [vmem:[%s0 + $0xc8] sm:$0xf]
  %v65 = vld [vmem:[%s0 + $0xcc] sm:$0xf]
  %v66 = vld [vmem:[%s0 + $0xd0] sm:$0xf]
  %v67 = vld [vmem:[%s0 + $0xd4] sm:$0xf]
  %v68 = vld [vmem:[%s0 + $0xd8] sm:$0xf]
  %v69 = vld [vmem:[%s0 + $0xdc] sm:$0xf]
  %v70 = vld [vmem:[%s0 + $0xe0] sm:$0xf]
  %v71 = vld [vmem:[%s0 + $0xe4] sm:$0xf]
  %v72 = vld [vmem:[%s0 + $0xe8] sm:$0xf]
  %v73 = vld [vmem:[%s0 + $0xec] sm:$0xf]
  %v74 = vld [vmem:[%s0 + $0xf0] sm:$0xf]
  %v75 = vld [vmem:[%s0 + $0xf4] sm:$0xf]
  %v76 = vld [vmem:[%s0 + $0xf8] sm:$0xf]
  %v77 = vld [vmem:[%s0 + $0xfc] sm:$0xf]
  %v78 = vld [vmem:[%s1] sm:$0xf]
  %v79 = vld [vmem:[%s1 + $0x4] sm:$0xf]
  %v80 = vld [vmem:[%s1 + $0x8] sm:$0xf]
  %v81 = vld [vmem:[%s1 + $0xc] sm:$0xf]
  %v82 = vld [vmem:[%s1 + $0x10] sm:$0xf]
  %v83 = vld [vmem:[%s1 + $0x14] sm:$0xf]
  %v84 = vld [vmem:[%s1 + $0x18] sm:$0xf]
  %v85 = vld [vmem:[%s1 + $0x1c] sm:$0xf]
  %v86 = vld [vmem:[%s1 + $0x20] sm:$0xf]
  %v87 = vld [vmem:[%s1 + $0x24] sm:$0xf]
  %v88 = vld [vmem:[%s1 + $0x28] sm:$0xf]
  %v89 = vld [vmem:[%s1 + $0x2c] sm:$0xf]
  %v90 = vld [vmem:[%s1 + $0x30] sm:$0xf]
  %v91 = vld [vmem:[%s1 + $0x34] sm:$0xf]
  %v92 = vld [vmem:[%s1 + $0x38] sm:$0xf]
  %v93 = vld [vmem:[%s1 + $0x3c] sm:$0xf]
  %v94 = vld [vmem:[%s2] sm:$0x1]
  %v96 = vperm.slane %v94, 0
  %v162 = vunpack.c.l.b16 %v14
  %v163 = vunpack.c.l.b16 %v15
  %v164 = vunpack.c.l.b16 %v16
  %v165 = vunpack.c.l.b16 %v17
  %v166 = vunpack.c.l.b16 %v18
  %v167 = vunpack.c.l.b16 %v19
  %v168 = vunpack.c.l.b16 %v20
  %v169 = vunpack.c.l.b16 %v21
  %v170 = vunpack.c.l.b16 %v22
  %v171 = vunpack.c.l.b16 %v23
  %v172 = vunpack.c.l.b16 %v24
  %v173 = vunpack.c.l.b16 %v25
  %v174 = vunpack.c.l.b16 %v26
  %v175 = vunpack.c.l.b16 %v27
  %v176 = vunpack.c.l.b16 %v28
  %v177 = vunpack.c.l.b16 %v29
  %v178 = vunpack.c.l.b16 %v30
  %v179 = vunpack.c.l.b16 %v31
  %v180 = vunpack.c.l.b16 %v32
  %v181 = vunpack.c.l.b16 %v33
  %v182 = vunpack.c.l.b16 %v34
  %v183 = vunpack.c.l.b16 %v35
  %v184 = vunpack.c.l.b16 %v36
  %v185 = vunpack.c.l.b16 %v37
  %v186 = vunpack.c.l.b16 %v38
  %v187 = vunpack.c.l.b16 %v39
  %v188 = vunpack.c.l.b16 %v40
  %v189 = vunpack.c.l.b16 %v41
  %v190 = vunpack.c.l.b16 %v42
  %v191 = vunpack.c.l.b16 %v43
  %v192 = vunpack.c.l.b16 %v44
  %v193 = vunpack.c.l.b16 %v45
  %v194 = vunpack.c.l.b16 %v46
  %v195 = vunpack.c.l.b16 %v47
  %v196 = vunpack.c.l.b16 %v48
  %v197 = vunpack.c.l.b16 %v49
  %v198 = vunpack.c.l.b16 %v50
  %v199 = vunpack.c.l.b16 %v51
  %v200 = vunpack.c.l.b16 %v52
  %v201 = vunpack.c.l.b16 %v53
  %v202 = vunpack.c.l.b16 %v54
  %v203 = vunpack.c.l.b16 %v55
  %v204 = vunpack.c.l.b16 %v56
  %v205 = vunpack.c.l.b16 %v57
  %v206 = vunpack.c.l.b16 %v58
  %v207 = vunpack.c.l.b16 %v59
  %v208 = vunpack.c.l.b16 %v60
  %v209 = vunpack.c.l.b16 %v61
  %v210 = vunpack.c.l.b16 %v62
  %v211 = vunpack.c.l.b16 %v63
  %v212 = vunpack.c.l.b16 %v64
  %v213 = vunpack.c.l.b16 %v65
  %v214 = vunpack.c.l.b16 %v66
  %v215 = vunpack.c.l.b16 %v67
  %v216 = vunpack.c.l.b16 %v68
  %v217 = vunpack.c.l.b16 %v69
  %v218 = vunpack.c.l.b16 %v70
  %v219 = vunpack.c.l.b16 %v71
  %v220 = vunpack.c.l.b16 %v72
  %v221 = vunpack.c.l.b16 %v73
  %v222 = vunpack.c.l.b16 %v74
  %v223 = vunpack.c.l.b16 %v75
  %v224 = vunpack.c.l.b16 %v76
  %v225 = vunpack.c.l.b16 %v77
  %v226 = vpack.c.b16 %v163, %v162
  %v227 = vpack.c.b16 %v165, %v164
  %v228 = vpack.c.b16 %v167, %v166
  %v229 = vpack.c.b16 %v169, %v168
  %v230 = vpack.c.b16 %v171, %v170
  %v231 = vpack.c.b16 %v173, %v172
  %v232 = vpack.c.b16 %v175, %v174
  %v233 = vpack.c.b16 %v177, %v176
  %v234 = vpack.c.b16 %v179, %v178
  %v235 = vpack.c.b16 %v181, %v180
  %v236 = vpack.c.b16 %v183, %v182
  %v237 = vpack.c.b16 %v185, %v184
  %v238 = vpack.c.b16 %v187, %v186
  %v239 = vpack.c.b16 %v189, %v188
  %v240 = vpack.c.b16 %v191, %v190
  %v241 = vpack.c.b16 %v193, %v192
  %v242 = vpack.c.b16 %v195, %v194
  %v243 = vpack.c.b16 %v197, %v196
  %v244 = vpack.c.b16 %v199, %v198
  %v245 = vpack.c.b16 %v201, %v200
  %v246 = vpack.c.b16 %v203, %v202
  %v247 = vpack.c.b16 %v205, %v204
  %v248 = vpack.c.b16 %v207, %v206
  %v249 = vpack.c.b16 %v209, %v208
  %v250 = vpack.c.b16 %v211, %v210
  %v251 = vpack.c.b16 %v213, %v212
  %v252 = vpack.c.b16 %v215, %v214
  %v253 = vpack.c.b16 %v217, %v216
  %v254 = vpack.c.b16 %v219, %v218
  %v255 = vpack.c.b16 %v221, %v220
  %v256 = vpack.c.b16 %v223, %v222
  %v257 = vpack.c.b16 %v225, %v224
  %v306 = vunpack.c.l.b16 %v78
  %v307 = vunpack.c.l.b16 %v79
  %v308 = vunpack.c.l.b16 %v80
  %v309 = vunpack.c.l.b16 %v81
  %v310 = vunpack.c.l.b16 %v82
  %v311 = vunpack.c.l.b16 %v83
  %v312 = vunpack.c.l.b16 %v84
  %v313 = vunpack.c.l.b16 %v85
  %v314 = vunpack.c.l.b16 %v86
  %v315 = vunpack.c.l.b16 %v87
  %v316 = vunpack.c.l.b16 %v88
  %v317 = vunpack.c.l.b16 %v89
  %v318 = vunpack.c.l.b16 %v90
  %v319 = vunpack.c.l.b16 %v91
  %v320 = vunpack.c.l.b16 %v92
  %v321 = vunpack.c.l.b16 %v93
  %v322 = vpack.c.b16 %v307, %v306
  %v323 = vpack.c.b16 %v309, %v308
  %v324 = vpack.c.b16 %v311, %v310
  %v325 = vpack.c.b16 %v313, %v312
  %v326 = vpack.c.b16 %v315, %v314
  %v327 = vpack.c.b16 %v317, %v316
  %v328 = vpack.c.b16 %v319, %v318
  %v329 = vpack.c.b16 %v321, %v320
  %338 = vmatpush.bf16.msra.mxu0 %v329
  %339 = vmatpush.bf16.msra.mxu0 %v328
  %340 = vmatpush.bf16.msra.mxu0 %v327
  %341 = vmatpush.bf16.msra.mxu0 %v326
  %342 = vmatpush.bf16.msra.mxu0 %v325
  %343 = vmatpush.bf16.msra.mxu0 %v324
  %344 = vmatpush.bf16.msra.mxu0 %v323
  %345 = vmatpush.bf16.msra.mxu0 %v322
  %346 = vmatmul.bf16.gmra.mxu0 %v226
  %v347 = vpop.f32.mrf.mxu0
  %v348 = vadd.f32 %v96, %v347
  %v349 = vpop.f32.mrf.mxu0
  %v350 = vadd.f32 %v96, %v349
  %351 = vmatmul.bf16.gmra.mxu0 %v227
  %v352 = vpop.f32.mrf.mxu0
  %v353 = vadd.f32 %v96, %v352
  %v354 = vpop.f32.mrf.mxu0
  %v355 = vadd.f32 %v96, %v354
  %356 = vmatmul.bf16.gmra.mxu0 %v228
  %v357 = vpop.f32.mrf.mxu0
  %v358 = vadd.f32 %v96, %v357
  %v359 = vpop.f32.mrf.mxu0
  %v360 = vadd.f32 %v96, %v359
  %361 = vmatmul.bf16.gmra.mxu0 %v229
  %v362 = vpop.f32.mrf.mxu0
  %v363 = vadd.f32 %v96, %v362
  %v364 = vpop.f32.mrf.mxu0
  %v365 = vadd.f32 %v96, %v364
  %366 = vmatmul.bf16.gmra.mxu0 %v230
  %v367 = vpop.f32.mrf.mxu0
  %v368 = vadd.f32 %v96, %v367
  %v369 = vpop.f32.mrf.mxu0
  %v370 = vadd.f32 %v96, %v369
  %371 = vmatmul.bf16.gmra.mxu0 %v231
  %v372 = vpop.f32.mrf.mxu0
  %v373 = vadd.f32 %v96, %v372
  %v374 = vpop.f32.mrf.mxu0
  %v375 = vadd.f32 %v96, %v374
  %376 = vmatmul.bf16.gmra.mxu0 %v232
  %v377 = vpop.f32.mrf.mxu0
  %v378 = vadd.f32 %v96, %v377
  %v379 = vpop.f32.mrf.mxu0
  %v380 = vadd.f32 %v96, %v379
  %381 = vmatmul.bf16.gmra.mxu0 %v233
  %v382 = vpop.f32.mrf.mxu0
  %v383 = vadd.f32 %v96, %v382
  %v384 = vpop.f32.mrf.mxu0
  %v385 = vadd.f32 %v96, %v384
  %386 = vmatmul.bf16.gmra.mxu0 %v234
  %v387 = vpop.f32.mrf.mxu0
  %v388 = vadd.f32 %v96, %v387
  %v389 = vpop.f32.mrf.mxu0
  %v390 = vadd.f32 %v96, %v389
  %391 = vmatmul.bf16.gmra.mxu0 %v235
  %v392 = vpop.f32.mrf.mxu0
  %v393 = vadd.f32 %v96, %v392
  %v394 = vpop.f32.mrf.mxu0
  %v395 = vadd.f32 %v96, %v394
  %396 = vmatmul.bf16.gmra.mxu0 %v236
  %v397 = vpop.f32.mrf.mxu0
  %v398 = vadd.f32 %v96, %v397
  %v399 = vpop.f32.mrf.mxu0
  %v400 = vadd.f32 %v96, %v399
  %401 = vmatmul.bf16.gmra.mxu0 %v237
  %v402 = vpop.f32.mrf.mxu0
  %v403 = vadd.f32 %v96, %v402
  %v404 = vpop.f32.mrf.mxu0
  %v405 = vadd.f32 %v96, %v404
  %406 = vmatmul.bf16.gmra.mxu0 %v238
  %v407 = vpop.f32.mrf.mxu0
  %v408 = vadd.f32 %v96, %v407
  %v409 = vpop.f32.mrf.mxu0
  %v410 = vadd.f32 %v96, %v409
  %411 = vmatmul.bf16.gmra.mxu0 %v239
  %v412 = vpop.f32.mrf.mxu0
  %v413 = vadd.f32 %v96, %v412
  %v414 = vpop.f32.mrf.mxu0
  %v415 = vadd.f32 %v96, %v414
  %416 = vmatmul.bf16.gmra.mxu0 %v240
  %v417 = vpop.f32.mrf.mxu0
  %v418 = vadd.f32 %v96, %v417
  %v419 = vpop.f32.mrf.mxu0
  %v420 = vadd.f32 %v96, %v419
  %421 = vmatmul.bf16.gmra.mxu0 %v241
  %v422 = vpop.f32.mrf.mxu0
  %v423 = vadd.f32 %v96, %v422
  %v424 = vpop.f32.mrf.mxu0
  %v425 = vadd.f32 %v96, %v424
  %426 = vmatmul.bf16.gmra.mxu0 %v242
  %v427 = vpop.f32.mrf.mxu0
  %v428 = vadd.f32 %v96, %v427
  %v429 = vpop.f32.mrf.mxu0
  %v430 = vadd.f32 %v96, %v429
  %431 = vmatmul.bf16.gmra.mxu0 %v243
  %v432 = vpop.f32.mrf.mxu0
  %v433 = vadd.f32 %v96, %v432
  %v434 = vpop.f32.mrf.mxu0
  %v435 = vadd.f32 %v96, %v434
  %436 = vmatmul.bf16.gmra.mxu0 %v244
  %v437 = vpop.f32.mrf.mxu0
  %v438 = vadd.f32 %v96, %v437
  %v439 = vpop.f32.mrf.mxu0
  %v440 = vadd.f32 %v96, %v439
  %441 = vmatmul.bf16.gmra.mxu0 %v245
  %v442 = vpop.f32.mrf.mxu0
  %v443 = vadd.f32 %v96, %v442
  %v444 = vpop.f32.mrf.mxu0
  %v445 = vadd.f32 %v96, %v444
  %446 = vmatmul.bf16.gmra.mxu0 %v246
  %v447 = vpop.f32.mrf.mxu0
  %v448 = vadd.f32 %v96, %v447
  %v449 = vpop.f32.mrf.mxu0
  %v450 = vadd.f32 %v96, %v449
  %451 = vmatmul.bf16.gmra.mxu0 %v247
  %v452 = vpop.f32.mrf.mxu0
  %v453 = vadd.f32 %v96, %v452
  %v454 = vpop.f32.mrf.mxu0
  %v455 = vadd.f32 %v96, %v454
  %456 = vmatmul.bf16.gmra.mxu0 %v248
  %v457 = vpop.f32.mrf.mxu0
  %v458 = vadd.f32 %v96, %v457
  %v459 = vpop.f32.mrf.mxu0
  %v460 = vadd.f32 %v96, %v459
  %461 = vmatmul.bf16.gmra.mxu0 %v249
  %v462 = vpop.f32.mrf.mxu0
  %v463 = vadd.f32 %v96, %v462
  %v464 = vpop.f32.mrf.mxu0
  %v465 = vadd.f32 %v96, %v464
  %466 = vmatmul.bf16.gmra.mxu0 %v250
  %v467 = vpop.f32.mrf.mxu0
  %v468 = vadd.f32 %v96, %v467
  %v469 = vpop.f32.mrf.mxu0
  %v470 = vadd.f32 %v96, %v469
  %471 = vmatmul.bf16.gmra.mxu0 %v251
  %v472 = vpop.f32.mrf.mxu0
  %v473 = vadd.f32 %v96, %v472
  %v474 = vpop.f32.mrf.mxu0
  %v475 = vadd.f32 %v96, %v474
  %476 = vmatmul.bf16.gmra.mxu0 %v252
  %v477 = vpop.f32.mrf.mxu0
  %v478 = vadd.f32 %v96, %v477
  %v479 = vpop.f32.mrf.mxu0
  %v480 = vadd.f32 %v96, %v479
  %481 = vmatmul.bf16.gmra.mxu0 %v253
  %v482 = vpop.f32.mrf.mxu0
  %v483 = vadd.f32 %v96, %v482
  %v484 = vpop.f32.mrf.mxu0
  %v485 = vadd.f32 %v96, %v484
  %486 = vmatmul.bf16.gmra.mxu0 %v254
  %v487 = vpop.f32.mrf.mxu0
  %v488 = vadd.f32 %v96, %v487
  %v489 = vpop.f32.mrf.mxu0
  %v490 = vadd.f32 %v96, %v489
  %491 = vmatmul.bf16.gmra.mxu0 %v255
  %v492 = vpop.f32.mrf.mxu0
  %v493 = vadd.f32 %v96, %v492
  %v494 = vpop.f32.mrf.mxu0
  %v495 = vadd.f32 %v96, %v494
  %496 = vmatmul.bf16.gmra.mxu0 %v256
  %v497 = vpop.f32.mrf.mxu0
  %v498 = vadd.f32 %v96, %v497
  %v499 = vpop.f32.mrf.mxu0
  %v500 = vadd.f32 %v96, %v499
  %501 = vmatmul.bf16.gmra.mxu0 %v257
  %v502 = vpop.f32.mrf.mxu0
  %v503 = vadd.f32 %v96, %v502
  %v504 = vpop.f32.mrf.mxu0
  %v505 = vadd.f32 %v96, %v504
  %506 = vdwg.mxu0
  %v507 = vmax.f32 %v348, 0.0
  %v508 = vmax.f32 %v350, 0.0
  %v509 = vmax.f32 %v353, 0.0
  %v510 = vmax.f32 %v355, 0.0
  %v511 = vmax.f32 %v358, 0.0
  %v512 = vmax.f32 %v360, 0.0
  %v513 = vmax.f32 %v363, 0.0
  %v514 = vmax.f32 %v365, 0.0
  %v515 = vmax.f32 %v368, 0.0
  %v516 = vmax.f32 %v370, 0.0
  %v517 = vmax.f32 %v373, 0.0
  %v518 = vmax.f32 %v375, 0.0
  %v519 = vmax.f32 %v378, 0.0
  %v520 = vmax.f32 %v380, 0.0
  %v521 = vmax.f32 %v383, 0.0
  %v522 = vmax.f32 %v385, 0.0
  %v523 = vmax.f32 %v388, 0.0
  %v524 = vmax.f32 %v390, 0.0
  %v525 = vmax.f32 %v393, 0.0
  %v526 = vmax.f32 %v395, 0.0
  %v527 = vmax.f32 %v398, 0.0
  %v528 = vmax.f32 %v400, 0.0
  %v529 = vmax.f32 %v403, 0.0
  %v530 = vmax.f32 %v405, 0.0
  %v531 = vmax.f32 %v408, 0.0
  %v532 = vmax.f32 %v410, 0.0
  %v533 = vmax.f32 %v413, 0.0
  %v534 = vmax.f32 %v415, 0.0
  %v535 = vmax.f32 %v418, 0.0
  %v536 = vmax.f32 %v420, 0.0
  %v537 = vmax.f32 %v423, 0.0
  %v538 = vmax.f32 %v425, 0.0
  %v539 = vmax.f32 %v428, 0.0
  %v540 = vmax.f32 %v430, 0.0
  %v541 = vmax.f32 %v433, 0.0
  %v542 = vmax.f32 %v435, 0.0
  %v543 = vmax.f32 %v438, 0.0
  %v544 = vmax.f32 %v440, 0.0
  %v545 = vmax.f32 %v443, 0.0
  %v546 = vmax.f32 %v445, 0.0
  %v547 = vmax.f32 %v448, 0.0
  %v548 = vmax.f32 %v450, 0.0
  %v549 = vmax.f32 %v453, 0.0
  %v550 = vmax.f32 %v455, 0.0
  %v551 = vmax.f32 %v458, 0.0
  %v552 = vmax.f32 %v460, 0.0
  %v553 = vmax.f32 %v463, 0.0
  %v554 = vmax.f32 %v465, 0.0
  %v555 = vmax.f32 %v468, 0.0
  %v556 = vmax.f32 %v470, 0.0
  %v557 = vmax.f32 %v473, 0.0
  %v558 = vmax.f32 %v475, 0.0
  %v559 = vmax.f32 %v478, 0.0
  %v560 = vmax.f32 %v480, 0.0
  %v561 = vmax.f32 %v483, 0.0
  %v562 = vmax.f32 %v485, 0.0
  %v563 = vmax.f32 %v488, 0.0
  %v564 = vmax.f32 %v490, 0.0
  %v565 = vmax.f32 %v493, 0.0
  %v566 = vmax.f32 %v495, 0.0
  %v567 = vmax.f32 %v498, 0.0
  %v568 = vmax.f32 %v500, 0.0
  %v569 = vmax.f32 %v503, 0.0
  %v570 = vmax.f32 %v505, 0.0
  %v571 = vpack.c.bf16 %v507, %v507
  %v572 = vpack.c.bf16 %v508, %v508
  %v573 = vpack.c.bf16 %v509, %v509
  %v574 = vpack.c.bf16 %v510, %v510
  %v575 = vpack.c.bf16 %v511, %v511
  %v576 = vpack.c.bf16 %v512, %v512
  %v577 = vpack.c.bf16 %v513, %v513
  %v578 = vpack.c.bf16 %v514, %v514
  %v579 = vpack.c.bf16 %v515, %v515
  %v580 = vpack.c.bf16 %v516, %v516
  %v581 = vpack.c.bf16 %v517, %v517
  %v582 = vpack.c.bf16 %v518, %v518
  %v583 = vpack.c.bf16 %v519, %v519
  %v584 = vpack.c.bf16 %v520, %v520
  %v585 = vpack.c.bf16 %v521, %v521
  %v586 = vpack.c.bf16 %v522, %v522
  %v587 = vpack.c.bf16 %v523, %v523
  %v588 = vpack.c.bf16 %v524, %v524
  %v589 = vpack.c.bf16 %v525, %v525
  %v590 = vpack.c.bf16 %v526, %v526
  %v591 = vpack.c.bf16 %v527, %v527
  %v592 = vpack.c.bf16 %v528, %v528
  %v593 = vpack.c.bf16 %v529, %v529
  %v594 = vpack.c.bf16 %v530, %v530
  %v595 = vpack.c.bf16 %v531, %v531
  %v596 = vpack.c.bf16 %v532, %v532
  %v597 = vpack.c.bf16 %v533, %v533
  %v598 = vpack.c.bf16 %v534, %v534
  %v599 = vpack.c.bf16 %v535, %v535
  %v600 = vpack.c.bf16 %v536, %v536
  %v601 = vpack.c.bf16 %v537, %v537
  %v602 = vpack.c.bf16 %v538, %v538
  %v603 = vpack.c.bf16 %v539, %v539
  %v604 = vpack.c.bf16 %v540, %v540
  %v605 = vpack.c.bf16 %v541, %v541
  %v606 = vpack.c.bf16 %v542, %v542
  %v607 = vpack.c.bf16 %v543, %v543
  %v608 = vpack.c.bf16 %v544, %v544
  %v609 = vpack.c.bf16 %v545, %v545
  %v610 = vpack.c.bf16 %v546, %v546
  %v611 = vpack.c.bf16 %v547, %v547
  %v612 = vpack.c.bf16 %v548, %v548
  %v613 = vpack.c.bf16 %v549, %v549
  %v614 = vpack.c.bf16 %v550, %v550
  %v615 = vpack.c.bf16 %v551, %v551
  %v616 = vpack.c.bf16 %v552, %v552
  %v617 = vpack.c.bf16 %v553, %v553
  %v618 = vpack.c.bf16 %v554, %v554
  %v619 = vpack.c.bf16 %v555, %v555
  %v620 = vpack.c.bf16 %v556, %v556
  %v621 = vpack.c.bf16 %v557, %v557
  %v622 = vpack.c.bf16 %v558, %v558
  %v623 = vpack.c.bf16 %v559, %v559
  %v624 = vpack.c.bf16 %v560, %v560
  %v625 = vpack.c.bf16 %v561, %v561
  %v626 = vpack.c.bf16 %v562, %v562
  %v627 = vpack.c.bf16 %v563, %v563
  %v628 = vpack.c.bf16 %v564, %v564
  %v629 = vpack.c.bf16 %v565, %v565
  %v630 = vpack.c.bf16 %v566, %v566
  %v631 = vpack.c.bf16 %v567, %v567
  %v632 = vpack.c.bf16 %v568, %v568
  %v633 = vpack.c.bf16 %v569, %v569
  %v634 = vpack.c.bf16 %v570, %v570
  %635 = vst [vmem:[%s3] sm:$0xf] %v571
  %636 = vst [vmem:[%s3 + $0x4] sm:$0xf] %v572
  %637 = vst [vmem:[%s3 + $0x8] sm:$0xf] %v573
  %638 = vst [vmem:[%s3 + $0xc] sm:$0xf] %v574
  %639 = vst [vmem:[%s3 + $0x10] sm:$0xf] %v575
  %640 = vst [vmem:[%s3 + $0x14] sm:$0xf] %v576
  %641 = vst [vmem:[%s3 + $0x18] sm:$0xf] %v577
  %642 = vst [vmem:[%s3 + $0x1c] sm:$0xf] %v578
  %643 = vst [vmem:[%s3 + $0x20] sm:$0xf] %v579
  %644 = vst [vmem:[%s3 + $0x24] sm:$0xf] %v580
  %645 = vst [vmem:[%s3 + $0x28] sm:$0xf] %v581
  %646 = vst [vmem:[%s3 + $0x2c] sm:$0xf] %v582
  %647 = vst [vmem:[%s3 + $0x30] sm:$0xf] %v583
  %648 = vst [vmem:[%s3 + $0x34] sm:$0xf] %v584
  %649 = vst [vmem:[%s3 + $0x38] sm:$0xf] %v585
  %650 = vst [vmem:[%s3 + $0x3c] sm:$0xf] %v586
  %651 = vst [vmem:[%s3 + $0x40] sm:$0xf] %v587
  %652 = vst [vmem:[%s3 + $0x44] sm:$0xf] %v588
  %653 = vst [vmem:[%s3 + $0x48] sm:$0xf] %v589
  %654 = vst [vmem:[%s3 + $0x4c] sm:$0xf] %v590
  %655 = vst [vmem:[%s3 + $0x50] sm:$0xf] %v591
  %656 = vst [vmem:[%s3 + $0x54] sm:$0xf] %v592
  %657 = vst [vmem:[%s3 + $0x58] sm:$0xf] %v593
  %658 = vst [vmem:[%s3 + $0x5c] sm:$0xf] %v594
  %659 = vst [vmem:[%s3 + $0x60] sm:$0xf] %v595
  %660 = vst [vmem:[%s3 + $0x64] sm:$0xf] %v596
  %661 = vst [vmem:[%s3 + $0x68] sm:$0xf] %v597
  %662 = vst [vmem:[%s3 + $0x6c] sm:$0xf] %v598
  %663 = vst [vmem:[%s3 + $0x70] sm:$0xf] %v599
  %664 = vst [vmem:[%s3 + $0x74] sm:$0xf] %v600
  %665 = vst [vmem:[%s3 + $0x78] sm:$0xf] %v601
  %666 = vst [vmem:[%s3 + $0x7c] sm:$0xf] %v602
  %667 = vst [vmem:[%s3 + $0x80] sm:$0xf] %v603
  %668 = vst [vmem:[%s3 + $0x84] sm:$0xf] %v604
  %669 = vst [vmem:[%s3 + $0x88] sm:$0xf] %v605
  %670 = vst [vmem:[%s3 + $0x8c] sm:$0xf] %v606
  %671 = vst [vmem:[%s3 + $0x90] sm:$0xf] %v607
  %672 = vst [vmem:[%s3 + $0x94] sm:$0xf] %v608
  %673 = vst [vmem:[%s3 + $0x98] sm:$0xf] %v609
  %674 = vst [vmem:[%s3 + $0x9c] sm:$0xf] %v610
  %675 = vst [vmem:[%s3 + $0xa0] sm:$0xf] %v611
  %676 = vst [vmem:[%s3 + $0xa4] sm:$0xf] %v612
  %677 = vst [vmem:[%s3 + $0xa8] sm:$0xf] %v613
  %678 = vst [vmem:[%s3 + $0xac] sm:$0xf] %v614
  %679 = vst [vmem:[%s3 + $0xb0] sm:$0xf] %v615
  %680 = vst [vmem:[%s3 + $0xb4] sm:$0xf] %v616
  %681 = vst [vmem:[%s3 + $0xb8] sm:$0xf] %v617
  %682 = vst [vmem:[%s3 + $0xbc] sm:$0xf] %v618
  %683 = vst [vmem:[%s3 + $0xc0] sm:$0xf] %v619
  %684 = vst [vmem:[%s3 + $0xc4] sm:$0xf] %v620
  %685 = vst [vmem:[%s3 + $0xc8] sm:$0xf] %v621
  %686 = vst [vmem:[%s3 + $0xcc] sm:$0xf] %v622
  %687 = vst [vmem:[%s3 + $0xd0] sm:$0xf] %v623
  %688 = vst [vmem:[%s3 + $0xd4] sm:$0xf] %v624
  %689 = vst [vmem:[%s3 + $0xd8] sm:$0xf] %v625
  %690 = vst [vmem:[%s3 + $0xdc] sm:$0xf] %v626
  %691 = vst [vmem:[%s3 + $0xe0] sm:$0xf] %v627
  %692 = vst [vmem:[%s3 + $0xe4] sm:$0xf] %v628
  %693 = vst [vmem:[%s3 + $0xe8] sm:$0xf] %v629
  %694 = vst [vmem:[%s3 + $0xec] sm:$0xf] %v630
  %695 = vst [vmem:[%s3 + $0xf0] sm:$0xf] %v631
  %696 = vst [vmem:[%s3 + $0xf4] sm:$0xf] %v632
  %697 = vst [vmem:[%s3 + $0xf8] sm:$0xf] %v633
  %698 = vst [vmem:[%s3 + $0xfc] sm:$0xf] %v634
  // Predicated region
  $region14: #{resnet_forward.10} parent=0 // pred_check
    _
  $region15: #{resnet_forward.10} parent=0 // pred_check_branch
    %700 = sbr.rel (0) target = $region17
  $region16: #{resnet_forward.10} parent=0 // pred_region
    _
  $region17: #{resnet_forward.10} parent=0 // pred_fallthru
    _
  // Predicated region
  $region18: #{resnet_forward.10} parent=0 // pred_check
    _
  $region19: #{resnet_forward.10} parent=0 // pred_check_branch
    %702 = sbr.rel (0) target = $region21
  $region20: #{resnet_forward.10} parent=0 // pred_region
    _
  $region21: #{resnet_forward.10} parent=0 // pred_fallthru
    _

// kernel: resnet_forward.11
$region0: #{resnet_forward.11}
  #allocation0 [shape = 'u32[]', space=smem, size = 0x4, offset = 0x4, fixed_abs, tag = 'smem constant byte address 0x4 - core index']
  #allocation1 [shape = 'u32[72,128]{1,0:T(1,128)}', space=vmem, size = 0x9000, scoped, tag = 'internal scratch']
  %s0 = inlined_call_operand.vmem [shape: bf16[512,256], index: 0, kind: input, shape index: {}]
  %s1 = inlined_call_operand.vmem [shape: bf16[256,128], index: 1, kind: input, shape index: {}]
  %s2 = inlined_call_operand.vmem [shape: f32[1,128], index: 2, kind: input, shape index: {}]
  %s3 = inlined_call_operand.vmem [shape: bf16[512,128], index: 3, kind: output, shape index: {}]
  %s4 = sld [smem:[#allocation0]]
  $region22: #{resnet_forward.11} parent=0
    _
  %s6 = ssub.s32 1, %s4
  %s7 = scalar_select 0, %s6, %s4
  // Predicated region
  $region2: #{resnet_forward.11} parent=0 // pred_check
    _
  $region3: #{resnet_forward.11} parent=0 // pred_check_branch
    %9 = sbr.rel (0) target = $region5
  $region4: #{resnet_forward.11} parent=0 // pred_region
    _
  $region5: #{resnet_forward.11} parent=0 // pred_fallthru
    _
  // Predicated region
  $region6: #{resnet_forward.11} parent=0 // pred_check
    _
  $region7: #{resnet_forward.11} parent=0 // pred_check_branch
    %11 = sbr.rel (0) target = $region9
  $region8: #{resnet_forward.11} parent=0 // pred_region
    _
  $region9: #{resnet_forward.11} parent=0 // pred_fallthru
    _
  // Predicated region
  $region10: #{resnet_forward.11} parent=0 // pred_check
    _
  $region11: #{resnet_forward.11} parent=0 // pred_check_branch
    %13 = sbr.rel (0) target = $region13
  $region12: #{resnet_forward.11} parent=0 // pred_region
    _
  $region13: #{resnet_forward.11} parent=0 // pred_fallthru
    _
  %v14 = vld [vmem:[%s0] sm:$0xff]
  %v15 = vld [vmem:[%s0 + $0x8] sm:$0xff]
  %v16 = vld [vmem:[%s0 + $0x10] sm:$0xff]
  %v17 = vld [vmem:[%s0 + $0x18] sm:$0xff]
  %v18 = vld [vmem:[%s0 + $0x20] sm:$0xff]
  %v19 = vld [vmem:[%s0 + $0x28] sm:$0xff]
  %v20 = vld [vmem:[%s0 + $0x30] sm:$0xff]
  %v21 = vld [vmem:[%s0 + $0x38] sm:$0xff]
  %v22 = vld [vmem:[%s0 + $0x40] sm:$0xff]
  %v23 = vld [vmem:[%s0 + $0x48] sm:$0xff]
  %v24 = vld [vmem:[%s0 + $0x50] sm:$0xff]
  %v25 = vld [vmem:[%s0 + $0x58] sm:$0xff]
  %v26 = vld [vmem:[%s0 + $0x60] sm:$0xff]
  %v27 = vld [vmem:[%s0 + $0x68] sm:$0xff]
  %v28 = vld [vmem:[%s0 + $0x70] sm:$0xff]
  %v29 = vld [vmem:[%s0 + $0x78] sm:$0xff]
  %v30 = vld [vmem:[%s0 + $0x80] sm:$0xff]
  %v31 = vld [vmem:[%s0 + $0x88] sm:$0xff]
  %v32 = vld [vmem:[%s0 + $0x90] sm:$0xff]
  %v33 = vld [vmem:[%s0 + $0x98] sm:$0xff]
  %v34 = vld [vmem:[%s0 + $0xa0] sm:$0xff]
  %v35 = vld [vmem:[%s0 + $0xa8] sm:$0xff]
  %v36 = vld [vmem:[%s0 + $0xb0] sm:$0xff]
  %v37 = vld [vmem:[%s0 + $0xb8] sm:$0xff]
  %v38 = vld [vmem:[%s0 + $0xc0] sm:$0xff]
  %v39 = vld [vmem:[%s0 + $0xc8] sm:$0xff]
  %v40 = vld [vmem:[%s0 + $0xd0] sm:$0xff]
  %v41 = vld [vmem:[%s0 + $0xd8] sm:$0xff]
  %v42 = vld [vmem:[%s0 + $0xe0] sm:$0xff]
  %v43 = vld [vmem:[%s0 + $0xe8] sm:$0xff]
  %v44 = vld [vmem:[%s0 + $0xf0] sm:$0xff]
  %v45 = vld [vmem:[%s0 + $0xf8] sm:$0xff]
  %v46 = vld [vmem:[%s0 + $0x100] sm:$0xff]
  %v47 = vld [vmem:[%s0 + $0x108] sm:$0xff]
  %v48 = vld [vmem:[%s0 + $0x110] sm:$0xff]
  %v49 = vld [vmem:[%s0 + $0x118] sm:$0xff]
  %v50 = vld [vmem:[%s0 + $0x120] sm:$0xff]
  %v51 = vld [vmem:[%s0 + $0x128] sm:$0xff]
  %v52 = vld [vmem:[%s0 + $0x130] sm:$0xff]
  %v53 = vld [vmem:[%s0 + $0x138] sm:$0xff]
  %v54 = vld [vmem:[%s0 + $0x140] sm:$0xff]
  %v55 = vld [vmem:[%s0 + $0x148] sm:$0xff]
  %v56 = vld [vmem:[%s0 + $0x150] sm:$0xff]
  %v57 = vld [vmem:[%s0 + $0x158] sm:$0xff]
  %v58 = vld [vmem:[%s0 + $0x160] sm:$0xff]
  %v59 = vld [vmem:[%s0 + $0x168] sm:$0xff]
  %v60 = vld [vmem:[%s0 + $0x170] sm:$0xff]
  %v61 = vld [vmem:[%s0 + $0x178] sm:$0xff]
  %v62 = vld [vmem:[%s0 + $0x180] sm:$0xff]
  %v63 = vld [vmem:[%s0 + $0x188] sm:$0xff]
  %v64 = vld [vmem:[%s0 + $0x190] sm:$0xff]
  %v65 = vld [vmem:[%s0 + $0x198] sm:$0xff]
  %v66 = vld [vmem:[%s0 + $0x1a0] sm:$0xff]
  %v67 = vld [vmem:[%s0 + $0x1a8] sm:$0xff]
  %v68 = vld [vmem:[%s0 + $0x1b0] sm:$0xff]
  %v69 = vld [vmem:[%s0 + $0x1b8] sm:$0xff]
  %v70 = vld [vmem:[%s0 + $0x1c0] sm:$0xff]
  %v71 = vld [vmem:[%s0 + $0x1c8] sm:$0xff]
  %v72 = vld [vmem:[%s0 + $0x1d0] sm:$0xff]
  %v73 = vld [vmem:[%s0 + $0x1d8] sm:$0xff]
  %v74 = vld [vmem:[%s0 + $0x1e0] sm:$0xff]
  %v75 = vld [vmem:[%s0 + $0x1e8] sm:$0xff]
  %v76 = vld [vmem:[%s0 + $0x1f0] sm:$0xff]
  %v77 = vld [vmem:[%s0 + $0x1f8] sm:$0xff]
  %v78 = vld [vmem:[%s1] sm:$0xf]
  %v79 = vld [vmem:[%s1 + $0x4] sm:$0xf]
  %v80 = vld [vmem:[%s1 + $0x8] sm:$0xf]
  %v81 = vld [vmem:[%s1 + $0xc] sm:$0xf]
  %v82 = vld [vmem:[%s1 + $0x10] sm:$0xf]
  %v83 = vld [vmem:[%s1 + $0x14] sm:$0xf]
  %v84 = vld [vmem:[%s1 + $0x18] sm:$0xf]
  %v85 = vld [vmem:[%s1 + $0x1c] sm:$0xf]
  %v86 = vld [vmem:[%s1 + $0x20] sm:$0xf]
  %v87 = vld [vmem:[%s1 + $0x24] sm:$0xf]
  %v88 = vld [vmem:[%s1 + $0x28] sm:$0xf]
  %v89 = vld [vmem:[%s1 + $0x2c] sm:$0xf]
  %v90 = vld [vmem:[%s1 + $0x30] sm:$0xf]
  %v91 = vld [vmem:[%s1 + $0x34] sm:$0xf]
  %v92 = vld [vmem:[%s1 + $0x38] sm:$0xf]
  %v93 = vld [vmem:[%s1 + $0x3c] sm:$0xf]
  %v94 = vld [vmem:[%s1 + $0x40] sm:$0xf]
  %v95 = vld [vmem:[%s1 + $0x44] sm:$0xf]
  %v96 = vld [vmem:[%s1 + $0x48] sm:$0xf]
  %v97 = vld [vmem:[%s1 + $0x4c] sm:$0xf]
  %v98 = vld [vmem:[%s1 + $0x50] sm:$0xf]
  %v99 = vld [vmem:[%s1 + $0x54] sm:$0xf]
  %v100 = vld [vmem:[%s1 + $0x58] sm:$0xf]
  %v101 = vld [vmem:[%s1 + $0x5c] sm:$0xf]
  %v102 = vld [vmem:[%s1 + $0x60] sm:$0xf]
  %v103 = vld [vmem:[%s1 + $0x64] sm:$0xf]
  %v104 = vld [vmem:[%s1 + $0x68] sm:$0xf]
  %v105 = vld [vmem:[%s1 + $0x6c] sm:$0xf]
  %v106 = vld [vmem:[%s1 + $0x70] sm:$0xf]
  %v107 = vld [vmem:[%s1 + $0x74] sm:$0xf]
  %v108 = vld [vmem:[%s1 + $0x78] sm:$0xf]
  %v109 = vld [vmem:[%s1 + $0x7c] sm:$0xf]
  %v110 = vld [vmem:[%s2] sm:$0x1]
  %v112 = vperm.slane %v110, 0
  %v178 = vunpack.c.l.b16 %v14
  %v179 = vunpack.c.h.b16 %v14
  %v180 = vunpack.c.l.b16 %v15
  %v181 = vunpack.c.h.b16 %v15
  %v182 = vunpack.c.l.b16 %v16
  %v183 = vunpack.c.h.b16 %v16
  %v184 = vunpack.c.l.b16 %v17
  %v185 = vunpack.c.h.b16 %v17
  %v186 = vunpack.c.l.b16 %v18
  %v187 = vunpack.c.h.b16 %v18
  %v188 = vunpack.c.l.b16 %v19
  %v189 = vunpack.c.h.b16 %v19
  %v190 = vunpack.c.l.b16 %v20
  %v191 = vunpack.c.h.b16 %v20
  %v192 = vunpack.c.l.b16 %v21
  %v193 = vunpack.c.h.b16 %v21
  %v194 = vunpack.c.l.b16 %v22
  %v195 = vunpack.c.h.b16 %v22
  %v196 = vunpack.c.l.b16 %v23
  %v197 = vunpack.c.h.b16 %v23
  %v198 = vunpack.c.l.b16 %v24
  %v199 = vunpack.c.h.b16 %v24
  %v200 = vunpack.c.l.b16 %v25
  %v201 = vunpack.c.h.b16 %v25
  %v202 = vunpack.c.l.b16 %v26
  %v203 = vunpack.c.h.b16 %v26
  %v204 = vunpack.c.l.b16 %v27
  %v205 = vunpack.c.h.b16 %v27
  %v206 = vunpack.c.l.b16 %v28
  %v207 = vunpack.c.h.b16 %v28
  %v208 = vunpack.c.l.b16 %v29
  %v209 = vunpack.c.h.b16 %v29
  %v210 = vunpack.c.l.b16 %v30
  %v211 = vunpack.c.h.b16 %v30
  %v212 = vunpack.c.l.b16 %v31
  %v213 = vunpack.c.h.b16 %v31
  %v214 = vunpack.c.l.b16 %v32
  %v215 = vunpack.c.h.b16 %v32
  %v216 = vunpack.c.l.b16 %v33
  %v217 = vunpack.c.h.b16 %v33
  %v218 = vunpack.c.l.b16 %v34
  %v219 = vunpack.c.h.b16 %v34
  %v220 = vunpack.c.l.b16 %v35
  %v221 = vunpack.c.h.b16 %v35
  %v222 = vunpack.c.l.b16 %v36
  %v223 = vunpack.c.h.b16 %v36
  %v224 = vunpack.c.l.b16 %v37
  %v225 = vunpack.c.h.b16 %v37
  %v226 = vunpack.c.l.b16 %v38
  %v227 = vunpack.c.h.b16 %v38
  %v228 = vunpack.c.l.b16 %v39
  %v229 = vunpack.c.h.b16 %v39
  %v230 = vunpack.c.l.b16 %v40
  %v231 = vunpack.c.h.b16 %v40
  %v232 = vunpack.c.l.b16 %v41
  %v233 = vunpack.c.h.b16 %v41
  %v234 = vunpack.c.l.b16 %v42
  %v235 = vunpack.c.h.b16 %v42
  %v236 = vunpack.c.l.b16 %v43
  %v237 = vunpack.c.h.b16 %v43
  %v238 = vunpack.c.l.b16 %v44
  %v239 = vunpack.c.h.b16 %v44
  %v240 = vunpack.c.l.b16 %v45
  %v241 = vunpack.c.h.b16 %v45
  %v242 = vunpack.c.l.b16 %v46
  %v243 = vunpack.c.h.b16 %v46
  %v244 = vunpack.c.l.b16 %v47
  %v245 = vunpack.c.h.b16 %v47
  %v246 = vunpack.c.l.b16 %v48
  %v247 = vunpack.c.h.b16 %v48
  %v248 = vunpack.c.l.b16 %v49
  %v249 = vunpack.c.h.b16 %v49
  %v250 = vunpack.c.l.b16 %v50
  %v251 = vunpack.c.h.b16 %v50
  %v252 = vunpack.c.l.b16 %v51
  %v253 = vunpack.c.h.b16 %v51
  %v254 = vunpack.c.l.b16 %v52
  %v255 = vunpack.c.h.b16 %v52
  %v256 = vunpack.c.l.b16 %v53
  %v257 = vunpack.c.h.b16 %v53
  %v258 = vunpack.c.l.b16 %v54
  %v259 = vunpack.c.h.b16 %v54
  %v260 = vunpack.c.l.b16 %v55
  %v261 = vunpack.c.h.b16 %v55
  %v262 = vunpack.c.l.b16 %v56
  %v263 = vunpack.c.h.b16 %v56
  %v264 = vunpack.c.l.b16 %v57
  %v265 = vunpack.c.h.b16 %v57
  %v266 = vunpack.c.l.b16 %v58
  %v267 = vunpack.c.h.b16 %v58
  %v268 = vunpack.c.l.b16 %v59
  %v269 = vunpack.c.h.b16 %v59
  %v270 = vunpack.c.l.b16 %v60
  %v271 = vunpack.c.h.b16 %v60
  %v272 = vunpack.c.l.b16 %v61
  %v273 = vunpack.c.h.b16 %v61
  %v274 = vunpack.c.l.b16 %v62
  %v275 = vunpack.c.h.b16 %v62
  %v276 = vunpack.c.l.b16 %v63
  %v277 = vunpack.c.h.b16 %v63
  %v278 = vunpack.c.l.b16 %v64
  %v279 = vunpack.c.h.b16 %v64
  %v280 = vunpack.c.l.b16 %v65
  %v281 = vunpack.c.h.b16 %v65
  %v282 = vunpack.c.l.b16 %v66
  %v283 = vunpack.c.h.b16 %v66
  %v284 = vunpack.c.l.b16 %v67
  %v285 = vunpack.c.h.b16 %v67
  %v286 = vunpack.c.l.b16 %v68
  %v287 = vunpack.c.h.b16 %v68
  %v288 = vunpack.c.l.b16 %v69
  %v289 = vunpack.c.h.b16 %v69
  %v290 = vunpack.c.l.b16 %v70
  %v291 = vunpack.c.h.b16 %v70
  %v292 = vunpack.c.l.b16 %v71
  %v293 = vunpack.c.h.b16 %v71
  %v294 = vunpack.c.l.b16 %v72
  %v295 = vunpack.c.h.b16 %v72
  %v296 = vunpack.c.l.b16 %v73
  %v297 = vunpack.c.h.b16 %v73
  %v298 = vunpack.c.l.b16 %v74
  %v299 = vunpack.c.h.b16 %v74
  %v300 = vunpack.c.l.b16 %v75
  %v301 = vunpack.c.h.b16 %v75
  %v302 = vunpack.c.l.b16 %v76
  %v303 = vunpack.c.h.b16 %v76
  %v304 = vunpack.c.l.b16 %v77
  %v305 = vunpack.c.h.b16 %v77
  %v306 = vpack.c.b16 %v180, %v178
  %v307 = vpack.c.b16 %v181, %v179
  %v308 = vpack.c.b16 %v184, %v182
  %v309 = vpack.c.b16 %v185, %v183
  %v310 = vpack.c.b16 %v188, %v186
  %v311 = vpack.c.b16 %v189, %v187
  %v312 = vpack.c.b16 %v192, %v190
  %v313 = vpack.c.b16 %v193, %v191
  %v314 = vpack.c.b16 %v196, %v194
  %v315 = vpack.c.b16 %v197, %v195
  %v316 = vpack.c.b16 %v200, %v198
  %v317 = vpack.c.b16 %v201, %v199
  %v318 = vpack.c.b16 %v204, %v202
  %v319 = vpack.c.b16 %v205, %v203
  %v320 = vpack.c.b16 %v208, %v206
  %v321 = vpack.c.b16 %v209, %v207
  %v322 = vpack.c.b16 %v212, %v210
  %v323 = vpack.c.b16 %v213, %v211
  %v324 = vpack.c.b16 %v216, %v214
  %v325 = vpack.c.b16 %v217, %v215
  %v326 = vpack.c.b16 %v220, %v218
  %v327 = vpack.c.b16 %v221, %v219
  %v328 = vpack.c.b16 %v224, %v222
  %v329 = vpack.c.b16 %v225, %v223
  %v330 = vpack.c.b16 %v228, %v226
  %v331 = vpack.c.b16 %v229, %v227
  %v332 = vpack.c.b16 %v232, %v230
  %v333 = vpack.c.b16 %v233, %v231
  %v334 = vpack.c.b16 %v236, %v234
  %v335 = vpack.c.b16 %v237, %v235
  %v336 = vpack.c.b16 %v240, %v238
  %v337 = vpack.c.b16 %v241, %v239
  %v338 = vpack.c.b16 %v244, %v242
  %v339 = vpack.c.b16 %v245, %v243
  %v340 = vpack.c.b16 %v248, %v246
  %v341 = vpack.c.b16 %v249, %v247
  %v342 = vpack.c.b16 %v252, %v250
  %v343 = vpack.c.b16 %v253, %v251
  %v344 = vpack.c.b16 %v256, %v254
  %v345 = vpack.c.b16 %v257, %v255
  %v346 = vpack.c.b16 %v260, %v258
  %v347 = vpack.c.b16 %v261, %v259
  %v348 = vpack.c.b16 %v264, %v262
  %v349 = vpack.c.b16 %v265, %v263
  %v350 = vpack.c.b16 %v268, %v266
  %v351 = vpack.c.b16 %v269, %v267
  %v352 = vpack.c.b16 %v272, %v270
  %v353 = vpack.c.b16 %v273, %v271
  %v354 = vpack.c.b16 %v276, %v274
  %v355 = vpack.c.b16 %v277, %v275
  %v356 = vpack.c.b16 %v280, %v278
  %v357 = vpack.c.b16 %v281, %v279
  %v358 = vpack.c.b16 %v284, %v282
  %v359 = vpack.c.b16 %v285, %v283
  %v360 = vpack.c.b16 %v288, %v286
  %v361 = vpack.c.b16 %v289, %v287
  %v362 = vpack.c.b16 %v292, %v290
  %v363 = vpack.c.b16 %v293, %v291
  %v364 = vpack.c.b16 %v296, %v294
  %v365 = vpack.c.b16 %v297, %v295
  %v366 = vpack.c.b16 %v300, %v298
  %v367 = vpack.c.b16 %v301, %v299
  %v368 = vpack.c.b16 %v304, %v302
  %v369 = vpack.c.b16 %v305, %v303
  %v466 = vunpack.c.l.b16 %v78
  %v467 = vunpack.c.l.b16 %v79
  %v468 = vunpack.c.l.b16 %v80
  %v469 = vunpack.c.l.b16 %v81
  %v470 = vunpack.c.l.b16 %v82
  %v471 = vunpack.c.l.b16 %v83
  %v472 = vunpack.c.l.b16 %v84
  %v473 = vunpack.c.l.b16 %v85
  %v474 = vunpack.c.l.b16 %v86
  %v475 = vunpack.c.l.b16 %v87
  %v476 = vunpack.c.l.b16 %v88
  %v477 = vunpack.c.l.b16 %v89
  %v478 = vunpack.c.l.b16 %v90
  %v479 = vunpack.c.l.b16 %v91
  %v480 = vunpack.c.l.b16 %v92
  %v481 = vunpack.c.l.b16 %v93
  %v482 = vunpack.c.l.b16 %v94
  %v483 = vunpack.c.l.b16 %v95
  %v484 = vunpack.c.l.b16 %v96
  %v485 = vunpack.c.l.b16 %v97
  %v486 = vunpack.c.l.b16 %v98
  %v487 = vunpack.c.l.b16 %v99
  %v488 = vunpack.c.l.b16 %v100
  %v489 = vunpack.c.l.b16 %v101
  %v490 = vunpack.c.l.b16 %v102
  %v491 = vunpack.c.l.b16 %v103
  %v492 = vunpack.c.l.b16 %v104
  %v493 = vunpack.c.l.b16 %v105
  %v494 = vunpack.c.l.b16 %v106
  %v495 = vunpack.c.l.b16 %v107
  %v496 = vunpack.c.l.b16 %v108
  %v497 = vunpack.c.l.b16 %v109
  %v498 = vpack.c.b16 %v467, %v466
  %v499 = vpack.c.b16 %v469, %v468
  %v500 = vpack.c.b16 %v471, %v470
  %v501 = vpack.c.b16 %v473, %v472
  %v502 = vpack.c.b16 %v475, %v474
  %v503 = vpack.c.b16 %v477, %v476
  %v504 = vpack.c.b16 %v479, %v478
  %v505 = vpack.c.b16 %v481, %v480
  %v506 = vpack.c.b16 %v483, %v482
  %v507 = vpack.c.b16 %v485, %v484
  %v508 = vpack.c.b16 %v487, %v486
  %v509 = vpack.c.b16 %v489, %v488
  %v510 = vpack.c.b16 %v491, %v490
  %v511 = vpack.c.b16 %v493, %v492
  %v512 = vpack.c.b16 %v495, %v494
  %v513 = vpack.c.b16 %v497, %v496
  %530 = vmatpush.bf16.msra.mxu0 %v505
  %531 = vmatpush.bf16.msra.mxu0 %v504
  %532 = vmatpush.bf16.msra.mxu0 %v503
  %533 = vmatpush.bf16.msra.mxu0 %v502
  %534 = vmatpush.bf16.msra.mxu0 %v501
  %535 = vmatpush.bf16.msra.mxu0 %v500
  %536 = vmatpush.bf16.msra.mxu0 %v499
  %537 = vmatpush.bf16.msra.mxu0 %v498
  %538 = vmatmul.bf16.gmra.mxu0 %v306
  %v539 = vpop.f32.mrf.mxu0
  %v540 = vadd.f32 %v112, %v539
  %v541 = vpop.f32.mrf.mxu0
  %v542 = vadd.f32 %v112, %v541
  %543 = vmatmul.bf16.gmra.mxu0 %v308
  %v544 = vpop.f32.mrf.mxu0
  %v545 = vadd.f32 %v112, %v544
  %v546 = vpop.f32.mrf.mxu0
  %v547 = vadd.f32 %v112, %v546
  %548 = vmatmul.bf16.gmra.mxu0 %v310
  %v549 = vpop.f32.mrf.mxu0
  %v550 = vadd.f32 %v112, %v549
  %v551 = vpop.f32.mrf.mxu0
  %v552 = vadd.f32 %v112, %v551
  %553 = vmatmul.bf16.gmra.mxu0 %v312
  %v554 = vpop.f32.mrf.mxu0
  %v555 = vadd.f32 %v112, %v554
  %v556 = vpop.f32.mrf.mxu0
  %v557 = vadd.f32 %v112, %v556
  %558 = vmatmul.bf16.gmra.mxu0 %v314
  %v559 = vpop.f32.mrf.mxu0
  %v560 = vadd.f32 %v112, %v559
  %v561 = vpop.f32.mrf.mxu0
  %v562 = vadd.f32 %v112, %v561
  %563 = vmatmul.bf16.gmra.mxu0 %v316
  %v564 = vpop.f32.mrf.mxu0
  %v565 = vadd.f32 %v112, %v564
  %v566 = vpop.f32.mrf.mxu0
  %v567 = vadd.f32 %v112, %v566
  %568 = vmatmul.bf16.gmra.mxu0 %v318
  %v569 = vpop.f32.mrf.mxu0
  %v570 = vadd.f32 %v112, %v569
  %v571 = vpop.f32.mrf.mxu0
  %v572 = vadd.f32 %v112, %v571
  %573 = vmatmul.bf16.gmra.mxu0 %v320
  %v574 = vpop.f32.mrf.mxu0
  %v575 = vadd.f32 %v112, %v574
  %v576 = vpop.f32.mrf.mxu0
  %v577 = vadd.f32 %v112, %v576
  %578 = vmatmul.bf16.gmra.mxu0 %v322
  %v579 = vpop.f32.mrf.mxu0
  %v580 = vadd.f32 %v112, %v579
  %v581 = vpop.f32.mrf.mxu0
  %v582 = vadd.f32 %v112, %v581
  %583 = vmatmul.bf16.gmra.mxu0 %v324
  %v584 = vpop.f32.mrf.mxu0
  %v585 = vadd.f32 %v112, %v584
  %v586 = vpop.f32.mrf.mxu0
  %v587 = vadd.f32 %v112, %v586
  %588 = vmatmul.bf16.gmra.mxu0 %v326
  %v589 = vpop.f32.mrf.mxu0
  %v590 = vadd.f32 %v112, %v589
  %v591 = vpop.f32.mrf.mxu0
  %v592 = vadd.f32 %v112, %v591
  %593 = vmatmul.bf16.gmra.mxu0 %v328
  %v594 = vpop.f32.mrf.mxu0
  %v595 = vadd.f32 %v112, %v594
  %v596 = vpop.f32.mrf.mxu0
  %v597 = vadd.f32 %v112, %v596
  %598 = vmatmul.bf16.gmra.mxu0 %v330
  %v599 = vpop.f32.mrf.mxu0
  %v600 = vadd.f32 %v112, %v599
  %v601 = vpop.f32.mrf.mxu0
  %v602 = vadd.f32 %v112, %v601
  %603 = vmatmul.bf16.gmra.mxu0 %v332
  %v604 = vpop.f32.mrf.mxu0
  %v605 = vadd.f32 %v112, %v604
  %v606 = vpop.f32.mrf.mxu0
  %v607 = vadd.f32 %v112, %v606
  %608 = vmatmul.bf16.gmra.mxu0 %v334
  %v609 = vpop.f32.mrf.mxu0
  %v610 = vadd.f32 %v112, %v609
  %v611 = vpop.f32.mrf.mxu0
  %v612 = vadd.f32 %v112, %v611
  %613 = vmatmul.bf16.gmra.mxu0 %v336
  %v614 = vpop.f32.mrf.mxu0
  %v615 = vadd.f32 %v112, %v614
  %v616 = vpop.f32.mrf.mxu0
  %v617 = vadd.f32 %v112, %v616
  %618 = vmatmul.bf16.gmra.mxu0 %v338
  %v619 = vpop.f32.mrf.mxu0
  %v620 = vadd.f32 %v112, %v619
  %v621 = vpop.f32.mrf.mxu0
  %v622 = vadd.f32 %v112, %v621
  %623 = vmatmul.bf16.gmra.mxu0 %v340
  %v624 = vpop.f32.mrf.mxu0
  %v625 = vadd.f32 %v112, %v624
  %v626 = vpop.f32.mrf.mxu0
  %v627 = vadd.f32 %v112, %v626
  %628 = vmatmul.bf16.gmra.mxu0 %v342
  %v629 = vpop.f32.mrf.mxu0
  %v630 = vadd.f32 %v112, %v629
  %v631 = vpop.f32.mrf.mxu0
  %v632 = vadd.f32 %v112, %v631
  %633 = vmatmul.bf16.gmra.mxu0 %v344
  %v634 = vpop.f32.mrf.mxu0
  %v635 = vadd.f32 %v112, %v634
  %v636 = vpop.f32.mrf.mxu0
  %v637 = vadd.f32 %v112, %v636
  %638 = vmatmul.bf16.gmra.mxu0 %v346
  %v639 = vpop.f32.mrf.mxu0
  %v640 = vadd.f32 %v112, %v639
  %v641 = vpop.f32.mrf.mxu0
  %v642 = vadd.f32 %v112, %v641
  %643 = vmatmul.bf16.gmra.mxu0 %v348
  %v644 = vpop.f32.mrf.mxu0
  %v645 = vadd.f32 %v112, %v644
  %v646 = vpop.f32.mrf.mxu0
  %v647 = vadd.f32 %v112, %v646
  %648 = vmatmul.bf16.gmra.mxu0 %v350
  %v649 = vpop.f32.mrf.mxu0
  %v650 = vadd.f32 %v112, %v649
  %v651 = vpop.f32.mrf.mxu0
  %v652 = vadd.f32 %v112, %v651
  %653 = vmatmul.bf16.gmra.mxu0 %v352
  %v654 = vpop.f32.mrf.mxu0
  %v655 = vadd.f32 %v112, %v654
  %v656 = vpop.f32.mrf.mxu0
  %v657 = vadd.f32 %v112, %v656
  %658 = vmatmul.bf16.gmra.mxu0 %v354
  %v659 = vpop.f32.mrf.mxu0
  %v660 = vadd.f32 %v112, %v659
  %v661 = vpop.f32.mrf.mxu0
  %v662 = vadd.f32 %v112, %v661
  %663 = vmatmul.bf16.gmra.mxu0 %v356
  %v664 = vpop.f32.mrf.mxu0
  %v665 = vadd.f32 %v112, %v664
  %v666 = vpop.f32.mrf.mxu0
  %v667 = vadd.f32 %v112, %v666
  %668 = vmatmul.bf16.gmra.mxu0 %v358
  %v669 = vpop.f32.mrf.mxu0
  %v670 = vadd.f32 %v112, %v669
  %v671 = vpop.f32.mrf.mxu0
  %v672 = vadd.f32 %v112, %v671
  %673 = vmatmul.bf16.gmra.mxu0 %v360
  %v674 = vpop.f32.mrf.mxu0
  %v675 = vadd.f32 %v112, %v674
  %v676 = vpop.f32.mrf.mxu0
  %v677 = vadd.f32 %v112, %v676
  %678 = vmatmul.bf16.gmra.mxu0 %v362
  %v679 = vpop.f32.mrf.mxu0
  %v680 = vadd.f32 %v112, %v679
  %v681 = vpop.f32.mrf.mxu0
  %v682 = vadd.f32 %v112, %v681
  %683 = vmatmul.bf16.gmra.mxu0 %v364
  %v684 = vpop.f32.mrf.mxu0
  %v685 = vadd.f32 %v112, %v684
  %v686 = vpop.f32.mrf.mxu0
  %v687 = vadd.f32 %v112, %v686
  %688 = vmatmul.bf16.gmra.mxu0 %v366
  %v689 = vpop.f32.mrf.mxu0
  %v690 = vadd.f32 %v112, %v689
  %v691 = vpop.f32.mrf.mxu0
  %v692 = vadd.f32 %v112, %v691
  %693 = vmatmul.bf16.gmra.mxu0 %v368
  %v694 = vpop.f32.mrf.mxu0
  %v695 = vadd.f32 %v112, %v694
  %v696 = vpop.f32.mrf.mxu0
  %v697 = vadd.f32 %v112, %v696
  %698 = vdwg.mxu0
  %699 = vmatpush.bf16.msra.mxu0 %v513
  %700 = vmatpush.bf16.msra.mxu0 %v512
  %701 = vmatpush.bf16.msra.mxu0 %v511
  %702 = vmatpush.bf16.msra.mxu0 %v510
  %703 = vmatpush.bf16.msra.mxu0 %v509
  %704 = vmatpush.bf16.msra.mxu0 %v508
  %705 = vmatpush.bf16.msra.mxu0 %v507
  %706 = vmatpush.bf16.msra.mxu0 %v506
  %707 = vmatmul.bf16.gmra.mxu0 %v307
  %v708 = vpop.f32.mrf.mxu0
  %v709 = vadd.f32 %v540, %v708
  %v710 = vpop.f32.mrf.mxu0
  %v711 = vadd.f32 %v542, %v710
  %712 = vmatmul.bf16.gmra.mxu0 %v309
  %v713 = vpop.f32.mrf.mxu0
  %v714 = vadd.f32 %v545, %v713
  %v715 = vpop.f32.mrf.mxu0
  %v716 = vadd.f32 %v547, %v715
  %717 = vmatmul.bf16.gmra.mxu0 %v311
  %v718 = vpop.f32.mrf.mxu0
  %v719 = vadd.f32 %v550, %v718
  %v720 = vpop.f32.mrf.mxu0
  %v721 = vadd.f32 %v552, %v720
  %722 = vmatmul.bf16.gmra.mxu0 %v313
  %v723 = vpop.f32.mrf.mxu0
  %v724 = vadd.f32 %v555, %v723
  %v725 = vpop.f32.mrf.mxu0
  %v726 = vadd.f32 %v557, %v725
  %727 = vmatmul.bf16.gmra.mxu0 %v315
  %v728 = vpop.f32.mrf.mxu0
  %v729 = vadd.f32 %v560, %v728
  %v730 = vpop.f32.mrf.mxu0
  %v731 = vadd.f32 %v562, %v730
  %732 = vmatmul.bf16.gmra.mxu0 %v317
  %v733 = vpop.f32.mrf.mxu0
  %v734 = vadd.f32 %v565, %v733
  %v735 = vpop.f32.mrf.mxu0
  %v736 = vadd.f32 %v567, %v735
  %737 = vmatmul.bf16.gmra.mxu0 %v319
  %v738 = vpop.f32.mrf.mxu0
  %v739 = vadd.f32 %v570, %v738
  %v740 = vpop.f32.mrf.mxu0
  %v741 = vadd.f32 %v572, %v740
  %742 = vmatmul.bf16.gmra.mxu0 %v321
  %v743 = vpop.f32.mrf.mxu0
  %v744 = vadd.f32 %v575, %v743
  %v745 = vpop.f32.mrf.mxu0
  %v746 = vadd.f32 %v577, %v745
  %747 = vmatmul.bf16.gmra.mxu0 %v323
  %v748 = vpop.f32.mrf.mxu0
  %v749 = vadd.f32 %v580, %v748
  %v750 = vpop.f32.mrf.mxu0
  %v751 = vadd.f32 %v582, %v750
  %752 = vmatmul.bf16.gmra.mxu0 %v325
  %v753 = vpop.f32.mrf.mxu0
  %v754 = vadd.f32 %v585, %v753
  %v755 = vpop.f32.mrf.mxu0
  %v756 = vadd.f32 %v587, %v755
  %757 = vmatmul.bf16.gmra.mxu0 %v327
  %v758 = vpop.f32.mrf.mxu0
  %v759 = vadd.f32 %v590, %v758
  %v760 = vpop.f32.mrf.mxu0
  %v761 = vadd.f32 %v592, %v760
  %762 = vmatmul.bf16.gmra.mxu0 %v329
  %v763 = vpop.f32.mrf.mxu0
  %v764 = vadd.f32 %v595, %v763
  %v765 = vpop.f32.mrf.mxu0
  %v766 = vadd.f32 %v597, %v765
  %767 = vmatmul.bf16.gmra.mxu0 %v331
  %v768 = vpop.f32.mrf.mxu0
  %v769 = vadd.f32 %v600, %v768
  %v770 = vpop.f32.mrf.mxu0
  %v771 = vadd.f32 %v602, %v770
  %772 = vmatmul.bf16.gmra.mxu0 %v333
  %v773 = vpop.f32.mrf.mxu0
  %v774 = vadd.f32 %v605, %v773
  %v775 = vpop.f32.mrf.mxu0
  %v776 = vadd.f32 %v607, %v775
  %777 = vmatmul.bf16.gmra.mxu0 %v335
  %v778 = vpop.f32.mrf.mxu0
  %v779 = vadd.f32 %v610, %v778
  %v780 = vpop.f32.mrf.mxu0
  %v781 = vadd.f32 %v612, %v780
  %782 = vmatmul.bf16.gmra.mxu0 %v337
  %v783 = vpop.f32.mrf.mxu0
  %v784 = vadd.f32 %v615, %v783
  %v785 = vpop.f32.mrf.mxu0
  %v786 = vadd.f32 %v617, %v785
  %787 = vmatmul.bf16.gmra.mxu0 %v339
  %v788 = vpop.f32.mrf.mxu0
  %v789 = vadd.f32 %v620, %v788
  %v790 = vpop.f32.mrf.mxu0
  %v791 = vadd.f32 %v622, %v790
  %792 = vmatmul.bf16.gmra.mxu0 %v341
  %v793 = vpop.f32.mrf.mxu0
  %v794 = vadd.f32 %v625, %v793
  %v795 = vpop.f32.mrf.mxu0
  %v796 = vadd.f32 %v627, %v795
  %797 = vmatmul.bf16.gmra.mxu0 %v343
  %v798 = vpop.f32.mrf.mxu0
  %v799 = vadd.f32 %v630, %v798
  %v800 = vpop.f32.mrf.mxu0
  %v801 = vadd.f32 %v632, %v800
  %802 = vmatmul.bf16.gmra.mxu0 %v345
  %v803 = vpop.f32.mrf.mxu0
  %v804 = vadd.f32 %v635, %v803
  %v805 = vpop.f32.mrf.mxu0
  %v806 = vadd.f32 %v637, %v805
  %807 = vmatmul.bf16.gmra.mxu0 %v347
  %v808 = vpop.f32.mrf.mxu0
  %v809 = vadd.f32 %v640, %v808
  %v810 = vpop.f32.mrf.mxu0
  %v811 = vadd.f32 %v642, %v810
  %812 = vmatmul.bf16.gmra.mxu0 %v349
  %v813 = vpop.f32.mrf.mxu0
  %v814 = vadd.f32 %v645, %v813
  %v815 = vpop.f32.mrf.mxu0
  %v816 = vadd.f32 %v647, %v815
  %817 = vmatmul.bf16.gmra.mxu0 %v351
  %v818 = vpop.f32.mrf.mxu0
  %v819 = vadd.f32 %v650, %v818
  %v820 = vpop.f32.mrf.mxu0
  %v821 = vadd.f32 %v652, %v820
  %822 = vmatmul.bf16.gmra.mxu0 %v353
  %v823 = vpop.f32.mrf.mxu0
  %v824 = vadd.f32 %v655, %v823
  %v825 = vpop.f32.mrf.mxu0
  %v826 = vadd.f32 %v657, %v825
  %827 = vmatmul.bf16.gmra.mxu0 %v355
  %v828 = vpop.f32.mrf.mxu0
  %v829 = vadd.f32 %v660, %v828
  %v830 = vpop.f32.mrf.mxu0
  %v831 = vadd.f32 %v662, %v830
  %832 = vmatmul.bf16.gmra.mxu0 %v357
  %v833 = vpop.f32.mrf.mxu0
  %v834 = vadd.f32 %v665, %v833
  %v835 = vpop.f32.mrf.mxu0
  %v836 = vadd.f32 %v667, %v835
  %837 = vmatmul.bf16.gmra.mxu0 %v359
  %v838 = vpop.f32.mrf.mxu0
  %v839 = vadd.f32 %v670, %v838
  %v840 = vpop.f32.mrf.mxu0
  %v841 = vadd.f32 %v672, %v840
  %842 = vmatmul.bf16.gmra.mxu0 %v361
  %v843 = vpop.f32.mrf.mxu0
  %v844 = vadd.f32 %v675, %v843
  %v845 = vpop.f32.mrf.mxu0
  %v846 = vadd.f32 %v677, %v845
  %847 = vmatmul.bf16.gmra.mxu0 %v363
  %v848 = vpop.f32.mrf.mxu0
  %v849 = vadd.f32 %v680, %v848
  %v850 = vpop.f32.mrf.mxu0
  %v851 = vadd.f32 %v682, %v850
  %852 = vmatmul.bf16.gmra.mxu0 %v365
  %v853 = vpop.f32.mrf.mxu0
  %v854 = vadd.f32 %v685, %v853
  %v855 = vpop.f32.mrf.mxu0
  %v856 = vadd.f32 %v687, %v855
  %857 = vmatmul.bf16.gmra.mxu0 %v367
  %v858 = vpop.f32.mrf.mxu0
  %v859 = vadd.f32 %v690, %v858
  %v860 = vpop.f32.mrf.mxu0
  %v861 = vadd.f32 %v692, %v860
  %862 = vmatmul.bf16.gmra.mxu0 %v369
  %v863 = vpop.f32.mrf.mxu0
  %v864 = vadd.f32 %v695, %v863
  %v865 = vpop.f32.mrf.mxu0
  %v866 = vadd.f32 %v697, %v865
  %867 = vdwg.mxu0
  %v868 = vmax.f32 %v709, 0.0
  %v869 = vmax.f32 %v711, 0.0
  %v870 = vmax.f32 %v714, 0.0
  %v871 = vmax.f32 %v716, 0.0
  %v872 = vmax.f32 %v719, 0.0
  %v873 = vmax.f32 %v721, 0.0
  %v874 = vmax.f32 %v724, 0.0
  %v875 = vmax.f32 %v726, 0.0
  %v876 = vmax.f32 %v729, 0.0
  %v877 = vmax.f32 %v731, 0.0
  %v878 = vmax.f32 %v734, 0.0
  %v879 = vmax.f32 %v736, 0.0
  %v880 = vmax.f32 %v739, 0.0
  %v881 = vmax.f32 %v741, 0.0
  %v882 = vmax.f32 %v744, 0.0
  %v883 = vmax.f32 %v746, 0.0
  %v884 = vmax.f32 %v749, 0.0
  %v885 = vmax.f32 %v751, 0.0
  %v886 = vmax.f32 %v754, 0.0
  %v887 = vmax.f32 %v756, 0.0
  %v888 = vmax.f32 %v759, 0.0
  %v889 = vmax.f32 %v761, 0.0
  %v890 = vmax.f32 %v764, 0.0
  %v891 = vmax.f32 %v766, 0.0
  %v892 = vmax.f32 %v769, 0.0
  %v893 = vmax.f32 %v771, 0.0
  %v894 = vmax.f32 %v774, 0.0
  %v895 = vmax.f32 %v776, 0.0
  %v896 = vmax.f32 %v779, 0.0
  %v897 = vmax.f32 %v781, 0.0
  %v898 = vmax.f32 %v784, 0.0
  %v899 = vmax.f32 %v786, 0.0
  %v900 = vmax.f32 %v789, 0.0
  %v901 = vmax.f32 %v791, 0.0
  %v902 = vmax.f32 %v794, 0.0
  %v903 = vmax.f32 %v796, 0.0
  %v904 = vmax.f32 %v799, 0.0
  %v905 = vmax.f32 %v801, 0.0
  %v906 = vmax.f32 %v804, 0.0
  %v907 = vmax.f32 %v806, 0.0
  %v908 = vmax.f32 %v809, 0.0
  %v909 = vmax.f32 %v811, 0.0
  %v910 = vmax.f32 %v814, 0.0
  %v911 = vmax.f32 %v816, 0.0
  %v912 = vmax.f32 %v819, 0.0
  %v913 = vmax.f32 %v821, 0.0
  %v914 = vmax.f32 %v824, 0.0
  %v915 = vmax.f32 %v826, 0.0
  %v916 = vmax.f32 %v829, 0.0
  %v917 = vmax.f32 %v831, 0.0
  %v918 = vmax.f32 %v834, 0.0
  %v919 = vmax.f32 %v836, 0.0
  %v920 = vmax.f32 %v839, 0.0
  %v921 = vmax.f32 %v841, 0.0
  %v922 = vmax.f32 %v844, 0.0
  %v923 = vmax.f32 %v846, 0.0
  %v924 = vmax.f32 %v849, 0.0
  %v925 = vmax.f32 %v851, 0.0
  %v926 = vmax.f32 %v854, 0.0
  %v927 = vmax.f32 %v856, 0.0
  %v928 = vmax.f32 %v859, 0.0
  %v929 = vmax.f32 %v861, 0.0
  %v930 = vmax.f32 %v864, 0.0
  %v931 = vmax.f32 %v866, 0.0
  %v932 = vpack.c.bf16 %v868, %v868
  %v933 = vpack.c.bf16 %v869, %v869
  %v934 = vpack.c.bf16 %v870, %v870
  %v935 = vpack.c.bf16 %v871, %v871
  %v936 = vpack.c.bf16 %v872, %v872
  %v937 = vpack.c.bf16 %v873, %v873
  %v938 = vpack.c.bf16 %v874, %v874
  %v939 = vpack.c.bf16 %v875, %v875
  %v940 = vpack.c.bf16 %v876, %v876
  %v941 = vpack.c.bf16 %v877, %v877
  %v942 = vpack.c.bf16 %v878, %v878
  %v943 = vpack.c.bf16 %v879, %v879
  %v944 = vpack.c.bf16 %v880, %v880
  %v945 = vpack.c.bf16 %v881, %v881
  %v946 = vpack.c.bf16 %v882, %v882
  %v947 = vpack.c.bf16 %v883, %v883
  %v948 = vpack.c.bf16 %v884, %v884
  %v949 = vpack.c.bf16 %v885, %v885
  %v950 = vpack.c.bf16 %v886, %v886
  %v951 = vpack.c.bf16 %v887, %v887
  %v952 = vpack.c.bf16 %v888, %v888
  %v953 = vpack.c.bf16 %v889, %v889
  %v954 = vpack.c.bf16 %v890, %v890
  %v955 = vpack.c.bf16 %v891, %v891
  %v956 = vpack.c.bf16 %v892, %v892
  %v957 = vpack.c.bf16 %v893, %v893
  %v958 = vpack.c.bf16 %v894, %v894
  %v959 = vpack.c.bf16 %v895, %v895
  %v960 = vpack.c.bf16 %v896, %v896
  %v961 = vpack.c.bf16 %v897, %v897
  %v962 = vpack.c.bf16 %v898, %v898
  %v963 = vpack.c.bf16 %v899, %v899
  %v964 = vpack.c.bf16 %v900, %v900
  %v965 = vpack.c.bf16 %v901, %v901
  %v966 = vpack.c.bf16 %v902, %v902
  %v967 = vpack.c.bf16 %v903, %v903
  %v968 = vpack.c.bf16 %v904, %v904
  %v969 = vpack.c.bf16 %v905, %v905
  %v970 = vpack.c.bf16 %v906, %v906
  %v971 = vpack.c.bf16 %v907, %v907
  %v972 = vpack.c.bf16 %v908, %v908
  %v973 = vpack.c.bf16 %v909, %v909
  %v974 = vpack.c.bf16 %v910, %v910
  %v975 = vpack.c.bf16 %v911, %v911
  %v976 = vpack.c.bf16 %v912, %v912
  %v977 = vpack.c.bf16 %v913, %v913
  %v978 = vpack.c.bf16 %v914, %v914
  %v979 = vpack.c.bf16 %v915, %v915
  %v980 = vpack.c.bf16 %v916, %v916
  %v981 = vpack.c.bf16 %v917, %v917
  %v982 = vpack.c.bf16 %v918, %v918
  %v983 = vpack.c.bf16 %v919, %v919
  %v984 = vpack.c.bf16 %v920, %v920
  %v985 = vpack.c.bf16 %v921, %v921
  %v986 = vpack.c.bf16 %v922, %v922
  %v987 = vpack.c.bf16 %v923, %v923
  %v988 = vpack.c.bf16 %v924, %v924
  %v989 = vpack.c.bf16 %v925, %v925
  %v990 = vpack.c.bf16 %v926, %v926
  %v991 = vpack.c.bf16 %v927, %v927
  %v992 = vpack.c.bf16 %v928, %v928
  %v993 = vpack.c.bf16 %v929, %v929
  %v994 = vpack.c.bf16 %v930, %v930
  %v995 = vpack.c.bf16 %v931, %v931
  %996 = vst [vmem:[%s3] sm:$0xf] %v932
  %997 = vst [vmem:[%s3 + $0x4] sm:$0xf] %v933
  %998 = vst [vmem:[%s3 + $0x8] sm:$0xf] %v934
  %999 = vst [vmem:[%s3 + $0xc] sm:$0xf] %v935
  %1000 = vst [vmem:[%s3 + $0x10] sm:$0xf] %v936
  %1001 = vst [vmem:[%s3 + $0x14] sm:$0xf] %v937
  %1002 = vst [vmem:[%s3 + $0x18] sm:$0xf] %v938
  %1003 = vst [vmem:[%s3 + $0x1c] sm:$0xf] %v939
  %1004 = vst [vmem:[%s3 + $0x20] sm:$0xf] %v940
  %1005 = vst [vmem:[%s3 + $0x24] sm:$0xf] %v941
  %1006 = vst [vmem:[%s3 + $0x28] sm:$0xf] %v942
  %1007 = vst [vmem:[%s3 + $0x2c] sm:$0xf] %v943
  %1008 = vst [vmem:[%s3 + $0x30] sm:$0xf] %v944
  %1009 = vst [vmem:[%s3 + $0x34] sm:$0xf] %v945
  %1010 = vst [vmem:[%s3 + $0x38] sm:$0xf] %v946
  %1011 = vst [vmem:[%s3 + $0x3c] sm:$0xf] %v947
  %1012 = vst [vmem:[%s3 + $0x40] sm:$0xf] %v948
  %1013 = vst [vmem:[%s3 + $0x44] sm:$0xf] %v949
  %1014 = vst [vmem:[%s3 + $0x48] sm:$0xf] %v950
  %1015 = vst [vmem:[%s3 + $0x4c] sm:$0xf] %v951
  %1016 = vst [vmem:[%s3 + $0x50] sm:$0xf] %v952
  %1017 = vst [vmem:[%s3 + $0x54] sm:$0xf] %v953
  %1018 = vst [vmem:[%s3 + $0x58] sm:$0xf] %v954
  %1019 = vst [vmem:[%s3 + $0x5c] sm:$0xf] %v955
  %1020 = vst [vmem:[%s3 + $0x60] sm:$0xf] %v956
  %1021 = vst [vmem:[%s3 + $0x64] sm:$0xf] %v957
  %1022 = vst [vmem:[%s3 + $0x68] sm:$0xf] %v958
  %1023 = vst [vmem:[%s3 + $0x6c] sm:$0xf] %v959
  %1024 = vst [vmem:[%s3 + $0x70] sm:$0xf] %v960
  %1025 = vst [vmem:[%s3 + $0x74] sm:$0xf] %v961
  %1026 = vst [vmem:[%s3 + $0x78] sm:$0xf] %v962
  %1027 = vst [vmem:[%s3 + $0x7c] sm:$0xf] %v963
  %1028 = vst [vmem:[%s3 + $0x80] sm:$0xf] %v964
  %1029 = vst [vmem:[%s3 + $0x84] sm:$0xf] %v965
  %1030 = vst [vmem:[%s3 + $0x88] sm:$0xf] %v966
  %1031 = vst [vmem:[%s3 + $0x8c] sm:$0xf] %v967
  %1032 = vst [vmem:[%s3 + $0x90] sm:$0xf] %v968
  %1033 = vst [vmem:[%s3 + $0x94] sm:$0xf] %v969
  %1034 = vst [vmem:[%s3 + $0x98] sm:$0xf] %v970
  %1035 = vst [vmem:[%s3 + $0x9c] sm:$0xf] %v971
  %1036 = vst [vmem:[%s3 + $0xa0] sm:$0xf] %v972
  %1037 = vst [vmem:[%s3 + $0xa4] sm:$0xf] %v973
  %1038 = vst [vmem:[%s3 + $0xa8] sm:$0xf] %v974
  %1039 = vst [vmem:[%s3 + $0xac] sm:$0xf] %v975
  %1040 = vst [vmem:[%s3 + $0xb0] sm:$0xf] %v976
  %1041 = vst [vmem:[%s3 + $0xb4] sm:$0xf] %v977
  %1042 = vst [vmem:[%s3 + $0xb8] sm:$0xf] %v978
  %1043 = vst [vmem:[%s3 + $0xbc] sm:$0xf] %v979
  %1044 = vst [vmem:[%s3 + $0xc0] sm:$0xf] %v980
  %1045 = vst [vmem:[%s3 + $0xc4] sm:$0xf] %v981
  %1046 = vst [vmem:[%s3 + $0xc8] sm:$0xf] %v982
  %1047 = vst [vmem:[%s3 + $0xcc] sm:$0xf] %v983
  %1048 = vst [vmem:[%s3 + $0xd0] sm:$0xf] %v984
  %1049 = vst [vmem:[%s3 + $0xd4] sm:$0xf] %v985
  %1050 = vst [vmem:[%s3 + $0xd8] sm:$0xf] %v986
  %1051 = vst [vmem:[%s3 + $0xdc] sm:$0xf] %v987
  %1052 = vst [vmem:[%s3 + $0xe0] sm:$0xf] %v988
  %1053 = vst [vmem:[%s3 + $0xe4] sm:$0xf] %v989
  %1054 = vst [vmem:[%s3 + $0xe8] sm:$0xf] %v990
  %1055 = vst [vmem:[%s3 + $0xec] sm:$0xf] %v991
  %1056 = vst [vmem:[%s3 + $0xf0] sm:$0xf] %v992
  %1057 = vst [vmem:[%s3 + $0xf4] sm:$0xf] %v993
  %1058 = vst [vmem:[%s3 + $0xf8] sm:$0xf] %v994
  %1059 = vst [vmem:[%s3 + $0xfc] sm:$0xf] %v995
  // Predicated region
  $region14: #{resnet_forward.11} parent=0 // pred_check
    _
  $region15: #{resnet_forward.11} parent=0 // pred_check_branch
    %1061 = sbr.rel (0) target = $region17
  $region16: #{resnet_forward.11} parent=0 // pred_region
    _
  $region17: #{resnet_forward.11} parent=0 // pred_fallthru
    _
  // Predicated region
  $region18: #{resnet_forward.11} parent=0 // pred_check
    _
  $region19: #{resnet_forward.11} parent=0 // pred_check_branch
    %1063 = sbr.rel (0) target = $region21
  $region20: #{resnet_forward.11} parent=0 // pred_region
    _
  $region21: #{resnet_forward.11} parent=0 // pred_fallthru
    _

// kernel: resnet_forward.14
$region0: #{resnet_forward.14}
  #allocation0 [shape = 'u32[]', space=smem, size = 0x4, offset = 0x4, fixed_abs, tag = 'smem constant byte address 0x4 - core index']
  #allocation1 [shape = 'u32[72,128]{1,0:T(1,128)}', space=vmem, size = 0x9000, scoped, tag = 'internal scratch']
  %s0 = inlined_call_operand.vmem [shape: bf16[512,384], index: 0, kind: input, shape index: {}]
  %s1 = inlined_call_operand.vmem [shape: bf16[384,128], index: 1, kind: input, shape index: {}]
  %s2 = inlined_call_operand.vmem [shape: f32[1,128], index: 2, kind: input, shape index: {}]
  %s3 = inlined_call_operand.vmem [shape: bf16[512,128], index: 3, kind: input, shape index: {}]
  %s4 = inlined_call_operand.vmem [shape: bf16[512,128], index: 4, kind: output, shape index: {}]
  %s5 = sld [smem:[#allocation0]]
  $region26: #{resnet_forward.14} parent=0
    _
  %s7 = ssub.s32 1, %s5
  %s8 = scalar_select 0, %s7, %s5
  // Predicated region
  $region2: #{resnet_forward.14} parent=0 // pred_check
    _
  $region3: #{resnet_forward.14} parent=0 // pred_check_branch
    %10 = sbr.rel (0) target = $region5
  $region4: #{resnet_forward.14} parent=0 // pred_region
    _
  $region5: #{resnet_forward.14} parent=0 // pred_fallthru
    _
  // Predicated region
  $region6: #{resnet_forward.14} parent=0 // pred_check
    _
  $region7: #{resnet_forward.14} parent=0 // pred_check_branch
    %12 = sbr.rel (0) target = $region9
  $region8: #{resnet_forward.14} parent=0 // pred_region
    _
  $region9: #{resnet_forward.14} parent=0 // pred_fallthru
    _
  // Predicated region
  $region10: #{resnet_forward.14} parent=0 // pred_check
    _
  $region11: #{resnet_forward.14} parent=0 // pred_check_branch
    %14 = sbr.rel (0) target = $region13
  $region12: #{resnet_forward.14} parent=0 // pred_region
    _
  $region13: #{resnet_forward.14} parent=0 // pred_fallthru
    _
  // Predicated region
  $region14: #{resnet_forward.14} parent=0 // pred_check
    _
  $region15: #{resnet_forward.14} parent=0 // pred_check_branch
    %16 = sbr.rel (0) target = $region17
  $region16: #{resnet_forward.14} parent=0 // pred_region
    _
  $region17: #{resnet_forward.14} parent=0 // pred_fallthru
    _
  %v17 = vld [vmem:[%s0] sm:$0xff]
  %v18 = vld [vmem:[%s0 + $0x8] sm:$0xf]
  %v19 = vld [vmem:[%s0 + $0xc] sm:$0xff]
  %v20 = vld [vmem:[%s0 + $0x14] sm:$0xf]
  %v21 = vld [vmem:[%s0 + $0x18] sm:$0xff]
  %v22 = vld [vmem:[%s0 + $0x20] sm:$0xf]
  %v23 = vld [vmem:[%s0 + $0x24] sm:$0xff]
  %v24 = vld [vmem:[%s0 + $0x2c] sm:$0xf]
  %v25 = vld [vmem:[%s0 + $0x30] sm:$0xff]
  %v26 = vld [vmem:[%s0 + $0x38] sm:$0xf]
  %v27 = vld [vmem:[%s0 + $0x3c] sm:$0xff]
  %v28 = vld [vmem:[%s0 + $0x44] sm:$0xf]
  %v29 = vld [vmem:[%s0 + $0x48] sm:$0xff]
  %v30 = vld [vmem:[%s0 + $0x50] sm:$0xf]
  %v31 = vld [vmem:[%s0 + $0x54] sm:$0xff]
  %v32 = vld [vmem:[%s0 + $0x5c] sm:$0xf]
  %v33 = vld [vmem:[%s0 + $0x60] sm:$0xff]
  %v34 = vld [vmem:[%s0 + $0x68] sm:$0xf]
  %v35 = vld [vmem:[%s0 + $0x6c] sm:$0xff]
  %v36 = vld [vmem:[%s0 + $0x74] sm:$0xf]
  %v37 = vld [vmem:[%s0 + $0x78] sm:$0xff]
  %v38 = vld [vmem:[%s0 + $0x80] sm:$0xf]
  %v39 = vld [vmem:[%s0 + $0x84] sm:$0xff]
  %v40 = vld [vmem:[%s0 + $0x8c] sm:$0xf]
  %v41 = vld [vmem:[%s0 + $0x90] sm:$0xff]
  %v42 = vld [vmem:[%s0 + $0x98] sm:$0xf]
  %v43 = vld [vmem:[%s0 + $0x9c] sm:$0xff]
  %v44 = vld [vmem:[%s0 + $0xa4] sm:$0xf]
  %v45 = vld [vmem:[%s0 + $0xa8] sm:$0xff]
  %v46 = vld [vmem:[%s0 + $0xb0] sm:$0xf]
  %v47 = vld [vmem:[%s0 + $0xb4] sm:$0xff]
  %v48 = vld [vmem:[%s0 + $0xbc] sm:$0xf]
  %v49 = vld [vmem:[%s0 + $0xc0] sm:$0xff]
  %v50 = vld [vmem:[%s0 + $0xc8] sm:$0xf]
  %v51 = vld [vmem:[%s0 + $0xcc] sm:$0xff]
  %v52 = vld [vmem:[%s0 + $0xd4] sm:$0xf]
  %v53 = vld [vmem:[%s0 + $0xd8] sm:$0xff]
  %v54 = vld [vmem:[%s0 + $0xe0] sm:$0xf]
  %v55 = vld [vmem:[%s0 + $0xe4] sm:$0xff]
  %v56 = vld [vmem:[%s0 + $0xec] sm:$0xf]
  %v57 = vld [vmem:[%s0 + $0xf0] sm:$0xff]
  %v58 = vld [vmem:[%s0 + $0xf8] sm:$0xf]
  %v59 = vld [vmem:[%s0 + $0xfc] sm:$0xff]
  %v60 = vld [vmem:[%s0 + $0x104] sm:$0xf]
  %v61 = vld [vmem:[%s0 + $0x108] sm:$0xff]
  %v62 = vld [vmem:[%s0 + $0x110] sm:$0xf]
  %v63 = vld [vmem:[%s0 + $0x114] sm:$0xff]
  %v64 = vld [vmem:[%s0 + $0x11c] sm:$0xf]
  %v65 = vld [vmem:[%s0 + $0x120] sm:$0xff]
  %v66 = vld [vmem:[%s0 + $0x128] sm:$0xf]
  %v67 = vld [vmem:[%s0 + $0x12c] sm:$0xff]
  %v68 = vld [vmem:[%s0 + $0x134] sm:$0xf]
  %v69 = vld [vmem:[%s0 + $0x138] sm:$0xff]
  %v70 = vld [vmem:[%s0 + $0x140] sm:$0xf]
  %v71 = vld [vmem:[%s0 + $0x144] sm:$0xff]
  %v72 = vld [vmem:[%s0 + $0x14c] sm:$0xf]
  %v73 = vld [vmem:[%s0 + $0x150] sm:$0xff]
  %v74 = vld [vmem:[%s0 + $0x158] sm:$0xf]
  %v75 = vld [vmem:[%s0 + $0x15c] sm:$0xff]
  %v76 = vld [vmem:[%s0 + $0x164] sm:$0xf]
  %v77 = vld [vmem:[%s0 + $0x168] sm:$0xff]
  %v78 = vld [vmem:[%s0 + $0x170] sm:$0xf]
  %v79 = vld [vmem:[%s0 + $0x174] sm:$0xff]
  %v80 = vld [vmem:[%s0 + $0x17c] sm:$0xf]
  %v81 = vld [vmem:[%s0 + $0x180] sm:$0xff]
  %v82 = vld [vmem:[%s0 + $0x188] sm:$0xf]
  %v83 = vld [vmem:[%s0 + $0x18c] sm:$0xff]
  %v84 = vld [vmem:[%s0 + $0x194] sm:$0xf]
  %v85 = vld [vmem:[%s0 + $0x198] sm:$0xff]
  %v86 = vld [vmem:[%s0 + $0x1a0] sm:$0xf]
  %v87 = vld [vmem:[%s0 + $0x1a4] sm:$0xff]
  %v88 = vld [vmem:[%s0 + $0x1ac] sm:$0xf]
  %v89 = vld [vmem:[%s0 + $0x1b0] sm:$0xff]
  %v90 = vld [vmem:[%s0 + $0x1b8] sm:$0xf]
  %v91 = vld [vmem:[%s0 + $0x1bc] sm:$0xff]
  %v92 = vld [vmem:[%s0 + $0x1c4] sm:$0xf]
  %v93 = vld [vmem:[%s0 + $0x1c8] sm:$0xff]
  %v94 = vld [vmem:[%s0 + $0x1d0] sm:$0xf]
  %v95 = vld [vmem:[%s0 + $0x1d4] sm:$0xff]
  %v96 = vld [vmem:[%s0 + $0x1dc] sm:$0xf]
  %v97 = vld [vmem:[%s0 + $0x1e0] sm:$0xff]
  %v98 = vld [vmem:[%s0 + $0x1e8] sm:$0xf]
  %v99 = vld [vmem:[%s0 + $0x1ec] sm:$0xff]
  %v100 = vld [vmem:[%s0 + $0x1f4] sm:$0xf]
  %v101 = vld [vmem:[%s0 + $0x1f8] sm:$0xff]
  %v102 = vld [vmem:[%s0 + $0x200] sm:$0xf]
  %v103 = vld [vmem:[%s0 + $0x204] sm:$0xff]
  %v104 = vld [vmem:[%s0 + $0x20c] sm:$0xf]
  %v105 = vld [vmem:[%s0 + $0x210] sm:$0xff]
  %v106 = vld [vmem:[%s0 + $0x218] sm:$0xf]
  %v107 = vld [vmem:[%s0 + $0x21c] sm:$0xff]
  %v108 = vld [vmem:[%s0 + $0x224] sm:$0xf]
  %v109 = vld [vmem:[%s0 + $0x228] sm:$0xff]
  %v110 = vld [vmem:[%s0 + $0x230] sm:$0xf]
  %v111 = vld [vmem:[%s0 + $0x234] sm:$0xff]
  %v112 = vld [vmem:[%s0 + $0x23c] sm:$0xf]
  %v113 = vld [vmem:[%s0 + $0x240] sm:$0xff]
  %v114 = vld [vmem:[%s0 + $0x248] sm:$0xf]
  %v115 = vld [vmem:[%s0 + $0x24c] sm:$0xff]
  %v116 = vld [vmem:[%s0 + $0x254] sm:$0xf]
  %v117 = vld [vmem:[%s0 + $0x258] sm:$0xff]
  %v118 = vld [vmem:[%s0 + $0x260] sm:$0xf]
  %v119 = vld [vmem:[%s0 + $0x264] sm:$0xff]
  %v120 = vld [vmem:[%s0 + $0x26c] sm:$0xf]
  %v121 = vld [vmem:[%s0 + $0x270] sm:$0xff]
  %v122 = vld [vmem:[%s0 + $0x278] sm:$0xf]
  %v123 = vld [vmem:[%s0 + $0x27c] sm:$0xff]
  %v124 = vld [vmem:[%s0 + $0x284] sm:$0xf]
  %v125 = vld [vmem:[%s0 + $0x288] sm:$0xff]
  %v126 = vld [vmem:[%s0 + $0x290] sm:$0xf]
  %v127 = vld [vmem:[%s0 + $0x294] sm:$0xff]
  %v128 = vld [vmem:[%s0 + $0x29c] sm:$0xf]
  %v129 = vld [vmem:[%s0 + $0x2a0] sm:$0xff]
  %v130 = vld [vmem:[%s0 + $0x2a8] sm:$0xf]
  %v131 = vld [vmem:[%s0 + $0x2ac] sm:$0xff]
  %v132 = vld [vmem:[%s0 + $0x2b4] sm:$0xf]
  %v133 = vld [vmem:[%s0 + $0x2b8] sm:$0xff]
  %v134 = vld [vmem:[%s0 + $0x2c0] sm:$0xf]
  %v135 = vld [vmem:[%s0 + $0x2c4] sm:$0xff]
  %v136 = vld [vmem:[%s0 + $0x2cc] sm:$0xf]
  %v137 = vld [vmem:[%s0 + $0x2d0] sm:$0xff]
  %v138 = vld [vmem:[%s0 + $0x2d8] sm:$0xf]
  %v139 = vld [vmem:[%s0 + $0x2dc] sm:$0xff]
  %v140 = vld [vmem:[%s0 + $0x2e4] sm:$0xf]
  %v141 = vld [vmem:[%s0 + $0x2e8] sm:$0xff]
  %v142 = vld [vmem:[%s0 + $0x2f0] sm:$0xf]
  %v143 = vld [vmem:[%s0 + $0x2f4] sm:$0xff]
  %v144 = vld [vmem:[%s0 + $0x2fc] sm:$0xf]
  %v145 = vld [vmem:[%s1] sm:$0xf]
  %v146 = vld [vmem:[%s1 + $0x4] sm:$0xf]
  %v147 = vld [vmem:[%s1 + $0x8] sm:$0xf]
  %v148 = vld [vmem:[%s1 + $0xc] sm:$0xf]
  %v149 = vld [vmem:[%s1 + $0x10] sm:$0xf]
  %v150 = vld [vmem:[%s1 + $0x14] sm:$0xf]
  %v151 = vld [vmem:[%s1 + $0x18] sm:$0xf]
  %v152 = vld [vmem:[%s1 + $0x1c] sm:$0xf]
  %v153 = vld [vmem:[%s1 + $0x20] sm:$0xf]
  %v154 = vld [vmem:[%s1 + $0x24] sm:$0xf]
  %v155 = vld [vmem:[%s1 + $0x28] sm:$0xf]
  %v156 = vld [vmem:[%s1 + $0x2c] sm:$0xf]
  %v157 = vld [vmem:[%s1 + $0x30] sm:$0xf]
  %v158 = vld [vmem:[%s1 + $0x34] sm:$0xf]
  %v159 = vld [vmem:[%s1 + $0x38] sm:$0xf]
  %v160 = vld [vmem:[%s1 + $0x3c] sm:$0xf]
  %v161 = vld [vmem:[%s1 + $0x40] sm:$0xf]
  %v162 = vld [vmem:[%s1 + $0x44] sm:$0xf]
  %v163 = vld [vmem:[%s1 + $0x48] sm:$0xf]
  %v164 = vld [vmem:[%s1 + $0x4c] sm:$0xf]
  %v165 = vld [vmem:[%s1 + $0x50] sm:$0xf]
  %v166 = vld [vmem:[%s1 + $0x54] sm:$0xf]
  %v167 = vld [vmem:[%s1 + $0x58] sm:$0xf]
  %v168 = vld [vmem:[%s1 + $0x5c] sm:$0xf]
  %v169 = vld [vmem:[%s1 + $0x60] sm:$0xf]
  %v170 = vld [vmem:[%s1 + $0x64] sm:$0xf]
  %v171 = vld [vmem:[%s1 + $0x68] sm:$0xf]
  %v172 = vld [vmem:[%s1 + $0x6c] sm:$0xf]
  %v173 = vld [vmem:[%s1 + $0x70] sm:$0xf]
  %v174 = vld [vmem:[%s1 + $0x74] sm:$0xf]
  %v175 = vld [vmem:[%s1 + $0x78] sm:$0xf]
  %v176 = vld [vmem:[%s1 + $0x7c] sm:$0xf]
  %v177 = vld [vmem:[%s1 + $0x80] sm:$0xf]
  %v178 = vld [vmem:[%s1 + $0x84] sm:$0xf]
  %v179 = vld [vmem:[%s1 + $0x88] sm:$0xf]
  %v180 = vld [vmem:[%s1 + $0x8c] sm:$0xf]
  %v181 = vld [vmem:[%s1 + $0x90] sm:$0xf]
  %v182 = vld [vmem:[%s1 + $0x94] sm:$0xf]
  %v183 = vld [vmem:[%s1 + $0x98] sm:$0xf]
  %v184 = vld [vmem:[%s1 + $0x9c] sm:$0xf]
  %v185 = vld [vmem:[%s1 + $0xa0] sm:$0xf]
  %v186 = vld [vmem:[%s1 + $0xa4] sm:$0xf]
  %v187 = vld [vmem:[%s1 + $0xa8] sm:$0xf]
  %v188 = vld [vmem:[%s1 + $0xac] sm:$0xf]
  %v189 = vld [vmem:[%s1 + $0xb0] sm:$0xf]
  %v190 = vld [vmem:[%s1 + $0xb4] sm:$0xf]
  %v191 = vld [vmem:[%s1 + $0xb8] sm:$0xf]
  %v192 = vld [vmem:[%s1 + $0xbc] sm:$0xf]
  %v193 = vld [vmem:[%s2] sm:$0x1]
  %v195 = vperm.slane %v193, 0
  %v325 = vunpack.c.l.b16 %v17
  %v326 = vunpack.c.h.b16 %v17
  %v327 = vunpack.c.l.b16 %v18
  %v328 = vunpack.c.l.b16 %v19
  %v329 = vunpack.c.h.b16 %v19
  %v330 = vunpack.c.l.b16 %v20
  %v331 = vunpack.c.l.b16 %v21
  %v332 = vunpack.c.h.b16 %v21
  %v333 = vunpack.c.l.b16 %v22
  %v334 = vunpack.c.l.b16 %v23
  %v335 = vunpack.c.h.b16 %v23
  %v336 = vunpack.c.l.b16 %v24
  %v337 = vunpack.c.l.b16 %v25
  %v338 = vunpack.c.h.b16 %v25
  %v339 = vunpack.c.l.b16 %v26
  %v340 = vunpack.c.l.b16 %v27
  %v341 = vunpack.c.h.b16 %v27
  %v342 = vunpack.c.l.b16 %v28
  %v343 = vunpack.c.l.b16 %v29
  %v344 = vunpack.c.h.b16 %v29
  %v345 = vunpack.c.l.b16 %v30
  %v346 = vunpack.c.l.b16 %v31
  %v347 = vunpack.c.h.b16 %v31
  %v348 = vunpack.c.l.b16 %v32
  %v349 = vunpack.c.l.b16 %v33
  %v350 = vunpack.c.h.b16 %v33
  %v351 = vunpack.c.l.b16 %v34
  %v352 = vunpack.c.l.b16 %v35
  %v353 = vunpack.c.h.b16 %v35
  %v354 = vunpack.c.l.b16 %v36
  %v355 = vunpack.c.l.b16 %v37
  %v356 = vunpack.c.h.b16 %v37
  %v357 = vunpack.c.l.b16 %v38
  %v358 = vunpack.c.l.b16 %v39
  %v359 = vunpack.c.h.b16 %v39
  %v360 = vunpack.c.l.b16 %v40
  %v361 = vunpack.c.l.b16 %v41
  %v362 = vunpack.c.h.b16 %v41
  %v363 = vunpack.c.l.b16 %v42
  %v364 = vunpack.c.l.b16 %v43
  %v365 = vunpack.c.h.b16 %v43
  %v366 = vunpack.c.l.b16 %v44
  %v367 = vunpack.c.l.b16 %v45
  %v368 = vunpack.c.h.b16 %v45
  %v369 = vunpack.c.l.b16 %v46
  %v370 = vunpack.c.l.b16 %v47
  %v371 = vunpack.c.h.b16 %v47
  %v372 = vunpack.c.l.b16 %v48
  %v373 = vunpack.c.l.b16 %v49
  %v374 = vunpack.c.h.b16 %v49
  %v375 = vunpack.c.l.b16 %v50
  %v376 = vunpack.c.l.b16 %v51
  %v377 = vunpack.c.h.b16 %v51
  %v378 = vunpack.c.l.b16 %v52
  %v379 = vunpack.c.l.b16 %v53
  %v380 = vunpack.c.h.b16 %v53
  %v381 = vunpack.c.l.b16 %v54
  %v382 = vunpack.c.l.b16 %v55
  %v383 = vunpack.c.h.b16 %v55
  %v384 = vunpack.c.l.b16 %v56
  %v385 = vunpack.c.l.b16 %v57
  %v386 = vunpack.c.h.b16 %v57
  %v387 = vunpack.c.l.b16 %v58
  %v388 = vunpack.c.l.b16 %v59
  %v389 = vunpack.c.h.b16 %v59
  %v390 = vunpack.c.l.b16 %v60
  %v391 = vunpack.c.l.b16 %v61
  %v392 = vunpack.c.h.b16 %v61
  %v393 = vunpack.c.l.b16 %v62
  %v394 = vunpack.c.l.b16 %v63
  %v395 = vunpack.c.h.b16 %v63
  %v396 = vunpack.c.l.b16 %v64
  %v397 = vunpack.c.l.b16 %v65
  %v398 = vunpack.c.h.b16 %v65
  %v399 = vunpack.c.l.b16 %v66
  %v400 = vunpack.c.l.b16 %v67
  %v401 = vunpack.c.h.b16 %v67
  %v402 = vunpack.c.l.b16 %v68
  %v403 = vunpack.c.l.b16 %v69
  %v404 = vunpack.c.h.b16 %v69
  %v405 = vunpack.c.l.b16 %v70
  %v406 = vunpack.c.l.b16 %v71
  %v407 = vunpack.c.h.b16 %v71
  %v408 = vunpack.c.l.b16 %v72
  %v409 = vunpack.c.l.b16 %v73
  %v410 = vunpack.c.h.b16 %v73
  %v411 = vunpack.c.l.b16 %v74
  %v412 = vunpack.c.l.b16 %v75
  %v413 = vunpack.c.h.b16 %v75
  %v414 = vunpack.c.l.b16 %v76
  %v415 = vunpack.c.l.b16 %v77
  %v416 = vunpack.c.h.b16 %v77
  %v417 = vunpack.c.l.b16 %v78
  %v418 = vunpack.c.l.b16 %v79
  %v419 = vunpack.c.h.b16 %v79
  %v420 = vunpack.c.l.b16 %v80
  %v421 = vunpack.c.l.b16 %v81
  %v422 = vunpack.c.h.b16 %v81
  %v423 = vunpack.c.l.b16 %v82
  %v424 = vunpack.c.l.b16 %v83
  %v425 = vunpack.c.h.b16 %v83
  %v426 = vunpack.c.l.b16 %v84
  %v427 = vunpack.c.l.b16 %v85
  %v428 = vunpack.c.h.b16 %v85
  %v429 = vunpack.c.l.b16 %v86
  %v430 = vunpack.c.l.b16 %v87
  %v431 = vunpack.c.h.b16 %v87
  %v432 = vunpack.c.l.b16 %v88
  %v433 = vunpack.c.l.b16 %v89
  %v434 = vunpack.c.h.b16 %v89
  %v435 = vunpack.c.l.b16 %v90
  %v436 = vunpack.c.l.b16 %v91
  %v437 = vunpack.c.h.b16 %v91
  %v438 = vunpack.c.l.b16 %v92
  %v439 = vunpack.c.l.b16 %v93
  %v440 = vunpack.c.h.b16 %v93
  %v441 = vunpack.c.l.b16 %v94
  %v442 = vunpack.c.l.b16 %v95
  %v443 = vunpack.c.h.b16 %v95
  %v444 = vunpack.c.l.b16 %v96
  %v445 = vunpack.c.l.b16 %v97
  %v446 = vunpack.c.h.b16 %v97
  %v447 = vunpack.c.l.b16 %v98
  %v448 = vunpack.c.l.b16 %v99
  %v449 = vunpack.c.h.b16 %v99
  %v450 = vunpack.c.l.b16 %v100
  %v451 = vunpack.c.l.b16 %v101
  %v452 = vunpack.c.h.b16 %v101
  %v453 = vunpack.c.l.b16 %v102
  %v454 = vunpack.c.l.b16 %v103
  %v455 = vunpack.c.h.b16 %v103
  %v456 = vunpack.c.l.b16 %v104
  %v457 = vunpack.c.l.b16 %v105
  %v458 = vunpack.c.h.b16 %v105
  %v459 = vunpack.c.l.b16 %v106
  %v460 = vunpack.c.l.b16 %v107
  %v461 = vunpack.c.h.b16 %v107
  %v462 = vunpack.c.l.b16 %v108
  %v463 = vunpack.c.l.b16 %v109
  %v464 = vunpack.c.h.b16 %v109
  %v465 = vunpack.c.l.b16 %v110
  %v466 = vunpack.c.l.b16 %v111
  %v467 = vunpack.c.h.b16 %v111
  %v468 = vunpack.c.l.b16 %v112
  %v469 = vunpack.c.l.b16 %v113
  %v470 = vunpack.c.h.b16 %v113
  %v471 = vunpack.c.l.b16 %v114
  %v472 = vunpack.c.l.b16 %v115
  %v473 = vunpack.c.h.b16 %v115
  %v474 = vunpack.c.l.b16 %v116
  %v475 = vunpack.c.l.b16 %v117
  %v476 = vunpack.c.h.b16 %v117
  %v477 = vunpack.c.l.b16 %v118
  %v478 = vunpack.c.l.b16 %v119
  %v479 = vunpack.c.h.b16 %v119
  %v480 = vunpack.c.l.b16 %v120
  %v481 = vunpack.c.l.b16 %v121
  %v482 = vunpack.c.h.b16 %v121
  %v483 = vunpack.c.l.b16 %v122
  %v484 = vunpack.c.l.b16 %v123
  %v485 = vunpack.c.h.b16 %v123
  %v486 = vunpack.c.l.b16 %v124
  %v487 = vunpack.c.l.b16 %v125
  %v488 = vunpack.c.h.b16 %v125
  %v489 = vunpack.c.l.b16 %v126
  %v490 = vunpack.c.l.b16 %v127
  %v491 = vunpack.c.h.b16 %v127
  %v492 = vunpack.c.l.b16 %v128
  %v493 = vunpack.c.l.b16 %v129
  %v494 = vunpack.c.h.b16 %v129
  %v495 = vunpack.c.l.b16 %v130
  %v496 = vunpack.c.l.b16 %v131
  %v497 = vunpack.c.h.b16 %v131
  %v498 = vunpack.c.l.b16 %v132
  %v499 = vunpack.c.l.b16 %v133
  %v500 = vunpack.c.h.b16 %v133
  %v501 = vunpack.c.l.b16 %v134
  %v502 = vunpack.c.l.b16 %v135
  %v503 = vunpack.c.h.b16 %v135
  %v504 = vunpack.c.l.b16 %v136
  %v505 = vunpack.c.l.b16 %v137
  %v506 = vunpack.c.h.b16 %v137
  %v507 = vunpack.c.l.b16 %v138
  %v508 = vunpack.c.l.b16 %v139
  %v509 = vunpack.c.h.b16 %v139
  %v510 = vunpack.c.l.b16 %v140
  %v511 = vunpack.c.l.b16 %v141
  %v512 = vunpack.c.h.b16 %v141
  %v513 = vunpack.c.l.b16 %v142
  %v514 = vunpack.c.l.b16 %v143
  %v515 = vunpack.c.h.b16 %v143
  %v516 = vunpack.c.l.b16 %v144
  %v517 = vpack.c.b16 %v328, %v325
  %v518 = vpack.c.b16 %v329, %v326
  %v519 = vpack.c.b16 %v330, %v327
  %v520 = vpack.c.b16 %v334, %v331
  %v521 = vpack.c.b16 %v335, %v332
  %v522 = vpack.c.b16 %v336, %v333
  %v523 = vpack.c.b16 %v340, %v337
  %v524 = vpack.c.b16 %v341, %v338
  %v525 = vpack.c.b16 %v342, %v339
  %v526 = vpack.c.b16 %v346, %v343
  %v527 = vpack.c.b16 %v347, %v344
  %v528 = vpack.c.b16 %v348, %v345
  %v529 = vpack.c.b16 %v352, %v349
  %v530 = vpack.c.b16 %v353, %v350
  %v531 = vpack.c.b16 %v354, %v351
  %v532 = vpack.c.b16 %v358, %v355
  %v533 = vpack.c.b16 %v359, %v356
  %v534 = vpack.c.b16 %v360, %v357
  %v535 = vpack.c.b16 %v364, %v361
  %v536 = vpack.c.b16 %v365, %v362
  %v537 = vpack.c.b16 %v366, %v363
  %v538 = vpack.c.b16 %v370, %v367
  %v539 = vpack.c.b16 %v371, %v368
  %v540 = vpack.c.b16 %v372, %v369
  %v541 = vpack.c.b16 %v376, %v373
  %v542 = vpack.c.b16 %v377, %v374
  %v543 = vpack.c.b16 %v378, %v375
  %v544 = vpack.c.b16 %v382, %v379
  %v545 = vpack.c.b16 %v383, %v380
  %v546 = vpack.c.b16 %v384, %v381
  %v547 = vpack.c.b16 %v388, %v385
  %v548 = vpack.c.b16 %v389, %v386
  %v549 = vpack.c.b16 %v390, %v387
  %v550 = vpack.c.b16 %v394, %v391
  %v551 = vpack.c.b16 %v395, %v392
  %v552 = vpack.c.b16 %v396, %v393
  %v553 = vpack.c.b16 %v400, %v397
  %v554 = vpack.c.b16 %v401, %v398
  %v555 = vpack.c.b16 %v402, %v399
  %v556 = vpack.c.b16 %v406, %v403
  %v557 = vpack.c.b16 %v407, %v404
  %v558 = vpack.c.b16 %v408, %v405
  %v559 = vpack.c.b16 %v412, %v409
  %v560 = vpack.c.b16 %v413, %v410
  %v561 = vpack.c.b16 %v414, %v411
  %v562 = vpack.c.b16 %v418, %v415
  %v563 = vpack.c.b16 %v419, %v416
  %v564 = vpack.c.b16 %v420, %v417
  %v565 = vpack.c.b16 %v424, %v421
  %v566 = vpack.c.b16 %v425, %v422
  %v567 = vpack.c.b16 %v426, %v423
  %v568 = vpack.c.b16 %v430, %v427
  %v569 = vpack.c.b16 %v431, %v428
  %v570 = vpack.c.b16 %v432, %v429
  %v571 = vpack.c.b16 %v436, %v433
  %v572 = vpack.c.b16 %v437, %v434
  %v573 = vpack.c.b16 %v438, %v435
  %v574 = vpack.c.b16 %v442, %v439
  %v575 = vpack.c.b16 %v443, %v440
  %v576 = vpack.c.b16 %v444, %v441
  %v577 = vpack.c.b16 %v448, %v445
  %v578 = vpack.c.b16 %v449, %v446
  %v579 = vpack.c.b16 %v450, %v447
  %v580 = vpack.c.b16 %v454, %v451
  %v581 = vpack.c.b16 %v455, %v452
  %v582 = vpack.c.b16 %v456, %v453
  %v583 = vpack.c.b16 %v460, %v457
  %v584 = vpack.c.b16 %v461, %v458
  %v585 = vpack.c.b16 %v462, %v459
  %v586 = vpack.c.b16 %v466, %v463
  %v587 = vpack.c.b16 %v467, %v464
  %v588 = vpack.c.b16 %v468, %v465
  %v589 = vpack.c.b16 %v472, %v469
  %v590 = vpack.c.b16 %v473, %v470
  %v591 = vpack.c.b16 %v474, %v471
  %v592 = vpack.c.b16 %v478, %v475
  %v593 = vpack.c.b16 %v479, %v476
  %v594 = vpack.c.b16 %v480, %v477
  %v595 = vpack.c.b16 %v484, %v481
  %v596 = vpack.c.b16 %v485, %v482
  %v597 = vpack.c.b16 %v486, %v483
  %v598 = vpack.c.b16 %v490, %v487
  %v599 = vpack.c.b16 %v491, %v488
  %v600 = vpack.c.b16 %v492, %v489
  %v601 = vpack.c.b16 %v496, %v493
  %v602 = vpack.c.b16 %v497, %v494
  %v603 = vpack.c.b16 %v498, %v495
  %v604 = vpack.c.b16 %v502, %v499
  %v605 = vpack.c.b16 %v503, %v500
  %v606 = vpack.c.b16 %v504, %v501
  %v607 = vpack.c.b16 %v508, %v505
  %v608 = vpack.c.b16 %v509, %v506
  %v609 = vpack.c.b16 %v510, %v507
  %v610 = vpack.c.b16 %v514, %v511
  %v611 = vpack.c.b16 %v515, %v512
  %v612 = vpack.c.b16 %v516, %v513
  %v757 = vunpack.c.l.b16 %v145
  %v758 = vunpack.c.l.b16 %v146
  %v759 = vunpack.c.l.b16 %v147
  %v760 = vunpack.c.l.b16 %v148
  %v761 = vunpack.c.l.b16 %v149
  %v762 = vunpack.c.l.b16 %v150
  %v763 = vunpack.c.l.b16 %v151
  %v764 = vunpack.c.l.b16 %v152
  %v765 = vunpack.c.l.b16 %v153
  %v766 = vunpack.c.l.b16 %v154
  %v767 = vunpack.c.l.b16 %v155
  %v768 = vunpack.c.l.b16 %v156
  %v769 = vunpack.c.l.b16 %v157
  %v770 = vunpack.c.l.b16 %v158
  %v771 = vunpack.c.l.b16 %v159
  %v772 = vunpack.c.l.b16 %v160
  %v773 = vunpack.c.l.b16 %v161
  %v774 = vunpack.c.l.b16 %v162
  %v775 = vunpack.c.l.b16 %v163
  %v776 = vunpack.c.l.b16 %v164
  %v777 = vunpack.c.l.b16 %v165
  %v778 = vunpack.c.l.b16 %v166
  %v779 = vunpack.c.l.b16 %v167
  %v780 = vunpack.c.l.b16 %v168
  %v781 = vunpack.c.l.b16 %v169
  %v782 = vunpack.c.l.b16 %v170
  %v783 = vunpack.c.l.b16 %v171
  %v784 = vunpack.c.l.b16 %v172
  %v785 = vunpack.c.l.b16 %v173
  %v786 = vunpack.c.l.b16 %v174
  %v787 = vunpack.c.l.b16 %v175
  %v788 = vunpack.c.l.b16 %v176
  %v789 = vunpack.c.l.b16 %v177
  %v790 = vunpack.c.l.b16 %v178
  %v791 = vunpack.c.l.b16 %v179
  %v792 = vunpack.c.l.b16 %v180
  %v793 = vunpack.c.l.b16 %v181
  %v794 = vunpack.c.l.b16 %v182
  %v795 = vunpack.c.l.b16 %v183
  %v796 = vunpack.c.l.b16 %v184
  %v797 = vunpack.c.l.b16 %v185
  %v798 = vunpack.c.l.b16 %v186
  %v799 = vunpack.c.l.b16 %v187
  %v800 = vunpack.c.l.b16 %v188
  %v801 = vunpack.c.l.b16 %v189
  %v802 = vunpack.c.l.b16 %v190
  %v803 = vunpack.c.l.b16 %v191
  %v804 = vunpack.c.l.b16 %v192
  %v805 = vpack.c.b16 %v758, %v757
  %v806 = vpack.c.b16 %v760, %v759
  %v807 = vpack.c.b16 %v762, %v761
  %v808 = vpack.c.b16 %v764, %v763
  %v809 = vpack.c.b16 %v766, %v765
  %v810 = vpack.c.b16 %v768, %v767
  %v811 = vpack.c.b16 %v770, %v769
  %v812 = vpack.c.b16 %v772, %v771
  %v813 = vpack.c.b16 %v774, %v773
  %v814 = vpack.c.b16 %v776, %v775
  %v815 = vpack.c.b16 %v778, %v777
  %v816 = vpack.c.b16 %v780, %v779
  %v817 = vpack.c.b16 %v782, %v781
  %v818 = vpack.c.b16 %v784, %v783
  %v819 = vpack.c.b16 %v786, %v785
  %v820 = vpack.c.b16 %v788, %v787
  %v821 = vpack.c.b16 %v790, %v789
  %v822 = vpack.c.b16 %v792, %v791
  %v823 = vpack.c.b16 %v794, %v793
  %v824 = vpack.c.b16 %v796, %v795
  %v825 = vpack.c.b16 %v798, %v797
  %v826 = vpack.c.b16 %v800, %v799
  %v827 = vpack.c.b16 %v802, %v801
  %v828 = vpack.c.b16 %v804, %v803
  %853 = vmatpush.bf16.msra.mxu0 %v812
  %854 = vmatpush.bf16.msra.mxu0 %v811
  %855 = vmatpush.bf16.msra.mxu0 %v810
  %856 = vmatpush.bf16.msra.mxu0 %v809
  %857 = vmatpush.bf16.msra.mxu0 %v808
  %858 = vmatpush.bf16.msra.mxu0 %v807
  %859 = vmatpush.bf16.msra.mxu0 %v806
  %860 = vmatpush.bf16.msra.mxu0 %v805
  %861 = vmatmul.bf16.gmra.mxu0 %v517
  %v862 = vpop.f32.mrf.mxu0
  %v863 = vadd.f32 %v195, %v862
  %v864 = vpop.f32.mrf.mxu0
  %v865 = vadd.f32 %v195, %v864
  %866 = vmatmul.bf16.gmra.mxu0 %v520
  %v867 = vpop.f32.mrf.mxu0
  %v868 = vadd.f32 %v195, %v867
  %v869 = vpop.f32.mrf.mxu0
  %v870 = vadd.f32 %v195, %v869
  %871 = vmatmul.bf16.gmra.mxu0 %v523
  %v872 = vpop.f32.mrf.mxu0
  %v873 = vadd.f32 %v195, %v872
  %v874 = vpop.f32.mrf.mxu0
  %v875 = vadd.f32 %v195, %v874
  %876 = vmatmul.bf16.gmra.mxu0 %v526
  %v877 = vpop.f32.mrf.mxu0
  %v878 = vadd.f32 %v195, %v877
  %v879 = vpop.f32.mrf.mxu0
  %v880 = vadd.f32 %v195, %v879
  %881 = vmatmul.bf16.gmra.mxu0 %v529
  %v882 = vpop.f32.mrf.mxu0
  %v883 = vadd.f32 %v195, %v882
  %v884 = vpop.f32.mrf.mxu0
  %v885 = vadd.f32 %v195, %v884
  %886 = vmatmul.bf16.gmra.mxu0 %v532
  %v887 = vpop.f32.mrf.mxu0
  %v888 = vadd.f32 %v195, %v887
  %v889 = vpop.f32.mrf.mxu0
  %v890 = vadd.f32 %v195, %v889
  %891 = vmatmul.bf16.gmra.mxu0 %v535
  %v892 = vpop.f32.mrf.mxu0
  %v893 = vadd.f32 %v195, %v892
  %v894 = vpop.f32.mrf.mxu0
  %v895 = vadd.f32 %v195, %v894
  %896 = vmatmul.bf16.gmra.mxu0 %v538
  %v897 = vpop.f32.mrf.mxu0
  %v898 = vadd.f32 %v195, %v897
  %v899 = vpop.f32.mrf.mxu0
  %v900 = vadd.f32 %v195, %v899
  %901 = vmatmul.bf16.gmra.mxu0 %v541
  %v902 = vpop.f32.mrf.mxu0
  %v903 = vadd.f32 %v195, %v902
  %v904 = vpop.f32.mrf.mxu0
  %v905 = vadd.f32 %v195, %v904
  %906 = vmatmul.bf16.gmra.mxu0 %v544
  %v907 = vpop.f32.mrf.mxu0
  %v908 = vadd.f32 %v195, %v907
  %v909 = vpop.f32.mrf.mxu0
  %v910 = vadd.f32 %v195, %v909
  %911 = vmatmul.bf16.gmra.mxu0 %v547
  %v912 = vpop.f32.mrf.mxu0
  %v913 = vadd.f32 %v195, %v912
  %v914 = vpop.f32.mrf.mxu0
  %v915 = vadd.f32 %v195, %v914
  %916 = vmatmul.bf16.gmra.mxu0 %v550
  %v917 = vpop.f32.mrf.mxu0
  %v918 = vadd.f32 %v195, %v917
  %v919 = vpop.f32.mrf.mxu0
  %v920 = vadd.f32 %v195, %v919
  %921 = vmatmul.bf16.gmra.mxu0 %v553
  %v922 = vpop.f32.mrf.mxu0
  %v923 = vadd.f32 %v195, %v922
  %v924 = vpop.f32.mrf.mxu0
  %v925 = vadd.f32 %v195, %v924
  %926 = vmatmul.bf16.gmra.mxu0 %v556
  %v927 = vpop.f32.mrf.mxu0
  %v928 = vadd.f32 %v195, %v927
  %v929 = vpop.f32.mrf.mxu0
  %v930 = vadd.f32 %v195, %v929
  %931 = vmatmul.bf16.gmra.mxu0 %v559
  %v932 = vpop.f32.mrf.mxu0
  %v933 = vadd.f32 %v195, %v932
  %v934 = vpop.f32.mrf.mxu0
  %v935 = vadd.f32 %v195, %v934
  %936 = vmatmul.bf16.gmra.mxu0 %v562
  %v937 = vpop.f32.mrf.mxu0
  %v938 = vadd.f32 %v195, %v937
  %v939 = vpop.f32.mrf.mxu0
  %v940 = vadd.f32 %v195, %v939
  %941 = vmatmul.bf16.gmra.mxu0 %v565
  %v942 = vpop.f32.mrf.mxu0
  %v943 = vadd.f32 %v195, %v942
  %v944 = vpop.f32.mrf.mxu0
  %v945 = vadd.f32 %v195, %v944
  %946 = vmatmul.bf16.gmra.mxu0 %v568
  %v947 = vpop.f32.mrf.mxu0
  %v948 = vadd.f32 %v195, %v947
  %v949 = vpop.f32.mrf.mxu0
  %v950 = vadd.f32 %v195, %v949
  %951 = vmatmul.bf16.gmra.mxu0 %v571
  %v952 = vpop.f32.mrf.mxu0
  %v953 = vadd.f32 %v195, %v952
  %v954 = vpop.f32.mrf.mxu0
  %v955 = vadd.f32 %v195, %v954
  %956 = vmatmul.bf16.gmra.mxu0 %v574
  %v957 = vpop.f32.mrf.mxu0
  %v958 = vadd.f32 %v195, %v957
  %v959 = vpop.f32.mrf.mxu0
  %v960 = vadd.f32 %v195, %v959
  %961 = vmatmul.bf16.gmra.mxu0 %v577
  %v962 = vpop.f32.mrf.mxu0
  %v963 = vadd.f32 %v195, %v962
  %v964 = vpop.f32.mrf.mxu0
  %v965 = vadd.f32 %v195, %v964
  %966 = vmatmul.bf16.gmra.mxu0 %v580
  %v967 = vpop.f32.mrf.mxu0
  %v968 = vadd.f32 %v195, %v967
  %v969 = vpop.f32.mrf.mxu0
  %v970 = vadd.f32 %v195, %v969
  %971 = vmatmul.bf16.gmra.mxu0 %v583
  %v972 = vpop.f32.mrf.mxu0
  %v973 = vadd.f32 %v195, %v972
  %v974 = vpop.f32.mrf.mxu0
  %v975 = vadd.f32 %v195, %v974
  %976 = vmatmul.bf16.gmra.mxu0 %v586
  %v977 = vpop.f32.mrf.mxu0
  %v978 = vadd.f32 %v195, %v977
  %v979 = vpop.f32.mrf.mxu0
  %v980 = vadd.f32 %v195, %v979
  %981 = vmatmul.bf16.gmra.mxu0 %v589
  %v982 = vpop.f32.mrf.mxu0
  %v983 = vadd.f32 %v195, %v982
  %v984 = vpop.f32.mrf.mxu0
  %v985 = vadd.f32 %v195, %v984
  %986 = vmatmul.bf16.gmra.mxu0 %v592
  %v987 = vpop.f32.mrf.mxu0
  %v988 = vadd.f32 %v195, %v987
  %v989 = vpop.f32.mrf.mxu0
  %v990 = vadd.f32 %v195, %v989
  %991 = vmatmul.bf16.gmra.mxu0 %v595
  %v992 = vpop.f32.mrf.mxu0
  %v993 = vadd.f32 %v195, %v992
  %v994 = vpop.f32.mrf.mxu0
  %v995 = vadd.f32 %v195, %v994
  %996 = vmatmul.bf16.gmra.mxu0 %v598
  %v997 = vpop.f32.mrf.mxu0
  %v998 = vadd.f32 %v195, %v997
  %v999 = vpop.f32.mrf.mxu0
  %v1000 = vadd.f32 %v195, %v999
  %1001 = vmatmul.bf16.gmra.mxu0 %v601
  %v1002 = vpop.f32.mrf.mxu0
  %v1003 = vadd.f32 %v195, %v1002
  %v1004 = vpop.f32.mrf.mxu0
  %v1005 = vadd.f32 %v195, %v1004
  %1006 = vmatmul.bf16.gmra.mxu0 %v604
  %v1007 = vpop.f32.mrf.mxu0
  %v1008 = vadd.f32 %v195, %v1007
  %v1009 = vpop.f32.mrf.mxu0
  %v1010 = vadd.f32 %v195, %v1009
  %1011 = vmatmul.bf16.gmra.mxu0 %v607
  %v1012 = vpop.f32.mrf.mxu0
  %v1013 = vadd.f32 %v195, %v1012
  %v1014 = vpop.f32.mrf.mxu0
  %v1015 = vadd.f32 %v195, %v1014
  %1016 = vmatmul.bf16.gmra.mxu0 %v610
  %v1017 = vpop.f32.mrf.mxu0
  %v1018 = vadd.f32 %v195, %v1017
  %v1019 = vpop.f32.mrf.mxu0
  %v1020 = vadd.f32 %v195, %v1019
  %1021 = vdwg.mxu0
  %1022 = vmatpush.bf16.msra.mxu0 %v820
  %1023 = vmatpush.bf16.msra.mxu0 %v819
  %1024 = vmatpush.bf16.msra.mxu0 %v818
  %1025 = vmatpush.bf16.msra.mxu0 %v817
  %1026 = vmatpush.bf16.msra.mxu0 %v816
  %1027 = vmatpush.bf16.msra.mxu0 %v815
  %1028 = vmatpush.bf16.msra.mxu0 %v814
  %1029 = vmatpush.bf16.msra.mxu0 %v813
  %1030 = vmatmul.bf16.gmra.mxu0 %v518
  %v1031 = vpop.f32.mrf.mxu0
  %v1032 = vadd.f32 %v863, %v1031
  %v1033 = vpop.f32.mrf.mxu0
  %v1034 = vadd.f32 %v865, %v1033
  %1035 = vmatmul.bf16.gmra.mxu0 %v521
  %v1036 = vpop.f32.mrf.mxu0
  %v1037 = vadd.f32 %v868, %v1036
  %v1038 = vpop.f32.mrf.mxu0
  %v1039 = vadd.f32 %v870, %v1038
  %1040 = vmatmul.bf16.gmra.mxu0 %v524
  %v1041 = vpop.f32.mrf.mxu0
  %v1042 = vadd.f32 %v873, %v1041
  %v1043 = vpop.f32.mrf.mxu0
  %v1044 = vadd.f32 %v875, %v1043
  %1045 = vmatmul.bf16.gmra.mxu0 %v527
  %v1046 = vpop.f32.mrf.mxu0
  %v1047 = vadd.f32 %v878, %v1046
  %v1048 = vpop.f32.mrf.mxu0
  %v1049 = vadd.f32 %v880, %v1048
  %1050 = vmatmul.bf16.gmra.mxu0 %v530
  %v1051 = vpop.f32.mrf.mxu0
  %v1052 = vadd.f32 %v883, %v1051
  %v1053 = vpop.f32.mrf.mxu0
  %v1054 = vadd.f32 %v885, %v1053
  %1055 = vmatmul.bf16.gmra.mxu0 %v533
  %v1056 = vpop.f32.mrf.mxu0
  %v1057 = vadd.f32 %v888, %v1056
  %v1058 = vpop.f32.mrf.mxu0
  %v1059 = vadd.f32 %v890, %v1058
  %1060 = vmatmul.bf16.gmra.mxu0 %v536
  %v1061 = vpop.f32.mrf.mxu0
  %v1062 = vadd.f32 %v893, %v1061
  %v1063 = vpop.f32.mrf.mxu0
  %v1064 = vadd.f32 %v895, %v1063
  %1065 = vmatmul.bf16.gmra.mxu0 %v539
  %v1066 = vpop.f32.mrf.mxu0
  %v1067 = vadd.f32 %v898, %v1066
  %v1068 = vpop.f32.mrf.mxu0
  %v1069 = vadd.f32 %v900, %v1068
  %1070 = vmatmul.bf16.gmra.mxu0 %v542
  %v1071 = vpop.f32.mrf.mxu0
  %v1072 = vadd.f32 %v903, %v1071
  %v1073 = vpop.f32.mrf.mxu0
  %v1074 = vadd.f32 %v905, %v1073
  %1075 = vmatmul.bf16.gmra.mxu0 %v545
  %v1076 = vpop.f32.mrf.mxu0
  %v1077 = vadd.f32 %v908, %v1076
  %v1078 = vpop.f32.mrf.mxu0
  %v1079 = vadd.f32 %v910, %v1078
  %1080 = vmatmul.bf16.gmra.mxu0 %v548
  %v1081 = vpop.f32.mrf.mxu0
  %v1082 = vadd.f32 %v913, %v1081
  %v1083 = vpop.f32.mrf.mxu0
  %v1084 = vadd.f32 %v915, %v1083
  %1085 = vmatmul.bf16.gmra.mxu0 %v551
  %v1086 = vpop.f32.mrf.mxu0
  %v1087 = vadd.f32 %v918, %v1086
  %v1088 = vpop.f32.mrf.mxu0
  %v1089 = vadd.f32 %v920, %v1088
  %1090 = vmatmul.bf16.gmra.mxu0 %v554
  %v1091 = vpop.f32.mrf.mxu0
  %v1092 = vadd.f32 %v923, %v1091
  %v1093 = vpop.f32.mrf.mxu0
  %v1094 = vadd.f32 %v925, %v1093
  %1095 = vmatmul.bf16.gmra.mxu0 %v557
  %v1096 = vpop.f32.mrf.mxu0
  %v1097 = vadd.f32 %v928, %v1096
  %v1098 = vpop.f32.mrf.mxu0
  %v1099 = vadd.f32 %v930, %v1098
  %1100 = vmatmul.bf16.gmra.mxu0 %v560
  %v1101 = vpop.f32.mrf.mxu0
  %v1102 = vadd.f32 %v933, %v1101
  %v1103 = vpop.f32.mrf.mxu0
  %v1104 = vadd.f32 %v935, %v1103
  %1105 = vmatmul.bf16.gmra.mxu0 %v563
  %v1106 = vpop.f32.mrf.mxu0
  %v1107 = vadd.f32 %v938, %v1106
  %v1108 = vpop.f32.mrf.mxu0
  %v1109 = vadd.f32 %v940, %v1108
  %1110 = vmatmul.bf16.gmra.mxu0 %v566
  %v1111 = vpop.f32.mrf.mxu0
  %v1112 = vadd.f32 %v943, %v1111
  %v1113 = vpop.f32.mrf.mxu0
  %v1114 = vadd.f32 %v945, %v1113
  %1115 = vmatmul.bf16.gmra.mxu0 %v569
  %v1116 = vpop.f32.mrf.mxu0
  %v1117 = vadd.f32 %v948, %v1116
  %v1118 = vpop.f32.mrf.mxu0
  %v1119 = vadd.f32 %v950, %v1118
  %1120 = vmatmul.bf16.gmra.mxu0 %v572
  %v1121 = vpop.f32.mrf.mxu0
  %v1122 = vadd.f32 %v953, %v1121
  %v1123 = vpop.f32.mrf.mxu0
  %v1124 = vadd.f32 %v955, %v1123
  %1125 = vmatmul.bf16.gmra.mxu0 %v575
  %v1126 = vpop.f32.mrf.mxu0
  %v1127 = vadd.f32 %v958, %v1126
  %v1128 = vpop.f32.mrf.mxu0
  %v1129 = vadd.f32 %v960, %v1128
  %1130 = vmatmul.bf16.gmra.mxu0 %v578
  %v1131 = vpop.f32.mrf.mxu0
  %v1132 = vadd.f32 %v963, %v1131
  %v1133 = vpop.f32.mrf.mxu0
  %v1134 = vadd.f32 %v965, %v1133
  %1135 = vmatmul.bf16.gmra.mxu0 %v581
  %v1136 = vpop.f32.mrf.mxu0
  %v1137 = vadd.f32 %v968, %v1136
  %v1138 = vpop.f32.mrf.mxu0
  %v1139 = vadd.f32 %v970, %v1138
  %1140 = vmatmul.bf16.gmra.mxu0 %v584
  %v1141 = vpop.f32.mrf.mxu0
  %v1142 = vadd.f32 %v973, %v1141
  %v1143 = vpop.f32.mrf.mxu0
  %v1144 = vadd.f32 %v975, %v1143
  %1145 = vmatmul.bf16.gmra.mxu0 %v587
  %v1146 = vpop.f32.mrf.mxu0
  %v1147 = vadd.f32 %v978, %v1146
  %v1148 = vpop.f32.mrf.mxu0
  %v1149 = vadd.f32 %v980, %v1148
  %1150 = vmatmul.bf16.gmra.mxu0 %v590
  %v1151 = vpop.f32.mrf.mxu0
  %v1152 = vadd.f32 %v983, %v1151
  %v1153 = vpop.f32.mrf.mxu0
  %v1154 = vadd.f32 %v985, %v1153
  %1155 = vmatmul.bf16.gmra.mxu0 %v593
  %v1156 = vpop.f32.mrf.mxu0
  %v1157 = vadd.f32 %v988, %v1156
  %v1158 = vpop.f32.mrf.mxu0
  %v1159 = vadd.f32 %v990, %v1158
  %1160 = vmatmul.bf16.gmra.mxu0 %v596
  %v1161 = vpop.f32.mrf.mxu0
  %v1162 = vadd.f32 %v993, %v1161
  %v1163 = vpop.f32.mrf.mxu0
  %v1164 = vadd.f32 %v995, %v1163
  %1165 = vmatmul.bf16.gmra.mxu0 %v599
  %v1166 = vpop.f32.mrf.mxu0
  %v1167 = vadd.f32 %v998, %v1166
  %v1168 = vpop.f32.mrf.mxu0
  %v1169 = vadd.f32 %v1000, %v1168
  %1170 = vmatmul.bf16.gmra.mxu0 %v602
  %v1171 = vpop.f32.mrf.mxu0
  %v1172 = vadd.f32 %v1003, %v1171
  %v1173 = vpop.f32.mrf.mxu0
  %v1174 = vadd.f32 %v1005, %v1173
  %1175 = vmatmul.bf16.gmra.mxu0 %v605
  %v1176 = vpop.f32.mrf.mxu0
  %v1177 = vadd.f32 %v1008, %v1176
  %v1178 = vpop.f32.mrf.mxu0
  %v1179 = vadd.f32 %v1010, %v1178
  %1180 = vmatmul.bf16.gmra.mxu0 %v608
  %v1181 = vpop.f32.mrf.mxu0
  %v1182 = vadd.f32 %v1013, %v1181
  %v1183 = vpop.f32.mrf.mxu0
  %v1184 = vadd.f32 %v1015, %v1183
  %1185 = vmatmul.bf16.gmra.mxu0 %v611
  %v1186 = vpop.f32.mrf.mxu0
  %v1187 = vadd.f32 %v1018, %v1186
  %v1188 = vpop.f32.mrf.mxu0
  %v1189 = vadd.f32 %v1020, %v1188
  %1190 = vdwg.mxu0
  %1191 = vmatpush.bf16.msra.mxu0 %v828
  %1192 = vmatpush.bf16.msra.mxu0 %v827
  %1193 = vmatpush.bf16.msra.mxu0 %v826
  %1194 = vmatpush.bf16.msra.mxu0 %v825
  %1195 = vmatpush.bf16.msra.mxu0 %v824
  %1196 = vmatpush.bf16.msra.mxu0 %v823
  %1197 = vmatpush.bf16.msra.mxu0 %v822
  %1198 = vmatpush.bf16.msra.mxu0 %v821
  %1199 = vmatmul.bf16.gmra.mxu0 %v519
  %v1200 = vpop.f32.mrf.mxu0
  %v1201 = vadd.f32 %v1032, %v1200
  %v1202 = vpop.f32.mrf.mxu0
  %v1203 = vadd.f32 %v1034, %v1202
  %1204 = vmatmul.bf16.gmra.mxu0 %v522
  %v1205 = vpop.f32.mrf.mxu0
  %v1206 = vadd.f32 %v1037, %v1205
  %v1207 = vpop.f32.mrf.mxu0
  %v1208 = vadd.f32 %v1039, %v1207
  %1209 = vmatmul.bf16.gmra.mxu0 %v525
  %v1210 = vpop.f32.mrf.mxu0
  %v1211 = vadd.f32 %v1042, %v1210
  %v1212 = vpop.f32.mrf.mxu0
  %v1213 = vadd.f32 %v1044, %v1212
  %1214 = vmatmul.bf16.gmra.mxu0 %v528
  %v1215 = vpop.f32.mrf.mxu0
  %v1216 = vadd.f32 %v1047, %v1215
  %v1217 = vpop.f32.mrf.mxu0
  %v1218 = vadd.f32 %v1049, %v1217
  %1219 = vmatmul.bf16.gmra.mxu0 %v531
  %v1220 = vpop.f32.mrf.mxu0
  %v1221 = vadd.f32 %v1052, %v1220
  %v1222 = vpop.f32.mrf.mxu0
  %v1223 = vadd.f32 %v1054, %v1222
  %1224 = vmatmul.bf16.gmra.mxu0 %v534
  %v1225 = vpop.f32.mrf.mxu0
  %v1226 = vadd.f32 %v1057, %v1225
  %v1227 = vpop.f32.mrf.mxu0
  %v1228 = vadd.f32 %v1059, %v1227
  %1229 = vmatmul.bf16.gmra.mxu0 %v537
  %v1230 = vpop.f32.mrf.mxu0
  %v1231 = vadd.f32 %v1062, %v1230
  %v1232 = vpop.f32.mrf.mxu0
  %v1233 = vadd.f32 %v1064, %v1232
  %1234 = vmatmul.bf16.gmra.mxu0 %v540
  %v1235 = vpop.f32.mrf.mxu0
  %v1236 = vadd.f32 %v1067, %v1235
  %v1237 = vpop.f32.mrf.mxu0
  %v1238 = vadd.f32 %v1069, %v1237
  %1239 = vmatmul.bf16.gmra.mxu0 %v543
  %v1240 = vpop.f32.mrf.mxu0
  %v1241 = vadd.f32 %v1072, %v1240
  %v1242 = vpop.f32.mrf.mxu0
  %v1243 = vadd.f32 %v1074, %v1242
  %1244 = vmatmul.bf16.gmra.mxu0 %v546
  %v1245 = vpop.f32.mrf.mxu0
  %v1246 = vadd.f32 %v1077, %v1245
  %v1247 = vpop.f32.mrf.mxu0
  %v1248 = vadd.f32 %v1079, %v1247
  %1249 = vmatmul.bf16.gmra.mxu0 %v549
  %v1250 = vpop.f32.mrf.mxu0
  %v1251 = vadd.f32 %v1082, %v1250
  %v1252 = vpop.f32.mrf.mxu0
  %v1253 = vadd.f32 %v1084, %v1252
  %1254 = vmatmul.bf16.gmra.mxu0 %v552
  %v1255 = vpop.f32.mrf.mxu0
  %v1256 = vadd.f32 %v1087, %v1255
  %v1257 = vpop.f32.mrf.mxu0
  %v1258 = vadd.f32 %v1089, %v1257
  %1259 = vmatmul.bf16.gmra.mxu0 %v555
  %v1260 = vpop.f32.mrf.mxu0
  %v1261 = vadd.f32 %v1092, %v1260
  %v1262 = vpop.f32.mrf.mxu0
  %v1263 = vadd.f32 %v1094, %v1262
  %1264 = vmatmul.bf16.gmra.mxu0 %v558
  %v1265 = vpop.f32.mrf.mxu0
  %v1266 = vadd.f32 %v1097, %v1265
  %v1267 = vpop.f32.mrf.mxu0
  %v1268 = vadd.f32 %v1099, %v1267
  %1269 = vmatmul.bf16.gmra.mxu0 %v561
  %v1270 = vpop.f32.mrf.mxu0
  %v1271 = vadd.f32 %v1102, %v1270
  %v1272 = vpop.f32.mrf.mxu0
  %v1273 = vadd.f32 %v1104, %v1272
  %1274 = vmatmul.bf16.gmra.mxu0 %v564
  %v1275 = vpop.f32.mrf.mxu0
  %v1276 = vadd.f32 %v1107, %v1275
  %v1277 = vpop.f32.mrf.mxu0
  %v1278 = vadd.f32 %v1109, %v1277
  %1279 = vmatmul.bf16.gmra.mxu0 %v567
  %v1280 = vpop.f32.mrf.mxu0
  %v1281 = vadd.f32 %v1112, %v1280
  %v1282 = vpop.f32.mrf.mxu0
  %v1283 = vadd.f32 %v1114, %v1282
  %1284 = vmatmul.bf16.gmra.mxu0 %v570
  %v1285 = vpop.f32.mrf.mxu0
  %v1286 = vadd.f32 %v1117, %v1285
  %v1287 = vpop.f32.mrf.mxu0
  %v1288 = vadd.f32 %v1119, %v1287
  %1289 = vmatmul.bf16.gmra.mxu0 %v573
  %v1290 = vpop.f32.mrf.mxu0
  %v1291 = vadd.f32 %v1122, %v1290
  %v1292 = vpop.f32.mrf.mxu0
  %v1293 = vadd.f32 %v1124, %v1292
  %1294 = vmatmul.bf16.gmra.mxu0 %v576
  %v1295 = vpop.f32.mrf.mxu0
  %v1296 = vadd.f32 %v1127, %v1295
  %v1297 = vpop.f32.mrf.mxu0
  %v1298 = vadd.f32 %v1129, %v1297
  %1299 = vmatmul.bf16.gmra.mxu0 %v579
  %v1300 = vpop.f32.mrf.mxu0
  %v1301 = vadd.f32 %v1132, %v1300
  %v1302 = vpop.f32.mrf.mxu0
  %v1303 = vadd.f32 %v1134, %v1302
  %1304 = vmatmul.bf16.gmra.mxu0 %v582
  %v1305 = vpop.f32.mrf.mxu0
  %v1306 = vadd.f32 %v1137, %v1305
  %v1307 = vpop.f32.mrf.mxu0
  %v1308 = vadd.f32 %v1139, %v1307
  %1309 = vmatmul.bf16.gmra.mxu0 %v585
  %v1310 = vpop.f32.mrf.mxu0
  %v1311 = vadd.f32 %v1142, %v1310
  %v1312 = vpop.f32.mrf.mxu0
  %v1313 = vadd.f32 %v1144, %v1312
  %1314 = vmatmul.bf16.gmra.mxu0 %v588
  %v1315 = vpop.f32.mrf.mxu0
  %v1316 = vadd.f32 %v1147, %v1315
  %v1317 = vpop.f32.mrf.mxu0
  %v1318 = vadd.f32 %v1149, %v1317
  %1319 = vmatmul.bf16.gmra.mxu0 %v591
  %v1320 = vpop.f32.mrf.mxu0
  %v1321 = vadd.f32 %v1152, %v1320
  %v1322 = vpop.f32.mrf.mxu0
  %v1323 = vadd.f32 %v1154, %v1322
  %1324 = vmatmul.bf16.gmra.mxu0 %v594
  %v1325 = vpop.f32.mrf.mxu0
  %v1326 = vadd.f32 %v1157, %v1325
  %v1327 = vpop.f32.mrf.mxu0
  %v1328 = vadd.f32 %v1159, %v1327
  %1329 = vmatmul.bf16.gmra.mxu0 %v597
  %v1330 = vpop.f32.mrf.mxu0
  %v1331 = vadd.f32 %v1162, %v1330
  %v1332 = vpop.f32.mrf.mxu0
  %v1333 = vadd.f32 %v1164, %v1332
  %1334 = vmatmul.bf16.gmra.mxu0 %v600
  %v1335 = vpop.f32.mrf.mxu0
  %v1336 = vadd.f32 %v1167, %v1335
  %v1337 = vpop.f32.mrf.mxu0
  %v1338 = vadd.f32 %v1169, %v1337
  %1339 = vmatmul.bf16.gmra.mxu0 %v603
  %v1340 = vpop.f32.mrf.mxu0
  %v1341 = vadd.f32 %v1172, %v1340
  %v1342 = vpop.f32.mrf.mxu0
  %v1343 = vadd.f32 %v1174, %v1342
  %1344 = vmatmul.bf16.gmra.mxu0 %v606
  %v1345 = vpop.f32.mrf.mxu0
  %v1346 = vadd.f32 %v1177, %v1345
  %v1347 = vpop.f32.mrf.mxu0
  %v1348 = vadd.f32 %v1179, %v1347
  %1349 = vmatmul.bf16.gmra.mxu0 %v609
  %v1350 = vpop.f32.mrf.mxu0
  %v1351 = vadd.f32 %v1182, %v1350
  %v1352 = vpop.f32.mrf.mxu0
  %v1353 = vadd.f32 %v1184, %v1352
  %1354 = vmatmul.bf16.gmra.mxu0 %v612
  %v1355 = vpop.f32.mrf.mxu0
  %v1356 = vadd.f32 %v1187, %v1355
  %v1357 = vpop.f32.mrf.mxu0
  %v1358 = vadd.f32 %v1189, %v1357
  %1359 = vdwg.mxu0
  %v1360 = vld [vmem:[%s3] sm:$0xf]
  %v1361 = vld [vmem:[%s3 + $0x4] sm:$0xf]
  %v1362 = vld [vmem:[%s3 + $0x8] sm:$0xf]
  %v1363 = vld [vmem:[%s3 + $0xc] sm:$0xf]
  %v1364 = vld [vmem:[%s3 + $0x10] sm:$0xf]
  %v1365 = vld [vmem:[%s3 + $0x14] sm:$0xf]
  %v1366 = vld [vmem:[%s3 + $0x18] sm:$0xf]
  %v1367 = vld [vmem:[%s3 + $0x1c] sm:$0xf]
  %v1368 = vld [vmem:[%s3 + $0x20] sm:$0xf]
  %v1369 = vld [vmem:[%s3 + $0x24] sm:$0xf]
  %v1370 = vld [vmem:[%s3 + $0x28] sm:$0xf]
  %v1371 = vld [vmem:[%s3 + $0x2c] sm:$0xf]
  %v1372 = vld [vmem:[%s3 + $0x30] sm:$0xf]
  %v1373 = vld [vmem:[%s3 + $0x34] sm:$0xf]
  %v1374 = vld [vmem:[%s3 + $0x38] sm:$0xf]
  %v1375 = vld [vmem:[%s3 + $0x3c] sm:$0xf]
  %v1376 = vld [vmem:[%s3 + $0x40] sm:$0xf]
  %v1377 = vld [vmem:[%s3 + $0x44] sm:$0xf]
  %v1378 = vld [vmem:[%s3 + $0x48] sm:$0xf]
  %v1379 = vld [vmem:[%s3 + $0x4c] sm:$0xf]
  %v1380 = vld [vmem:[%s3 + $0x50] sm:$0xf]
  %v1381 = vld [vmem:[%s3 + $0x54] sm:$0xf]
  %v1382 = vld [vmem:[%s3 + $0x58] sm:$0xf]
  %v1383 = vld [vmem:[%s3 + $0x5c] sm:$0xf]
  %v1384 = vld [vmem:[%s3 + $0x60] sm:$0xf]
  %v1385 = vld [vmem:[%s3 + $0x64] sm:$0xf]
  %v1386 = vld [vmem:[%s3 + $0x68] sm:$0xf]
  %v1387 = vld [vmem:[%s3 + $0x6c] sm:$0xf]
  %v1388 = vld [vmem:[%s3 + $0x70] sm:$0xf]
  %v1389 = vld [vmem:[%s3 + $0x74] sm:$0xf]
  %v1390 = vld [vmem:[%s3 + $0x78] sm:$0xf]
  %v1391 = vld [vmem:[%s3 + $0x7c] sm:$0xf]
  %v1392 = vld [vmem:[%s3 + $0x80] sm:$0xf]
  %v1393 = vld [vmem:[%s3 + $0x84] sm:$0xf]
  %v1394 = vld [vmem:[%s3 + $0x88] sm:$0xf]
  %v1395 = vld [vmem:[%s3 + $0x8c] sm:$0xf]
  %v1396 = vld [vmem:[%s3 + $0x90] sm:$0xf]
  %v1397 = vld [vmem:[%s3 + $0x94] sm:$0xf]
  %v1398 = vld [vmem:[%s3 + $0x98] sm:$0xf]
  %v1399 = vld [vmem:[%s3 + $0x9c] sm:$0xf]
  %v1400 = vld [vmem:[%s3 + $0xa0] sm:$0xf]
  %v1401 = vld [vmem:[%s3 + $0xa4] sm:$0xf]
  %v1402 = vld [vmem:[%s3 + $0xa8] sm:$0xf]
  %v1403 = vld [vmem:[%s3 + $0xac] sm:$0xf]
  %v1404 = vld [vmem:[%s3 + $0xb0] sm:$0xf]
  %v1405 = vld [vmem:[%s3 + $0xb4] sm:$0xf]
  %v1406 = vld [vmem:[%s3 + $0xb8] sm:$0xf]
  %v1407 = vld [vmem:[%s3 + $0xbc] sm:$0xf]
  %v1408 = vld [vmem:[%s3 + $0xc0] sm:$0xf]
  %v1409 = vld [vmem:[%s3 + $0xc4] sm:$0xf]
  %v1410 = vld [vmem:[%s3 + $0xc8] sm:$0xf]
  %v1411 = vld [vmem:[%s3 + $0xcc] sm:$0xf]
  %v1412 = vld [vmem:[%s3 + $0xd0] sm:$0xf]
  %v1413 = vld [vmem:[%s3 + $0xd4] sm:$0xf]
  %v1414 = vld [vmem:[%s3 + $0xd8] sm:$0xf]
  %v1415 = vld [vmem:[%s3 + $0xdc] sm:$0xf]
  %v1416 = vld [vmem:[%s3 + $0xe0] sm:$0xf]
  %v1417 = vld [vmem:[%s3 + $0xe4] sm:$0xf]
  %v1418 = vld [vmem:[%s3 + $0xe8] sm:$0xf]
  %v1419 = vld [vmem:[%s3 + $0xec] sm:$0xf]
  %v1420 = vld [vmem:[%s3 + $0xf0] sm:$0xf]
  %v1421 = vld [vmem:[%s3 + $0xf4] sm:$0xf]
  %v1422 = vld [vmem:[%s3 + $0xf8] sm:$0xf]
  %v1423 = vld [vmem:[%s3 + $0xfc] sm:$0xf]
  %v1424 = vunpack.c.l.bf16 %v1360
  %v1425 = vunpack.c.l.bf16 %v1361
  %v1426 = vunpack.c.l.bf16 %v1362
  %v1427 = vunpack.c.l.bf16 %v1363
  %v1428 = vunpack.c.l.bf16 %v1364
  %v1429 = vunpack.c.l.bf16 %v1365
  %v1430 = vunpack.c.l.bf16 %v1366
  %v1431 = vunpack.c.l.bf16 %v1367
  %v1432 = vunpack.c.l.bf16 %v1368
  %v1433 = vunpack.c.l.bf16 %v1369
  %v1434 = vunpack.c.l.bf16 %v1370
  %v1435 = vunpack.c.l.bf16 %v1371
  %v1436 = vunpack.c.l.bf16 %v1372
  %v1437 = vunpack.c.l.bf16 %v1373
  %v1438 = vunpack.c.l.bf16 %v1374
  %v1439 = vunpack.c.l.bf16 %v1375
  %v1440 = vunpack.c.l.bf16 %v1376
  %v1441 = vunpack.c.l.bf16 %v1377
  %v1442 = vunpack.c.l.bf16 %v1378
  %v1443 = vunpack.c.l.bf16 %v1379
  %v1444 = vunpack.c.l.bf16 %v1380
  %v1445 = vunpack.c.l.bf16 %v1381
  %v1446 = vunpack.c.l.bf16 %v1382
  %v1447 = vunpack.c.l.bf16 %v1383
  %v1448 = vunpack.c.l.bf16 %v1384
  %v1449 = vunpack.c.l.bf16 %v1385
  %v1450 = vunpack.c.l.bf16 %v1386
  %v1451 = vunpack.c.l.bf16 %v1387
  %v1452 = vunpack.c.l.bf16 %v1388
  %v1453 = vunpack.c.l.bf16 %v1389
  %v1454 = vunpack.c.l.bf16 %v1390
  %v1455 = vunpack.c.l.bf16 %v1391
  %v1456 = vunpack.c.l.bf16 %v1392
  %v1457 = vunpack.c.l.bf16 %v1393
  %v1458 = vunpack.c.l.bf16 %v1394
  %v1459 = vunpack.c.l.bf16 %v1395
  %v1460 = vunpack.c.l.bf16 %v1396
  %v1461 = vunpack.c.l.bf16 %v1397
  %v1462 = vunpack.c.l.bf16 %v1398
  %v1463 = vunpack.c.l.bf16 %v1399
  %v1464 = vunpack.c.l.bf16 %v1400
  %v1465 = vunpack.c.l.bf16 %v1401
  %v1466 = vunpack.c.l.bf16 %v1402
  %v1467 = vunpack.c.l.bf16 %v1403
  %v1468 = vunpack.c.l.bf16 %v1404
  %v1469 = vunpack.c.l.bf16 %v1405
  %v1470 = vunpack.c.l.bf16 %v1406
  %v1471 = vunpack.c.l.bf16 %v1407
  %v1472 = vunpack.c.l.bf16 %v1408
  %v1473 = vunpack.c.l.bf16 %v1409
  %v1474 = vunpack.c.l.bf16 %v1410
  %v1475 = vunpack.c.l.bf16 %v1411
  %v1476 = vunpack.c.l.bf16 %v1412
  %v1477 = vunpack.c.l.bf16 %v1413
  %v1478 = vunpack.c.l.bf16 %v1414
  %v1479 = vunpack.c.l.bf16 %v1415
  %v1480 = vunpack.c.l.bf16 %v1416
  %v1481 = vunpack.c.l.bf16 %v1417
  %v1482 = vunpack.c.l.bf16 %v1418
  %v1483 = vunpack.c.l.bf16 %v1419
  %v1484 = vunpack.c.l.bf16 %v1420
  %v1485 = vunpack.c.l.bf16 %v1421
  %v1486 = vunpack.c.l.bf16 %v1422
  %v1487 = vunpack.c.l.bf16 %v1423
  %v1488 = vadd.f32 %v1201, %v1424
  %v1489 = vadd.f32 %v1203, %v1425
  %v1490 = vadd.f32 %v1206, %v1426
  %v1491 = vadd.f32 %v1208, %v1427
  %v1492 = vadd.f32 %v1211, %v1428
  %v1493 = vadd.f32 %v1213, %v1429
  %v1494 = vadd.f32 %v1216, %v1430
  %v1495 = vadd.f32 %v1218, %v1431
  %v1496 = vadd.f32 %v1221, %v1432
  %v1497 = vadd.f32 %v1223, %v1433
  %v1498 = vadd.f32 %v1226, %v1434
  %v1499 = vadd.f32 %v1228, %v1435
  %v1500 = vadd.f32 %v1231, %v1436
  %v1501 = vadd.f32 %v1233, %v1437
  %v1502 = vadd.f32 %v1236, %v1438
  %v1503 = vadd.f32 %v1238, %v1439
  %v1504 = vadd.f32 %v1241, %v1440
  %v1505 = vadd.f32 %v1243, %v1441
  %v1506 = vadd.f32 %v1246, %v1442
  %v1507 = vadd.f32 %v1248, %v1443
  %v1508 = vadd.f32 %v1251, %v1444
  %v1509 = vadd.f32 %v1253, %v1445
  %v1510 = vadd.f32 %v1256, %v1446
  %v1511 = vadd.f32 %v1258, %v1447
  %v1512 = vadd.f32 %v1261, %v1448
  %v1513 = vadd.f32 %v1263, %v1449
  %v1514 = vadd.f32 %v1266, %v1450
  %v1515 = vadd.f32 %v1268, %v1451
  %v1516 = vadd.f32 %v1271, %v1452
  %v1517 = vadd.f32 %v1273, %v1453
  %v1518 = vadd.f32 %v1276, %v1454
  %v1519 = vadd.f32 %v1278, %v1455
  %v1520 = vadd.f32 %v1281, %v1456
  %v1521 = vadd.f32 %v1283, %v1457
  %v1522 = vadd.f32 %v1286, %v1458
  %v1523 = vadd.f32 %v1288, %v1459
  %v1524 = vadd.f32 %v1291, %v1460
  %v1525 = vadd.f32 %v1293, %v1461
  %v1526 = vadd.f32 %v1296, %v1462
  %v1527 = vadd.f32 %v1298, %v1463
  %v1528 = vadd.f32 %v1301, %v1464
  %v1529 = vadd.f32 %v1303, %v1465
  %v1530 = vadd.f32 %v1306, %v1466
  %v1531 = vadd.f32 %v1308, %v1467
  %v1532 = vadd.f32 %v1311, %v1468
  %v1533 = vadd.f32 %v1313, %v1469
  %v1534 = vadd.f32 %v1316, %v1470
  %v1535 = vadd.f32 %v1318, %v1471
  %v1536 = vadd.f32 %v1321, %v1472
  %v1537 = vadd.f32 %v1323, %v1473
  %v1538 = vadd.f32 %v1326, %v1474
  %v1539 = vadd.f32 %v1328, %v1475
  %v1540 = vadd.f32 %v1331, %v1476
  %v1541 = vadd.f32 %v1333, %v1477
  %v1542 = vadd.f32 %v1336, %v1478
  %v1543 = vadd.f32 %v1338, %v1479
  %v1544 = vadd.f32 %v1341, %v1480
  %v1545 = vadd.f32 %v1343, %v1481
  %v1546 = vadd.f32 %v1346, %v1482
  %v1547 = vadd.f32 %v1348, %v1483
  %v1548 = vadd.f32 %v1351, %v1484
  %v1549 = vadd.f32 %v1353, %v1485
  %v1550 = vadd.f32 %v1356, %v1486
  %v1551 = vadd.f32 %v1358, %v1487
  %v1552 = vmax.f32 %v1488, 0.0
  %v1553 = vmax.f32 %v1489, 0.0
  %v1554 = vmax.f32 %v1490, 0.0
  %v1555 = vmax.f32 %v1491, 0.0
  %v1556 = vmax.f32 %v1492, 0.0
  %v1557 = vmax.f32 %v1493, 0.0
  %v1558 = vmax.f32 %v1494, 0.0
  %v1559 = vmax.f32 %v1495, 0.0
  %v1560 = vmax.f32 %v1496, 0.0
  %v1561 = vmax.f32 %v1497, 0.0
  %v1562 = vmax.f32 %v1498, 0.0
  %v1563 = vmax.f32 %v1499, 0.0
  %v1564 = vmax.f32 %v1500, 0.0
  %v1565 = vmax.f32 %v1501, 0.0
  %v1566 = vmax.f32 %v1502, 0.0
  %v1567 = vmax.f32 %v1503, 0.0
  %v1568 = vmax.f32 %v1504, 0.0
  %v1569 = vmax.f32 %v1505, 0.0
  %v1570 = vmax.f32 %v1506, 0.0
  %v1571 = vmax.f32 %v1507, 0.0
  %v1572 = vmax.f32 %v1508, 0.0
  %v1573 = vmax.f32 %v1509, 0.0
  %v1574 = vmax.f32 %v1510, 0.0
  %v1575 = vmax.f32 %v1511, 0.0
  %v1576 = vmax.f32 %v1512, 0.0
  %v1577 = vmax.f32 %v1513, 0.0
  %v1578 = vmax.f32 %v1514, 0.0
  %v1579 = vmax.f32 %v1515, 0.0
  %v1580 = vmax.f32 %v1516, 0.0
  %v1581 = vmax.f32 %v1517, 0.0
  %v1582 = vmax.f32 %v1518, 0.0
  %v1583 = vmax.f32 %v1519, 0.0
  %v1584 = vmax.f32 %v1520, 0.0
  %v1585 = vmax.f32 %v1521, 0.0
  %v1586 = vmax.f32 %v1522, 0.0
  %v1587 = vmax.f32 %v1523, 0.0
  %v1588 = vmax.f32 %v1524, 0.0
  %v1589 = vmax.f32 %v1525, 0.0
  %v1590 = vmax.f32 %v1526, 0.0
  %v1591 = vmax.f32 %v1527, 0.0
  %v1592 = vmax.f32 %v1528, 0.0
  %v1593 = vmax.f32 %v1529, 0.0
  %v1594 = vmax.f32 %v1530, 0.0
  %v1595 = vmax.f32 %v1531, 0.0
  %v1596 = vmax.f32 %v1532, 0.0
  %v1597 = vmax.f32 %v1533, 0.0
  %v1598 = vmax.f32 %v1534, 0.0
  %v1599 = vmax.f32 %v1535, 0.0
  %v1600 = vmax.f32 %v1536, 0.0
  %v1601 = vmax.f32 %v1537, 0.0
  %v1602 = vmax.f32 %v1538, 0.0
  %v1603 = vmax.f32 %v1539, 0.0
  %v1604 = vmax.f32 %v1540, 0.0
  %v1605 = vmax.f32 %v1541, 0.0
  %v1606 = vmax.f32 %v1542, 0.0
  %v1607 = vmax.f32 %v1543, 0.0
  %v1608 = vmax.f32 %v1544, 0.0
  %v1609 = vmax.f32 %v1545, 0.0
  %v1610 = vmax.f32 %v1546, 0.0
  %v1611 = vmax.f32 %v1547, 0.0
  %v1612 = vmax.f32 %v1548, 0.0
  %v1613 = vmax.f32 %v1549, 0.0
  %v1614 = vmax.f32 %v1550, 0.0
  %v1615 = vmax.f32 %v1551, 0.0
  %v1616 = vpack.c.bf16 %v1552, %v1552
  %v1617 = vpack.c.bf16 %v1553, %v1553
  %v1618 = vpack.c.bf16 %v1554, %v1554
  %v1619 = vpack.c.bf16 %v1555, %v1555
  %v1620 = vpack.c.bf16 %v1556, %v1556
  %v1621 = vpack.c.bf16 %v1557, %v1557
  %v1622 = vpack.c.bf16 %v1558, %v1558
  %v1623 = vpack.c.bf16 %v1559, %v1559
  %v1624 = vpack.c.bf16 %v1560, %v1560
  %v1625 = vpack.c.bf16 %v1561, %v1561
  %v1626 = vpack.c.bf16 %v1562, %v1562
  %v1627 = vpack.c.bf16 %v1563, %v1563
  %v1628 = vpack.c.bf16 %v1564, %v1564
  %v1629 = vpack.c.bf16 %v1565, %v1565
  %v1630 = vpack.c.bf16 %v1566, %v1566
  %v1631 = vpack.c.bf16 %v1567, %v1567
  %v1632 = vpack.c.bf16 %v1568, %v1568
  %v1633 = vpack.c.bf16 %v1569, %v1569
  %v1634 = vpack.c.bf16 %v1570, %v1570
  %v1635 = vpack.c.bf16 %v1571, %v1571
  %v1636 = vpack.c.bf16 %v1572, %v1572
  %v1637 = vpack.c.bf16 %v1573, %v1573
  %v1638 = vpack.c.bf16 %v1574, %v1574
  %v1639 = vpack.c.bf16 %v1575, %v1575
  %v1640 = vpack.c.bf16 %v1576, %v1576
  %v1641 = vpack.c.bf16 %v1577, %v1577
  %v1642 = vpack.c.bf16 %v1578, %v1578
  %v1643 = vpack.c.bf16 %v1579, %v1579
  %v1644 = vpack.c.bf16 %v1580, %v1580
  %v1645 = vpack.c.bf16 %v1581, %v1581
  %v1646 = vpack.c.bf16 %v1582, %v1582
  %v1647 = vpack.c.bf16 %v1583, %v1583
  %v1648 = vpack.c.bf16 %v1584, %v1584
  %v1649 = vpack.c.bf16 %v1585, %v1585
  %v1650 = vpack.c.bf16 %v1586, %v1586
  %v1651 = vpack.c.bf16 %v1587, %v1587
  %v1652 = vpack.c.bf16 %v1588, %v1588
  %v1653 = vpack.c.bf16 %v1589, %v1589
  %v1654 = vpack.c.bf16 %v1590, %v1590
  %v1655 = vpack.c.bf16 %v1591, %v1591
  %v1656 = vpack.c.bf16 %v1592, %v1592
  %v1657 = vpack.c.bf16 %v1593, %v1593
  %v1658 = vpack.c.bf16 %v1594, %v1594
  %v1659 = vpack.c.bf16 %v1595, %v1595
  %v1660 = vpack.c.bf16 %v1596, %v1596
  %v1661 = vpack.c.bf16 %v1597, %v1597
  %v1662 = vpack.c.bf16 %v1598, %v1598
  %v1663 = vpack.c.bf16 %v1599, %v1599
  %v1664 = vpack.c.bf16 %v1600, %v1600
  %v1665 = vpack.c.bf16 %v1601, %v1601
  %v1666 = vpack.c.bf16 %v1602, %v1602
  %v1667 = vpack.c.bf16 %v1603, %v1603
  %v1668 = vpack.c.bf16 %v1604, %v1604
  %v1669 = vpack.c.bf16 %v1605, %v1605
  %v1670 = vpack.c.bf16 %v1606, %v1606
  %v1671 = vpack.c.bf16 %v1607, %v1607
  %v1672 = vpack.c.bf16 %v1608, %v1608
  %v1673 = vpack.c.bf16 %v1609, %v1609
  %v1674 = vpack.c.bf16 %v1610, %v1610
  %v1675 = vpack.c.bf16 %v1611, %v1611
  %v1676 = vpack.c.bf16 %v1612, %v1612
  %v1677 = vpack.c.bf16 %v1613, %v1613
  %v1678 = vpack.c.bf16 %v1614, %v1614
  %v1679 = vpack.c.bf16 %v1615, %v1615
  %1680 = vst [vmem:[%s4] sm:$0xf] %v1616
  %1681 = vst [vmem:[%s4 + $0x4] sm:$0xf] %v1617
  %1682 = vst [vmem:[%s4 + $0x8] sm:$0xf] %v1618
  %1683 = vst [vmem:[%s4 + $0xc] sm:$0xf] %v1619
  %1684 = vst [vmem:[%s4 + $0x10] sm:$0xf] %v1620
  %1685 = vst [vmem:[%s4 + $0x14] sm:$0xf] %v1621
  %1686 = vst [vmem:[%s4 + $0x18] sm:$0xf] %v1622
  %1687 = vst [vmem:[%s4 + $0x1c] sm:$0xf] %v1623
  %1688 = vst [vmem:[%s4 + $0x20] sm:$0xf] %v1624
  %1689 = vst [vmem:[%s4 + $0x24] sm:$0xf] %v1625
  %1690 = vst [vmem:[%s4 + $0x28] sm:$0xf] %v1626
  %1691 = vst [vmem:[%s4 + $0x2c] sm:$0xf] %v1627
  %1692 = vst [vmem:[%s4 + $0x30] sm:$0xf] %v1628
  %1693 = vst [vmem:[%s4 + $0x34] sm:$0xf] %v1629
  %1694 = vst [vmem:[%s4 + $0x38] sm:$0xf] %v1630
  %1695 = vst [vmem:[%s4 + $0x3c] sm:$0xf] %v1631
  %1696 = vst [vmem:[%s4 + $0x40] sm:$0xf] %v1632
  %1697 = vst [vmem:[%s4 + $0x44] sm:$0xf] %v1633
  %1698 = vst [vmem:[%s4 + $0x48] sm:$0xf] %v1634
  %1699 = vst [vmem:[%s4 + $0x4c] sm:$0xf] %v1635
  %1700 = vst [vmem:[%s4 + $0x50] sm:$0xf] %v1636
  %1701 = vst [vmem:[%s4 + $0x54] sm:$0xf] %v1637
  %1702 = vst [vmem:[%s4 + $0x58] sm:$0xf] %v1638
  %1703 = vst [vmem:[%s4 + $0x5c] sm:$0xf] %v1639
  %1704 = vst [vmem:[%s4 + $0x60] sm:$0xf] %v1640
  %1705 = vst [vmem:[%s4 + $0x64] sm:$0xf] %v1641
  %1706 = vst [vmem:[%s4 + $0x68] sm:$0xf] %v1642
  %1707 = vst [vmem:[%s4 + $0x6c] sm:$0xf] %v1643
  %1708 = vst [vmem:[%s4 + $0x70] sm:$0xf] %v1644
  %1709 = vst [vmem:[%s4 + $0x74] sm:$0xf] %v1645
  %1710 = vst [vmem:[%s4 + $0x78] sm:$0xf] %v1646
  %1711 = vst [vmem:[%s4 + $0x7c] sm:$0xf] %v1647
  %1712 = vst [vmem:[%s4 + $0x80] sm:$0xf] %v1648
  %1713 = vst [vmem:[%s4 + $0x84] sm:$0xf] %v1649
  %1714 = vst [vmem:[%s4 + $0x88] sm:$0xf] %v1650
  %1715 = vst [vmem:[%s4 + $0x8c] sm:$0xf] %v1651
  %1716 = vst [vmem:[%s4 + $0x90] sm:$0xf] %v1652
  %1717 = vst [vmem:[%s4 + $0x94] sm:$0xf] %v1653
  %1718 = vst [vmem:[%s4 + $0x98] sm:$0xf] %v1654
  %1719 = vst [vmem:[%s4 + $0x9c] sm:$0xf] %v1655
  %1720 = vst [vmem:[%s4 + $0xa0] sm:$0xf] %v1656
  %1721 = vst [vmem:[%s4 + $0xa4] sm:$0xf] %v1657
  %1722 = vst [vmem:[%s4 + $0xa8] sm:$0xf] %v1658
  %1723 = vst [vmem:[%s4 + $0xac] sm:$0xf] %v1659
  %1724 = vst [vmem:[%s4 + $0xb0] sm:$0xf] %v1660
  %1725 = vst [vmem:[%s4 + $0xb4] sm:$0xf] %v1661
  %1726 = vst [vmem:[%s4 + $0xb8] sm:$0xf] %v1662
  %1727 = vst [vmem:[%s4 + $0xbc] sm:$0xf] %v1663
  %1728 = vst [vmem:[%s4 + $0xc0] sm:$0xf] %v1664
  %1729 = vst [vmem:[%s4 + $0xc4] sm:$0xf] %v1665
  %1730 = vst [vmem:[%s4 + $0xc8] sm:$0xf] %v1666
  %1731 = vst [vmem:[%s4 + $0xcc] sm:$0xf] %v1667
  %1732 = vst [vmem:[%s4 + $0xd0] sm:$0xf] %v1668
  %1733 = vst [vmem:[%s4 + $0xd4] sm:$0xf] %v1669
  %1734 = vst [vmem:[%s4 + $0xd8] sm:$0xf] %v1670
  %1735 = vst [vmem:[%s4 + $0xdc] sm:$0xf] %v1671
  %1736 = vst [vmem:[%s4 + $0xe0] sm:$0xf] %v1672
  %1737 = vst [vmem:[%s4 + $0xe4] sm:$0xf] %v1673
  %1738 = vst [vmem:[%s4 + $0xe8] sm:$0xf] %v1674
  %1739 = vst [vmem:[%s4 + $0xec] sm:$0xf] %v1675
  %1740 = vst [vmem:[%s4 + $0xf0] sm:$0xf] %v1676
  %1741 = vst [vmem:[%s4 + $0xf4] sm:$0xf] %v1677
  %1742 = vst [vmem:[%s4 + $0xf8] sm:$0xf] %v1678
  %1743 = vst [vmem:[%s4 + $0xfc] sm:$0xf] %v1679
  // Predicated region
  $region18: #{resnet_forward.14} parent=0 // pred_check
    _
  $region19: #{resnet_forward.14} parent=0 // pred_check_branch
    %1745 = sbr.rel (0) target = $region21
  $region20: #{resnet_forward.14} parent=0 // pred_region
    _
  $region21: #{resnet_forward.14} parent=0 // pred_fallthru
    _
  // Predicated region
  $region22: #{resnet_forward.14} parent=0 // pred_check
    _
  $region23: #{resnet_forward.14} parent=0 // pred_check_branch
    %1747 = sbr.rel (0) target = $region25
  $region24: #{resnet_forward.14} parent=0 // pred_region
    _
  $region25: #{resnet_forward.14} parent=0 // pred_fallthru
    _

// kernel: resnet_forward.12
$region0: #{resnet_forward.12}
  #allocation0 [shape = 'u32[]', space=smem, size = 0x4, offset = 0x4, fixed_abs, tag = 'smem constant byte address 0x4 - core index']
  #allocation1 [shape = 'u32[72,128]{1,0:T(1,128)}', space=vmem, size = 0x9000, scoped, tag = 'internal scratch']
  %s0 = inlined_call_operand.vmem [shape: bf16[512,384], index: 0, kind: input, shape index: {}]
  %s1 = inlined_call_operand.vmem [shape: bf16[384,128], index: 1, kind: input, shape index: {}]
  %s2 = inlined_call_operand.vmem [shape: f32[1,128], index: 2, kind: input, shape index: {}]
  %s3 = inlined_call_operand.vmem [shape: bf16[512,128], index: 3, kind: input, shape index: {}]
  %s4 = inlined_call_operand.vmem [shape: bf16[128,128], index: 4, kind: input, shape index: {}]
  %s5 = inlined_call_operand.vmem [shape: f32[1,128], index: 5, kind: input, shape index: {}]
  %s6 = inlined_call_operand.vmem [shape: bf16[512,128], index: 6, kind: output, shape index: {}]
  %s7 = sld [smem:[#allocation0]]
  $region34: #{resnet_forward.12} parent=0
    _
  %s9 = ssub.s32 1, %s7
  %s10 = scalar_select 0, %s9, %s7
  // Predicated region
  $region2: #{resnet_forward.12} parent=0 // pred_check
    _
  $region3: #{resnet_forward.12} parent=0 // pred_check_branch
    %12 = sbr.rel (0) target = $region5
  $region4: #{resnet_forward.12} parent=0 // pred_region
    _
  $region5: #{resnet_forward.12} parent=0 // pred_fallthru
    _
  // Predicated region
  $region6: #{resnet_forward.12} parent=0 // pred_check
    _
  $region7: #{resnet_forward.12} parent=0 // pred_check_branch
    %14 = sbr.rel (0) target = $region9
  $region8: #{resnet_forward.12} parent=0 // pred_region
    _
  $region9: #{resnet_forward.12} parent=0 // pred_fallthru
    _
  // Predicated region
  $region10: #{resnet_forward.12} parent=0 // pred_check
    _
  $region11: #{resnet_forward.12} parent=0 // pred_check_branch
    %16 = sbr.rel (0) target = $region13
  $region12: #{resnet_forward.12} parent=0 // pred_region
    _
  $region13: #{resnet_forward.12} parent=0 // pred_fallthru
    _
  // Predicated region
  $region14: #{resnet_forward.12} parent=0 // pred_check
    _
  $region15: #{resnet_forward.12} parent=0 // pred_check_branch
    %18 = sbr.rel (0) target = $region17
  $region16: #{resnet_forward.12} parent=0 // pred_region
    _
  $region17: #{resnet_forward.12} parent=0 // pred_fallthru
    _
  // Predicated region
  $region18: #{resnet_forward.12} parent=0 // pred_check
    _
  $region19: #{resnet_forward.12} parent=0 // pred_check_branch
    %20 = sbr.rel (0) target = $region21
  $region20: #{resnet_forward.12} parent=0 // pred_region
    _
  $region21: #{resnet_forward.12} parent=0 // pred_fallthru
    _
  // Predicated region
  $region22: #{resnet_forward.12} parent=0 // pred_check
    _
  $region23: #{resnet_forward.12} parent=0 // pred_check_branch
    %22 = sbr.rel (0) target = $region25
  $region24: #{resnet_forward.12} parent=0 // pred_region
    _
  $region25: #{resnet_forward.12} parent=0 // pred_fallthru
    _
  %v23 = vld [vmem:[%s0] sm:$0xff]
  %v24 = vld [vmem:[%s0 + $0x8] sm:$0xf]
  %v25 = vld [vmem:[%s0 + $0xc] sm:$0xff]
  %v26 = vld [vmem:[%s0 + $0x14] sm:$0xf]
  %v27 = vld [vmem:[%s0 + $0x18] sm:$0xff]
  %v28 = vld [vmem:[%s0 + $0x20] sm:$0xf]
  %v29 = vld [vmem:[%s0 + $0x24] sm:$0xff]
  %v30 = vld [vmem:[%s0 + $0x2c] sm:$0xf]
  %v31 = vld [vmem:[%s0 + $0x30] sm:$0xff]
  %v32 = vld [vmem:[%s0 + $0x38] sm:$0xf]
  %v33 = vld [vmem:[%s0 + $0x3c] sm:$0xff]
  %v34 = vld [vmem:[%s0 + $0x44] sm:$0xf]
  %v35 = vld [vmem:[%s0 + $0x48] sm:$0xff]
  %v36 = vld [vmem:[%s0 + $0x50] sm:$0xf]
  %v37 = vld [vmem:[%s0 + $0x54] sm:$0xff]
  %v38 = vld [vmem:[%s0 + $0x5c] sm:$0xf]
  %v39 = vld [vmem:[%s0 + $0x60] sm:$0xff]
  %v40 = vld [vmem:[%s0 + $0x68] sm:$0xf]
  %v41 = vld [vmem:[%s0 + $0x6c] sm:$0xff]
  %v42 = vld [vmem:[%s0 + $0x74] sm:$0xf]
  %v43 = vld [vmem:[%s0 + $0x78] sm:$0xff]
  %v44 = vld [vmem:[%s0 + $0x80] sm:$0xf]
  %v45 = vld [vmem:[%s0 + $0x84] sm:$0xff]
  %v46 = vld [vmem:[%s0 + $0x8c] sm:$0xf]
  %v47 = vld [vmem:[%s0 + $0x90] sm:$0xff]
  %v48 = vld [vmem:[%s0 + $0x98] sm:$0xf]
  %v49 = vld [vmem:[%s0 + $0x9c] sm:$0xff]
  %v50 = vld [vmem:[%s0 + $0xa4] sm:$0xf]
  %v51 = vld [vmem:[%s0 + $0xa8] sm:$0xff]
  %v52 = vld [vmem:[%s0 + $0xb0] sm:$0xf]
  %v53 = vld [vmem:[%s0 + $0xb4] sm:$0xff]
  %v54 = vld [vmem:[%s0 + $0xbc] sm:$0xf]
  %v55 = vld [vmem:[%s0 + $0xc0] sm:$0xff]
  %v56 = vld [vmem:[%s0 + $0xc8] sm:$0xf]
  %v57 = vld [vmem:[%s0 + $0xcc] sm:$0xff]
  %v58 = vld [vmem:[%s0 + $0xd4] sm:$0xf]
  %v59 = vld [vmem:[%s0 + $0xd8] sm:$0xff]
  %v60 = vld [vmem:[%s0 + $0xe0] sm:$0xf]
  %v61 = vld [vmem:[%s0 + $0xe4] sm:$0xff]
  %v62 = vld [vmem:[%s0 + $0xec] sm:$0xf]
  %v63 = vld [vmem:[%s0 + $0xf0] sm:$0xff]
  %v64 = vld [vmem:[%s0 + $0xf8] sm:$0xf]
  %v65 = vld [vmem:[%s0 + $0xfc] sm:$0xff]
  %v66 = vld [vmem:[%s0 + $0x104] sm:$0xf]
  %v67 = vld [vmem:[%s0 + $0x108] sm:$0xff]
  %v68 = vld [vmem:[%s0 + $0x110] sm:$0xf]
  %v69 = vld [vmem:[%s0 + $0x114] sm:$0xff]
  %v70 = vld [vmem:[%s0 + $0x11c] sm:$0xf]
  %v71 = vld [vmem:[%s0 + $0x120] sm:$0xff]
  %v72 = vld [vmem:[%s0 + $0x128] sm:$0xf]
  %v73 = vld [vmem:[%s0 + $0x12c] sm:$0xff]
  %v74 = vld [vmem:[%s0 + $0x134] sm:$0xf]
  %v75 = vld [vmem:[%s0 + $0x138] sm:$0xff]
  %v76 = vld [vmem:[%s0 + $0x140] sm:$0xf]
  %v77 = vld [vmem:[%s0 + $0x144] sm:$0xff]
  %v78 = vld [vmem:[%s0 + $0x14c] sm:$0xf]
  %v79 = vld [vmem:[%s0 + $0x150] sm:$0xff]
  %v80 = vld [vmem:[%s0 + $0x158] sm:$0xf]
  %v81 = vld [vmem:[%s0 + $0x15c] sm:$0xff]
  %v82 = vld [vmem:[%s0 + $0x164] sm:$0xf]
  %v83 = vld [vmem:[%s0 + $0x168] sm:$0xff]
  %v84 = vld [vmem:[%s0 + $0x170] sm:$0xf]
  %v85 = vld [vmem:[%s0 + $0x174] sm:$0xff]
  %v86 = vld [vmem:[%s0 + $0x17c] sm:$0xf]
  %v87 = vld [vmem:[%s0 + $0x180] sm:$0xff]
  %v88 = vld [vmem:[%s0 + $0x188] sm:$0xf]
  %v89 = vld [vmem:[%s0 + $0x18c] sm:$0xff]
  %v90 = vld [vmem:[%s0 + $0x194] sm:$0xf]
  %v91 = vld [vmem:[%s0 + $0x198] sm:$0xff]
  %v92 = vld [vmem:[%s0 + $0x1a0] sm:$0xf]
  %v93 = vld [vmem:[%s0 + $0x1a4] sm:$0xff]
  %v94 = vld [vmem:[%s0 + $0x1ac] sm:$0xf]
  %v95 = vld [vmem:[%s0 + $0x1b0] sm:$0xff]
  %v96 = vld [vmem:[%s0 + $0x1b8] sm:$0xf]
  %v97 = vld [vmem:[%s0 + $0x1bc] sm:$0xff]
  %v98 = vld [vmem:[%s0 + $0x1c4] sm:$0xf]
  %v99 = vld [vmem:[%s0 + $0x1c8] sm:$0xff]
  %v100 = vld [vmem:[%s0 + $0x1d0] sm:$0xf]
  %v101 = vld [vmem:[%s0 + $0x1d4] sm:$0xff]
  %v102 = vld [vmem:[%s0 + $0x1dc] sm:$0xf]
  %v103 = vld [vmem:[%s0 + $0x1e0] sm:$0xff]
  %v104 = vld [vmem:[%s0 + $0x1e8] sm:$0xf]
  %v105 = vld [vmem:[%s0 + $0x1ec] sm:$0xff]
  %v106 = vld [vmem:[%s0 + $0x1f4] sm:$0xf]
  %v107 = vld [vmem:[%s0 + $0x1f8] sm:$0xff]
  %v108 = vld [vmem:[%s0 + $0x200] sm:$0xf]
  %v109 = vld [vmem:[%s0 + $0x204] sm:$0xff]
  %v110 = vld [vmem:[%s0 + $0x20c] sm:$0xf]
  %v111 = vld [vmem:[%s0 + $0x210] sm:$0xff]
  %v112 = vld [vmem:[%s0 + $0x218] sm:$0xf]
  %v113 = vld [vmem:[%s0 + $0x21c] sm:$0xff]
  %v114 = vld [vmem:[%s0 + $0x224] sm:$0xf]
  %v115 = vld [vmem:[%s0 + $0x228] sm:$0xff]
  %v116 = vld [vmem:[%s0 + $0x230] sm:$0xf]
  %v117 = vld [vmem:[%s0 + $0x234] sm:$0xff]
  %v118 = vld [vmem:[%s0 + $0x23c] sm:$0xf]
  %v119 = vld [vmem:[%s0 + $0x240] sm:$0xff]
  %v120 = vld [vmem:[%s0 + $0x248] sm:$0xf]
  %v121 = vld [vmem:[%s0 + $0x24c] sm:$0xff]
  %v122 = vld [vmem:[%s0 + $0x254] sm:$0xf]
  %v123 = vld [vmem:[%s0 + $0x258] sm:$0xff]
  %v124 = vld [vmem:[%s0 + $0x260] sm:$0xf]
  %v125 = vld [vmem:[%s0 + $0x264] sm:$0xff]
  %v126 = vld [vmem:[%s0 + $0x26c] sm:$0xf]
  %v127 = vld [vmem:[%s0 + $0x270] sm:$0xff]
  %v128 = vld [vmem:[%s0 + $0x278] sm:$0xf]
  %v129 = vld [vmem:[%s0 + $0x27c] sm:$0xff]
  %v130 = vld [vmem:[%s0 + $0x284] sm:$0xf]
  %v131 = vld [vmem:[%s0 + $0x288] sm:$0xff]
  %v132 = vld [vmem:[%s0 + $0x290] sm:$0xf]
  %v133 = vld [vmem:[%s0 + $0x294] sm:$0xff]
  %v134 = vld [vmem:[%s0 + $0x29c] sm:$0xf]
  %v135 = vld [vmem:[%s0 + $0x2a0] sm:$0xff]
  %v136 = vld [vmem:[%s0 + $0x2a8] sm:$0xf]
  %v137 = vld [vmem:[%s0 + $0x2ac] sm:$0xff]
  %v138 = vld [vmem:[%s0 + $0x2b4] sm:$0xf]
  %v139 = vld [vmem:[%s0 + $0x2b8] sm:$0xff]
  %v140 = vld [vmem:[%s0 + $0x2c0] sm:$0xf]
  %v141 = vld [vmem:[%s0 + $0x2c4] sm:$0xff]
  %v142 = vld [vmem:[%s0 + $0x2cc] sm:$0xf]
  %v143 = vld [vmem:[%s0 + $0x2d0] sm:$0xff]
  %v144 = vld [vmem:[%s0 + $0x2d8] sm:$0xf]
  %v145 = vld [vmem:[%s0 + $0x2dc] sm:$0xff]
  %v146 = vld [vmem:[%s0 + $0x2e4] sm:$0xf]
  %v147 = vld [vmem:[%s0 + $0x2e8] sm:$0xff]
  %v148 = vld [vmem:[%s0 + $0x2f0] sm:$0xf]
  %v149 = vld [vmem:[%s0 + $0x2f4] sm:$0xff]
  %v150 = vld [vmem:[%s0 + $0x2fc] sm:$0xf]
  %v151 = vld [vmem:[%s1] sm:$0xf]
  %v152 = vld [vmem:[%s1 + $0x4] sm:$0xf]
  %v153 = vld [vmem:[%s1 + $0x8] sm:$0xf]
  %v154 = vld [vmem:[%s1 + $0xc] sm:$0xf]
  %v155 = vld [vmem:[%s1 + $0x10] sm:$0xf]
  %v156 = vld [vmem:[%s1 + $0x14] sm:$0xf]
  %v157 = vld [vmem:[%s1 + $0x18] sm:$0xf]
  %v158 = vld [vmem:[%s1 + $0x1c] sm:$0xf]
  %v159 = vld [vmem:[%s1 + $0x20] sm:$0xf]
  %v160 = vld [vmem:[%s1 + $0x24] sm:$0xf]
  %v161 = vld [vmem:[%s1 + $0x28] sm:$0xf]
  %v162 = vld [vmem:[%s1 + $0x2c] sm:$0xf]
  %v163 = vld [vmem:[%s1 + $0x30] sm:$0xf]
  %v164 = vld [vmem:[%s1 + $0x34] sm:$0xf]
  %v165 = vld [vmem:[%s1 + $0x38] sm:$0xf]
  %v166 = vld [vmem:[%s1 + $0x3c] sm:$0xf]
  %v167 = vld [vmem:[%s1 + $0x40] sm:$0xf]
  %v168 = vld [vmem:[%s1 + $0x44] sm:$0xf]
  %v169 = vld [vmem:[%s1 + $0x48] sm:$0xf]
  %v170 = vld [vmem:[%s1 + $0x4c] sm:$0xf]
  %v171 = vld [vmem:[%s1 + $0x50] sm:$0xf]
  %v172 = vld [vmem:[%s1 + $0x54] sm:$0xf]
  %v173 = vld [vmem:[%s1 + $0x58] sm:$0xf]
  %v174 = vld [vmem:[%s1 + $0x5c] sm:$0xf]
  %v175 = vld [vmem:[%s1 + $0x60] sm:$0xf]
  %v176 = vld [vmem:[%s1 + $0x64] sm:$0xf]
  %v177 = vld [vmem:[%s1 + $0x68] sm:$0xf]
  %v178 = vld [vmem:[%s1 + $0x6c] sm:$0xf]
  %v179 = vld [vmem:[%s1 + $0x70] sm:$0xf]
  %v180 = vld [vmem:[%s1 + $0x74] sm:$0xf]
  %v181 = vld [vmem:[%s1 + $0x78] sm:$0xf]
  %v182 = vld [vmem:[%s1 + $0x7c] sm:$0xf]
  %v183 = vld [vmem:[%s1 + $0x80] sm:$0xf]
  %v184 = vld [vmem:[%s1 + $0x84] sm:$0xf]
  %v185 = vld [vmem:[%s1 + $0x88] sm:$0xf]
  %v186 = vld [vmem:[%s1 + $0x8c] sm:$0xf]
  %v187 = vld [vmem:[%s1 + $0x90] sm:$0xf]
  %v188 = vld [vmem:[%s1 + $0x94] sm:$0xf]
  %v189 = vld [vmem:[%s1 + $0x98] sm:$0xf]
  %v190 = vld [vmem:[%s1 + $0x9c] sm:$0xf]
  %v191 = vld [vmem:[%s1 + $0xa0] sm:$0xf]
  %v192 = vld [vmem:[%s1 + $0xa4] sm:$0xf]
  %v193 = vld [vmem:[%s1 + $0xa8] sm:$0xf]
  %v194 = vld [vmem:[%s1 + $0xac] sm:$0xf]
  %v195 = vld [vmem:[%s1 + $0xb0] sm:$0xf]
  %v196 = vld [vmem:[%s1 + $0xb4] sm:$0xf]
  %v197 = vld [vmem:[%s1 + $0xb8] sm:$0xf]
  %v198 = vld [vmem:[%s1 + $0xbc] sm:$0xf]
  %v199 = vld [vmem:[%s3] sm:$0xf]
  %v200 = vld [vmem:[%s3 + $0x4] sm:$0xf]
  %v201 = vld [vmem:[%s3 + $0x8] sm:$0xf]
  %v202 = vld [vmem:[%s3 + $0xc] sm:$0xf]
  %v203 = vld [vmem:[%s3 + $0x10] sm:$0xf]
  %v204 = vld [vmem:[%s3 + $0x14] sm:$0xf]
  %v205 = vld [vmem:[%s3 + $0x18] sm:$0xf]
  %v206 = vld [vmem:[%s3 + $0x1c] sm:$0xf]
  %v207 = vld [vmem:[%s3 + $0x20] sm:$0xf]
  %v208 = vld [vmem:[%s3 + $0x24] sm:$0xf]
  %v209 = vld [vmem:[%s3 + $0x28] sm:$0xf]
  %v210 = vld [vmem:[%s3 + $0x2c] sm:$0xf]
  %v211 = vld [vmem:[%s3 + $0x30] sm:$0xf]
  %v212 = vld [vmem:[%s3 + $0x34] sm:$0xf]
  %v213 = vld [vmem:[%s3 + $0x38] sm:$0xf]
  %v214 = vld [vmem:[%s3 + $0x3c] sm:$0xf]
  %v215 = vld [vmem:[%s3 + $0x40] sm:$0xf]
  %v216 = vld [vmem:[%s3 + $0x44] sm:$0xf]
  %v217 = vld [vmem:[%s3 + $0x48] sm:$0xf]
  %v218 = vld [vmem:[%s3 + $0x4c] sm:$0xf]
  %v219 = vld [vmem:[%s3 + $0x50] sm:$0xf]
  %v220 = vld [vmem:[%s3 + $0x54] sm:$0xf]
  %v221 = vld [vmem:[%s3 + $0x58] sm:$0xf]
  %v222 = vld [vmem:[%s3 + $0x5c] sm:$0xf]
  %v223 = vld [vmem:[%s3 + $0x60] sm:$0xf]
  %v224 = vld [vmem:[%s3 + $0x64] sm:$0xf]
  %v225 = vld [vmem:[%s3 + $0x68] sm:$0xf]
  %v226 = vld [vmem:[%s3 + $0x6c] sm:$0xf]
  %v227 = vld [vmem:[%s3 + $0x70] sm:$0xf]
  %v228 = vld [vmem:[%s3 + $0x74] sm:$0xf]
  %v229 = vld [vmem:[%s3 + $0x78] sm:$0xf]
  %v230 = vld [vmem:[%s3 + $0x7c] sm:$0xf]
  %v231 = vld [vmem:[%s3 + $0x80] sm:$0xf]
  %v232 = vld [vmem:[%s3 + $0x84] sm:$0xf]
  %v233 = vld [vmem:[%s3 + $0x88] sm:$0xf]
  %v234 = vld [vmem:[%s3 + $0x8c] sm:$0xf]
  %v235 = vld [vmem:[%s3 + $0x90] sm:$0xf]
  %v236 = vld [vmem:[%s3 + $0x94] sm:$0xf]
  %v237 = vld [vmem:[%s3 + $0x98] sm:$0xf]
  %v238 = vld [vmem:[%s3 + $0x9c] sm:$0xf]
  %v239 = vld [vmem:[%s3 + $0xa0] sm:$0xf]
  %v240 = vld [vmem:[%s3 + $0xa4] sm:$0xf]
  %v241 = vld [vmem:[%s3 + $0xa8] sm:$0xf]
  %v242 = vld [vmem:[%s3 + $0xac] sm:$0xf]
  %v243 = vld [vmem:[%s3 + $0xb0] sm:$0xf]
  %v244 = vld [vmem:[%s3 + $0xb4] sm:$0xf]
  %v245 = vld [vmem:[%s3 + $0xb8] sm:$0xf]
  %v246 = vld [vmem:[%s3 + $0xbc] sm:$0xf]
  %v247 = vld [vmem:[%s3 + $0xc0] sm:$0xf]
  %v248 = vld [vmem:[%s3 + $0xc4] sm:$0xf]
  %v249 = vld [vmem:[%s3 + $0xc8] sm:$0xf]
  %v250 = vld [vmem:[%s3 + $0xcc] sm:$0xf]
  %v251 = vld [vmem:[%s3 + $0xd0] sm:$0xf]
  %v252 = vld [vmem:[%s3 + $0xd4] sm:$0xf]
  %v253 = vld [vmem:[%s3 + $0xd8] sm:$0xf]
  %v254 = vld [vmem:[%s3 + $0xdc] sm:$0xf]
  %v255 = vld [vmem:[%s3 + $0xe0] sm:$0xf]
  %v256 = vld [vmem:[%s3 + $0xe4] sm:$0xf]
  %v257 = vld [vmem:[%s3 + $0xe8] sm:$0xf]
  %v258 = vld [vmem:[%s3 + $0xec] sm:$0xf]
  %v259 = vld [vmem:[%s3 + $0xf0] sm:$0xf]
  %v260 = vld [vmem:[%s3 + $0xf4] sm:$0xf]
  %v261 = vld [vmem:[%s3 + $0xf8] sm:$0xf]
  %v262 = vld [vmem:[%s3 + $0xfc] sm:$0xf]
  %v263 = vld [vmem:[%s4] sm:$0xf]
  %v264 = vld [vmem:[%s4 + $0x4] sm:$0xf]
  %v265 = vld [vmem:[%s4 + $0x8] sm:$0xf]
  %v266 = vld [vmem:[%s4 + $0xc] sm:$0xf]
  %v267 = vld [vmem:[%s4 + $0x10] sm:$0xf]
  %v268 = vld [vmem:[%s4 + $0x14] sm:$0xf]
  %v269 = vld [vmem:[%s4 + $0x18] sm:$0xf]
  %v270 = vld [vmem:[%s4 + $0x1c] sm:$0xf]
  %v271 = vld [vmem:[%s4 + $0x20] sm:$0xf]
  %v272 = vld [vmem:[%s4 + $0x24] sm:$0xf]
  %v273 = vld [vmem:[%s4 + $0x28] sm:$0xf]
  %v274 = vld [vmem:[%s4 + $0x2c] sm:$0xf]
  %v275 = vld [vmem:[%s4 + $0x30] sm:$0xf]
  %v276 = vld [vmem:[%s4 + $0x34] sm:$0xf]
  %v277 = vld [vmem:[%s4 + $0x38] sm:$0xf]
  %v278 = vld [vmem:[%s4 + $0x3c] sm:$0xf]
  %v343 = vunpack.c.l.b16 %v199
  %v344 = vunpack.c.l.b16 %v200
  %v345 = vunpack.c.l.b16 %v201
  %v346 = vunpack.c.l.b16 %v202
  %v347 = vunpack.c.l.b16 %v203
  %v348 = vunpack.c.l.b16 %v204
  %v349 = vunpack.c.l.b16 %v205
  %v350 = vunpack.c.l.b16 %v206
  %v351 = vunpack.c.l.b16 %v207
  %v352 = vunpack.c.l.b16 %v208
  %v353 = vunpack.c.l.b16 %v209
  %v354 = vunpack.c.l.b16 %v210
  %v355 = vunpack.c.l.b16 %v211
  %v356 = vunpack.c.l.b16 %v212
  %v357 = vunpack.c.l.b16 %v213
  %v358 = vunpack.c.l.b16 %v214
  %v359 = vunpack.c.l.b16 %v215
  %v360 = vunpack.c.l.b16 %v216
  %v361 = vunpack.c.l.b16 %v217
  %v362 = vunpack.c.l.b16 %v218
  %v363 = vunpack.c.l.b16 %v219
  %v364 = vunpack.c.l.b16 %v220
  %v365 = vunpack.c.l.b16 %v221
  %v366 = vunpack.c.l.b16 %v222
  %v367 = vunpack.c.l.b16 %v223
  %v368 = vunpack.c.l.b16 %v224
  %v369 = vunpack.c.l.b16 %v225
  %v370 = vunpack.c.l.b16 %v226
  %v371 = vunpack.c.l.b16 %v227
  %v372 = vunpack.c.l.b16 %v228
  %v373 = vunpack.c.l.b16 %v229
  %v374 = vunpack.c.l.b16 %v230
  %v375 = vunpack.c.l.b16 %v231
  %v376 = vunpack.c.l.b16 %v232
  %v377 = vunpack.c.l.b16 %v233
  %v378 = vunpack.c.l.b16 %v234
  %v379 = vunpack.c.l.b16 %v235
  %v380 = vunpack.c.l.b16 %v236
  %v381 = vunpack.c.l.b16 %v237
  %v382 = vunpack.c.l.b16 %v238
  %v383 = vunpack.c.l.b16 %v239
  %v384 = vunpack.c.l.b16 %v240
  %v385 = vunpack.c.l.b16 %v241
  %v386 = vunpack.c.l.b16 %v242
  %v387 = vunpack.c.l.b16 %v243
  %v388 = vunpack.c.l.b16 %v244
  %v389 = vunpack.c.l.b16 %v245
  %v390 = vunpack.c.l.b16 %v246
  %v391 = vunpack.c.l.b16 %v247
  %v392 = vunpack.c.l.b16 %v248
  %v393 = vunpack.c.l.b16 %v249
  %v394 = vunpack.c.l.b16 %v250
  %v395 = vunpack.c.l.b16 %v251
  %v396 = vunpack.c.l.b16 %v252
  %v397 = vunpack.c.l.b16 %v253
  %v398 = vunpack.c.l.b16 %v254
  %v399 = vunpack.c.l.b16 %v255
  %v400 = vunpack.c.l.b16 %v256
  %v401 = vunpack.c.l.b16 %v257
  %v402 = vunpack.c.l.b16 %v258
  %v403 = vunpack.c.l.b16 %v259
  %v404 = vunpack.c.l.b16 %v260
  %v405 = vunpack.c.l.b16 %v261
  %v406 = vunpack.c.l.b16 %v262
  %v407 = vpack.c.b16 %v344, %v343
  %v408 = vpack.c.b16 %v346, %v345
  %v409 = vpack.c.b16 %v348, %v347
  %v410 = vpack.c.b16 %v350, %v349
  %v411 = vpack.c.b16 %v352, %v351
  %v412 = vpack.c.b16 %v354, %v353
  %v413 = vpack.c.b16 %v356, %v355
  %v414 = vpack.c.b16 %v358, %v357
  %v415 = vpack.c.b16 %v360, %v359
  %v416 = vpack.c.b16 %v362, %v361
  %v417 = vpack.c.b16 %v364, %v363
  %v418 = vpack.c.b16 %v366, %v365
  %v419 = vpack.c.b16 %v368, %v367
  %v420 = vpack.c.b16 %v370, %v369
  %v421 = vpack.c.b16 %v372, %v371
  %v422 = vpack.c.b16 %v374, %v373
  %v423 = vpack.c.b16 %v376, %v375
  %v424 = vpack.c.b16 %v378, %v377
  %v425 = vpack.c.b16 %v380, %v379
  %v426 = vpack.c.b16 %v382, %v381
  %v427 = vpack.c.b16 %v384, %v383
  %v428 = vpack.c.b16 %v386, %v385
  %v429 = vpack.c.b16 %v388, %v387
  %v430 = vpack.c.b16 %v390, %v389
  %v431 = vpack.c.b16 %v392, %v391
  %v432 = vpack.c.b16 %v394, %v393
  %v433 = vpack.c.b16 %v396, %v395
  %v434 = vpack.c.b16 %v398, %v397
  %v435 = vpack.c.b16 %v400, %v399
  %v436 = vpack.c.b16 %v402, %v401
  %v437 = vpack.c.b16 %v404, %v403
  %v438 = vpack.c.b16 %v406, %v405
  %v487 = vunpack.c.l.b16 %v263
  %v488 = vunpack.c.l.b16 %v264
  %v489 = vunpack.c.l.b16 %v265
  %v490 = vunpack.c.l.b16 %v266
  %v491 = vunpack.c.l.b16 %v267
  %v492 = vunpack.c.l.b16 %v268
  %v493 = vunpack.c.l.b16 %v269
  %v494 = vunpack.c.l.b16 %v270
  %v495 = vunpack.c.l.b16 %v271
  %v496 = vunpack.c.l.b16 %v272
  %v497 = vunpack.c.l.b16 %v273
  %v498 = vunpack.c.l.b16 %v274
  %v499 = vunpack.c.l.b16 %v275
  %v500 = vunpack.c.l.b16 %v276
  %v501 = vunpack.c.l.b16 %v277
  %v502 = vunpack.c.l.b16 %v278
  %v503 = vpack.c.b16 %v488, %v487
  %v504 = vpack.c.b16 %v490, %v489
  %v505 = vpack.c.b16 %v492, %v491
  %v506 = vpack.c.b16 %v494, %v493
  %v507 = vpack.c.b16 %v496, %v495
  %v508 = vpack.c.b16 %v498, %v497
  %v509 = vpack.c.b16 %v500, %v499
  %v510 = vpack.c.b16 %v502, %v501
  %519 = vmatpush.bf16.msra.mxu0 %v510
  %520 = vmatpush.bf16.msra.mxu0 %v509
  %521 = vmatpush.bf16.msra.mxu0 %v508
  %522 = vmatpush.bf16.msra.mxu0 %v507
  %523 = vmatpush.bf16.msra.mxu0 %v506
  %524 = vmatpush.bf16.msra.mxu0 %v505
  %525 = vmatpush.bf16.msra.mxu0 %v504
  %526 = vmatpush.bf16.msra.mxu0 %v503
  %527 = vmatmul.bf16.gmra.mxu0 %v407
  %v528 = vpop.f32.mrf.mxu0
  %v529 = vadd.f32 0.0, %v528
  %v530 = vpop.f32.mrf.mxu0
  %v531 = vadd.f32 0.0, %v530
  %532 = vmatmul.bf16.gmra.mxu0 %v408
  %v533 = vpop.f32.mrf.mxu0
  %v534 = vadd.f32 0.0, %v533
  %v535 = vpop.f32.mrf.mxu0
  %v536 = vadd.f32 0.0, %v535
  %537 = vmatmul.bf16.gmra.mxu0 %v409
  %v538 = vpop.f32.mrf.mxu0
  %v539 = vadd.f32 0.0, %v538
  %v540 = vpop.f32.mrf.mxu0
  %v541 = vadd.f32 0.0, %v540
  %542 = vmatmul.bf16.gmra.mxu0 %v410
  %v543 = vpop.f32.mrf.mxu0
  %v544 = vadd.f32 0.0, %v543
  %v545 = vpop.f32.mrf.mxu0
  %v546 = vadd.f32 0.0, %v545
  %547 = vmatmul.bf16.gmra.mxu0 %v411
  %v548 = vpop.f32.mrf.mxu0
  %v549 = vadd.f32 0.0, %v548
  %v550 = vpop.f32.mrf.mxu0
  %v551 = vadd.f32 0.0, %v550
  %552 = vmatmul.bf16.gmra.mxu0 %v412
  %v553 = vpop.f32.mrf.mxu0
  %v554 = vadd.f32 0.0, %v553
  %v555 = vpop.f32.mrf.mxu0
  %v556 = vadd.f32 0.0, %v555
  %557 = vmatmul.bf16.gmra.mxu0 %v413
  %v558 = vpop.f32.mrf.mxu0
  %v559 = vadd.f32 0.0, %v558
  %v560 = vpop.f32.mrf.mxu0
  %v561 = vadd.f32 0.0, %v560
  %562 = vmatmul.bf16.gmra.mxu0 %v414
  %v563 = vpop.f32.mrf.mxu0
  %v564 = vadd.f32 0.0, %v563
  %v565 = vpop.f32.mrf.mxu0
  %v566 = vadd.f32 0.0, %v565
  %567 = vmatmul.bf16.gmra.mxu0 %v415
  %v568 = vpop.f32.mrf.mxu0
  %v569 = vadd.f32 0.0, %v568
  %v570 = vpop.f32.mrf.mxu0
  %v571 = vadd.f32 0.0, %v570
  %572 = vmatmul.bf16.gmra.mxu0 %v416
  %v573 = vpop.f32.mrf.mxu0
  %v574 = vadd.f32 0.0, %v573
  %v575 = vpop.f32.mrf.mxu0
  %v576 = vadd.f32 0.0, %v575
  %577 = vmatmul.bf16.gmra.mxu0 %v417
  %v578 = vpop.f32.mrf.mxu0
  %v579 = vadd.f32 0.0, %v578
  %v580 = vpop.f32.mrf.mxu0
  %v581 = vadd.f32 0.0, %v580
  %582 = vmatmul.bf16.gmra.mxu0 %v418
  %v583 = vpop.f32.mrf.mxu0
  %v584 = vadd.f32 0.0, %v583
  %v585 = vpop.f32.mrf.mxu0
  %v586 = vadd.f32 0.0, %v585
  %587 = vmatmul.bf16.gmra.mxu0 %v419
  %v588 = vpop.f32.mrf.mxu0
  %v589 = vadd.f32 0.0, %v588
  %v590 = vpop.f32.mrf.mxu0
  %v591 = vadd.f32 0.0, %v590
  %592 = vmatmul.bf16.gmra.mxu0 %v420
  %v593 = vpop.f32.mrf.mxu0
  %v594 = vadd.f32 0.0, %v593
  %v595 = vpop.f32.mrf.mxu0
  %v596 = vadd.f32 0.0, %v595
  %597 = vmatmul.bf16.gmra.mxu0 %v421
  %v598 = vpop.f32.mrf.mxu0
  %v599 = vadd.f32 0.0, %v598
  %v600 = vpop.f32.mrf.mxu0
  %v601 = vadd.f32 0.0, %v600
  %602 = vmatmul.bf16.gmra.mxu0 %v422
  %v603 = vpop.f32.mrf.mxu0
  %v604 = vadd.f32 0.0, %v603
  %v605 = vpop.f32.mrf.mxu0
  %v606 = vadd.f32 0.0, %v605
  %607 = vmatmul.bf16.gmra.mxu0 %v423
  %v608 = vpop.f32.mrf.mxu0
  %v609 = vadd.f32 0.0, %v608
  %v610 = vpop.f32.mrf.mxu0
  %v611 = vadd.f32 0.0, %v610
  %612 = vmatmul.bf16.gmra.mxu0 %v424
  %v613 = vpop.f32.mrf.mxu0
  %v614 = vadd.f32 0.0, %v613
  %v615 = vpop.f32.mrf.mxu0
  %v616 = vadd.f32 0.0, %v615
  %617 = vmatmul.bf16.gmra.mxu0 %v425
  %v618 = vpop.f32.mrf.mxu0
  %v619 = vadd.f32 0.0, %v618
  %v620 = vpop.f32.mrf.mxu0
  %v621 = vadd.f32 0.0, %v620
  %622 = vmatmul.bf16.gmra.mxu0 %v426
  %v623 = vpop.f32.mrf.mxu0
  %v624 = vadd.f32 0.0, %v623
  %v625 = vpop.f32.mrf.mxu0
  %v626 = vadd.f32 0.0, %v625
  %627 = vmatmul.bf16.gmra.mxu0 %v427
  %v628 = vpop.f32.mrf.mxu0
  %v629 = vadd.f32 0.0, %v628
  %v630 = vpop.f32.mrf.mxu0
  %v631 = vadd.f32 0.0, %v630
  %632 = vmatmul.bf16.gmra.mxu0 %v428
  %v633 = vpop.f32.mrf.mxu0
  %v634 = vadd.f32 0.0, %v633
  %v635 = vpop.f32.mrf.mxu0
  %v636 = vadd.f32 0.0, %v635
  %637 = vmatmul.bf16.gmra.mxu0 %v429
  %v638 = vpop.f32.mrf.mxu0
  %v639 = vadd.f32 0.0, %v638
  %v640 = vpop.f32.mrf.mxu0
  %v641 = vadd.f32 0.0, %v640
  %642 = vmatmul.bf16.gmra.mxu0 %v430
  %v643 = vpop.f32.mrf.mxu0
  %v644 = vadd.f32 0.0, %v643
  %v645 = vpop.f32.mrf.mxu0
  %v646 = vadd.f32 0.0, %v645
  %647 = vmatmul.bf16.gmra.mxu0 %v431
  %v648 = vpop.f32.mrf.mxu0
  %v649 = vadd.f32 0.0, %v648
  %v650 = vpop.f32.mrf.mxu0
  %v651 = vadd.f32 0.0, %v650
  %652 = vmatmul.bf16.gmra.mxu0 %v432
  %v653 = vpop.f32.mrf.mxu0
  %v654 = vadd.f32 0.0, %v653
  %v655 = vpop.f32.mrf.mxu0
  %v656 = vadd.f32 0.0, %v655
  %657 = vmatmul.bf16.gmra.mxu0 %v433
  %v658 = vpop.f32.mrf.mxu0
  %v659 = vadd.f32 0.0, %v658
  %v660 = vpop.f32.mrf.mxu0
  %v661 = vadd.f32 0.0, %v660
  %662 = vmatmul.bf16.gmra.mxu0 %v434
  %v663 = vpop.f32.mrf.mxu0
  %v664 = vadd.f32 0.0, %v663
  %v665 = vpop.f32.mrf.mxu0
  %v666 = vadd.f32 0.0, %v665
  %667 = vmatmul.bf16.gmra.mxu0 %v435
  %v668 = vpop.f32.mrf.mxu0
  %v669 = vadd.f32 0.0, %v668
  %v670 = vpop.f32.mrf.mxu0
  %v671 = vadd.f32 0.0, %v670
  %672 = vmatmul.bf16.gmra.mxu0 %v436
  %v673 = vpop.f32.mrf.mxu0
  %v674 = vadd.f32 0.0, %v673
  %v675 = vpop.f32.mrf.mxu0
  %v676 = vadd.f32 0.0, %v675
  %677 = vmatmul.bf16.gmra.mxu0 %v437
  %v678 = vpop.f32.mrf.mxu0
  %v679 = vadd.f32 0.0, %v678
  %v680 = vpop.f32.mrf.mxu0
  %v681 = vadd.f32 0.0, %v680
  %682 = vmatmul.bf16.gmra.mxu0 %v438
  %v683 = vpop.f32.mrf.mxu0
  %v684 = vadd.f32 0.0, %v683
  %v685 = vpop.f32.mrf.mxu0
  %v686 = vadd.f32 0.0, %v685
  %687 = vdwg.mxu0
  %v688 = vld [vmem:[%s2] sm:$0x1]
  %v690 = vperm.slane %v688, 0
  %v820 = vunpack.c.l.b16 %v23
  %v821 = vunpack.c.h.b16 %v23
  %v822 = vunpack.c.l.b16 %v24
  %v823 = vunpack.c.l.b16 %v25
  %v824 = vunpack.c.h.b16 %v25
  %v825 = vunpack.c.l.b16 %v26
  %v826 = vunpack.c.l.b16 %v27
  %v827 = vunpack.c.h.b16 %v27
  %v828 = vunpack.c.l.b16 %v28
  %v829 = vunpack.c.l.b16 %v29
  %v830 = vunpack.c.h.b16 %v29
  %v831 = vunpack.c.l.b16 %v30
  %v832 = vunpack.c.l.b16 %v31
  %v833 = vunpack.c.h.b16 %v31
  %v834 = vunpack.c.l.b16 %v32
  %v835 = vunpack.c.l.b16 %v33
  %v836 = vunpack.c.h.b16 %v33
  %v837 = vunpack.c.l.b16 %v34
  %v838 = vunpack.c.l.b16 %v35
  %v839 = vunpack.c.h.b16 %v35
  %v840 = vunpack.c.l.b16 %v36
  %v841 = vunpack.c.l.b16 %v37
  %v842 = vunpack.c.h.b16 %v37
  %v843 = vunpack.c.l.b16 %v38
  %v844 = vunpack.c.l.b16 %v39
  %v845 = vunpack.c.h.b16 %v39
  %v846 = vunpack.c.l.b16 %v40
  %v847 = vunpack.c.l.b16 %v41
  %v848 = vunpack.c.h.b16 %v41
  %v849 = vunpack.c.l.b16 %v42
  %v850 = vunpack.c.l.b16 %v43
  %v851 = vunpack.c.h.b16 %v43
  %v852 = vunpack.c.l.b16 %v44
  %v853 = vunpack.c.l.b16 %v45
  %v854 = vunpack.c.h.b16 %v45
  %v855 = vunpack.c.l.b16 %v46
  %v856 = vunpack.c.l.b16 %v47
  %v857 = vunpack.c.h.b16 %v47
  %v858 = vunpack.c.l.b16 %v48
  %v859 = vunpack.c.l.b16 %v49
  %v860 = vunpack.c.h.b16 %v49
  %v861 = vunpack.c.l.b16 %v50
  %v862 = vunpack.c.l.b16 %v51
  %v863 = vunpack.c.h.b16 %v51
  %v864 = vunpack.c.l.b16 %v52
  %v865 = vunpack.c.l.b16 %v53
  %v866 = vunpack.c.h.b16 %v53
  %v867 = vunpack.c.l.b16 %v54
  %v868 = vunpack.c.l.b16 %v55
  %v869 = vunpack.c.h.b16 %v55
  %v870 = vunpack.c.l.b16 %v56
  %v871 = vunpack.c.l.b16 %v57
  %v872 = vunpack.c.h.b16 %v57
  %v873 = vunpack.c.l.b16 %v58
  %v874 = vunpack.c.l.b16 %v59
  %v875 = vunpack.c.h.b16 %v59
  %v876 = vunpack.c.l.b16 %v60
  %v877 = vunpack.c.l.b16 %v61
  %v878 = vunpack.c.h.b16 %v61
  %v879 = vunpack.c.l.b16 %v62
  %v880 = vunpack.c.l.b16 %v63
  %v881 = vunpack.c.h.b16 %v63
  %v882 = vunpack.c.l.b16 %v64
  %v883 = vunpack.c.l.b16 %v65
  %v884 = vunpack.c.h.b16 %v65
  %v885 = vunpack.c.l.b16 %v66
  %v886 = vunpack.c.l.b16 %v67
  %v887 = vunpack.c.h.b16 %v67
  %v888 = vunpack.c.l.b16 %v68
  %v889 = vunpack.c.l.b16 %v69
  %v890 = vunpack.c.h.b16 %v69
  %v891 = vunpack.c.l.b16 %v70
  %v892 = vunpack.c.l.b16 %v71
  %v893 = vunpack.c.h.b16 %v71
  %v894 = vunpack.c.l.b16 %v72
  %v895 = vunpack.c.l.b16 %v73
  %v896 = vunpack.c.h.b16 %v73
  %v897 = vunpack.c.l.b16 %v74
  %v898 = vunpack.c.l.b16 %v75
  %v899 = vunpack.c.h.b16 %v75
  %v900 = vunpack.c.l.b16 %v76
  %v901 = vunpack.c.l.b16 %v77
  %v902 = vunpack.c.h.b16 %v77
  %v903 = vunpack.c.l.b16 %v78
  %v904 = vunpack.c.l.b16 %v79
  %v905 = vunpack.c.h.b16 %v79
  %v906 = vunpack.c.l.b16 %v80
  %v907 = vunpack.c.l.b16 %v81
  %v908 = vunpack.c.h.b16 %v81
  %v909 = vunpack.c.l.b16 %v82
  %v910 = vunpack.c.l.b16 %v83
  %v911 = vunpack.c.h.b16 %v83
  %v912 = vunpack.c.l.b16 %v84
  %v913 = vunpack.c.l.b16 %v85
  %v914 = vunpack.c.h.b16 %v85
  %v915 = vunpack.c.l.b16 %v86
  %v916 = vunpack.c.l.b16 %v87
  %v917 = vunpack.c.h.b16 %v87
  %v918 = vunpack.c.l.b16 %v88
  %v919 = vunpack.c.l.b16 %v89
  %v920 = vunpack.c.h.b16 %v89
  %v921 = vunpack.c.l.b16 %v90
  %v922 = vunpack.c.l.b16 %v91
  %v923 = vunpack.c.h.b16 %v91
  %v924 = vunpack.c.l.b16 %v92
  %v925 = vunpack.c.l.b16 %v93
  %v926 = vunpack.c.h.b16 %v93
  %v927 = vunpack.c.l.b16 %v94
  %v928 = vunpack.c.l.b16 %v95
  %v929 = vunpack.c.h.b16 %v95
  %v930 = vunpack.c.l.b16 %v96
  %v931 = vunpack.c.l.b16 %v97
  %v932 = vunpack.c.h.b16 %v97
  %v933 = vunpack.c.l.b16 %v98
  %v934 = vunpack.c.l.b16 %v99
  %v935 = vunpack.c.h.b16 %v99
  %v936 = vunpack.c.l.b16 %v100
  %v937 = vunpack.c.l.b16 %v101
  %v938 = vunpack.c.h.b16 %v101
  %v939 = vunpack.c.l.b16 %v102
  %v940 = vunpack.c.l.b16 %v103
  %v941 = vunpack.c.h.b16 %v103
  %v942 = vunpack.c.l.b16 %v104
  %v943 = vunpack.c.l.b16 %v105
  %v944 = vunpack.c.h.b16 %v105
  %v945 = vunpack.c.l.b16 %v106
  %v946 = vunpack.c.l.b16 %v107
  %v947 = vunpack.c.h.b16 %v107
  %v948 = vunpack.c.l.b16 %v108
  %v949 = vunpack.c.l.b16 %v109
  %v950 = vunpack.c.h.b16 %v109
  %v951 = vunpack.c.l.b16 %v110
  %v952 = vunpack.c.l.b16 %v111
  %v953 = vunpack.c.h.b16 %v111
  %v954 = vunpack.c.l.b16 %v112
  %v955 = vunpack.c.l.b16 %v113
  %v956 = vunpack.c.h.b16 %v113
  %v957 = vunpack.c.l.b16 %v114
  %v958 = vunpack.c.l.b16 %v115
  %v959 = vunpack.c.h.b16 %v115
  %v960 = vunpack.c.l.b16 %v116
  %v961 = vunpack.c.l.b16 %v117
  %v962 = vunpack.c.h.b16 %v117
  %v963 = vunpack.c.l.b16 %v118
  %v964 = vunpack.c.l.b16 %v119
  %v965 = vunpack.c.h.b16 %v119
  %v966 = vunpack.c.l.b16 %v120
  %v967 = vunpack.c.l.b16 %v121
  %v968 = vunpack.c.h.b16 %v121
  %v969 = vunpack.c.l.b16 %v122
  %v970 = vunpack.c.l.b16 %v123
  %v971 = vunpack.c.h.b16 %v123
  %v972 = vunpack.c.l.b16 %v124
  %v973 = vunpack.c.l.b16 %v125
  %v974 = vunpack.c.h.b16 %v125
  %v975 = vunpack.c.l.b16 %v126
  %v976 = vunpack.c.l.b16 %v127
  %v977 = vunpack.c.h.b16 %v127
  %v978 = vunpack.c.l.b16 %v128
  %v979 = vunpack.c.l.b16 %v129
  %v980 = vunpack.c.h.b16 %v129
  %v981 = vunpack.c.l.b16 %v130
  %v982 = vunpack.c.l.b16 %v131
  %v983 = vunpack.c.h.b16 %v131
  %v984 = vunpack.c.l.b16 %v132
  %v985 = vunpack.c.l.b16 %v133
  %v986 = vunpack.c.h.b16 %v133
  %v987 = vunpack.c.l.b16 %v134
  %v988 = vunpack.c.l.b16 %v135
  %v989 = vunpack.c.h.b16 %v135
  %v990 = vunpack.c.l.b16 %v136
  %v991 = vunpack.c.l.b16 %v137
  %v992 = vunpack.c.h.b16 %v137
  %v993 = vunpack.c.l.b16 %v138
  %v994 = vunpack.c.l.b16 %v139
  %v995 = vunpack.c.h.b16 %v139
  %v996 = vunpack.c.l.b16 %v140
  %v997 = vunpack.c.l.b16 %v141
  %v998 = vunpack.c.h.b16 %v141
  %v999 = vunpack.c.l.b16 %v142
  %v1000 = vunpack.c.l.b16 %v143
  %v1001 = vunpack.c.h.b16 %v143
  %v1002 = vunpack.c.l.b16 %v144
  %v1003 = vunpack.c.l.b16 %v145
  %v1004 = vunpack.c.h.b16 %v145
  %v1005 = vunpack.c.l.b16 %v146
  %v1006 = vunpack.c.l.b16 %v147
  %v1007 = vunpack.c.h.b16 %v147
  %v1008 = vunpack.c.l.b16 %v148
  %v1009 = vunpack.c.l.b16 %v149
  %v1010 = vunpack.c.h.b16 %v149
  %v1011 = vunpack.c.l.b16 %v150
  %v1012 = vpack.c.b16 %v823, %v820
  %v1013 = vpack.c.b16 %v824, %v821
  %v1014 = vpack.c.b16 %v825, %v822
  %v1015 = vpack.c.b16 %v829, %v826
  %v1016 = vpack.c.b16 %v830, %v827
  %v1017 = vpack.c.b16 %v831, %v828
  %v1018 = vpack.c.b16 %v835, %v832
  %v1019 = vpack.c.b16 %v836, %v833
  %v1020 = vpack.c.b16 %v837, %v834
  %v1021 = vpack.c.b16 %v841, %v838
  %v1022 = vpack.c.b16 %v842, %v839
  %v1023 = vpack.c.b16 %v843, %v840
  %v1024 = vpack.c.b16 %v847, %v844
  %v1025 = vpack.c.b16 %v848, %v845
  %v1026 = vpack.c.b16 %v849, %v846
  %v1027 = vpack.c.b16 %v853, %v850
  %v1028 = vpack.c.b16 %v854, %v851
  %v1029 = vpack.c.b16 %v855, %v852
  %v1030 = vpack.c.b16 %v859, %v856
  %v1031 = vpack.c.b16 %v860, %v857
  %v1032 = vpack.c.b16 %v861, %v858
  %v1033 = vpack.c.b16 %v865, %v862
  %v1034 = vpack.c.b16 %v866, %v863
  %v1035 = vpack.c.b16 %v867, %v864
  %v1036 = vpack.c.b16 %v871, %v868
  %v1037 = vpack.c.b16 %v872, %v869
  %v1038 = vpack.c.b16 %v873, %v870
  %v1039 = vpack.c.b16 %v877, %v874
  %v1040 = vpack.c.b16 %v878, %v875
  %v1041 = vpack.c.b16 %v879, %v876
  %v1042 = vpack.c.b16 %v883, %v880
  %v1043 = vpack.c.b16 %v884, %v881
  %v1044 = vpack.c.b16 %v885, %v882
  %v1045 = vpack.c.b16 %v889, %v886
  %v1046 = vpack.c.b16 %v890, %v887
  %v1047 = vpack.c.b16 %v891, %v888
  %v1048 = vpack.c.b16 %v895, %v892
  %v1049 = vpack.c.b16 %v896, %v893
  %v1050 = vpack.c.b16 %v897, %v894
  %v1051 = vpack.c.b16 %v901, %v898
  %v1052 = vpack.c.b16 %v902, %v899
  %v1053 = vpack.c.b16 %v903, %v900
  %v1054 = vpack.c.b16 %v907, %v904
  %v1055 = vpack.c.b16 %v908, %v905
  %v1056 = vpack.c.b16 %v909, %v906
  %v1057 = vpack.c.b16 %v913, %v910
  %v1058 = vpack.c.b16 %v914, %v911
  %v1059 = vpack.c.b16 %v915, %v912
  %v1060 = vpack.c.b16 %v919, %v916
  %v1061 = vpack.c.b16 %v920, %v917
  %v1062 = vpack.c.b16 %v921, %v918
  %v1063 = vpack.c.b16 %v925, %v922
  %v1064 = vpack.c.b16 %v926, %v923
  %v1065 = vpack.c.b16 %v927, %v924
  %v1066 = vpack.c.b16 %v931, %v928
  %v1067 = vpack.c.b16 %v932, %v929
  %v1068 = vpack.c.b16 %v933, %v930
  %v1069 = vpack.c.b16 %v937, %v934
  %v1070 = vpack.c.b16 %v938, %v935
  %v1071 = vpack.c.b16 %v939, %v936
  %v1072 = vpack.c.b16 %v943, %v940
  %v1073 = vpack.c.b16 %v944, %v941
  %v1074 = vpack.c.b16 %v945, %v942
  %v1075 = vpack.c.b16 %v949, %v946
  %v1076 = vpack.c.b16 %v950, %v947
  %v1077 = vpack.c.b16 %v951, %v948
  %v1078 = vpack.c.b16 %v955, %v952
  %v1079 = vpack.c.b16 %v956, %v953
  %v1080 = vpack.c.b16 %v957, %v954
  %v1081 = vpack.c.b16 %v961, %v958
  %v1082 = vpack.c.b16 %v962, %v959
  %v1083 = vpack.c.b16 %v963, %v960
  %v1084 = vpack.c.b16 %v967, %v964
  %v1085 = vpack.c.b16 %v968, %v965
  %v1086 = vpack.c.b16 %v969, %v966
  %v1087 = vpack.c.b16 %v973, %v970
  %v1088 = vpack.c.b16 %v974, %v971
  %v1089 = vpack.c.b16 %v975, %v972
  %v1090 = vpack.c.b16 %v979, %v976
  %v1091 = vpack.c.b16 %v980, %v977
  %v1092 = vpack.c.b16 %v981, %v978
  %v1093 = vpack.c.b16 %v985, %v982
  %v1094 = vpack.c.b16 %v986, %v983
  %v1095 = vpack.c.b16 %v987, %v984
  %v1096 = vpack.c.b16 %v991, %v988
  %v1097 = vpack.c.b16 %v992, %v989
  %v1098 = vpack.c.b16 %v993, %v990
  %v1099 = vpack.c.b16 %v997, %v994
  %v1100 = vpack.c.b16 %v998, %v995
  %v1101 = vpack.c.b16 %v999, %v996
  %v1102 = vpack.c.b16 %v1003, %v1000
  %v1103 = vpack.c.b16 %v1004, %v1001
  %v1104 = vpack.c.b16 %v1005, %v1002
  %v1105 = vpack.c.b16 %v1009, %v1006
  %v1106 = vpack.c.b16 %v1010, %v1007
  %v1107 = vpack.c.b16 %v1011, %v1008
  %v1252 = vunpack.c.l.b16 %v151
  %v1253 = vunpack.c.l.b16 %v152
  %v1254 = vunpack.c.l.b16 %v153
  %v1255 = vunpack.c.l.b16 %v154
  %v1256 = vunpack.c.l.b16 %v155
  %v1257 = vunpack.c.l.b16 %v156
  %v1258 = vunpack.c.l.b16 %v157
  %v1259 = vunpack.c.l.b16 %v158
  %v1260 = vunpack.c.l.b16 %v159
  %v1261 = vunpack.c.l.b16 %v160
  %v1262 = vunpack.c.l.b16 %v161
  %v1263 = vunpack.c.l.b16 %v162
  %v1264 = vunpack.c.l.b16 %v163
  %v1265 = vunpack.c.l.b16 %v164
  %v1266 = vunpack.c.l.b16 %v165
  %v1267 = vunpack.c.l.b16 %v166
  %v1268 = vunpack.c.l.b16 %v167
  %v1269 = vunpack.c.l.b16 %v168
  %v1270 = vunpack.c.l.b16 %v169
  %v1271 = vunpack.c.l.b16 %v170
  %v1272 = vunpack.c.l.b16 %v171
  %v1273 = vunpack.c.l.b16 %v172
  %v1274 = vunpack.c.l.b16 %v173
  %v1275 = vunpack.c.l.b16 %v174
  %v1276 = vunpack.c.l.b16 %v175
  %v1277 = vunpack.c.l.b16 %v176
  %v1278 = vunpack.c.l.b16 %v177
  %v1279 = vunpack.c.l.b16 %v178
  %v1280 = vunpack.c.l.b16 %v179
  %v1281 = vunpack.c.l.b16 %v180
  %v1282 = vunpack.c.l.b16 %v181
  %v1283 = vunpack.c.l.b16 %v182
  %v1284 = vunpack.c.l.b16 %v183
  %v1285 = vunpack.c.l.b16 %v184
  %v1286 = vunpack.c.l.b16 %v185
  %v1287 = vunpack.c.l.b16 %v186
  %v1288 = vunpack.c.l.b16 %v187
  %v1289 = vunpack.c.l.b16 %v188
  %v1290 = vunpack.c.l.b16 %v189
  %v1291 = vunpack.c.l.b16 %v190
  %v1292 = vunpack.c.l.b16 %v191
  %v1293 = vunpack.c.l.b16 %v192
  %v1294 = vunpack.c.l.b16 %v193
  %v1295 = vunpack.c.l.b16 %v194
  %v1296 = vunpack.c.l.b16 %v195
  %v1297 = vunpack.c.l.b16 %v196
  %v1298 = vunpack.c.l.b16 %v197
  %v1299 = vunpack.c.l.b16 %v198
  %v1300 = vpack.c.b16 %v1253, %v1252
  %v1301 = vpack.c.b16 %v1255, %v1254
  %v1302 = vpack.c.b16 %v1257, %v1256
  %v1303 = vpack.c.b16 %v1259, %v1258
  %v1304 = vpack.c.b16 %v1261, %v1260
  %v1305 = vpack.c.b16 %v1263, %v1262
  %v1306 = vpack.c.b16 %v1265, %v1264
  %v1307 = vpack.c.b16 %v1267, %v1266
  %v1308 = vpack.c.b16 %v1269, %v1268
  %v1309 = vpack.c.b16 %v1271, %v1270
  %v1310 = vpack.c.b16 %v1273, %v1272
  %v1311 = vpack.c.b16 %v1275, %v1274
  %v1312 = vpack.c.b16 %v1277, %v1276
  %v1313 = vpack.c.b16 %v1279, %v1278
  %v1314 = vpack.c.b16 %v1281, %v1280
  %v1315 = vpack.c.b16 %v1283, %v1282
  %v1316 = vpack.c.b16 %v1285, %v1284
  %v1317 = vpack.c.b16 %v1287, %v1286
  %v1318 = vpack.c.b16 %v1289, %v1288
  %v1319 = vpack.c.b16 %v1291, %v1290
  %v1320 = vpack.c.b16 %v1293, %v1292
  %v1321 = vpack.c.b16 %v1295, %v1294
  %v1322 = vpack.c.b16 %v1297, %v1296
  %v1323 = vpack.c.b16 %v1299, %v1298
  %1348 = vmatpush.bf16.msra.mxu0 %v1307
  %1349 = vmatpush.bf16.msra.mxu0 %v1306
  %1350 = vmatpush.bf16.msra.mxu0 %v1305
  %1351 = vmatpush.bf16.msra.mxu0 %v1304
  %1352 = vmatpush.bf16.msra.mxu0 %v1303
  %1353 = vmatpush.bf16.msra.mxu0 %v1302
  %1354 = vmatpush.bf16.msra.mxu0 %v1301
  %1355 = vmatpush.bf16.msra.mxu0 %v1300
  %1356 = vmatmul.bf16.gmra.mxu0 %v1012
  %v1357 = vpop.f32.mrf.mxu0
  %v1358 = vadd.f32 %v690, %v1357
  %v1359 = vpop.f32.mrf.mxu0
  %v1360 = vadd.f32 %v690, %v1359
  %1361 = vmatmul.bf16.gmra.mxu0 %v1015
  %v1362 = vpop.f32.mrf.mxu0
  %v1363 = vadd.f32 %v690, %v1362
  %v1364 = vpop.f32.mrf.mxu0
  %v1365 = vadd.f32 %v690, %v1364
  %1366 = vmatmul.bf16.gmra.mxu0 %v1018
  %v1367 = vpop.f32.mrf.mxu0
  %v1368 = vadd.f32 %v690, %v1367
  %v1369 = vpop.f32.mrf.mxu0
  %v1370 = vadd.f32 %v690, %v1369
  %1371 = vmatmul.bf16.gmra.mxu0 %v1021
  %v1372 = vpop.f32.mrf.mxu0
  %v1373 = vadd.f32 %v690, %v1372
  %v1374 = vpop.f32.mrf.mxu0
  %v1375 = vadd.f32 %v690, %v1374
  %1376 = vmatmul.bf16.gmra.mxu0 %v1024
  %v1377 = vpop.f32.mrf.mxu0
  %v1378 = vadd.f32 %v690, %v1377
  %v1379 = vpop.f32.mrf.mxu0
  %v1380 = vadd.f32 %v690, %v1379
  %1381 = vmatmul.bf16.gmra.mxu0 %v1027
  %v1382 = vpop.f32.mrf.mxu0
  %v1383 = vadd.f32 %v690, %v1382
  %v1384 = vpop.f32.mrf.mxu0
  %v1385 = vadd.f32 %v690, %v1384
  %1386 = vmatmul.bf16.gmra.mxu0 %v1030
  %v1387 = vpop.f32.mrf.mxu0
  %v1388 = vadd.f32 %v690, %v1387
  %v1389 = vpop.f32.mrf.mxu0
  %v1390 = vadd.f32 %v690, %v1389
  %1391 = vmatmul.bf16.gmra.mxu0 %v1033
  %v1392 = vpop.f32.mrf.mxu0
  %v1393 = vadd.f32 %v690, %v1392
  %v1394 = vpop.f32.mrf.mxu0
  %v1395 = vadd.f32 %v690, %v1394
  %1396 = vmatmul.bf16.gmra.mxu0 %v1036
  %v1397 = vpop.f32.mrf.mxu0
  %v1398 = vadd.f32 %v690, %v1397
  %v1399 = vpop.f32.mrf.mxu0
  %v1400 = vadd.f32 %v690, %v1399
  %1401 = vmatmul.bf16.gmra.mxu0 %v1039
  %v1402 = vpop.f32.mrf.mxu0
  %v1403 = vadd.f32 %v690, %v1402
  %v1404 = vpop.f32.mrf.mxu0
  %v1405 = vadd.f32 %v690, %v1404
  %1406 = vmatmul.bf16.gmra.mxu0 %v1042
  %v1407 = vpop.f32.mrf.mxu0
  %v1408 = vadd.f32 %v690, %v1407
  %v1409 = vpop.f32.mrf.mxu0
  %v1410 = vadd.f32 %v690, %v1409
  %1411 = vmatmul.bf16.gmra.mxu0 %v1045
  %v1412 = vpop.f32.mrf.mxu0
  %v1413 = vadd.f32 %v690, %v1412
  %v1414 = vpop.f32.mrf.mxu0
  %v1415 = vadd.f32 %v690, %v1414
  %1416 = vmatmul.bf16.gmra.mxu0 %v1048
  %v1417 = vpop.f32.mrf.mxu0
  %v1418 = vadd.f32 %v690, %v1417
  %v1419 = vpop.f32.mrf.mxu0
  %v1420 = vadd.f32 %v690, %v1419
  %1421 = vmatmul.bf16.gmra.mxu0 %v1051
  %v1422 = vpop.f32.mrf.mxu0
  %v1423 = vadd.f32 %v690, %v1422
  %v1424 = vpop.f32.mrf.mxu0
  %v1425 = vadd.f32 %v690, %v1424
  %1426 = vmatmul.bf16.gmra.mxu0 %v1054
  %v1427 = vpop.f32.mrf.mxu0
  %v1428 = vadd.f32 %v690, %v1427
  %v1429 = vpop.f32.mrf.mxu0
  %v1430 = vadd.f32 %v690, %v1429
  %1431 = vmatmul.bf16.gmra.mxu0 %v1057
  %v1432 = vpop.f32.mrf.mxu0
  %v1433 = vadd.f32 %v690, %v1432
  %v1434 = vpop.f32.mrf.mxu0
  %v1435 = vadd.f32 %v690, %v1434
  %1436 = vmatmul.bf16.gmra.mxu0 %v1060
  %v1437 = vpop.f32.mrf.mxu0
  %v1438 = vadd.f32 %v690, %v1437
  %v1439 = vpop.f32.mrf.mxu0
  %v1440 = vadd.f32 %v690, %v1439
  %1441 = vmatmul.bf16.gmra.mxu0 %v1063
  %v1442 = vpop.f32.mrf.mxu0
  %v1443 = vadd.f32 %v690, %v1442
  %v1444 = vpop.f32.mrf.mxu0
  %v1445 = vadd.f32 %v690, %v1444
  %1446 = vmatmul.bf16.gmra.mxu0 %v1066
  %v1447 = vpop.f32.mrf.mxu0
  %v1448 = vadd.f32 %v690, %v1447
  %v1449 = vpop.f32.mrf.mxu0
  %v1450 = vadd.f32 %v690, %v1449
  %1451 = vmatmul.bf16.gmra.mxu0 %v1069
  %v1452 = vpop.f32.mrf.mxu0
  %v1453 = vadd.f32 %v690, %v1452
  %v1454 = vpop.f32.mrf.mxu0
  %v1455 = vadd.f32 %v690, %v1454
  %1456 = vmatmul.bf16.gmra.mxu0 %v1072
  %v1457 = vpop.f32.mrf.mxu0
  %v1458 = vadd.f32 %v690, %v1457
  %v1459 = vpop.f32.mrf.mxu0
  %v1460 = vadd.f32 %v690, %v1459
  %1461 = vmatmul.bf16.gmra.mxu0 %v1075
  %v1462 = vpop.f32.mrf.mxu0
  %v1463 = vadd.f32 %v690, %v1462
  %v1464 = vpop.f32.mrf.mxu0
  %v1465 = vadd.f32 %v690, %v1464
  %1466 = vmatmul.bf16.gmra.mxu0 %v1078
  %v1467 = vpop.f32.mrf.mxu0
  %v1468 = vadd.f32 %v690, %v1467
  %v1469 = vpop.f32.mrf.mxu0
  %v1470 = vadd.f32 %v690, %v1469
  %1471 = vmatmul.bf16.gmra.mxu0 %v1081
  %v1472 = vpop.f32.mrf.mxu0
  %v1473 = vadd.f32 %v690, %v1472
  %v1474 = vpop.f32.mrf.mxu0
  %v1475 = vadd.f32 %v690, %v1474
  %1476 = vmatmul.bf16.gmra.mxu0 %v1084
  %v1477 = vpop.f32.mrf.mxu0
  %v1478 = vadd.f32 %v690, %v1477
  %v1479 = vpop.f32.mrf.mxu0
  %v1480 = vadd.f32 %v690, %v1479
  %1481 = vmatmul.bf16.gmra.mxu0 %v1087
  %v1482 = vpop.f32.mrf.mxu0
  %v1483 = vadd.f32 %v690, %v1482
  %v1484 = vpop.f32.mrf.mxu0
  %v1485 = vadd.f32 %v690, %v1484
  %1486 = vmatmul.bf16.gmra.mxu0 %v1090
  %v1487 = vpop.f32.mrf.mxu0
  %v1488 = vadd.f32 %v690, %v1487
  %v1489 = vpop.f32.mrf.mxu0
  %v1490 = vadd.f32 %v690, %v1489
  %1491 = vmatmul.bf16.gmra.mxu0 %v1093
  %v1492 = vpop.f32.mrf.mxu0
  %v1493 = vadd.f32 %v690, %v1492
  %v1494 = vpop.f32.mrf.mxu0
  %v1495 = vadd.f32 %v690, %v1494
  %1496 = vmatmul.bf16.gmra.mxu0 %v1096
  %v1497 = vpop.f32.mrf.mxu0
  %v1498 = vadd.f32 %v690, %v1497
  %v1499 = vpop.f32.mrf.mxu0
  %v1500 = vadd.f32 %v690, %v1499
  %1501 = vmatmul.bf16.gmra.mxu0 %v1099
  %v1502 = vpop.f32.mrf.mxu0
  %v1503 = vadd.f32 %v690, %v1502
  %v1504 = vpop.f32.mrf.mxu0
  %v1505 = vadd.f32 %v690, %v1504
  %1506 = vmatmul.bf16.gmra.mxu0 %v1102
  %v1507 = vpop.f32.mrf.mxu0
  %v1508 = vadd.f32 %v690, %v1507
  %v1509 = vpop.f32.mrf.mxu0
  %v1510 = vadd.f32 %v690, %v1509
  %1511 = vmatmul.bf16.gmra.mxu0 %v1105
  %v1512 = vpop.f32.mrf.mxu0
  %v1513 = vadd.f32 %v690, %v1512
  %v1514 = vpop.f32.mrf.mxu0
  %v1515 = vadd.f32 %v690, %v1514
  %1516 = vdwg.mxu0
  %1517 = vmatpush.bf16.msra.mxu0 %v1315
  %1518 = vmatpush.bf16.msra.mxu0 %v1314
  %1519 = vmatpush.bf16.msra.mxu0 %v1313
  %1520 = vmatpush.bf16.msra.mxu0 %v1312
  %1521 = vmatpush.bf16.msra.mxu0 %v1311
  %1522 = vmatpush.bf16.msra.mxu0 %v1310
  %1523 = vmatpush.bf16.msra.mxu0 %v1309
  %1524 = vmatpush.bf16.msra.mxu0 %v1308
  %1525 = vmatmul.bf16.gmra.mxu0 %v1013
  %v1526 = vpop.f32.mrf.mxu0
  %v1527 = vadd.f32 %v1358, %v1526
  %v1528 = vpop.f32.mrf.mxu0
  %v1529 = vadd.f32 %v1360, %v1528
  %1530 = vmatmul.bf16.gmra.mxu0 %v1016
  %v1531 = vpop.f32.mrf.mxu0
  %v1532 = vadd.f32 %v1363, %v1531
  %v1533 = vpop.f32.mrf.mxu0
  %v1534 = vadd.f32 %v1365, %v1533
  %1535 = vmatmul.bf16.gmra.mxu0 %v1019
  %v1536 = vpop.f32.mrf.mxu0
  %v1537 = vadd.f32 %v1368, %v1536
  %v1538 = vpop.f32.mrf.mxu0
  %v1539 = vadd.f32 %v1370, %v1538
  %1540 = vmatmul.bf16.gmra.mxu0 %v1022
  %v1541 = vpop.f32.mrf.mxu0
  %v1542 = vadd.f32 %v1373, %v1541
  %v1543 = vpop.f32.mrf.mxu0
  %v1544 = vadd.f32 %v1375, %v1543
  %1545 = vmatmul.bf16.gmra.mxu0 %v1025
  %v1546 = vpop.f32.mrf.mxu0
  %v1547 = vadd.f32 %v1378, %v1546
  %v1548 = vpop.f32.mrf.mxu0
  %v1549 = vadd.f32 %v1380, %v1548
  %1550 = vmatmul.bf16.gmra.mxu0 %v1028
  %v1551 = vpop.f32.mrf.mxu0
  %v1552 = vadd.f32 %v1383, %v1551
  %v1553 = vpop.f32.mrf.mxu0
  %v1554 = vadd.f32 %v1385, %v1553
  %1555 = vmatmul.bf16.gmra.mxu0 %v1031
  %v1556 = vpop.f32.mrf.mxu0
  %v1557 = vadd.f32 %v1388, %v1556
  %v1558 = vpop.f32.mrf.mxu0
  %v1559 = vadd.f32 %v1390, %v1558
  %1560 = vmatmul.bf16.gmra.mxu0 %v1034
  %v1561 = vpop.f32.mrf.mxu0
  %v1562 = vadd.f32 %v1393, %v1561
  %v1563 = vpop.f32.mrf.mxu0
  %v1564 = vadd.f32 %v1395, %v1563
  %1565 = vmatmul.bf16.gmra.mxu0 %v1037
  %v1566 = vpop.f32.mrf.mxu0
  %v1567 = vadd.f32 %v1398, %v1566
  %v1568 = vpop.f32.mrf.mxu0
  %v1569 = vadd.f32 %v1400, %v1568
  %1570 = vmatmul.bf16.gmra.mxu0 %v1040
  %v1571 = vpop.f32.mrf.mxu0
  %v1572 = vadd.f32 %v1403, %v1571
  %v1573 = vpop.f32.mrf.mxu0
  %v1574 = vadd.f32 %v1405, %v1573
  %1575 = vmatmul.bf16.gmra.mxu0 %v1043
  %v1576 = vpop.f32.mrf.mxu0
  %v1577 = vadd.f32 %v1408, %v1576
  %v1578 = vpop.f32.mrf.mxu0
  %v1579 = vadd.f32 %v1410, %v1578
  %1580 = vmatmul.bf16.gmra.mxu0 %v1046
  %v1581 = vpop.f32.mrf.mxu0
  %v1582 = vadd.f32 %v1413, %v1581
  %v1583 = vpop.f32.mrf.mxu0
  %v1584 = vadd.f32 %v1415, %v1583
  %1585 = vmatmul.bf16.gmra.mxu0 %v1049
  %v1586 = vpop.f32.mrf.mxu0
  %v1587 = vadd.f32 %v1418, %v1586
  %v1588 = vpop.f32.mrf.mxu0
  %v1589 = vadd.f32 %v1420, %v1588
  %1590 = vmatmul.bf16.gmra.mxu0 %v1052
  %v1591 = vpop.f32.mrf.mxu0
  %v1592 = vadd.f32 %v1423, %v1591
  %v1593 = vpop.f32.mrf.mxu0
  %v1594 = vadd.f32 %v1425, %v1593
  %1595 = vmatmul.bf16.gmra.mxu0 %v1055
  %v1596 = vpop.f32.mrf.mxu0
  %v1597 = vadd.f32 %v1428, %v1596
  %v1598 = vpop.f32.mrf.mxu0
  %v1599 = vadd.f32 %v1430, %v1598
  %1600 = vmatmul.bf16.gmra.mxu0 %v1058
  %v1601 = vpop.f32.mrf.mxu0
  %v1602 = vadd.f32 %v1433, %v1601
  %v1603 = vpop.f32.mrf.mxu0
  %v1604 = vadd.f32 %v1435, %v1603
  %1605 = vmatmul.bf16.gmra.mxu0 %v1061
  %v1606 = vpop.f32.mrf.mxu0
  %v1607 = vadd.f32 %v1438, %v1606
  %v1608 = vpop.f32.mrf.mxu0
  %v1609 = vadd.f32 %v1440, %v1608
  %1610 = vmatmul.bf16.gmra.mxu0 %v1064
  %v1611 = vpop.f32.mrf.mxu0
  %v1612 = vadd.f32 %v1443, %v1611
  %v1613 = vpop.f32.mrf.mxu0
  %v1614 = vadd.f32 %v1445, %v1613
  %1615 = vmatmul.bf16.gmra.mxu0 %v1067
  %v1616 = vpop.f32.mrf.mxu0
  %v1617 = vadd.f32 %v1448, %v1616
  %v1618 = vpop.f32.mrf.mxu0
  %v1619 = vadd.f32 %v1450, %v1618
  %1620 = vmatmul.bf16.gmra.mxu0 %v1070
  %v1621 = vpop.f32.mrf.mxu0
  %v1622 = vadd.f32 %v1453, %v1621
  %v1623 = vpop.f32.mrf.mxu0
  %v1624 = vadd.f32 %v1455, %v1623
  %1625 = vmatmul.bf16.gmra.mxu0 %v1073
  %v1626 = vpop.f32.mrf.mxu0
  %v1627 = vadd.f32 %v1458, %v1626
  %v1628 = vpop.f32.mrf.mxu0
  %v1629 = vadd.f32 %v1460, %v1628
  %1630 = vmatmul.bf16.gmra.mxu0 %v1076
  %v1631 = vpop.f32.mrf.mxu0
  %v1632 = vadd.f32 %v1463, %v1631
  %v1633 = vpop.f32.mrf.mxu0
  %v1634 = vadd.f32 %v1465, %v1633
  %1635 = vmatmul.bf16.gmra.mxu0 %v1079
  %v1636 = vpop.f32.mrf.mxu0
  %v1637 = vadd.f32 %v1468, %v1636
  %v1638 = vpop.f32.mrf.mxu0
  %v1639 = vadd.f32 %v1470, %v1638
  %1640 = vmatmul.bf16.gmra.mxu0 %v1082
  %v1641 = vpop.f32.mrf.mxu0
  %v1642 = vadd.f32 %v1473, %v1641
  %v1643 = vpop.f32.mrf.mxu0
  %v1644 = vadd.f32 %v1475, %v1643
  %1645 = vmatmul.bf16.gmra.mxu0 %v1085
  %v1646 = vpop.f32.mrf.mxu0
  %v1647 = vadd.f32 %v1478, %v1646
  %v1648 = vpop.f32.mrf.mxu0
  %v1649 = vadd.f32 %v1480, %v1648
  %1650 = vmatmul.bf16.gmra.mxu0 %v1088
  %v1651 = vpop.f32.mrf.mxu0
  %v1652 = vadd.f32 %v1483, %v1651
  %v1653 = vpop.f32.mrf.mxu0
  %v1654 = vadd.f32 %v1485, %v1653
  %1655 = vmatmul.bf16.gmra.mxu0 %v1091
  %v1656 = vpop.f32.mrf.mxu0
  %v1657 = vadd.f32 %v1488, %v1656
  %v1658 = vpop.f32.mrf.mxu0
  %v1659 = vadd.f32 %v1490, %v1658
  %1660 = vmatmul.bf16.gmra.mxu0 %v1094
  %v1661 = vpop.f32.mrf.mxu0
  %v1662 = vadd.f32 %v1493, %v1661
  %v1663 = vpop.f32.mrf.mxu0
  %v1664 = vadd.f32 %v1495, %v1663
  %1665 = vmatmul.bf16.gmra.mxu0 %v1097
  %v1666 = vpop.f32.mrf.mxu0
  %v1667 = vadd.f32 %v1498, %v1666
  %v1668 = vpop.f32.mrf.mxu0
  %v1669 = vadd.f32 %v1500, %v1668
  %1670 = vmatmul.bf16.gmra.mxu0 %v1100
  %v1671 = vpop.f32.mrf.mxu0
  %v1672 = vadd.f32 %v1503, %v1671
  %v1673 = vpop.f32.mrf.mxu0
  %v1674 = vadd.f32 %v1505, %v1673
  %1675 = vmatmul.bf16.gmra.mxu0 %v1103
  %v1676 = vpop.f32.mrf.mxu0
  %v1677 = vadd.f32 %v1508, %v1676
  %v1678 = vpop.f32.mrf.mxu0
  %v1679 = vadd.f32 %v1510, %v1678
  %1680 = vmatmul.bf16.gmra.mxu0 %v1106
  %v1681 = vpop.f32.mrf.mxu0
  %v1682 = vadd.f32 %v1513, %v1681
  %v1683 = vpop.f32.mrf.mxu0
  %v1684 = vadd.f32 %v1515, %v1683
  %1685 = vdwg.mxu0
  %1686 = vmatpush.bf16.msra.mxu0 %v1323
  %1687 = vmatpush.bf16.msra.mxu0 %v1322
  %1688 = vmatpush.bf16.msra.mxu0 %v1321
  %1689 = vmatpush.bf16.msra.mxu0 %v1320
  %1690 = vmatpush.bf16.msra.mxu0 %v1319
  %1691 = vmatpush.bf16.msra.mxu0 %v1318
  %1692 = vmatpush.bf16.msra.mxu0 %v1317
  %1693 = vmatpush.bf16.msra.mxu0 %v1316
  %1694 = vmatmul.bf16.gmra.mxu0 %v1014
  %v1695 = vpop.f32.mrf.mxu0
  %v1696 = vadd.f32 %v1527, %v1695
  %v1697 = vpop.f32.mrf.mxu0
  %v1698 = vadd.f32 %v1529, %v1697
  %1699 = vmatmul.bf16.gmra.mxu0 %v1017
  %v1700 = vpop.f32.mrf.mxu0
  %v1701 = vadd.f32 %v1532, %v1700
  %v1702 = vpop.f32.mrf.mxu0
  %v1703 = vadd.f32 %v1534, %v1702
  %1704 = vmatmul.bf16.gmra.mxu0 %v1020
  %v1705 = vpop.f32.mrf.mxu0
  %v1706 = vadd.f32 %v1537, %v1705
  %v1707 = vpop.f32.mrf.mxu0
  %v1708 = vadd.f32 %v1539, %v1707
  %1709 = vmatmul.bf16.gmra.mxu0 %v1023
  %v1710 = vpop.f32.mrf.mxu0
  %v1711 = vadd.f32 %v1542, %v1710
  %v1712 = vpop.f32.mrf.mxu0
  %v1713 = vadd.f32 %v1544, %v1712
  %1714 = vmatmul.bf16.gmra.mxu0 %v1026
  %v1715 = vpop.f32.mrf.mxu0
  %v1716 = vadd.f32 %v1547, %v1715
  %v1717 = vpop.f32.mrf.mxu0
  %v1718 = vadd.f32 %v1549, %v1717
  %1719 = vmatmul.bf16.gmra.mxu0 %v1029
  %v1720 = vpop.f32.mrf.mxu0
  %v1721 = vadd.f32 %v1552, %v1720
  %v1722 = vpop.f32.mrf.mxu0
  %v1723 = vadd.f32 %v1554, %v1722
  %1724 = vmatmul.bf16.gmra.mxu0 %v1032
  %v1725 = vpop.f32.mrf.mxu0
  %v1726 = vadd.f32 %v1557, %v1725
  %v1727 = vpop.f32.mrf.mxu0
  %v1728 = vadd.f32 %v1559, %v1727
  %1729 = vmatmul.bf16.gmra.mxu0 %v1035
  %v1730 = vpop.f32.mrf.mxu0
  %v1731 = vadd.f32 %v1562, %v1730
  %v1732 = vpop.f32.mrf.mxu0
  %v1733 = vadd.f32 %v1564, %v1732
  %1734 = vmatmul.bf16.gmra.mxu0 %v1038
  %v1735 = vpop.f32.mrf.mxu0
  %v1736 = vadd.f32 %v1567, %v1735
  %v1737 = vpop.f32.mrf.mxu0
  %v1738 = vadd.f32 %v1569, %v1737
  %1739 = vmatmul.bf16.gmra.mxu0 %v1041
  %v1740 = vpop.f32.mrf.mxu0
  %v1741 = vadd.f32 %v1572, %v1740
  %v1742 = vpop.f32.mrf.mxu0
  %v1743 = vadd.f32 %v1574, %v1742
  %1744 = vmatmul.bf16.gmra.mxu0 %v1044
  %v1745 = vpop.f32.mrf.mxu0
  %v1746 = vadd.f32 %v1577, %v1745
  %v1747 = vpop.f32.mrf.mxu0
  %v1748 = vadd.f32 %v1579, %v1747
  %1749 = vmatmul.bf16.gmra.mxu0 %v1047
  %v1750 = vpop.f32.mrf.mxu0
  %v1751 = vadd.f32 %v1582, %v1750
  %v1752 = vpop.f32.mrf.mxu0
  %v1753 = vadd.f32 %v1584, %v1752
  %1754 = vmatmul.bf16.gmra.mxu0 %v1050
  %v1755 = vpop.f32.mrf.mxu0
  %v1756 = vadd.f32 %v1587, %v1755
  %v1757 = vpop.f32.mrf.mxu0
  %v1758 = vadd.f32 %v1589, %v1757
  %1759 = vmatmul.bf16.gmra.mxu0 %v1053
  %v1760 = vpop.f32.mrf.mxu0
  %v1761 = vadd.f32 %v1592, %v1760
  %v1762 = vpop.f32.mrf.mxu0
  %v1763 = vadd.f32 %v1594, %v1762
  %1764 = vmatmul.bf16.gmra.mxu0 %v1056
  %v1765 = vpop.f32.mrf.mxu0
  %v1766 = vadd.f32 %v1597, %v1765
  %v1767 = vpop.f32.mrf.mxu0
  %v1768 = vadd.f32 %v1599, %v1767
  %1769 = vmatmul.bf16.gmra.mxu0 %v1059
  %v1770 = vpop.f32.mrf.mxu0
  %v1771 = vadd.f32 %v1602, %v1770
  %v1772 = vpop.f32.mrf.mxu0
  %v1773 = vadd.f32 %v1604, %v1772
  %1774 = vmatmul.bf16.gmra.mxu0 %v1062
  %v1775 = vpop.f32.mrf.mxu0
  %v1776 = vadd.f32 %v1607, %v1775
  %v1777 = vpop.f32.mrf.mxu0
  %v1778 = vadd.f32 %v1609, %v1777
  %1779 = vmatmul.bf16.gmra.mxu0 %v1065
  %v1780 = vpop.f32.mrf.mxu0
  %v1781 = vadd.f32 %v1612, %v1780
  %v1782 = vpop.f32.mrf.mxu0
  %v1783 = vadd.f32 %v1614, %v1782
  %1784 = vmatmul.bf16.gmra.mxu0 %v1068
  %v1785 = vpop.f32.mrf.mxu0
  %v1786 = vadd.f32 %v1617, %v1785
  %v1787 = vpop.f32.mrf.mxu0
  %v1788 = vadd.f32 %v1619, %v1787
  %1789 = vmatmul.bf16.gmra.mxu0 %v1071
  %v1790 = vpop.f32.mrf.mxu0
  %v1791 = vadd.f32 %v1622, %v1790
  %v1792 = vpop.f32.mrf.mxu0
  %v1793 = vadd.f32 %v1624, %v1792
  %1794 = vmatmul.bf16.gmra.mxu0 %v1074
  %v1795 = vpop.f32.mrf.mxu0
  %v1796 = vadd.f32 %v1627, %v1795
  %v1797 = vpop.f32.mrf.mxu0
  %v1798 = vadd.f32 %v1629, %v1797
  %1799 = vmatmul.bf16.gmra.mxu0 %v1077
  %v1800 = vpop.f32.mrf.mxu0
  %v1801 = vadd.f32 %v1632, %v1800
  %v1802 = vpop.f32.mrf.mxu0
  %v1803 = vadd.f32 %v1634, %v1802
  %1804 = vmatmul.bf16.gmra.mxu0 %v1080
  %v1805 = vpop.f32.mrf.mxu0
  %v1806 = vadd.f32 %v1637, %v1805
  %v1807 = vpop.f32.mrf.mxu0
  %v1808 = vadd.f32 %v1639, %v1807
  %1809 = vmatmul.bf16.gmra.mxu0 %v1083
  %v1810 = vpop.f32.mrf.mxu0
  %v1811 = vadd.f32 %v1642, %v1810
  %v1812 = vpop.f32.mrf.mxu0
  %v1813 = vadd.f32 %v1644, %v1812
  %1814 = vmatmul.bf16.gmra.mxu0 %v1086
  %v1815 = vpop.f32.mrf.mxu0
  %v1816 = vadd.f32 %v1647, %v1815
  %v1817 = vpop.f32.mrf.mxu0
  %v1818 = vadd.f32 %v1649, %v1817
  %1819 = vmatmul.bf16.gmra.mxu0 %v1089
  %v1820 = vpop.f32.mrf.mxu0
  %v1821 = vadd.f32 %v1652, %v1820
  %v1822 = vpop.f32.mrf.mxu0
  %v1823 = vadd.f32 %v1654, %v1822
  %1824 = vmatmul.bf16.gmra.mxu0 %v1092
  %v1825 = vpop.f32.mrf.mxu0
  %v1826 = vadd.f32 %v1657, %v1825
  %v1827 = vpop.f32.mrf.mxu0
  %v1828 = vadd.f32 %v1659, %v1827
  %1829 = vmatmul.bf16.gmra.mxu0 %v1095
  %v1830 = vpop.f32.mrf.mxu0
  %v1831 = vadd.f32 %v1662, %v1830
  %v1832 = vpop.f32.mrf.mxu0
  %v1833 = vadd.f32 %v1664, %v1832
  %1834 = vmatmul.bf16.gmra.mxu0 %v1098
  %v1835 = vpop.f32.mrf.mxu0
  %v1836 = vadd.f32 %v1667, %v1835
  %v1837 = vpop.f32.mrf.mxu0
  %v1838 = vadd.f32 %v1669, %v1837
  %1839 = vmatmul.bf16.gmra.mxu0 %v1101
  %v1840 = vpop.f32.mrf.mxu0
  %v1841 = vadd.f32 %v1672, %v1840
  %v1842 = vpop.f32.mrf.mxu0
  %v1843 = vadd.f32 %v1674, %v1842
  %1844 = vmatmul.bf16.gmra.mxu0 %v1104
  %v1845 = vpop.f32.mrf.mxu0
  %v1846 = vadd.f32 %v1677, %v1845
  %v1847 = vpop.f32.mrf.mxu0
  %v1848 = vadd.f32 %v1679, %v1847
  %1849 = vmatmul.bf16.gmra.mxu0 %v1107
  %v1850 = vpop.f32.mrf.mxu0
  %v1851 = vadd.f32 %v1682, %v1850
  %v1852 = vpop.f32.mrf.mxu0
  %v1853 = vadd.f32 %v1684, %v1852
  %1854 = vdwg.mxu0
  %v1855 = vadd.f32 %v1696, %v529
  %v1856 = vadd.f32 %v1698, %v531
  %v1857 = vadd.f32 %v1701, %v534
  %v1858 = vadd.f32 %v1703, %v536
  %v1859 = vadd.f32 %v1706, %v539
  %v1860 = vadd.f32 %v1708, %v541
  %v1861 = vadd.f32 %v1711, %v544
  %v1862 = vadd.f32 %v1713, %v546
  %v1863 = vadd.f32 %v1716, %v549
  %v1864 = vadd.f32 %v1718, %v551
  %v1865 = vadd.f32 %v1721, %v554
  %v1866 = vadd.f32 %v1723, %v556
  %v1867 = vadd.f32 %v1726, %v559
  %v1868 = vadd.f32 %v1728, %v561
  %v1869 = vadd.f32 %v1731, %v564
  %v1870 = vadd.f32 %v1733, %v566
  %v1871 = vadd.f32 %v1736, %v569
  %v1872 = vadd.f32 %v1738, %v571
  %v1873 = vadd.f32 %v1741, %v574
  %v1874 = vadd.f32 %v1743, %v576
  %v1875 = vadd.f32 %v1746, %v579
  %v1876 = vadd.f32 %v1748, %v581
  %v1877 = vadd.f32 %v1751, %v584
  %v1878 = vadd.f32 %v1753, %v586
  %v1879 = vadd.f32 %v1756, %v589
  %v1880 = vadd.f32 %v1758, %v591
  %v1881 = vadd.f32 %v1761, %v594
  %v1882 = vadd.f32 %v1763, %v596
  %v1883 = vadd.f32 %v1766, %v599
  %v1884 = vadd.f32 %v1768, %v601
  %v1885 = vadd.f32 %v1771, %v604
  %v1886 = vadd.f32 %v1773, %v606
  %v1887 = vadd.f32 %v1776, %v609
  %v1888 = vadd.f32 %v1778, %v611
  %v1889 = vadd.f32 %v1781, %v614
  %v1890 = vadd.f32 %v1783, %v616
  %v1891 = vadd.f32 %v1786, %v619
  %v1892 = vadd.f32 %v1788, %v621
  %v1893 = vadd.f32 %v1791, %v624
  %v1894 = vadd.f32 %v1793, %v626
  %v1895 = vadd.f32 %v1796, %v629
  %v1896 = vadd.f32 %v1798, %v631
  %v1897 = vadd.f32 %v1801, %v634
  %v1898 = vadd.f32 %v1803, %v636
  %v1899 = vadd.f32 %v1806, %v639
  %v1900 = vadd.f32 %v1808, %v641
  %v1901 = vadd.f32 %v1811, %v644
  %v1902 = vadd.f32 %v1813, %v646
  %v1903 = vadd.f32 %v1816, %v649
  %v1904 = vadd.f32 %v1818, %v651
  %v1905 = vadd.f32 %v1821, %v654
  %v1906 = vadd.f32 %v1823, %v656
  %v1907 = vadd.f32 %v1826, %v659
  %v1908 = vadd.f32 %v1828, %v661
  %v1909 = vadd.f32 %v1831, %v664
  %v1910 = vadd.f32 %v1833, %v666
  %v1911 = vadd.f32 %v1836, %v669
  %v1912 = vadd.f32 %v1838, %v671
  %v1913 = vadd.f32 %v1841, %v674
  %v1914 = vadd.f32 %v1843, %v676
  %v1915 = vadd.f32 %v1846, %v679
  %v1916 = vadd.f32 %v1848, %v681
  %v1917 = vadd.f32 %v1851, %v684
  %v1918 = vadd.f32 %v1853, %v686
  %v1919 = vld [vmem:[%s5] sm:$0x1]
  %v1921 = vperm.slane %v1919, 0
  %v1923 = vadd.f32 %v1855, %v1921
  %v1924 = vadd.f32 %v1856, %v1921
  %v1925 = vadd.f32 %v1857, %v1921
  %v1926 = vadd.f32 %v1858, %v1921
  %v1927 = vadd.f32 %v1859, %v1921
  %v1928 = vadd.f32 %v1860, %v1921
  %v1929 = vadd.f32 %v1861, %v1921
  %v1930 = vadd.f32 %v1862, %v1921
  %v1931 = vadd.f32 %v1863, %v1921
  %v1932 = vadd.f32 %v1864, %v1921
  %v1933 = vadd.f32 %v1865, %v1921
  %v1934 = vadd.f32 %v1866, %v1921
  %v1935 = vadd.f32 %v1867, %v1921
  %v1936 = vadd.f32 %v1868, %v1921
  %v1937 = vadd.f32 %v1869, %v1921
  %v1938 = vadd.f32 %v1870, %v1921
  %v1939 = vadd.f32 %v1871, %v1921
  %v1940 = vadd.f32 %v1872, %v1921
  %v1941 = vadd.f32 %v1873, %v1921
  %v1942 = vadd.f32 %v1874, %v1921
  %v1943 = vadd.f32 %v1875, %v1921
  %v1944 = vadd.f32 %v1876, %v1921
  %v1945 = vadd.f32 %v1877, %v1921
  %v1946 = vadd.f32 %v1878, %v1921
  %v1947 = vadd.f32 %v1879, %v1921
  %v1948 = vadd.f32 %v1880, %v1921
  %v1949 = vadd.f32 %v1881, %v1921
  %v1950 = vadd.f32 %v1882, %v1921
  %v1951 = vadd.f32 %v1883, %v1921
  %v1952 = vadd.f32 %v1884, %v1921
  %v1953 = vadd.f32 %v1885, %v1921
  %v1954 = vadd.f32 %v1886, %v1921
  %v1955 = vadd.f32 %v1887, %v1921
  %v1956 = vadd.f32 %v1888, %v1921
  %v1957 = vadd.f32 %v1889, %v1921
  %v1958 = vadd.f32 %v1890, %v1921
  %v1959 = vadd.f32 %v1891, %v1921
  %v1960 = vadd.f32 %v1892, %v1921
  %v1961 = vadd.f32 %v1893, %v1921
  %v1962 = vadd.f32 %v1894, %v1921
  %v1963 = vadd.f32 %v1895, %v1921
  %v1964 = vadd.f32 %v1896, %v1921
  %v1965 = vadd.f32 %v1897, %v1921
  %v1966 = vadd.f32 %v1898, %v1921
  %v1967 = vadd.f32 %v1899, %v1921
  %v1968 = vadd.f32 %v1900, %v1921
  %v1969 = vadd.f32 %v1901, %v1921
  %v1970 = vadd.f32 %v1902, %v1921
  %v1971 = vadd.f32 %v1903, %v1921
  %v1972 = vadd.f32 %v1904, %v1921
  %v1973 = vadd.f32 %v1905, %v1921
  %v1974 = vadd.f32 %v1906, %v1921
  %v1975 = vadd.f32 %v1907, %v1921
  %v1976 = vadd.f32 %v1908, %v1921
  %v1977 = vadd.f32 %v1909, %v1921
  %v1978 = vadd.f32 %v1910, %v1921
  %v1979 = vadd.f32 %v1911, %v1921
  %v1980 = vadd.f32 %v1912, %v1921
  %v1981 = vadd.f32 %v1913, %v1921
  %v1982 = vadd.f32 %v1914, %v1921
  %v1983 = vadd.f32 %v1915, %v1921
  %v1984 = vadd.f32 %v1916, %v1921
  %v1985 = vadd.f32 %v1917, %v1921
  %v1986 = vadd.f32 %v1918, %v1921
  %v1987 = vmax.f32 %v1923, 0.0
  %v1988 = vmax.f32 %v1924, 0.0
  %v1989 = vmax.f32 %v1925, 0.0
  %v1990 = vmax.f32 %v1926, 0.0
  %v1991 = vmax.f32 %v1927, 0.0
  %v1992 = vmax.f32 %v1928, 0.0
  %v1993 = vmax.f32 %v1929, 0.0
  %v1994 = vmax.f32 %v1930, 0.0
  %v1995 = vmax.f32 %v1931, 0.0
  %v1996 = vmax.f32 %v1932, 0.0
  %v1997 = vmax.f32 %v1933, 0.0
  %v1998 = vmax.f32 %v1934, 0.0
  %v1999 = vmax.f32 %v1935, 0.0
  %v2000 = vmax.f32 %v1936, 0.0
  %v2001 = vmax.f32 %v1937, 0.0
  %v2002 = vmax.f32 %v1938, 0.0
  %v2003 = vmax.f32 %v1939, 0.0
  %v2004 = vmax.f32 %v1940, 0.0
  %v2005 = vmax.f32 %v1941, 0.0
  %v2006 = vmax.f32 %v1942, 0.0
  %v2007 = vmax.f32 %v1943, 0.0
  %v2008 = vmax.f32 %v1944, 0.0
  %v2009 = vmax.f32 %v1945, 0.0
  %v2010 = vmax.f32 %v1946, 0.0
  %v2011 = vmax.f32 %v1947, 0.0
  %v2012 = vmax.f32 %v1948, 0.0
  %v2013 = vmax.f32 %v1949, 0.0
  %v2014 = vmax.f32 %v1950, 0.0
  %v2015 = vmax.f32 %v1951, 0.0
  %v2016 = vmax.f32 %v1952, 0.0
  %v2017 = vmax.f32 %v1953, 0.0
  %v2018 = vmax.f32 %v1954, 0.0
  %v2019 = vmax.f32 %v1955, 0.0
  %v2020 = vmax.f32 %v1956, 0.0
  %v2021 = vmax.f32 %v1957, 0.0
  %v2022 = vmax.f32 %v1958, 0.0
  %v2023 = vmax.f32 %v1959, 0.0
  %v2024 = vmax.f32 %v1960, 0.0
  %v2025 = vmax.f32 %v1961, 0.0
  %v2026 = vmax.f32 %v1962, 0.0
  %v2027 = vmax.f32 %v1963, 0.0
  %v2028 = vmax.f32 %v1964, 0.0
  %v2029 = vmax.f32 %v1965, 0.0
  %v2030 = vmax.f32 %v1966, 0.0
  %v2031 = vmax.f32 %v1967, 0.0
  %v2032 = vmax.f32 %v1968, 0.0
  %v2033 = vmax.f32 %v1969, 0.0
  %v2034 = vmax.f32 %v1970, 0.0
  %v2035 = vmax.f32 %v1971, 0.0
  %v2036 = vmax.f32 %v1972, 0.0
  %v2037 = vmax.f32 %v1973, 0.0
  %v2038 = vmax.f32 %v1974, 0.0
  %v2039 = vmax.f32 %v1975, 0.0
  %v2040 = vmax.f32 %v1976, 0.0
  %v2041 = vmax.f32 %v1977, 0.0
  %v2042 = vmax.f32 %v1978, 0.0
  %v2043 = vmax.f32 %v1979, 0.0
  %v2044 = vmax.f32 %v1980, 0.0
  %v2045 = vmax.f32 %v1981, 0.0
  %v2046 = vmax.f32 %v1982, 0.0
  %v2047 = vmax.f32 %v1983, 0.0
  %v2048 = vmax.f32 %v1984, 0.0
  %v2049 = vmax.f32 %v1985, 0.0
  %v2050 = vmax.f32 %v1986, 0.0
  %v2051 = vpack.c.bf16 %v1987, %v1987
  %v2052 = vpack.c.bf16 %v1988, %v1988
  %v2053 = vpack.c.bf16 %v1989, %v1989
  %v2054 = vpack.c.bf16 %v1990, %v1990
  %v2055 = vpack.c.bf16 %v1991, %v1991
  %v2056 = vpack.c.bf16 %v1992, %v1992
  %v2057 = vpack.c.bf16 %v1993, %v1993
  %v2058 = vpack.c.bf16 %v1994, %v1994
  %v2059 = vpack.c.bf16 %v1995, %v1995
  %v2060 = vpack.c.bf16 %v1996, %v1996
  %v2061 = vpack.c.bf16 %v1997, %v1997
  %v2062 = vpack.c.bf16 %v1998, %v1998
  %v2063 = vpack.c.bf16 %v1999, %v1999
  %v2064 = vpack.c.bf16 %v2000, %v2000
  %v2065 = vpack.c.bf16 %v2001, %v2001
  %v2066 = vpack.c.bf16 %v2002, %v2002
  %v2067 = vpack.c.bf16 %v2003, %v2003
  %v2068 = vpack.c.bf16 %v2004, %v2004
  %v2069 = vpack.c.bf16 %v2005, %v2005
  %v2070 = vpack.c.bf16 %v2006, %v2006
  %v2071 = vpack.c.bf16 %v2007, %v2007
  %v2072 = vpack.c.bf16 %v2008, %v2008
  %v2073 = vpack.c.bf16 %v2009, %v2009
  %v2074 = vpack.c.bf16 %v2010, %v2010
  %v2075 = vpack.c.bf16 %v2011, %v2011
  %v2076 = vpack.c.bf16 %v2012, %v2012
  %v2077 = vpack.c.bf16 %v2013, %v2013
  %v2078 = vpack.c.bf16 %v2014, %v2014
  %v2079 = vpack.c.bf16 %v2015, %v2015
  %v2080 = vpack.c.bf16 %v2016, %v2016
  %v2081 = vpack.c.bf16 %v2017, %v2017
  %v2082 = vpack.c.bf16 %v2018, %v2018
  %v2083 = vpack.c.bf16 %v2019, %v2019
  %v2084 = vpack.c.bf16 %v2020, %v2020
  %v2085 = vpack.c.bf16 %v2021, %v2021
  %v2086 = vpack.c.bf16 %v2022, %v2022
  %v2087 = vpack.c.bf16 %v2023, %v2023
  %v2088 = vpack.c.bf16 %v2024, %v2024
  %v2089 = vpack.c.bf16 %v2025, %v2025
  %v2090 = vpack.c.bf16 %v2026, %v2026
  %v2091 = vpack.c.bf16 %v2027, %v2027
  %v2092 = vpack.c.bf16 %v2028, %v2028
  %v2093 = vpack.c.bf16 %v2029, %v2029
  %v2094 = vpack.c.bf16 %v2030, %v2030
  %v2095 = vpack.c.bf16 %v2031, %v2031
  %v2096 = vpack.c.bf16 %v2032, %v2032
  %v2097 = vpack.c.bf16 %v2033, %v2033
  %v2098 = vpack.c.bf16 %v2034, %v2034
  %v2099 = vpack.c.bf16 %v2035, %v2035
  %v2100 = vpack.c.bf16 %v2036, %v2036
  %v2101 = vpack.c.bf16 %v2037, %v2037
  %v2102 = vpack.c.bf16 %v2038, %v2038
  %v2103 = vpack.c.bf16 %v2039, %v2039
  %v2104 = vpack.c.bf16 %v2040, %v2040
  %v2105 = vpack.c.bf16 %v2041, %v2041
  %v2106 = vpack.c.bf16 %v2042, %v2042
  %v2107 = vpack.c.bf16 %v2043, %v2043
  %v2108 = vpack.c.bf16 %v2044, %v2044
  %v2109 = vpack.c.bf16 %v2045, %v2045
  %v2110 = vpack.c.bf16 %v2046, %v2046
  %v2111 = vpack.c.bf16 %v2047, %v2047
  %v2112 = vpack.c.bf16 %v2048, %v2048
  %v2113 = vpack.c.bf16 %v2049, %v2049
  %v2114 = vpack.c.bf16 %v2050, %v2050
  %2115 = vst [vmem:[%s6] sm:$0xf] %v2051
  %2116 = vst [vmem:[%s6 + $0x4] sm:$0xf] %v2052
  %2117 = vst [vmem:[%s6 + $0x8] sm:$0xf] %v2053
  %2118 = vst [vmem:[%s6 + $0xc] sm:$0xf] %v2054
  %2119 = vst [vmem:[%s6 + $0x10] sm:$0xf] %v2055
  %2120 = vst [vmem:[%s6 + $0x14] sm:$0xf] %v2056
  %2121 = vst [vmem:[%s6 + $0x18] sm:$0xf] %v2057
  %2122 = vst [vmem:[%s6 + $0x1c] sm:$0xf] %v2058
  %2123 = vst [vmem:[%s6 + $0x20] sm:$0xf] %v2059
  %2124 = vst [vmem:[%s6 + $0x24] sm:$0xf] %v2060
  %2125 = vst [vmem:[%s6 + $0x28] sm:$0xf] %v2061
  %2126 = vst [vmem:[%s6 + $0x2c] sm:$0xf] %v2062
  %2127 = vst [vmem:[%s6 + $0x30] sm:$0xf] %v2063
  %2128 = vst [vmem:[%s6 + $0x34] sm:$0xf] %v2064
  %2129 = vst [vmem:[%s6 + $0x38] sm:$0xf] %v2065
  %2130 = vst [vmem:[%s6 + $0x3c] sm:$0xf] %v2066
  %2131 = vst [vmem:[%s6 + $0x40] sm:$0xf] %v2067
  %2132 = vst [vmem:[%s6 + $0x44] sm:$0xf] %v2068
  %2133 = vst [vmem:[%s6 + $0x48] sm:$0xf] %v2069
  %2134 = vst [vmem:[%s6 + $0x4c] sm:$0xf] %v2070
  %2135 = vst [vmem:[%s6 + $0x50] sm:$0xf] %v2071
  %2136 = vst [vmem:[%s6 + $0x54] sm:$0xf] %v2072
  %2137 = vst [vmem:[%s6 + $0x58] sm:$0xf] %v2073
  %2138 = vst [vmem:[%s6 + $0x5c] sm:$0xf] %v2074
  %2139 = vst [vmem:[%s6 + $0x60] sm:$0xf] %v2075
  %2140 = vst [vmem:[%s6 + $0x64] sm:$0xf] %v2076
  %2141 = vst [vmem:[%s6 + $0x68] sm:$0xf] %v2077
  %2142 = vst [vmem:[%s6 + $0x6c] sm:$0xf] %v2078
  %2143 = vst [vmem:[%s6 + $0x70] sm:$0xf] %v2079
  %2144 = vst [vmem:[%s6 + $0x74] sm:$0xf] %v2080
  %2145 = vst [vmem:[%s6 + $0x78] sm:$0xf] %v2081
  %2146 = vst [vmem:[%s6 + $0x7c] sm:$0xf] %v2082
  %2147 = vst [vmem:[%s6 + $0x80] sm:$0xf] %v2083
  %2148 = vst [vmem:[%s6 + $0x84] sm:$0xf] %v2084
  %2149 = vst [vmem:[%s6 + $0x88] sm:$0xf] %v2085
  %2150 = vst [vmem:[%s6 + $0x8c] sm:$0xf] %v2086
  %2151 = vst [vmem:[%s6 + $0x90] sm:$0xf] %v2087
  %2152 = vst [vmem:[%s6 + $0x94] sm:$0xf] %v2088
  %2153 = vst [vmem:[%s6 + $0x98] sm:$0xf] %v2089
  %2154 = vst [vmem:[%s6 + $0x9c] sm:$0xf] %v2090
  %2155 = vst [vmem:[%s6 + $0xa0] sm:$0xf] %v2091
  %2156 = vst [vmem:[%s6 + $0xa4] sm:$0xf] %v2092
  %2157 = vst [vmem:[%s6 + $0xa8] sm:$0xf] %v2093
  %2158 = vst [vmem:[%s6 + $0xac] sm:$0xf] %v2094
  %2159 = vst [vmem:[%s6 + $0xb0] sm:$0xf] %v2095
  %2160 = vst [vmem:[%s6 + $0xb4] sm:$0xf] %v2096
  %2161 = vst [vmem:[%s6 + $0xb8] sm:$0xf] %v2097
  %2162 = vst [vmem:[%s6 + $0xbc] sm:$0xf] %v2098
  %2163 = vst [vmem:[%s6 + $0xc0] sm:$0xf] %v2099
  %2164 = vst [vmem:[%s6 + $0xc4] sm:$0xf] %v2100
  %2165 = vst [vmem:[%s6 + $0xc8] sm:$0xf] %v2101
  %2166 = vst [vmem:[%s6 + $0xcc] sm:$0xf] %v2102
  %2167 = vst [vmem:[%s6 + $0xd0] sm:$0xf] %v2103
  %2168 = vst [vmem:[%s6 + $0xd4] sm:$0xf] %v2104
  %2169 = vst [vmem:[%s6 + $0xd8] sm:$0xf] %v2105
  %2170 = vst [vmem:[%s6 + $0xdc] sm:$0xf] %v2106
  %2171 = vst [vmem:[%s6 + $0xe0] sm:$0xf] %v2107
  %2172 = vst [vmem:[%s6 + $0xe4] sm:$0xf] %v2108
  %2173 = vst [vmem:[%s6 + $0xe8] sm:$0xf] %v2109
  %2174 = vst [vmem:[%s6 + $0xec] sm:$0xf] %v2110
  %2175 = vst [vmem:[%s6 + $0xf0] sm:$0xf] %v2111
  %2176 = vst [vmem:[%s6 + $0xf4] sm:$0xf] %v2112
  %2177 = vst [vmem:[%s6 + $0xf8] sm:$0xf] %v2113
  %2178 = vst [vmem:[%s6 + $0xfc] sm:$0xf] %v2114
  // Predicated region
  $region26: #{resnet_forward.12} parent=0 // pred_check
    _
  $region27: #{resnet_forward.12} parent=0 // pred_check_branch
    %2180 = sbr.rel (0) target = $region29
  $region28: #{resnet_forward.12} parent=0 // pred_region
    _
  $region29: #{resnet_forward.12} parent=0 // pred_fallthru
    _
  // Predicated region
  $region30: #{resnet_forward.12} parent=0 // pred_check
    _
  $region31: #{resnet_forward.12} parent=0 // pred_check_branch
    %2182 = sbr.rel (0) target = $region33
  $region32: #{resnet_forward.12} parent=0 // pred_region
    _
  $region33: #{resnet_forward.12} parent=0 // pred_fallthru
    _

// kernel: resnet_forward.13
$region0: #{resnet_forward.13}
  #allocation0 [shape = 'u32[]', space=smem, size = 0x4, offset = 0x4, fixed_abs, tag = 'smem constant byte address 0x4 - core index']
  #allocation1 [shape = 'u32[72,128]{1,0:T(1,128)}', space=vmem, size = 0x9000, scoped, tag = 'internal scratch']
  %s0 = inlined_call_operand.vmem [shape: bf16[512,384], index: 0, kind: input, shape index: {}]
  %s1 = inlined_call_operand.vmem [shape: bf16[384,128], index: 1, kind: input, shape index: {}]
  %s2 = inlined_call_operand.vmem [shape: f32[1,128], index: 2, kind: input, shape index: {}]
  %s3 = inlined_call_operand.vmem [shape: bf16[512,128], index: 3, kind: output, shape index: {}]
  %s4 = sld [smem:[#allocation0]]
  $region22: #{resnet_forward.13} parent=0
    _
  %s6 = ssub.s32 1, %s4
  %s7 = scalar_select 0, %s6, %s4
  // Predicated region
  $region2: #{resnet_forward.13} parent=0 // pred_check
    _
  $region3: #{resnet_forward.13} parent=0 // pred_check_branch
    %9 = sbr.rel (0) target = $region5
  $region4: #{resnet_forward.13} parent=0 // pred_region
    _
  $region5: #{resnet_forward.13} parent=0 // pred_fallthru
    _
  // Predicated region
  $region6: #{resnet_forward.13} parent=0 // pred_check
    _
  $region7: #{resnet_forward.13} parent=0 // pred_check_branch
    %11 = sbr.rel (0) target = $region9
  $region8: #{resnet_forward.13} parent=0 // pred_region
    _
  $region9: #{resnet_forward.13} parent=0 // pred_fallthru
    _
  // Predicated region
  $region10: #{resnet_forward.13} parent=0 // pred_check
    _
  $region11: #{resnet_forward.13} parent=0 // pred_check_branch
    %13 = sbr.rel (0) target = $region13
  $region12: #{resnet_forward.13} parent=0 // pred_region
    _
  $region13: #{resnet_forward.13} parent=0 // pred_fallthru
    _
  %v14 = vld [vmem:[%s0] sm:$0xff]
  %v15 = vld [vmem:[%s0 + $0x8] sm:$0xf]
  %v16 = vld [vmem:[%s0 + $0xc] sm:$0xff]
  %v17 = vld [vmem:[%s0 + $0x14] sm:$0xf]
  %v18 = vld [vmem:[%s0 + $0x18] sm:$0xff]
  %v19 = vld [vmem:[%s0 + $0x20] sm:$0xf]
  %v20 = vld [vmem:[%s0 + $0x24] sm:$0xff]
  %v21 = vld [vmem:[%s0 + $0x2c] sm:$0xf]
  %v22 = vld [vmem:[%s0 + $0x30] sm:$0xff]
  %v23 = vld [vmem:[%s0 + $0x38] sm:$0xf]
  %v24 = vld [vmem:[%s0 + $0x3c] sm:$0xff]
  %v25 = vld [vmem:[%s0 + $0x44] sm:$0xf]
  %v26 = vld [vmem:[%s0 + $0x48] sm:$0xff]
  %v27 = vld [vmem:[%s0 + $0x50] sm:$0xf]
  %v28 = vld [vmem:[%s0 + $0x54] sm:$0xff]
  %v29 = vld [vmem:[%s0 + $0x5c] sm:$0xf]
  %v30 = vld [vmem:[%s0 + $0x60] sm:$0xff]
  %v31 = vld [vmem:[%s0 + $0x68] sm:$0xf]
  %v32 = vld [vmem:[%s0 + $0x6c] sm:$0xff]
  %v33 = vld [vmem:[%s0 + $0x74] sm:$0xf]
  %v34 = vld [vmem:[%s0 + $0x78] sm:$0xff]
  %v35 = vld [vmem:[%s0 + $0x80] sm:$0xf]
  %v36 = vld [vmem:[%s0 + $0x84] sm:$0xff]
  %v37 = vld [vmem:[%s0 + $0x8c] sm:$0xf]
  %v38 = vld [vmem:[%s0 + $0x90] sm:$0xff]
  %v39 = vld [vmem:[%s0 + $0x98] sm:$0xf]
  %v40 = vld [vmem:[%s0 + $0x9c] sm:$0xff]
  %v41 = vld [vmem:[%s0 + $0xa4] sm:$0xf]
  %v42 = vld [vmem:[%s0 + $0xa8] sm:$0xff]
  %v43 = vld [vmem:[%s0 + $0xb0] sm:$0xf]
  %v44 = vld [vmem:[%s0 + $0xb4] sm:$0xff]
  %v45 = vld [vmem:[%s0 + $0xbc] sm:$0xf]
  %v46 = vld [vmem:[%s0 + $0xc0] sm:$0xff]
  %v47 = vld [vmem:[%s0 + $0xc8] sm:$0xf]
  %v48 = vld [vmem:[%s0 + $0xcc] sm:$0xff]
  %v49 = vld [vmem:[%s0 + $0xd4] sm:$0xf]
  %v50 = vld [vmem:[%s0 + $0xd8] sm:$0xff]
  %v51 = vld [vmem:[%s0 + $0xe0] sm:$0xf]
  %v52 = vld [vmem:[%s0 + $0xe4] sm:$0xff]
  %v53 = vld [vmem:[%s0 + $0xec] sm:$0xf]
  %v54 = vld [vmem:[%s0 + $0xf0] sm:$0xff]
  %v55 = vld [vmem:[%s0 + $0xf8] sm:$0xf]
  %v56 = vld [vmem:[%s0 + $0xfc] sm:$0xff]
  %v57 = vld [vmem:[%s0 + $0x104] sm:$0xf]
  %v58 = vld [vmem:[%s0 + $0x108] sm:$0xff]
  %v59 = vld [vmem:[%s0 + $0x110] sm:$0xf]
  %v60 = vld [vmem:[%s0 + $0x114] sm:$0xff]
  %v61 = vld [vmem:[%s0 + $0x11c] sm:$0xf]
  %v62 = vld [vmem:[%s0 + $0x120] sm:$0xff]
  %v63 = vld [vmem:[%s0 + $0x128] sm:$0xf]
  %v64 = vld [vmem:[%s0 + $0x12c] sm:$0xff]
  %v65 = vld [vmem:[%s0 + $0x134] sm:$0xf]
  %v66 = vld [vmem:[%s0 + $0x138] sm:$0xff]
  %v67 = vld [vmem:[%s0 + $0x140] sm:$0xf]
  %v68 = vld [vmem:[%s0 + $0x144] sm:$0xff]
  %v69 = vld [vmem:[%s0 + $0x14c] sm:$0xf]
  %v70 = vld [vmem:[%s0 + $0x150] sm:$0xff]
  %v71 = vld [vmem:[%s0 + $0x158] sm:$0xf]
  %v72 = vld [vmem:[%s0 + $0x15c] sm:$0xff]
  %v73 = vld [vmem:[%s0 + $0x164] sm:$0xf]
  %v74 = vld [vmem:[%s0 + $0x168] sm:$0xff]
  %v75 = vld [vmem:[%s0 + $0x170] sm:$0xf]
  %v76 = vld [vmem:[%s0 + $0x174] sm:$0xff]
  %v77 = vld [vmem:[%s0 + $0x17c] sm:$0xf]
  %v78 = vld [vmem:[%s0 + $0x180] sm:$0xff]
  %v79 = vld [vmem:[%s0 + $0x188] sm:$0xf]
  %v80 = vld [vmem:[%s0 + $0x18c] sm:$0xff]
  %v81 = vld [vmem:[%s0 + $0x194] sm:$0xf]
  %v82 = vld [vmem:[%s0 + $0x198] sm:$0xff]
  %v83 = vld [vmem:[%s0 + $0x1a0] sm:$0xf]
  %v84 = vld [vmem:[%s0 + $0x1a4] sm:$0xff]
  %v85 = vld [vmem:[%s0 + $0x1ac] sm:$0xf]
  %v86 = vld [vmem:[%s0 + $0x1b0] sm:$0xff]
  %v87 = vld [vmem:[%s0 + $0x1b8] sm:$0xf]
  %v88 = vld [vmem:[%s0 + $0x1bc] sm:$0xff]
  %v89 = vld [vmem:[%s0 + $0x1c4] sm:$0xf]
  %v90 = vld [vmem:[%s0 + $0x1c8] sm:$0xff]
  %v91 = vld [vmem:[%s0 + $0x1d0] sm:$0xf]
  %v92 = vld [vmem:[%s0 + $0x1d4] sm:$0xff]
  %v93 = vld [vmem:[%s0 + $0x1dc] sm:$0xf]
  %v94 = vld [vmem:[%s0 + $0x1e0] sm:$0xff]
  %v95 = vld [vmem:[%s0 + $0x1e8] sm:$0xf]
  %v96 = vld [vmem:[%s0 + $0x1ec] sm:$0xff]
  %v97 = vld [vmem:[%s0 + $0x1f4] sm:$0xf]
  %v98 = vld [vmem:[%s0 + $0x1f8] sm:$0xff]
  %v99 = vld [vmem:[%s0 + $0x200] sm:$0xf]
  %v100 = vld [vmem:[%s0 + $0x204] sm:$0xff]
  %v101 = vld [vmem:[%s0 + $0x20c] sm:$0xf]
  %v102 = vld [vmem:[%s0 + $0x210] sm:$0xff]
  %v103 = vld [vmem:[%s0 + $0x218] sm:$0xf]
  %v104 = vld [vmem:[%s0 + $0x21c] sm:$0xff]
  %v105 = vld [vmem:[%s0 + $0x224] sm:$0xf]
  %v106 = vld [vmem:[%s0 + $0x228] sm:$0xff]
  %v107 = vld [vmem:[%s0 + $0x230] sm:$0xf]
  %v108 = vld [vmem:[%s0 + $0x234] sm:$0xff]
  %v109 = vld [vmem:[%s0 + $0x23c] sm:$0xf]
  %v110 = vld [vmem:[%s0 + $0x240] sm:$0xff]
  %v111 = vld [vmem:[%s0 + $0x248] sm:$0xf]
  %v112 = vld [vmem:[%s0 + $0x24c] sm:$0xff]
  %v113 = vld [vmem:[%s0 + $0x254] sm:$0xf]
  %v114 = vld [vmem:[%s0 + $0x258] sm:$0xff]
  %v115 = vld [vmem:[%s0 + $0x260] sm:$0xf]
  %v116 = vld [vmem:[%s0 + $0x264] sm:$0xff]
  %v117 = vld [vmem:[%s0 + $0x26c] sm:$0xf]
  %v118 = vld [vmem:[%s0 + $0x270] sm:$0xff]
  %v119 = vld [vmem:[%s0 + $0x278] sm:$0xf]
  %v120 = vld [vmem:[%s0 + $0x27c] sm:$0xff]
  %v121 = vld [vmem:[%s0 + $0x284] sm:$0xf]
  %v122 = vld [vmem:[%s0 + $0x288] sm:$0xff]
  %v123 = vld [vmem:[%s0 + $0x290] sm:$0xf]
  %v124 = vld [vmem:[%s0 + $0x294] sm:$0xff]
  %v125 = vld [vmem:[%s0 + $0x29c] sm:$0xf]
  %v126 = vld [vmem:[%s0 + $0x2a0] sm:$0xff]
  %v127 = vld [vmem:[%s0 + $0x2a8] sm:$0xf]
  %v128 = vld [vmem:[%s0 + $0x2ac] sm:$0xff]
  %v129 = vld [vmem:[%s0 + $0x2b4] sm:$0xf]
  %v130 = vld [vmem:[%s0 + $0x2b8] sm:$0xff]
  %v131 = vld [vmem:[%s0 + $0x2c0] sm:$0xf]
  %v132 = vld [vmem:[%s0 + $0x2c4] sm:$0xff]
  %v133 = vld [vmem:[%s0 + $0x2cc] sm:$0xf]
  %v134 = vld [vmem:[%s0 + $0x2d0] sm:$0xff]
  %v135 = vld [vmem:[%s0 + $0x2d8] sm:$0xf]
  %v136 = vld [vmem:[%s0 + $0x2dc] sm:$0xff]
  %v137 = vld [vmem:[%s0 + $0x2e4] sm:$0xf]
  %v138 = vld [vmem:[%s0 + $0x2e8] sm:$0xff]
  %v139 = vld [vmem:[%s0 + $0x2f0] sm:$0xf]
  %v140 = vld [vmem:[%s0 + $0x2f4] sm:$0xff]
  %v141 = vld [vmem:[%s0 + $0x2fc] sm:$0xf]
  %v142 = vld [vmem:[%s1] sm:$0xf]
  %v143 = vld [vmem:[%s1 + $0x4] sm:$0xf]
  %v144 = vld [vmem:[%s1 + $0x8] sm:$0xf]
  %v145 = vld [vmem:[%s1 + $0xc] sm:$0xf]
  %v146 = vld [vmem:[%s1 + $0x10] sm:$0xf]
  %v147 = vld [vmem:[%s1 + $0x14] sm:$0xf]
  %v148 = vld [vmem:[%s1 + $0x18] sm:$0xf]
  %v149 = vld [vmem:[%s1 + $0x1c] sm:$0xf]
  %v150 = vld [vmem:[%s1 + $0x20] sm:$0xf]
  %v151 = vld [vmem:[%s1 + $0x24] sm:$0xf]
  %v152 = vld [vmem:[%s1 + $0x28] sm:$0xf]
  %v153 = vld [vmem:[%s1 + $0x2c] sm:$0xf]
  %v154 = vld [vmem:[%s1 + $0x30] sm:$0xf]
  %v155 = vld [vmem:[%s1 + $0x34] sm:$0xf]
  %v156 = vld [vmem:[%s1 + $0x38] sm:$0xf]
  %v157 = vld [vmem:[%s1 + $0x3c] sm:$0xf]
  %v158 = vld [vmem:[%s1 + $0x40] sm:$0xf]
  %v159 = vld [vmem:[%s1 + $0x44] sm:$0xf]
  %v160 = vld [vmem:[%s1 + $0x48] sm:$0xf]
  %v161 = vld [vmem:[%s1 + $0x4c] sm:$0xf]
  %v162 = vld [vmem:[%s1 + $0x50] sm:$0xf]
  %v163 = vld [vmem:[%s1 + $0x54] sm:$0xf]
  %v164 = vld [vmem:[%s1 + $0x58] sm:$0xf]
  %v165 = vld [vmem:[%s1 + $0x5c] sm:$0xf]
  %v166 = vld [vmem:[%s1 + $0x60] sm:$0xf]
  %v167 = vld [vmem:[%s1 + $0x64] sm:$0xf]
  %v168 = vld [vmem:[%s1 + $0x68] sm:$0xf]
  %v169 = vld [vmem:[%s1 + $0x6c] sm:$0xf]
  %v170 = vld [vmem:[%s1 + $0x70] sm:$0xf]
  %v171 = vld [vmem:[%s1 + $0x74] sm:$0xf]
  %v172 = vld [vmem:[%s1 + $0x78] sm:$0xf]
  %v173 = vld [vmem:[%s1 + $0x7c] sm:$0xf]
  %v174 = vld [vmem:[%s1 + $0x80] sm:$0xf]
  %v175 = vld [vmem:[%s1 + $0x84] sm:$0xf]
  %v176 = vld [vmem:[%s1 + $0x88] sm:$0xf]
  %v177 = vld [vmem:[%s1 + $0x8c] sm:$0xf]
  %v178 = vld [vmem:[%s1 + $0x90] sm:$0xf]
  %v179 = vld [vmem:[%s1 + $0x94] sm:$0xf]
  %v180 = vld [vmem:[%s1 + $0x98] sm:$0xf]
  %v181 = vld [vmem:[%s1 + $0x9c] sm:$0xf]
  %v182 = vld [vmem:[%s1 + $0xa0] sm:$0xf]
  %v183 = vld [vmem:[%s1 + $0xa4] sm:$0xf]
  %v184 = vld [vmem:[%s1 + $0xa8] sm:$0xf]
  %v185 = vld [vmem:[%s1 + $0xac] sm:$0xf]
  %v186 = vld [vmem:[%s1 + $0xb0] sm:$0xf]
  %v187 = vld [vmem:[%s1 + $0xb4] sm:$0xf]
  %v188 = vld [vmem:[%s1 + $0xb8] sm:$0xf]
  %v189 = vld [vmem:[%s1 + $0xbc] sm:$0xf]
  %v190 = vld [vmem:[%s2] sm:$0x1]
  %v192 = vperm.slane %v190, 0
  %v322 = vunpack.c.l.b16 %v14
  %v323 = vunpack.c.h.b16 %v14
  %v324 = vunpack.c.l.b16 %v15
  %v325 = vunpack.c.l.b16 %v16
  %v326 = vunpack.c.h.b16 %v16
  %v327 = vunpack.c.l.b16 %v17
  %v328 = vunpack.c.l.b16 %v18
  %v329 = vunpack.c.h.b16 %v18
  %v330 = vunpack.c.l.b16 %v19
  %v331 = vunpack.c.l.b16 %v20
  %v332 = vunpack.c.h.b16 %v20
  %v333 = vunpack.c.l.b16 %v21
  %v334 = vunpack.c.l.b16 %v22
  %v335 = vunpack.c.h.b16 %v22
  %v336 = vunpack.c.l.b16 %v23
  %v337 = vunpack.c.l.b16 %v24
  %v338 = vunpack.c.h.b16 %v24
  %v339 = vunpack.c.l.b16 %v25
  %v340 = vunpack.c.l.b16 %v26
  %v341 = vunpack.c.h.b16 %v26
  %v342 = vunpack.c.l.b16 %v27
  %v343 = vunpack.c.l.b16 %v28
  %v344 = vunpack.c.h.b16 %v28
  %v345 = vunpack.c.l.b16 %v29
  %v346 = vunpack.c.l.b16 %v30
  %v347 = vunpack.c.h.b16 %v30
  %v348 = vunpack.c.l.b16 %v31
  %v349 = vunpack.c.l.b16 %v32
  %v350 = vunpack.c.h.b16 %v32
  %v351 = vunpack.c.l.b16 %v33
  %v352 = vunpack.c.l.b16 %v34
  %v353 = vunpack.c.h.b16 %v34
  %v354 = vunpack.c.l.b16 %v35
  %v355 = vunpack.c.l.b16 %v36
  %v356 = vunpack.c.h.b16 %v36
  %v357 = vunpack.c.l.b16 %v37
  %v358 = vunpack.c.l.b16 %v38
  %v359 = vunpack.c.h.b16 %v38
  %v360 = vunpack.c.l.b16 %v39
  %v361 = vunpack.c.l.b16 %v40
  %v362 = vunpack.c.h.b16 %v40
  %v363 = vunpack.c.l.b16 %v41
  %v364 = vunpack.c.l.b16 %v42
  %v365 = vunpack.c.h.b16 %v42
  %v366 = vunpack.c.l.b16 %v43
  %v367 = vunpack.c.l.b16 %v44
  %v368 = vunpack.c.h.b16 %v44
  %v369 = vunpack.c.l.b16 %v45
  %v370 = vunpack.c.l.b16 %v46
  %v371 = vunpack.c.h.b16 %v46
  %v372 = vunpack.c.l.b16 %v47
  %v373 = vunpack.c.l.b16 %v48
  %v374 = vunpack.c.h.b16 %v48
  %v375 = vunpack.c.l.b16 %v49
  %v376 = vunpack.c.l.b16 %v50
  %v377 = vunpack.c.h.b16 %v50
  %v378 = vunpack.c.l.b16 %v51
  %v379 = vunpack.c.l.b16 %v52
  %v380 = vunpack.c.h.b16 %v52
  %v381 = vunpack.c.l.b16 %v53
  %v382 = vunpack.c.l.b16 %v54
  %v383 = vunpack.c.h.b16 %v54
  %v384 = vunpack.c.l.b16 %v55
  %v385 = vunpack.c.l.b16 %v56
  %v386 = vunpack.c.h.b16 %v56
  %v387 = vunpack.c.l.b16 %v57
  %v388 = vunpack.c.l.b16 %v58
  %v389 = vunpack.c.h.b16 %v58
  %v390 = vunpack.c.l.b16 %v59
  %v391 = vunpack.c.l.b16 %v60
  %v392 = vunpack.c.h.b16 %v60
  %v393 = vunpack.c.l.b16 %v61
  %v394 = vunpack.c.l.b16 %v62
  %v395 = vunpack.c.h.b16 %v62
  %v396 = vunpack.c.l.b16 %v63
  %v397 = vunpack.c.l.b16 %v64
  %v398 = vunpack.c.h.b16 %v64
  %v399 = vunpack.c.l.b16 %v65
  %v400 = vunpack.c.l.b16 %v66
  %v401 = vunpack.c.h.b16 %v66
  %v402 = vunpack.c.l.b16 %v67
  %v403 = vunpack.c.l.b16 %v68
  %v404 = vunpack.c.h.b16 %v68
  %v405 = vunpack.c.l.b16 %v69
  %v406 = vunpack.c.l.b16 %v70
  %v407 = vunpack.c.h.b16 %v70
  %v408 = vunpack.c.l.b16 %v71
  %v409 = vunpack.c.l.b16 %v72
  %v410 = vunpack.c.h.b16 %v72
  %v411 = vunpack.c.l.b16 %v73
  %v412 = vunpack.c.l.b16 %v74
  %v413 = vunpack.c.h.b16 %v74
  %v414 = vunpack.c.l.b16 %v75
  %v415 = vunpack.c.l.b16 %v76
  %v416 = vunpack.c.h.b16 %v76
  %v417 = vunpack.c.l.b16 %v77
  %v418 = vunpack.c.l.b16 %v78
  %v419 = vunpack.c.h.b16 %v78
  %v420 = vunpack.c.l.b16 %v79
  %v421 = vunpack.c.l.b16 %v80
  %v422 = vunpack.c.h.b16 %v80
  %v423 = vunpack.c.l.b16 %v81
  %v424 = vunpack.c.l.b16 %v82
  %v425 = vunpack.c.h.b16 %v82
  %v426 = vunpack.c.l.b16 %v83
  %v427 = vunpack.c.l.b16 %v84
  %v428 = vunpack.c.h.b16 %v84
  %v429 = vunpack.c.l.b16 %v85
  %v430 = vunpack.c.l.b16 %v86
  %v431 = vunpack.c.h.b16 %v86
  %v432 = vunpack.c.l.b16 %v87
  %v433 = vunpack.c.l.b16 %v88
  %v434 = vunpack.c.h.b16 %v88
  %v435 = vunpack.c.l.b16 %v89
  %v436 = vunpack.c.l.b16 %v90
  %v437 = vunpack.c.h.b16 %v90
  %v438 = vunpack.c.l.b16 %v91
  %v439 = vunpack.c.l.b16 %v92
  %v440 = vunpack.c.h.b16 %v92
  %v441 = vunpack.c.l.b16 %v93
  %v442 = vunpack.c.l.b16 %v94
  %v443 = vunpack.c.h.b16 %v94
  %v444 = vunpack.c.l.b16 %v95
  %v445 = vunpack.c.l.b16 %v96
  %v446 = vunpack.c.h.b16 %v96
  %v447 = vunpack.c.l.b16 %v97
  %v448 = vunpack.c.l.b16 %v98
  %v449 = vunpack.c.h.b16 %v98
  %v450 = vunpack.c.l.b16 %v99
  %v451 = vunpack.c.l.b16 %v100
  %v452 = vunpack.c.h.b16 %v100
  %v453 = vunpack.c.l.b16 %v101
  %v454 = vunpack.c.l.b16 %v102
  %v455 = vunpack.c.h.b16 %v102
  %v456 = vunpack.c.l.b16 %v103
  %v457 = vunpack.c.l.b16 %v104
  %v458 = vunpack.c.h.b16 %v104
  %v459 = vunpack.c.l.b16 %v105
  %v460 = vunpack.c.l.b16 %v106
  %v461 = vunpack.c.h.b16 %v106
  %v462 = vunpack.c.l.b16 %v107
  %v463 = vunpack.c.l.b16 %v108
  %v464 = vunpack.c.h.b16 %v108
  %v465 = vunpack.c.l.b16 %v109
  %v466 = vunpack.c.l.b16 %v110
  %v467 = vunpack.c.h.b16 %v110
  %v468 = vunpack.c.l.b16 %v111
  %v469 = vunpack.c.l.b16 %v112
  %v470 = vunpack.c.h.b16 %v112
  %v471 = vunpack.c.l.b16 %v113
  %v472 = vunpack.c.l.b16 %v114
  %v473 = vunpack.c.h.b16 %v114
  %v474 = vunpack.c.l.b16 %v115
  %v475 = vunpack.c.l.b16 %v116
  %v476 = vunpack.c.h.b16 %v116
  %v477 = vunpack.c.l.b16 %v117
  %v478 = vunpack.c.l.b16 %v118
  %v479 = vunpack.c.h.b16 %v118
  %v480 = vunpack.c.l.b16 %v119
  %v481 = vunpack.c.l.b16 %v120
  %v482 = vunpack.c.h.b16 %v120
  %v483 = vunpack.c.l.b16 %v121
  %v484 = vunpack.c.l.b16 %v122
  %v485 = vunpack.c.h.b16 %v122
  %v486 = vunpack.c.l.b16 %v123
  %v487 = vunpack.c.l.b16 %v124
  %v488 = vunpack.c.h.b16 %v124
  %v489 = vunpack.c.l.b16 %v125
  %v490 = vunpack.c.l.b16 %v126
  %v491 = vunpack.c.h.b16 %v126
  %v492 = vunpack.c.l.b16 %v127
  %v493 = vunpack.c.l.b16 %v128
  %v494 = vunpack.c.h.b16 %v128
  %v495 = vunpack.c.l.b16 %v129
  %v496 = vunpack.c.l.b16 %v130
  %v497 = vunpack.c.h.b16 %v130
  %v498 = vunpack.c.l.b16 %v131
  %v499 = vunpack.c.l.b16 %v132
  %v500 = vunpack.c.h.b16 %v132
  %v501 = vunpack.c.l.b16 %v133
  %v502 = vunpack.c.l.b16 %v134
  %v503 = vunpack.c.h.b16 %v134
  %v504 = vunpack.c.l.b16 %v135
  %v505 = vunpack.c.l.b16 %v136
  %v506 = vunpack.c.h.b16 %v136
  %v507 = vunpack.c.l.b16 %v137
  %v508 = vunpack.c.l.b16 %v138
  %v509 = vunpack.c.h.b16 %v138
  %v510 = vunpack.c.l.b16 %v139
  %v511 = vunpack.c.l.b16 %v140
  %v512 = vunpack.c.h.b16 %v140
  %v513 = vunpack.c.l.b16 %v141
  %v514 = vpack.c.b16 %v325, %v322
  %v515 = vpack.c.b16 %v326, %v323
  %v516 = vpack.c.b16 %v327, %v324
  %v517 = vpack.c.b16 %v331, %v328
  %v518 = vpack.c.b16 %v332, %v329
  %v519 = vpack.c.b16 %v333, %v330
  %v520 = vpack.c.b16 %v337, %v334
  %v521 = vpack.c.b16 %v338, %v335
  %v522 = vpack.c.b16 %v339, %v336
  %v523 = vpack.c.b16 %v343, %v340
  %v524 = vpack.c.b16 %v344, %v341
  %v525 = vpack.c.b16 %v345, %v342
  %v526 = vpack.c.b16 %v349, %v346
  %v527 = vpack.c.b16 %v350, %v347
  %v528 = vpack.c.b16 %v351, %v348
  %v529 = vpack.c.b16 %v355, %v352
  %v530 = vpack.c.b16 %v356, %v353
  %v531 = vpack.c.b16 %v357, %v354
  %v532 = vpack.c.b16 %v361, %v358
  %v533 = vpack.c.b16 %v362, %v359
  %v534 = vpack.c.b16 %v363, %v360
  %v535 = vpack.c.b16 %v367, %v364
  %v536 = vpack.c.b16 %v368, %v365
  %v537 = vpack.c.b16 %v369, %v366
  %v538 = vpack.c.b16 %v373, %v370
  %v539 = vpack.c.b16 %v374, %v371
  %v540 = vpack.c.b16 %v375, %v372
  %v541 = vpack.c.b16 %v379, %v376
  %v542 = vpack.c.b16 %v380, %v377
  %v543 = vpack.c.b16 %v381, %v378
  %v544 = vpack.c.b16 %v385, %v382
  %v545 = vpack.c.b16 %v386, %v383
  %v546 = vpack.c.b16 %v387, %v384
  %v547 = vpack.c.b16 %v391, %v388
  %v548 = vpack.c.b16 %v392, %v389
  %v549 = vpack.c.b16 %v393, %v390
  %v550 = vpack.c.b16 %v397, %v394
  %v551 = vpack.c.b16 %v398, %v395
  %v552 = vpack.c.b16 %v399, %v396
  %v553 = vpack.c.b16 %v403, %v400
  %v554 = vpack.c.b16 %v404, %v401
  %v555 = vpack.c.b16 %v405, %v402
  %v556 = vpack.c.b16 %v409, %v406
  %v557 = vpack.c.b16 %v410, %v407
  %v558 = vpack.c.b16 %v411, %v408
  %v559 = vpack.c.b16 %v415, %v412
  %v560 = vpack.c.b16 %v416, %v413
  %v561 = vpack.c.b16 %v417, %v414
  %v562 = vpack.c.b16 %v421, %v418
  %v563 = vpack.c.b16 %v422, %v419
  %v564 = vpack.c.b16 %v423, %v420
  %v565 = vpack.c.b16 %v427, %v424
  %v566 = vpack.c.b16 %v428, %v425
  %v567 = vpack.c.b16 %v429, %v426
  %v568 = vpack.c.b16 %v433, %v430
  %v569 = vpack.c.b16 %v434, %v431
  %v570 = vpack.c.b16 %v435, %v432
  %v571 = vpack.c.b16 %v439, %v436
  %v572 = vpack.c.b16 %v440, %v437
  %v573 = vpack.c.b16 %v441, %v438
  %v574 = vpack.c.b16 %v445, %v442
  %v575 = vpack.c.b16 %v446, %v443
  %v576 = vpack.c.b16 %v447, %v444
  %v577 = vpack.c.b16 %v451, %v448
  %v578 = vpack.c.b16 %v452, %v449
  %v579 = vpack.c.b16 %v453, %v450
  %v580 = vpack.c.b16 %v457, %v454
  %v581 = vpack.c.b16 %v458, %v455
  %v582 = vpack.c.b16 %v459, %v456
  %v583 = vpack.c.b16 %v463, %v460
  %v584 = vpack.c.b16 %v464, %v461
  %v585 = vpack.c.b16 %v465, %v462
  %v586 = vpack.c.b16 %v469, %v466
  %v587 = vpack.c.b16 %v470, %v467
  %v588 = vpack.c.b16 %v471, %v468
  %v589 = vpack.c.b16 %v475, %v472
  %v590 = vpack.c.b16 %v476, %v473
  %v591 = vpack.c.b16 %v477, %v474
  %v592 = vpack.c.b16 %v481, %v478
  %v593 = vpack.c.b16 %v482, %v479
  %v594 = vpack.c.b16 %v483, %v480
  %v595 = vpack.c.b16 %v487, %v484
  %v596 = vpack.c.b16 %v488, %v485
  %v597 = vpack.c.b16 %v489, %v486
  %v598 = vpack.c.b16 %v493, %v490
  %v599 = vpack.c.b16 %v494, %v491
  %v600 = vpack.c.b16 %v495, %v492
  %v601 = vpack.c.b16 %v499, %v496
  %v602 = vpack.c.b16 %v500, %v497
  %v603 = vpack.c.b16 %v501, %v498
  %v604 = vpack.c.b16 %v505, %v502
  %v605 = vpack.c.b16 %v506, %v503
  %v606 = vpack.c.b16 %v507, %v504
  %v607 = vpack.c.b16 %v511, %v508
  %v608 = vpack.c.b16 %v512, %v509
  %v609 = vpack.c.b16 %v513, %v510
  %v754 = vunpack.c.l.b16 %v142
  %v755 = vunpack.c.l.b16 %v143
  %v756 = vunpack.c.l.b16 %v144
  %v757 = vunpack.c.l.b16 %v145
  %v758 = vunpack.c.l.b16 %v146
  %v759 = vunpack.c.l.b16 %v147
  %v760 = vunpack.c.l.b16 %v148
  %v761 = vunpack.c.l.b16 %v149
  %v762 = vunpack.c.l.b16 %v150
  %v763 = vunpack.c.l.b16 %v151
  %v764 = vunpack.c.l.b16 %v152
  %v765 = vunpack.c.l.b16 %v153
  %v766 = vunpack.c.l.b16 %v154
  %v767 = vunpack.c.l.b16 %v155
  %v768 = vunpack.c.l.b16 %v156
  %v769 = vunpack.c.l.b16 %v157
  %v770 = vunpack.c.l.b16 %v158
  %v771 = vunpack.c.l.b16 %v159
  %v772 = vunpack.c.l.b16 %v160
  %v773 = vunpack.c.l.b16 %v161
  %v774 = vunpack.c.l.b16 %v162
  %v775 = vunpack.c.l.b16 %v163
  %v776 = vunpack.c.l.b16 %v164
  %v777 = vunpack.c.l.b16 %v165
  %v778 = vunpack.c.l.b16 %v166
  %v779 = vunpack.c.l.b16 %v167
  %v780 = vunpack.c.l.b16 %v168
  %v781 = vunpack.c.l.b16 %v169
  %v782 = vunpack.c.l.b16 %v170
  %v783 = vunpack.c.l.b16 %v171
  %v784 = vunpack.c.l.b16 %v172
  %v785 = vunpack.c.l.b16 %v173
  %v786 = vunpack.c.l.b16 %v174
  %v787 = vunpack.c.l.b16 %v175
  %v788 = vunpack.c.l.b16 %v176
  %v789 = vunpack.c.l.b16 %v177
  %v790 = vunpack.c.l.b16 %v178
  %v791 = vunpack.c.l.b16 %v179
  %v792 = vunpack.c.l.b16 %v180
  %v793 = vunpack.c.l.b16 %v181
  %v794 = vunpack.c.l.b16 %v182
  %v795 = vunpack.c.l.b16 %v183
  %v796 = vunpack.c.l.b16 %v184
  %v797 = vunpack.c.l.b16 %v185
  %v798 = vunpack.c.l.b16 %v186
  %v799 = vunpack.c.l.b16 %v187
  %v800 = vunpack.c.l.b16 %v188
  %v801 = vunpack.c.l.b16 %v189
  %v802 = vpack.c.b16 %v755, %v754
  %v803 = vpack.c.b16 %v757, %v756
  %v804 = vpack.c.b16 %v759, %v758
  %v805 = vpack.c.b16 %v761, %v760
  %v806 = vpack.c.b16 %v763, %v762
  %v807 = vpack.c.b16 %v765, %v764
  %v808 = vpack.c.b16 %v767, %v766
  %v809 = vpack.c.b16 %v769, %v768
  %v810 = vpack.c.b16 %v771, %v770
  %v811 = vpack.c.b16 %v773, %v772
  %v812 = vpack.c.b16 %v775, %v774
  %v813 = vpack.c.b16 %v777, %v776
  %v814 = vpack.c.b16 %v779, %v778
  %v815 = vpack.c.b16 %v781, %v780
  %v816 = vpack.c.b16 %v783, %v782
  %v817 = vpack.c.b16 %v785, %v784
  %v818 = vpack.c.b16 %v787, %v786
  %v819 = vpack.c.b16 %v789, %v788
  %v820 = vpack.c.b16 %v791, %v790
  %v821 = vpack.c.b16 %v793, %v792
  %v822 = vpack.c.b16 %v795, %v794
  %v823 = vpack.c.b16 %v797, %v796
  %v824 = vpack.c.b16 %v799, %v798
  %v825 = vpack.c.b16 %v801, %v800
  %850 = vmatpush.bf16.msra.mxu0 %v809
  %851 = vmatpush.bf16.msra.mxu0 %v808
  %852 = vmatpush.bf16.msra.mxu0 %v807
  %853 = vmatpush.bf16.msra.mxu0 %v806
  %854 = vmatpush.bf16.msra.mxu0 %v805
  %855 = vmatpush.bf16.msra.mxu0 %v804
  %856 = vmatpush.bf16.msra.mxu0 %v803
  %857 = vmatpush.bf16.msra.mxu0 %v802
  %858 = vmatmul.bf16.gmra.mxu0 %v514
  %v859 = vpop.f32.mrf.mxu0
  %v860 = vadd.f32 %v192, %v859
  %v861 = vpop.f32.mrf.mxu0
  %v862 = vadd.f32 %v192, %v861
  %863 = vmatmul.bf16.gmra.mxu0 %v517
  %v864 = vpop.f32.mrf.mxu0
  %v865 = vadd.f32 %v192, %v864
  %v866 = vpop.f32.mrf.mxu0
  %v867 = vadd.f32 %v192, %v866
  %868 = vmatmul.bf16.gmra.mxu0 %v520
  %v869 = vpop.f32.mrf.mxu0
  %v870 = vadd.f32 %v192, %v869
  %v871 = vpop.f32.mrf.mxu0
  %v872 = vadd.f32 %v192, %v871
  %873 = vmatmul.bf16.gmra.mxu0 %v523
  %v874 = vpop.f32.mrf.mxu0
  %v875 = vadd.f32 %v192, %v874
  %v876 = vpop.f32.mrf.mxu0
  %v877 = vadd.f32 %v192, %v876
  %878 = vmatmul.bf16.gmra.mxu0 %v526
  %v879 = vpop.f32.mrf.mxu0
  %v880 = vadd.f32 %v192, %v879
  %v881 = vpop.f32.mrf.mxu0
  %v882 = vadd.f32 %v192, %v881
  %883 = vmatmul.bf16.gmra.mxu0 %v529
  %v884 = vpop.f32.mrf.mxu0
  %v885 = vadd.f32 %v192, %v884
  %v886 = vpop.f32.mrf.mxu0
  %v887 = vadd.f32 %v192, %v886
  %888 = vmatmul.bf16.gmra.mxu0 %v532
  %v889 = vpop.f32.mrf.mxu0
  %v890 = vadd.f32 %v192, %v889
  %v891 = vpop.f32.mrf.mxu0
  %v892 = vadd.f32 %v192, %v891
  %893 = vmatmul.bf16.gmra.mxu0 %v535
  %v894 = vpop.f32.mrf.mxu0
  %v895 = vadd.f32 %v192, %v894
  %v896 = vpop.f32.mrf.mxu0
  %v897 = vadd.f32 %v192, %v896
  %898 = vmatmul.bf16.gmra.mxu0 %v538
  %v899 = vpop.f32.mrf.mxu0
  %v900 = vadd.f32 %v192, %v899
  %v901 = vpop.f32.mrf.mxu0
  %v902 = vadd.f32 %v192, %v901
  %903 = vmatmul.bf16.gmra.mxu0 %v541
  %v904 = vpop.f32.mrf.mxu0
  %v905 = vadd.f32 %v192, %v904
  %v906 = vpop.f32.mrf.mxu0
  %v907 = vadd.f32 %v192, %v906
  %908 = vmatmul.bf16.gmra.mxu0 %v544
  %v909 = vpop.f32.mrf.mxu0
  %v910 = vadd.f32 %v192, %v909
  %v911 = vpop.f32.mrf.mxu0
  %v912 = vadd.f32 %v192, %v911
  %913 = vmatmul.bf16.gmra.mxu0 %v547
  %v914 = vpop.f32.mrf.mxu0
  %v915 = vadd.f32 %v192, %v914
  %v916 = vpop.f32.mrf.mxu0
  %v917 = vadd.f32 %v192, %v916
  %918 = vmatmul.bf16.gmra.mxu0 %v550
  %v919 = vpop.f32.mrf.mxu0
  %v920 = vadd.f32 %v192, %v919
  %v921 = vpop.f32.mrf.mxu0
  %v922 = vadd.f32 %v192, %v921
  %923 = vmatmul.bf16.gmra.mxu0 %v553
  %v924 = vpop.f32.mrf.mxu0
  %v925 = vadd.f32 %v192, %v924
  %v926 = vpop.f32.mrf.mxu0
  %v927 = vadd.f32 %v192, %v926
  %928 = vmatmul.bf16.gmra.mxu0 %v556
  %v929 = vpop.f32.mrf.mxu0
  %v930 = vadd.f32 %v192, %v929
  %v931 = vpop.f32.mrf.mxu0
  %v932 = vadd.f32 %v192, %v931
  %933 = vmatmul.bf16.gmra.mxu0 %v559
  %v934 = vpop.f32.mrf.mxu0
  %v935 = vadd.f32 %v192, %v934
  %v936 = vpop.f32.mrf.mxu0
  %v937 = vadd.f32 %v192, %v936
  %938 = vmatmul.bf16.gmra.mxu0 %v562
  %v939 = vpop.f32.mrf.mxu0
  %v940 = vadd.f32 %v192, %v939
  %v941 = vpop.f32.mrf.mxu0
  %v942 = vadd.f32 %v192, %v941
  %943 = vmatmul.bf16.gmra.mxu0 %v565
  %v944 = vpop.f32.mrf.mxu0
  %v945 = vadd.f32 %v192, %v944
  %v946 = vpop.f32.mrf.mxu0
  %v947 = vadd.f32 %v192, %v946
  %948 = vmatmul.bf16.gmra.mxu0 %v568
  %v949 = vpop.f32.mrf.mxu0
  %v950 = vadd.f32 %v192, %v949
  %v951 = vpop.f32.mrf.mxu0
  %v952 = vadd.f32 %v192, %v951
  %953 = vmatmul.bf16.gmra.mxu0 %v571
  %v954 = vpop.f32.mrf.mxu0
  %v955 = vadd.f32 %v192, %v954
  %v956 = vpop.f32.mrf.mxu0
  %v957 = vadd.f32 %v192, %v956
  %958 = vmatmul.bf16.gmra.mxu0 %v574
  %v959 = vpop.f32.mrf.mxu0
  %v960 = vadd.f32 %v192, %v959
  %v961 = vpop.f32.mrf.mxu0
  %v962 = vadd.f32 %v192, %v961
  %963 = vmatmul.bf16.gmra.mxu0 %v577
  %v964 = vpop.f32.mrf.mxu0
  %v965 = vadd.f32 %v192, %v964
  %v966 = vpop.f32.mrf.mxu0
  %v967 = vadd.f32 %v192, %v966
  %968 = vmatmul.bf16.gmra.mxu0 %v580
  %v969 = vpop.f32.mrf.mxu0
  %v970 = vadd.f32 %v192, %v969
  %v971 = vpop.f32.mrf.mxu0
  %v972 = vadd.f32 %v192, %v971
  %973 = vmatmul.bf16.gmra.mxu0 %v583
  %v974 = vpop.f32.mrf.mxu0
  %v975 = vadd.f32 %v192, %v974
  %v976 = vpop.f32.mrf.mxu0
  %v977 = vadd.f32 %v192, %v976
  %978 = vmatmul.bf16.gmra.mxu0 %v586
  %v979 = vpop.f32.mrf.mxu0
  %v980 = vadd.f32 %v192, %v979
  %v981 = vpop.f32.mrf.mxu0
  %v982 = vadd.f32 %v192, %v981
  %983 = vmatmul.bf16.gmra.mxu0 %v589
  %v984 = vpop.f32.mrf.mxu0
  %v985 = vadd.f32 %v192, %v984
  %v986 = vpop.f32.mrf.mxu0
  %v987 = vadd.f32 %v192, %v986
  %988 = vmatmul.bf16.gmra.mxu0 %v592
  %v989 = vpop.f32.mrf.mxu0
  %v990 = vadd.f32 %v192, %v989
  %v991 = vpop.f32.mrf.mxu0
  %v992 = vadd.f32 %v192, %v991
  %993 = vmatmul.bf16.gmra.mxu0 %v595
  %v994 = vpop.f32.mrf.mxu0
  %v995 = vadd.f32 %v192, %v994
  %v996 = vpop.f32.mrf.mxu0
  %v997 = vadd.f32 %v192, %v996
  %998 = vmatmul.bf16.gmra.mxu0 %v598
  %v999 = vpop.f32.mrf.mxu0
  %v1000 = vadd.f32 %v192, %v999
  %v1001 = vpop.f32.mrf.mxu0
  %v1002 = vadd.f32 %v192, %v1001
  %1003 = vmatmul.bf16.gmra.mxu0 %v601
  %v1004 = vpop.f32.mrf.mxu0
  %v1005 = vadd.f32 %v192, %v1004
  %v1006 = vpop.f32.mrf.mxu0
  %v1007 = vadd.f32 %v192, %v1006
  %1008 = vmatmul.bf16.gmra.mxu0 %v604
  %v1009 = vpop.f32.mrf.mxu0
  %v1010 = vadd.f32 %v192, %v1009
  %v1011 = vpop.f32.mrf.mxu0
  %v1012 = vadd.f32 %v192, %v1011
  %1013 = vmatmul.bf16.gmra.mxu0 %v607
  %v1014 = vpop.f32.mrf.mxu0
  %v1015 = vadd.f32 %v192, %v1014
  %v1016 = vpop.f32.mrf.mxu0
  %v1017 = vadd.f32 %v192, %v1016
  %1018 = vdwg.mxu0
  %1019 = vmatpush.bf16.msra.mxu0 %v817
  %1020 = vmatpush.bf16.msra.mxu0 %v816
  %1021 = vmatpush.bf16.msra.mxu0 %v815
  %1022 = vmatpush.bf16.msra.mxu0 %v814
  %1023 = vmatpush.bf16.msra.mxu0 %v813
  %1024 = vmatpush.bf16.msra.mxu0 %v812
  %1025 = vmatpush.bf16.msra.mxu0 %v811
  %1026 = vmatpush.bf16.msra.mxu0 %v810
  %1027 = vmatmul.bf16.gmra.mxu0 %v515
  %v1028 = vpop.f32.mrf.mxu0
  %v1029 = vadd.f32 %v860, %v1028
  %v1030 = vpop.f32.mrf.mxu0
  %v1031 = vadd.f32 %v862, %v1030
  %1032 = vmatmul.bf16.gmra.mxu0 %v518
  %v1033 = vpop.f32.mrf.mxu0
  %v1034 = vadd.f32 %v865, %v1033
  %v1035 = vpop.f32.mrf.mxu0
  %v1036 = vadd.f32 %v867, %v1035
  %1037 = vmatmul.bf16.gmra.mxu0 %v521
  %v1038 = vpop.f32.mrf.mxu0
  %v1039 = vadd.f32 %v870, %v1038
  %v1040 = vpop.f32.mrf.mxu0
  %v1041 = vadd.f32 %v872, %v1040
  %1042 = vmatmul.bf16.gmra.mxu0 %v524
  %v1043 = vpop.f32.mrf.mxu0
  %v1044 = vadd.f32 %v875, %v1043
  %v1045 = vpop.f32.mrf.mxu0
  %v1046 = vadd.f32 %v877, %v1045
  %1047 = vmatmul.bf16.gmra.mxu0 %v527
  %v1048 = vpop.f32.mrf.mxu0
  %v1049 = vadd.f32 %v880, %v1048
  %v1050 = vpop.f32.mrf.mxu0
  %v1051 = vadd.f32 %v882, %v1050
  %1052 = vmatmul.bf16.gmra.mxu0 %v530
  %v1053 = vpop.f32.mrf.mxu0
  %v1054 = vadd.f32 %v885, %v1053
  %v1055 = vpop.f32.mrf.mxu0
  %v1056 = vadd.f32 %v887, %v1055
  %1057 = vmatmul.bf16.gmra.mxu0 %v533
  %v1058 = vpop.f32.mrf.mxu0
  %v1059 = vadd.f32 %v890, %v1058
  %v1060 = vpop.f32.mrf.mxu0
  %v1061 = vadd.f32 %v892, %v1060
  %1062 = vmatmul.bf16.gmra.mxu0 %v536
  %v1063 = vpop.f32.mrf.mxu0
  %v1064 = vadd.f32 %v895, %v1063
  %v1065 = vpop.f32.mrf.mxu0
  %v1066 = vadd.f32 %v897, %v1065
  %1067 = vmatmul.bf16.gmra.mxu0 %v539
  %v1068 = vpop.f32.mrf.mxu0
  %v1069 = vadd.f32 %v900, %v1068
  %v1070 = vpop.f32.mrf.mxu0
  %v1071 = vadd.f32 %v902, %v1070
  %1072 = vmatmul.bf16.gmra.mxu0 %v542
  %v1073 = vpop.f32.mrf.mxu0
  %v1074 = vadd.f32 %v905, %v1073
  %v1075 = vpop.f32.mrf.mxu0
  %v1076 = vadd.f32 %v907, %v1075
  %1077 = vmatmul.bf16.gmra.mxu0 %v545
  %v1078 = vpop.f32.mrf.mxu0
  %v1079 = vadd.f32 %v910, %v1078
  %v1080 = vpop.f32.mrf.mxu0
  %v1081 = vadd.f32 %v912, %v1080
  %1082 = vmatmul.bf16.gmra.mxu0 %v548
  %v1083 = vpop.f32.mrf.mxu0
  %v1084 = vadd.f32 %v915, %v1083
  %v1085 = vpop.f32.mrf.mxu0
  %v1086 = vadd.f32 %v917, %v1085
  %1087 = vmatmul.bf16.gmra.mxu0 %v551
  %v1088 = vpop.f32.mrf.mxu0
  %v1089 = vadd.f32 %v920, %v1088
  %v1090 = vpop.f32.mrf.mxu0
  %v1091 = vadd.f32 %v922, %v1090
  %1092 = vmatmul.bf16.gmra.mxu0 %v554
  %v1093 = vpop.f32.mrf.mxu0
  %v1094 = vadd.f32 %v925, %v1093
  %v1095 = vpop.f32.mrf.mxu0
  %v1096 = vadd.f32 %v927, %v1095
  %1097 = vmatmul.bf16.gmra.mxu0 %v557
  %v1098 = vpop.f32.mrf.mxu0
  %v1099 = vadd.f32 %v930, %v1098
  %v1100 = vpop.f32.mrf.mxu0
  %v1101 = vadd.f32 %v932, %v1100
  %1102 = vmatmul.bf16.gmra.mxu0 %v560
  %v1103 = vpop.f32.mrf.mxu0
  %v1104 = vadd.f32 %v935, %v1103
  %v1105 = vpop.f32.mrf.mxu0
  %v1106 = vadd.f32 %v937, %v1105
  %1107 = vmatmul.bf16.gmra.mxu0 %v563
  %v1108 = vpop.f32.mrf.mxu0
  %v1109 = vadd.f32 %v940, %v1108
  %v1110 = vpop.f32.mrf.mxu0
  %v1111 = vadd.f32 %v942, %v1110
  %1112 = vmatmul.bf16.gmra.mxu0 %v566
  %v1113 = vpop.f32.mrf.mxu0
  %v1114 = vadd.f32 %v945, %v1113
  %v1115 = vpop.f32.mrf.mxu0
  %v1116 = vadd.f32 %v947, %v1115
  %1117 = vmatmul.bf16.gmra.mxu0 %v569
  %v1118 = vpop.f32.mrf.mxu0
  %v1119 = vadd.f32 %v950, %v1118
  %v1120 = vpop.f32.mrf.mxu0
  %v1121 = vadd.f32 %v952, %v1120
  %1122 = vmatmul.bf16.gmra.mxu0 %v572
  %v1123 = vpop.f32.mrf.mxu0
  %v1124 = vadd.f32 %v955, %v1123
  %v1125 = vpop.f32.mrf.mxu0
  %v1126 = vadd.f32 %v957, %v1125
  %1127 = vmatmul.bf16.gmra.mxu0 %v575
  %v1128 = vpop.f32.mrf.mxu0
  %v1129 = vadd.f32 %v960, %v1128
  %v1130 = vpop.f32.mrf.mxu0
  %v1131 = vadd.f32 %v962, %v1130
  %1132 = vmatmul.bf16.gmra.mxu0 %v578
  %v1133 = vpop.f32.mrf.mxu0
  %v1134 = vadd.f32 %v965, %v1133
  %v1135 = vpop.f32.mrf.mxu0
  %v1136 = vadd.f32 %v967, %v1135
  %1137 = vmatmul.bf16.gmra.mxu0 %v581
  %v1138 = vpop.f32.mrf.mxu0
  %v1139 = vadd.f32 %v970, %v1138
  %v1140 = vpop.f32.mrf.mxu0
  %v1141 = vadd.f32 %v972, %v1140
  %1142 = vmatmul.bf16.gmra.mxu0 %v584
  %v1143 = vpop.f32.mrf.mxu0
  %v1144 = vadd.f32 %v975, %v1143
  %v1145 = vpop.f32.mrf.mxu0
  %v1146 = vadd.f32 %v977, %v1145
  %1147 = vmatmul.bf16.gmra.mxu0 %v587
  %v1148 = vpop.f32.mrf.mxu0
  %v1149 = vadd.f32 %v980, %v1148
  %v1150 = vpop.f32.mrf.mxu0
  %v1151 = vadd.f32 %v982, %v1150
  %1152 = vmatmul.bf16.gmra.mxu0 %v590
  %v1153 = vpop.f32.mrf.mxu0
  %v1154 = vadd.f32 %v985, %v1153
  %v1155 = vpop.f32.mrf.mxu0
  %v1156 = vadd.f32 %v987, %v1155
  %1157 = vmatmul.bf16.gmra.mxu0 %v593
  %v1158 = vpop.f32.mrf.mxu0
  %v1159 = vadd.f32 %v990, %v1158
  %v1160 = vpop.f32.mrf.mxu0
  %v1161 = vadd.f32 %v992, %v1160
  %1162 = vmatmul.bf16.gmra.mxu0 %v596
  %v1163 = vpop.f32.mrf.mxu0
  %v1164 = vadd.f32 %v995, %v1163
  %v1165 = vpop.f32.mrf.mxu0
  %v1166 = vadd.f32 %v997, %v1165
  %1167 = vmatmul.bf16.gmra.mxu0 %v599
  %v1168 = vpop.f32.mrf.mxu0
  %v1169 = vadd.f32 %v1000, %v1168
  %v1170 = vpop.f32.mrf.mxu0
  %v1171 = vadd.f32 %v1002, %v1170
  %1172 = vmatmul.bf16.gmra.mxu0 %v602
  %v1173 = vpop.f32.mrf.mxu0
  %v1174 = vadd.f32 %v1005, %v1173
  %v1175 = vpop.f32.mrf.mxu0
  %v1176 = vadd.f32 %v1007, %v1175
  %1177 = vmatmul.bf16.gmra.mxu0 %v605
  %v1178 = vpop.f32.mrf.mxu0
  %v1179 = vadd.f32 %v1010, %v1178
  %v1180 = vpop.f32.mrf.mxu0
  %v1181 = vadd.f32 %v1012, %v1180
  %1182 = vmatmul.bf16.gmra.mxu0 %v608
  %v1183 = vpop.f32.mrf.mxu0
  %v1184 = vadd.f32 %v1015, %v1183
  %v1185 = vpop.f32.mrf.mxu0
  %v1186 = vadd.f32 %v1017, %v1185
  %1187 = vdwg.mxu0
  %1188 = vmatpush.bf16.msra.mxu0 %v825
  %1189 = vmatpush.bf16.msra.mxu0 %v824
  %1190 = vmatpush.bf16.msra.mxu0 %v823
  %1191 = vmatpush.bf16.msra.mxu0 %v822
  %1192 = vmatpush.bf16.msra.mxu0 %v821
  %1193 = vmatpush.bf16.msra.mxu0 %v820
  %1194 = vmatpush.bf16.msra.mxu0 %v819
  %1195 = vmatpush.bf16.msra.mxu0 %v818
  %1196 = vmatmul.bf16.gmra.mxu0 %v516
  %v1197 = vpop.f32.mrf.mxu0
  %v1198 = vadd.f32 %v1029, %v1197
  %v1199 = vpop.f32.mrf.mxu0
  %v1200 = vadd.f32 %v1031, %v1199
  %1201 = vmatmul.bf16.gmra.mxu0 %v519
  %v1202 = vpop.f32.mrf.mxu0
  %v1203 = vadd.f32 %v1034, %v1202
  %v1204 = vpop.f32.mrf.mxu0
  %v1205 = vadd.f32 %v1036, %v1204
  %1206 = vmatmul.bf16.gmra.mxu0 %v522
  %v1207 = vpop.f32.mrf.mxu0
  %v1208 = vadd.f32 %v1039, %v1207
  %v1209 = vpop.f32.mrf.mxu0
  %v1210 = vadd.f32 %v1041, %v1209
  %1211 = vmatmul.bf16.gmra.mxu0 %v525
  %v1212 = vpop.f32.mrf.mxu0
  %v1213 = vadd.f32 %v1044, %v1212
  %v1214 = vpop.f32.mrf.mxu0
  %v1215 = vadd.f32 %v1046, %v1214
  %1216 = vmatmul.bf16.gmra.mxu0 %v528
  %v1217 = vpop.f32.mrf.mxu0
  %v1218 = vadd.f32 %v1049, %v1217
  %v1219 = vpop.f32.mrf.mxu0
  %v1220 = vadd.f32 %v1051, %v1219
  %1221 = vmatmul.bf16.gmra.mxu0 %v531
  %v1222 = vpop.f32.mrf.mxu0
  %v1223 = vadd.f32 %v1054, %v1222
  %v1224 = vpop.f32.mrf.mxu0
  %v1225 = vadd.f32 %v1056, %v1224
  %1226 = vmatmul.bf16.gmra.mxu0 %v534
  %v1227 = vpop.f32.mrf.mxu0
  %v1228 = vadd.f32 %v1059, %v1227
  %v1229 = vpop.f32.mrf.mxu0
  %v1230 = vadd.f32 %v1061, %v1229
  %1231 = vmatmul.bf16.gmra.mxu0 %v537
  %v1232 = vpop.f32.mrf.mxu0
  %v1233 = vadd.f32 %v1064, %v1232
  %v1234 = vpop.f32.mrf.mxu0
  %v1235 = vadd.f32 %v1066, %v1234
  %1236 = vmatmul.bf16.gmra.mxu0 %v540
  %v1237 = vpop.f32.mrf.mxu0
  %v1238 = vadd.f32 %v1069, %v1237
  %v1239 = vpop.f32.mrf.mxu0
  %v1240 = vadd.f32 %v1071, %v1239
  %1241 = vmatmul.bf16.gmra.mxu0 %v543
  %v1242 = vpop.f32.mrf.mxu0
  %v1243 = vadd.f32 %v1074, %v1242
  %v1244 = vpop.f32.mrf.mxu0
  %v1245 = vadd.f32 %v1076, %v1244
  %1246 = vmatmul.bf16.gmra.mxu0 %v546
  %v1247 = vpop.f32.mrf.mxu0
  %v1248 = vadd.f32 %v1079, %v1247
  %v1249 = vpop.f32.mrf.mxu0
  %v1250 = vadd.f32 %v1081, %v1249
  %1251 = vmatmul.bf16.gmra.mxu0 %v549
  %v1252 = vpop.f32.mrf.mxu0
  %v1253 = vadd.f32 %v1084, %v1252
  %v1254 = vpop.f32.mrf.mxu0
  %v1255 = vadd.f32 %v1086, %v1254
  %1256 = vmatmul.bf16.gmra.mxu0 %v552
  %v1257 = vpop.f32.mrf.mxu0
  %v1258 = vadd.f32 %v1089, %v1257
  %v1259 = vpop.f32.mrf.mxu0
  %v1260 = vadd.f32 %v1091, %v1259
  %1261 = vmatmul.bf16.gmra.mxu0 %v555
  %v1262 = vpop.f32.mrf.mxu0
  %v1263 = vadd.f32 %v1094, %v1262
  %v1264 = vpop.f32.mrf.mxu0
  %v1265 = vadd.f32 %v1096, %v1264
  %1266 = vmatmul.bf16.gmra.mxu0 %v558
  %v1267 = vpop.f32.mrf.mxu0
  %v1268 = vadd.f32 %v1099, %v1267
  %v1269 = vpop.f32.mrf.mxu0
  %v1270 = vadd.f32 %v1101, %v1269
  %1271 = vmatmul.bf16.gmra.mxu0 %v561
  %v1272 = vpop.f32.mrf.mxu0
  %v1273 = vadd.f32 %v1104, %v1272
  %v1274 = vpop.f32.mrf.mxu0
  %v1275 = vadd.f32 %v1106, %v1274
  %1276 = vmatmul.bf16.gmra.mxu0 %v564
  %v1277 = vpop.f32.mrf.mxu0
  %v1278 = vadd.f32 %v1109, %v1277
  %v1279 = vpop.f32.mrf.mxu0
  %v1280 = vadd.f32 %v1111, %v1279
  %1281 = vmatmul.bf16.gmra.mxu0 %v567
  %v1282 = vpop.f32.mrf.mxu0
  %v1283 = vadd.f32 %v1114, %v1282
  %v1284 = vpop.f32.mrf.mxu0
  %v1285 = vadd.f32 %v1116, %v1284
  %1286 = vmatmul.bf16.gmra.mxu0 %v570
  %v1287 = vpop.f32.mrf.mxu0
  %v1288 = vadd.f32 %v1119, %v1287
  %v1289 = vpop.f32.mrf.mxu0
  %v1290 = vadd.f32 %v1121, %v1289
  %1291 = vmatmul.bf16.gmra.mxu0 %v573
  %v1292 = vpop.f32.mrf.mxu0
  %v1293 = vadd.f32 %v1124, %v1292
  %v1294 = vpop.f32.mrf.mxu0
  %v1295 = vadd.f32 %v1126, %v1294
  %1296 = vmatmul.bf16.gmra.mxu0 %v576
  %v1297 = vpop.f32.mrf.mxu0
  %v1298 = vadd.f32 %v1129, %v1297
  %v1299 = vpop.f32.mrf.mxu0
  %v1300 = vadd.f32 %v1131, %v1299
  %1301 = vmatmul.bf16.gmra.mxu0 %v579
  %v1302 = vpop.f32.mrf.mxu0
  %v1303 = vadd.f32 %v1134, %v1302
  %v1304 = vpop.f32.mrf.mxu0
  %v1305 = vadd.f32 %v1136, %v1304
  %1306 = vmatmul.bf16.gmra.mxu0 %v582
  %v1307 = vpop.f32.mrf.mxu0
  %v1308 = vadd.f32 %v1139, %v1307
  %v1309 = vpop.f32.mrf.mxu0
  %v1310 = vadd.f32 %v1141, %v1309
  %1311 = vmatmul.bf16.gmra.mxu0 %v585
  %v1312 = vpop.f32.mrf.mxu0
  %v1313 = vadd.f32 %v1144, %v1312
  %v1314 = vpop.f32.mrf.mxu0
  %v1315 = vadd.f32 %v1146, %v1314
  %1316 = vmatmul.bf16.gmra.mxu0 %v588
  %v1317 = vpop.f32.mrf.mxu0
  %v1318 = vadd.f32 %v1149, %v1317
  %v1319 = vpop.f32.mrf.mxu0
  %v1320 = vadd.f32 %v1151, %v1319
  %1321 = vmatmul.bf16.gmra.mxu0 %v591
  %v1322 = vpop.f32.mrf.mxu0
  %v1323 = vadd.f32 %v1154, %v1322
  %v1324 = vpop.f32.mrf.mxu0
  %v1325 = vadd.f32 %v1156, %v1324
  %1326 = vmatmul.bf16.gmra.mxu0 %v594
  %v1327 = vpop.f32.mrf.mxu0
  %v1328 = vadd.f32 %v1159, %v1327
  %v1329 = vpop.f32.mrf.mxu0
  %v1330 = vadd.f32 %v1161, %v1329
  %1331 = vmatmul.bf16.gmra.mxu0 %v597
  %v1332 = vpop.f32.mrf.mxu0
  %v1333 = vadd.f32 %v1164, %v1332
  %v1334 = vpop.f32.mrf.mxu0
  %v1335 = vadd.f32 %v1166, %v1334
  %1336 = vmatmul.bf16.gmra.mxu0 %v600
  %v1337 = vpop.f32.mrf.mxu0
  %v1338 = vadd.f32 %v1169, %v1337
  %v1339 = vpop.f32.mrf.mxu0
  %v1340 = vadd.f32 %v1171, %v1339
  %1341 = vmatmul.bf16.gmra.mxu0 %v603
  %v1342 = vpop.f32.mrf.mxu0
  %v1343 = vadd.f32 %v1174, %v1342
  %v1344 = vpop.f32.mrf.mxu0
  %v1345 = vadd.f32 %v1176, %v1344
  %1346 = vmatmul.bf16.gmra.mxu0 %v606
  %v1347 = vpop.f32.mrf.mxu0
  %v1348 = vadd.f32 %v1179, %v1347
  %v1349 = vpop.f32.mrf.mxu0
  %v1350 = vadd.f32 %v1181, %v1349
  %1351 = vmatmul.bf16.gmra.mxu0 %v609
  %v1352 = vpop.f32.mrf.mxu0
  %v1353 = vadd.f32 %v1184, %v1352
  %v1354 = vpop.f32.mrf.mxu0
  %v1355 = vadd.f32 %v1186, %v1354
  %1356 = vdwg.mxu0
  %v1357 = vmax.f32 %v1198, 0.0
  %v1358 = vmax.f32 %v1200, 0.0
  %v1359 = vmax.f32 %v1203, 0.0
  %v1360 = vmax.f32 %v1205, 0.0
  %v1361 = vmax.f32 %v1208, 0.0
  %v1362 = vmax.f32 %v1210, 0.0
  %v1363 = vmax.f32 %v1213, 0.0
  %v1364 = vmax.f32 %v1215, 0.0
  %v1365 = vmax.f32 %v1218, 0.0
  %v1366 = vmax.f32 %v1220, 0.0
  %v1367 = vmax.f32 %v1223, 0.0
  %v1368 = vmax.f32 %v1225, 0.0
  %v1369 = vmax.f32 %v1228, 0.0
  %v1370 = vmax.f32 %v1230, 0.0
  %v1371 = vmax.f32 %v1233, 0.0
  %v1372 = vmax.f32 %v1235, 0.0
  %v1373 = vmax.f32 %v1238, 0.0
  %v1374 = vmax.f32 %v1240, 0.0
  %v1375 = vmax.f32 %v1243, 0.0
  %v1376 = vmax.f32 %v1245, 0.0
  %v1377 = vmax.f32 %v1248, 0.0
  %v1378 = vmax.f32 %v1250, 0.0
  %v1379 = vmax.f32 %v1253, 0.0
  %v1380 = vmax.f32 %v1255, 0.0
  %v1381 = vmax.f32 %v1258, 0.0
  %v1382 = vmax.f32 %v1260, 0.0
  %v1383 = vmax.f32 %v1263, 0.0
  %v1384 = vmax.f32 %v1265, 0.0
  %v1385 = vmax.f32 %v1268, 0.0
  %v1386 = vmax.f32 %v1270, 0.0
  %v1387 = vmax.f32 %v1273, 0.0
  %v1388 = vmax.f32 %v1275, 0.0
  %v1389 = vmax.f32 %v1278, 0.0
  %v1390 = vmax.f32 %v1280, 0.0
  %v1391 = vmax.f32 %v1283, 0.0
  %v1392 = vmax.f32 %v1285, 0.0
  %v1393 = vmax.f32 %v1288, 0.0
  %v1394 = vmax.f32 %v1290, 0.0
  %v1395 = vmax.f32 %v1293, 0.0
  %v1396 = vmax.f32 %v1295, 0.0
  %v1397 = vmax.f32 %v1298, 0.0
  %v1398 = vmax.f32 %v1300, 0.0
  %v1399 = vmax.f32 %v1303, 0.0
  %v1400 = vmax.f32 %v1305, 0.0
  %v1401 = vmax.f32 %v1308, 0.0
  %v1402 = vmax.f32 %v1310, 0.0
  %v1403 = vmax.f32 %v1313, 0.0
  %v1404 = vmax.f32 %v1315, 0.0
  %v1405 = vmax.f32 %v1318, 0.0
  %v1406 = vmax.f32 %v1320, 0.0
  %v1407 = vmax.f32 %v1323, 0.0
  %v1408 = vmax.f32 %v1325, 0.0
  %v1409 = vmax.f32 %v1328, 0.0
  %v1410 = vmax.f32 %v1330, 0.0
  %v1411 = vmax.f32 %v1333, 0.0
  %v1412 = vmax.f32 %v1335, 0.0
  %v1413 = vmax.f32 %v1338, 0.0
  %v1414 = vmax.f32 %v1340, 0.0
  %v1415 = vmax.f32 %v1343, 0.0
  %v1416 = vmax.f32 %v1345, 0.0
  %v1417 = vmax.f32 %v1348, 0.0
  %v1418 = vmax.f32 %v1350, 0.0
  %v1419 = vmax.f32 %v1353, 0.0
  %v1420 = vmax.f32 %v1355, 0.0
  %v1421 = vpack.c.bf16 %v1357, %v1357
  %v1422 = vpack.c.bf16 %v1358, %v1358
  %v1423 = vpack.c.bf16 %v1359, %v1359
  %v1424 = vpack.c.bf16 %v1360, %v1360
  %v1425 = vpack.c.bf16 %v1361, %v1361
  %v1426 = vpack.c.bf16 %v1362, %v1362
  %v1427 = vpack.c.bf16 %v1363, %v1363
  %v1428 = vpack.c.bf16 %v1364, %v1364
  %v1429 = vpack.c.bf16 %v1365, %v1365
  %v1430 = vpack.c.bf16 %v1366, %v1366
  %v1431 = vpack.c.bf16 %v1367, %v1367
  %v1432 = vpack.c.bf16 %v1368, %v1368
  %v1433 = vpack.c.bf16 %v1369, %v1369
  %v1434 = vpack.c.bf16 %v1370, %v1370
  %v1435 = vpack.c.bf16 %v1371, %v1371
  %v1436 = vpack.c.bf16 %v1372, %v1372
  %v1437 = vpack.c.bf16 %v1373, %v1373
  %v1438 = vpack.c.bf16 %v1374, %v1374
  %v1439 = vpack.c.bf16 %v1375, %v1375
  %v1440 = vpack.c.bf16 %v1376, %v1376
  %v1441 = vpack.c.bf16 %v1377, %v1377
  %v1442 = vpack.c.bf16 %v1378, %v1378
  %v1443 = vpack.c.bf16 %v1379, %v1379
  %v1444 = vpack.c.bf16 %v1380, %v1380
  %v1445 = vpack.c.bf16 %v1381, %v1381
  %v1446 = vpack.c.bf16 %v1382, %v1382
  %v1447 = vpack.c.bf16 %v1383, %v1383
  %v1448 = vpack.c.bf16 %v1384, %v1384
  %v1449 = vpack.c.bf16 %v1385, %v1385
  %v1450 = vpack.c.bf16 %v1386, %v1386
  %v1451 = vpack.c.bf16 %v1387, %v1387
  %v1452 = vpack.c.bf16 %v1388, %v1388
  %v1453 = vpack.c.bf16 %v1389, %v1389
  %v1454 = vpack.c.bf16 %v1390, %v1390
  %v1455 = vpack.c.bf16 %v1391, %v1391
  %v1456 = vpack.c.bf16 %v1392, %v1392
  %v1457 = vpack.c.bf16 %v1393, %v1393
  %v1458 = vpack.c.bf16 %v1394, %v1394
  %v1459 = vpack.c.bf16 %v1395, %v1395
  %v1460 = vpack.c.bf16 %v1396, %v1396
  %v1461 = vpack.c.bf16 %v1397, %v1397
  %v1462 = vpack.c.bf16 %v1398, %v1398
  %v1463 = vpack.c.bf16 %v1399, %v1399
  %v1464 = vpack.c.bf16 %v1400, %v1400
  %v1465 = vpack.c.bf16 %v1401, %v1401
  %v1466 = vpack.c.bf16 %v1402, %v1402
  %v1467 = vpack.c.bf16 %v1403, %v1403
  %v1468 = vpack.c.bf16 %v1404, %v1404
  %v1469 = vpack.c.bf16 %v1405, %v1405
  %v1470 = vpack.c.bf16 %v1406, %v1406
  %v1471 = vpack.c.bf16 %v1407, %v1407
  %v1472 = vpack.c.bf16 %v1408, %v1408
  %v1473 = vpack.c.bf16 %v1409, %v1409
  %v1474 = vpack.c.bf16 %v1410, %v1410
  %v1475 = vpack.c.bf16 %v1411, %v1411
  %v1476 = vpack.c.bf16 %v1412, %v1412
  %v1477 = vpack.c.bf16 %v1413, %v1413
  %v1478 = vpack.c.bf16 %v1414, %v1414
  %v1479 = vpack.c.bf16 %v1415, %v1415
  %v1480 = vpack.c.bf16 %v1416, %v1416
  %v1481 = vpack.c.bf16 %v1417, %v1417
  %v1482 = vpack.c.bf16 %v1418, %v1418
  %v1483 = vpack.c.bf16 %v1419, %v1419
  %v1484 = vpack.c.bf16 %v1420, %v1420
  %1485 = vst [vmem:[%s3] sm:$0xf] %v1421
  %1486 = vst [vmem:[%s3 + $0x4] sm:$0xf] %v1422
  %1487 = vst [vmem:[%s3 + $0x8] sm:$0xf] %v1423
  %1488 = vst [vmem:[%s3 + $0xc] sm:$0xf] %v1424
  %1489 = vst [vmem:[%s3 + $0x10] sm:$0xf] %v1425
  %1490 = vst [vmem:[%s3 + $0x14] sm:$0xf] %v1426
  %1491 = vst [vmem:[%s3 + $0x18] sm:$0xf] %v1427
  %1492 = vst [vmem:[%s3 + $0x1c] sm:$0xf] %v1428
  %1493 = vst [vmem:[%s3 + $0x20] sm:$0xf] %v1429
  %1494 = vst [vmem:[%s3 + $0x24] sm:$0xf] %v1430
  %1495 = vst [vmem:[%s3 + $0x28] sm:$0xf] %v1431
  %1496 = vst [vmem:[%s3 + $0x2c] sm:$0xf] %v1432
  %1497 = vst [vmem:[%s3 + $0x30] sm:$0xf] %v1433
  %1498 = vst [vmem:[%s3 + $0x34] sm:$0xf] %v1434
  %1499 = vst [vmem:[%s3 + $0x38] sm:$0xf] %v1435
  %1500 = vst [vmem:[%s3 + $0x3c] sm:$0xf] %v1436
  %1501 = vst [vmem:[%s3 + $0x40] sm:$0xf] %v1437
  %1502 = vst [vmem:[%s3 + $0x44] sm:$0xf] %v1438
  %1503 = vst [vmem:[%s3 + $0x48] sm:$0xf] %v1439
  %1504 = vst [vmem:[%s3 + $0x4c] sm:$0xf] %v1440
  %1505 = vst [vmem:[%s3 + $0x50] sm:$0xf] %v1441
  %1506 = vst [vmem:[%s3 + $0x54] sm:$0xf] %v1442
  %1507 = vst [vmem:[%s3 + $0x58] sm:$0xf] %v1443
  %1508 = vst [vmem:[%s3 + $0x5c] sm:$0xf] %v1444
  %1509 = vst [vmem:[%s3 + $0x60] sm:$0xf] %v1445
  %1510 = vst [vmem:[%s3 + $0x64] sm:$0xf] %v1446
  %1511 = vst [vmem:[%s3 + $0x68] sm:$0xf] %v1447
  %1512 = vst [vmem:[%s3 + $0x6c] sm:$0xf] %v1448
  %1513 = vst [vmem:[%s3 + $0x70] sm:$0xf] %v1449
  %1514 = vst [vmem:[%s3 + $0x74] sm:$0xf] %v1450
  %1515 = vst [vmem:[%s3 + $0x78] sm:$0xf] %v1451
  %1516 = vst [vmem:[%s3 + $0x7c] sm:$0xf] %v1452
  %1517 = vst [vmem:[%s3 + $0x80] sm:$0xf] %v1453
  %1518 = vst [vmem:[%s3 + $0x84] sm:$0xf] %v1454
  %1519 = vst [vmem:[%s3 + $0x88] sm:$0xf] %v1455
  %1520 = vst [vmem:[%s3 + $0x8c] sm:$0xf] %v1456
  %1521 = vst [vmem:[%s3 + $0x90] sm:$0xf] %v1457
  %1522 = vst [vmem:[%s3 + $0x94] sm:$0xf] %v1458
  %1523 = vst [vmem:[%s3 + $0x98] sm:$0xf] %v1459
  %1524 = vst [vmem:[%s3 + $0x9c] sm:$0xf] %v1460
  %1525 = vst [vmem:[%s3 + $0xa0] sm:$0xf] %v1461
  %1526 = vst [vmem:[%s3 + $0xa4] sm:$0xf] %v1462
  %1527 = vst [vmem:[%s3 + $0xa8] sm:$0xf] %v1463
  %1528 = vst [vmem:[%s3 + $0xac] sm:$0xf] %v1464
  %1529 = vst [vmem:[%s3 + $0xb0] sm:$0xf] %v1465
  %1530 = vst [vmem:[%s3 + $0xb4] sm:$0xf] %v1466
  %1531 = vst [vmem:[%s3 + $0xb8] sm:$0xf] %v1467
  %1532 = vst [vmem:[%s3 + $0xbc] sm:$0xf] %v1468
  %1533 = vst [vmem:[%s3 + $0xc0] sm:$0xf] %v1469
  %1534 = vst [vmem:[%s3 + $0xc4] sm:$0xf] %v1470
  %1535 = vst [vmem:[%s3 + $0xc8] sm:$0xf] %v1471
  %1536 = vst [vmem:[%s3 + $0xcc] sm:$0xf] %v1472
  %1537 = vst [vmem:[%s3 + $0xd0] sm:$0xf] %v1473
  %1538 = vst [vmem:[%s3 + $0xd4] sm:$0xf] %v1474
  %1539 = vst [vmem:[%s3 + $0xd8] sm:$0xf] %v1475
  %1540 = vst [vmem:[%s3 + $0xdc] sm:$0xf] %v1476
  %1541 = vst [vmem:[%s3 + $0xe0] sm:$0xf] %v1477
  %1542 = vst [vmem:[%s3 + $0xe4] sm:$0xf] %v1478
  %1543 = vst [vmem:[%s3 + $0xe8] sm:$0xf] %v1479
  %1544 = vst [vmem:[%s3 + $0xec] sm:$0xf] %v1480
  %1545 = vst [vmem:[%s3 + $0xf0] sm:$0xf] %v1481
  %1546 = vst [vmem:[%s3 + $0xf4] sm:$0xf] %v1482
  %1547 = vst [vmem:[%s3 + $0xf8] sm:$0xf] %v1483
  %1548 = vst [vmem:[%s3 + $0xfc] sm:$0xf] %v1484
  // Predicated region
  $region14: #{resnet_forward.13} parent=0 // pred_check
    _
  $region15: #{resnet_forward.13} parent=0 // pred_check_branch
    %1550 = sbr.rel (0) target = $region17
  $region16: #{resnet_forward.13} parent=0 // pred_region
    _
  $region17: #{resnet_forward.13} parent=0 // pred_fallthru
    _
  // Predicated region
  $region18: #{resnet_forward.13} parent=0 // pred_check
    _
  $region19: #{resnet_forward.13} parent=0 // pred_check_branch
    %1552 = sbr.rel (0) target = $region21
  $region20: #{resnet_forward.13} parent=0 // pred_region
    _
  $region21: #{resnet_forward.13} parent=0 // pred_fallthru
    _

// kernel: resnet_forward.16
$region0: #{resnet_forward.16}
  #allocation0 [shape = 'u32[]', space=smem, size = 0x4, offset = 0x4, fixed_abs, tag = 'smem constant byte address 0x4 - core index']
  #allocation1 [shape = 'u32[72,128]{1,0:T(1,128)}', space=vmem, size = 0x9000, scoped, tag = 'internal scratch']
  %s0 = inlined_call_operand.vmem [shape: bf16[128,640], index: 0, kind: input, shape index: {}]
  %s1 = inlined_call_operand.vmem [shape: bf16[640,128], index: 1, kind: input, shape index: {}]
  %s2 = inlined_call_operand.vmem [shape: f32[1,128], index: 2, kind: input, shape index: {}]
  %s3 = inlined_call_operand.vmem [shape: bf16[128,128], index: 3, kind: input, shape index: {}]
  %s4 = inlined_call_operand.vmem [shape: bf16[128,128], index: 4, kind: input, shape index: {}]
  %s5 = inlined_call_operand.vmem [shape: f32[1,128], index: 5, kind: input, shape index: {}]
  %s6 = inlined_call_operand.vmem [shape: bf16[128,128], index: 6, kind: output, shape index: {}]
  %s7 = sld [smem:[#allocation0]]
  $region34: #{resnet_forward.16} parent=0
    _
  %s9 = ssub.s32 1, %s7
  %s10 = scalar_select 0, %s9, %s7
  // Predicated region
  $region2: #{resnet_forward.16} parent=0 // pred_check
    _
  $region3: #{resnet_forward.16} parent=0 // pred_check_branch
    %12 = sbr.rel (0) target = $region5
  $region4: #{resnet_forward.16} parent=0 // pred_region
    _
  $region5: #{resnet_forward.16} parent=0 // pred_fallthru
    _
  // Predicated region
  $region6: #{resnet_forward.16} parent=0 // pred_check
    _
  $region7: #{resnet_forward.16} parent=0 // pred_check_branch
    %14 = sbr.rel (0) target = $region9
  $region8: #{resnet_forward.16} parent=0 // pred_region
    _
  $region9: #{resnet_forward.16} parent=0 // pred_fallthru
    _
  // Predicated region
  $region10: #{resnet_forward.16} parent=0 // pred_check
    _
  $region11: #{resnet_forward.16} parent=0 // pred_check_branch
    %16 = sbr.rel (0) target = $region13
  $region12: #{resnet_forward.16} parent=0 // pred_region
    _
  $region13: #{resnet_forward.16} parent=0 // pred_fallthru
    _
  // Predicated region
  $region14: #{resnet_forward.16} parent=0 // pred_check
    _
  $region15: #{resnet_forward.16} parent=0 // pred_check_branch
    %18 = sbr.rel (0) target = $region17
  $region16: #{resnet_forward.16} parent=0 // pred_region
    _
  $region17: #{resnet_forward.16} parent=0 // pred_fallthru
    _
  // Predicated region
  $region18: #{resnet_forward.16} parent=0 // pred_check
    _
  $region19: #{resnet_forward.16} parent=0 // pred_check_branch
    %20 = sbr.rel (0) target = $region21
  $region20: #{resnet_forward.16} parent=0 // pred_region
    _
  $region21: #{resnet_forward.16} parent=0 // pred_fallthru
    _
  // Predicated region
  $region22: #{resnet_forward.16} parent=0 // pred_check
    _
  $region23: #{resnet_forward.16} parent=0 // pred_check_branch
    %22 = sbr.rel (0) target = $region25
  $region24: #{resnet_forward.16} parent=0 // pred_region
    _
  $region25: #{resnet_forward.16} parent=0 // pred_fallthru
    _
  %v23 = vld [vmem:[%s0] sm:$0xff]
  %v24 = vld [vmem:[%s0 + $0x8] sm:$0xff]
  %v25 = vld [vmem:[%s0 + $0x10] sm:$0xf]
  %v26 = vld [vmem:[%s0 + $0x14] sm:$0xff]
  %v27 = vld [vmem:[%s0 + $0x1c] sm:$0xff]
  %v28 = vld [vmem:[%s0 + $0x24] sm:$0xf]
  %v29 = vld [vmem:[%s0 + $0x28] sm:$0xff]
  %v30 = vld [vmem:[%s0 + $0x30] sm:$0xff]
  %v31 = vld [vmem:[%s0 + $0x38] sm:$0xf]
  %v32 = vld [vmem:[%s0 + $0x3c] sm:$0xff]
  %v33 = vld [vmem:[%s0 + $0x44] sm:$0xff]
  %v34 = vld [vmem:[%s0 + $0x4c] sm:$0xf]
  %v35 = vld [vmem:[%s0 + $0x50] sm:$0xff]
  %v36 = vld [vmem:[%s0 + $0x58] sm:$0xff]
  %v37 = vld [vmem:[%s0 + $0x60] sm:$0xf]
  %v38 = vld [vmem:[%s0 + $0x64] sm:$0xff]
  %v39 = vld [vmem:[%s0 + $0x6c] sm:$0xff]
  %v40 = vld [vmem:[%s0 + $0x74] sm:$0xf]
  %v41 = vld [vmem:[%s0 + $0x78] sm:$0xff]
  %v42 = vld [vmem:[%s0 + $0x80] sm:$0xff]
  %v43 = vld [vmem:[%s0 + $0x88] sm:$0xf]
  %v44 = vld [vmem:[%s0 + $0x8c] sm:$0xff]
  %v45 = vld [vmem:[%s0 + $0x94] sm:$0xff]
  %v46 = vld [vmem:[%s0 + $0x9c] sm:$0xf]
  %v47 = vld [vmem:[%s0 + $0xa0] sm:$0xff]
  %v48 = vld [vmem:[%s0 + $0xa8] sm:$0xff]
  %v49 = vld [vmem:[%s0 + $0xb0] sm:$0xf]
  %v50 = vld [vmem:[%s0 + $0xb4] sm:$0xff]
  %v51 = vld [vmem:[%s0 + $0xbc] sm:$0xff]
  %v52 = vld [vmem:[%s0 + $0xc4] sm:$0xf]
  %v53 = vld [vmem:[%s0 + $0xc8] sm:$0xff]
  %v54 = vld [vmem:[%s0 + $0xd0] sm:$0xff]
  %v55 = vld [vmem:[%s0 + $0xd8] sm:$0xf]
  %v56 = vld [vmem:[%s0 + $0xdc] sm:$0xff]
  %v57 = vld [vmem:[%s0 + $0xe4] sm:$0xff]
  %v58 = vld [vmem:[%s0 + $0xec] sm:$0xf]
  %v59 = vld [vmem:[%s0 + $0xf0] sm:$0xff]
  %v60 = vld [vmem:[%s0 + $0xf8] sm:$0xff]
  %v61 = vld [vmem:[%s0 + $0x100] sm:$0xf]
  %v62 = vld [vmem:[%s0 + $0x104] sm:$0xff]
  %v63 = vld [vmem:[%s0 + $0x10c] sm:$0xff]
  %v64 = vld [vmem:[%s0 + $0x114] sm:$0xf]
  %v65 = vld [vmem:[%s0 + $0x118] sm:$0xff]
  %v66 = vld [vmem:[%s0 + $0x120] sm:$0xff]
  %v67 = vld [vmem:[%s0 + $0x128] sm:$0xf]
  %v68 = vld [vmem:[%s0 + $0x12c] sm:$0xff]
  %v69 = vld [vmem:[%s0 + $0x134] sm:$0xff]
  %v70 = vld [vmem:[%s0 + $0x13c] sm:$0xf]
  %v71 = vld [vmem:[%s1] sm:$0xf]
  %v72 = vld [vmem:[%s1 + $0x4] sm:$0xf]
  %v73 = vld [vmem:[%s1 + $0x8] sm:$0xf]
  %v74 = vld [vmem:[%s1 + $0xc] sm:$0xf]
  %v75 = vld [vmem:[%s1 + $0x10] sm:$0xf]
  %v76 = vld [vmem:[%s1 + $0x14] sm:$0xf]
  %v77 = vld [vmem:[%s1 + $0x18] sm:$0xf]
  %v78 = vld [vmem:[%s1 + $0x1c] sm:$0xf]
  %v79 = vld [vmem:[%s1 + $0x20] sm:$0xf]
  %v80 = vld [vmem:[%s1 + $0x24] sm:$0xf]
  %v81 = vld [vmem:[%s1 + $0x28] sm:$0xf]
  %v82 = vld [vmem:[%s1 + $0x2c] sm:$0xf]
  %v83 = vld [vmem:[%s1 + $0x30] sm:$0xf]
  %v84 = vld [vmem:[%s1 + $0x34] sm:$0xf]
  %v85 = vld [vmem:[%s1 + $0x38] sm:$0xf]
  %v86 = vld [vmem:[%s1 + $0x3c] sm:$0xf]
  %v87 = vld [vmem:[%s1 + $0x40] sm:$0xf]
  %v88 = vld [vmem:[%s1 + $0x44] sm:$0xf]
  %v89 = vld [vmem:[%s1 + $0x48] sm:$0xf]
  %v90 = vld [vmem:[%s1 + $0x4c] sm:$0xf]
  %v91 = vld [vmem:[%s1 + $0x50] sm:$0xf]
  %v92 = vld [vmem:[%s1 + $0x54] sm:$0xf]
  %v93 = vld [vmem:[%s1 + $0x58] sm:$0xf]
  %v94 = vld [vmem:[%s1 + $0x5c] sm:$0xf]
  %v95 = vld [vmem:[%s1 + $0x60] sm:$0xf]
  %v96 = vld [vmem:[%s1 + $0x64] sm:$0xf]
  %v97 = vld [vmem:[%s1 + $0x68] sm:$0xf]
  %v98 = vld [vmem:[%s1 + $0x6c] sm:$0xf]
  %v99 = vld [vmem:[%s1 + $0x70] sm:$0xf]
  %v100 = vld [vmem:[%s1 + $0x74] sm:$0xf]
  %v101 = vld [vmem:[%s1 + $0x78] sm:$0xf]
  %v102 = vld [vmem:[%s1 + $0x7c] sm:$0xf]
  %v103 = vld [vmem:[%s1 + $0x80] sm:$0xf]
  %v104 = vld [vmem:[%s1 + $0x84] sm:$0xf]
  %v105 = vld [vmem:[%s1 + $0x88] sm:$0xf]
  %v106 = vld [vmem:[%s1 + $0x8c] sm:$0xf]
  %v107 = vld [vmem:[%s1 + $0x90] sm:$0xf]
  %v108 = vld [vmem:[%s1 + $0x94] sm:$0xf]
  %v109 = vld [vmem:[%s1 + $0x98] sm:$0xf]
  %v110 = vld [vmem:[%s1 + $0x9c] sm:$0xf]
  %v111 = vld [vmem:[%s1 + $0xa0] sm:$0xf]
  %v112 = vld [vmem:[%s1 + $0xa4] sm:$0xf]
  %v113 = vld [vmem:[%s1 + $0xa8] sm:$0xf]
  %v114 = vld [vmem:[%s1 + $0xac] sm:$0xf]
  %v115 = vld [vmem:[%s1 + $0xb0] sm:$0xf]
  %v116 = vld [vmem:[%s1 + $0xb4] sm:$0xf]
  %v117 = vld [vmem:[%s1 + $0xb8] sm:$0xf]
  %v118 = vld [vmem:[%s1 + $0xbc] sm:$0xf]
  %v119 = vld [vmem:[%s1 + $0xc0] sm:$0xf]
  %v120 = vld [vmem:[%s1 + $0xc4] sm:$0xf]
  %v121 = vld [vmem:[%s1 + $0xc8] sm:$0xf]
  %v122 = vld [vmem:[%s1 + $0xcc] sm:$0xf]
  %v123 = vld [vmem:[%s1 + $0xd0] sm:$0xf]
  %v124 = vld [vmem:[%s1 + $0xd4] sm:$0xf]
  %v125 = vld [vmem:[%s1 + $0xd8] sm:$0xf]
  %v126 = vld [vmem:[%s1 + $0xdc] sm:$0xf]
  %v127 = vld [vmem:[%s1 + $0xe0] sm:$0xf]
  %v128 = vld [vmem:[%s1 + $0xe4] sm:$0xf]
  %v129 = vld [vmem:[%s1 + $0xe8] sm:$0xf]
  %v130 = vld [vmem:[%s1 + $0xec] sm:$0xf]
  %v131 = vld [vmem:[%s1 + $0xf0] sm:$0xf]
  %v132 = vld [vmem:[%s1 + $0xf4] sm:$0xf]
  %v133 = vld [vmem:[%s1 + $0xf8] sm:$0xf]
  %v134 = vld [vmem:[%s1 + $0xfc] sm:$0xf]
  %v135 = vld [vmem:[%s1 + $0x100] sm:$0xf]
  %v136 = vld [vmem:[%s1 + $0x104] sm:$0xf]
  %v137 = vld [vmem:[%s1 + $0x108] sm:$0xf]
  %v138 = vld [vmem:[%s1 + $0x10c] sm:$0xf]
  %v139 = vld [vmem:[%s1 + $0x110] sm:$0xf]
  %v140 = vld [vmem:[%s1 + $0x114] sm:$0xf]
  %v141 = vld [vmem:[%s1 + $0x118] sm:$0xf]
  %v142 = vld [vmem:[%s1 + $0x11c] sm:$0xf]
  %v143 = vld [vmem:[%s1 + $0x120] sm:$0xf]
  %v144 = vld [vmem:[%s1 + $0x124] sm:$0xf]
  %v145 = vld [vmem:[%s1 + $0x128] sm:$0xf]
  %v146 = vld [vmem:[%s1 + $0x12c] sm:$0xf]
  %v147 = vld [vmem:[%s1 + $0x130] sm:$0xf]
  %v148 = vld [vmem:[%s1 + $0x134] sm:$0xf]
  %v149 = vld [vmem:[%s1 + $0x138] sm:$0xf]
  %v150 = vld [vmem:[%s1 + $0x13c] sm:$0xf]
  %v151 = vld [vmem:[%s3] sm:$0xf]
  %v152 = vld [vmem:[%s3 + $0x4] sm:$0xf]
  %v153 = vld [vmem:[%s3 + $0x8] sm:$0xf]
  %v154 = vld [vmem:[%s3 + $0xc] sm:$0xf]
  %v155 = vld [vmem:[%s3 + $0x10] sm:$0xf]
  %v156 = vld [vmem:[%s3 + $0x14] sm:$0xf]
  %v157 = vld [vmem:[%s3 + $0x18] sm:$0xf]
  %v158 = vld [vmem:[%s3 + $0x1c] sm:$0xf]
  %v159 = vld [vmem:[%s3 + $0x20] sm:$0xf]
  %v160 = vld [vmem:[%s3 + $0x24] sm:$0xf]
  %v161 = vld [vmem:[%s3 + $0x28] sm:$0xf]
  %v162 = vld [vmem:[%s3 + $0x2c] sm:$0xf]
  %v163 = vld [vmem:[%s3 + $0x30] sm:$0xf]
  %v164 = vld [vmem:[%s3 + $0x34] sm:$0xf]
  %v165 = vld [vmem:[%s3 + $0x38] sm:$0xf]
  %v166 = vld [vmem:[%s3 + $0x3c] sm:$0xf]
  %v167 = vld [vmem:[%s4] sm:$0xf]
  %v168 = vld [vmem:[%s4 + $0x4] sm:$0xf]
  %v169 = vld [vmem:[%s4 + $0x8] sm:$0xf]
  %v170 = vld [vmem:[%s4 + $0xc] sm:$0xf]
  %v171 = vld [vmem:[%s4 + $0x10] sm:$0xf]
  %v172 = vld [vmem:[%s4 + $0x14] sm:$0xf]
  %v173 = vld [vmem:[%s4 + $0x18] sm:$0xf]
  %v174 = vld [vmem:[%s4 + $0x1c] sm:$0xf]
  %v175 = vld [vmem:[%s4 + $0x20] sm:$0xf]
  %v176 = vld [vmem:[%s4 + $0x24] sm:$0xf]
  %v177 = vld [vmem:[%s4 + $0x28] sm:$0xf]
  %v178 = vld [vmem:[%s4 + $0x2c] sm:$0xf]
  %v179 = vld [vmem:[%s4 + $0x30] sm:$0xf]
  %v180 = vld [vmem:[%s4 + $0x34] sm:$0xf]
  %v181 = vld [vmem:[%s4 + $0x38] sm:$0xf]
  %v182 = vld [vmem:[%s4 + $0x3c] sm:$0xf]
  %v199 = vunpack.c.l.b16 %v151
  %v200 = vunpack.c.l.b16 %v152
  %v201 = vunpack.c.l.b16 %v153
  %v202 = vunpack.c.l.b16 %v154
  %v203 = vunpack.c.l.b16 %v155
  %v204 = vunpack.c.l.b16 %v156
  %v205 = vunpack.c.l.b16 %v157
  %v206 = vunpack.c.l.b16 %v158
  %v207 = vunpack.c.l.b16 %v159
  %v208 = vunpack.c.l.b16 %v160
  %v209 = vunpack.c.l.b16 %v161
  %v210 = vunpack.c.l.b16 %v162
  %v211 = vunpack.c.l.b16 %v163
  %v212 = vunpack.c.l.b16 %v164
  %v213 = vunpack.c.l.b16 %v165
  %v214 = vunpack.c.l.b16 %v166
  %v215 = vpack.c.b16 %v200, %v199
  %v216 = vpack.c.b16 %v202, %v201
  %v217 = vpack.c.b16 %v204, %v203
  %v218 = vpack.c.b16 %v206, %v205
  %v219 = vpack.c.b16 %v208, %v207
  %v220 = vpack.c.b16 %v210, %v209
  %v221 = vpack.c.b16 %v212, %v211
  %v222 = vpack.c.b16 %v214, %v213
  %v247 = vunpack.c.l.b16 %v167
  %v248 = vunpack.c.l.b16 %v168
  %v249 = vunpack.c.l.b16 %v169
  %v250 = vunpack.c.l.b16 %v170
  %v251 = vunpack.c.l.b16 %v171
  %v252 = vunpack.c.l.b16 %v172
  %v253 = vunpack.c.l.b16 %v173
  %v254 = vunpack.c.l.b16 %v174
  %v255 = vunpack.c.l.b16 %v175
  %v256 = vunpack.c.l.b16 %v176
  %v257 = vunpack.c.l.b16 %v177
  %v258 = vunpack.c.l.b16 %v178
  %v259 = vunpack.c.l.b16 %v179
  %v260 = vunpack.c.l.b16 %v180
  %v261 = vunpack.c.l.b16 %v181
  %v262 = vunpack.c.l.b16 %v182
  %v263 = vpack.c.b16 %v248, %v247
  %v264 = vpack.c.b16 %v250, %v249
  %v265 = vpack.c.b16 %v252, %v251
  %v266 = vpack.c.b16 %v254, %v253
  %v267 = vpack.c.b16 %v256, %v255
  %v268 = vpack.c.b16 %v258, %v257
  %v269 = vpack.c.b16 %v260, %v259
  %v270 = vpack.c.b16 %v262, %v261
  %279 = vmatpush.bf16.msra.mxu0 %v270
  %280 = vmatpush.bf16.msra.mxu0 %v269
  %281 = vmatpush.bf16.msra.mxu0 %v268
  %282 = vmatpush.bf16.msra.mxu0 %v267
  %283 = vmatpush.bf16.msra.mxu0 %v266
  %284 = vmatpush.bf16.msra.mxu0 %v265
  %285 = vmatpush.bf16.msra.mxu0 %v264
  %286 = vmatpush.bf16.msra.mxu0 %v263
  %287 = vmatmul.bf16.gmra.mxu0 %v215
  %v288 = vpop.f32.mrf.mxu0
  %v289 = vadd.f32 0.0, %v288
  %v290 = vpop.f32.mrf.mxu0
  %v291 = vadd.f32 0.0, %v290
  %292 = vmatmul.bf16.gmra.mxu0 %v216
  %v293 = vpop.f32.mrf.mxu0
  %v294 = vadd.f32 0.0, %v293
  %v295 = vpop.f32.mrf.mxu0
  %v296 = vadd.f32 0.0, %v295
  %297 = vmatmul.bf16.gmra.mxu0 %v217
  %v298 = vpop.f32.mrf.mxu0
  %v299 = vadd.f32 0.0, %v298
  %v300 = vpop.f32.mrf.mxu0
  %v301 = vadd.f32 0.0, %v300
  %302 = vmatmul.bf16.gmra.mxu0 %v218
  %v303 = vpop.f32.mrf.mxu0
  %v304 = vadd.f32 0.0, %v303
  %v305 = vpop.f32.mrf.mxu0
  %v306 = vadd.f32 0.0, %v305
  %307 = vmatmul.bf16.gmra.mxu0 %v219
  %v308 = vpop.f32.mrf.mxu0
  %v309 = vadd.f32 0.0, %v308
  %v310 = vpop.f32.mrf.mxu0
  %v311 = vadd.f32 0.0, %v310
  %312 = vmatmul.bf16.gmra.mxu0 %v220
  %v313 = vpop.f32.mrf.mxu0
  %v314 = vadd.f32 0.0, %v313
  %v315 = vpop.f32.mrf.mxu0
  %v316 = vadd.f32 0.0, %v315
  %317 = vmatmul.bf16.gmra.mxu0 %v221
  %v318 = vpop.f32.mrf.mxu0
  %v319 = vadd.f32 0.0, %v318
  %v320 = vpop.f32.mrf.mxu0
  %v321 = vadd.f32 0.0, %v320
  %322 = vmatmul.bf16.gmra.mxu0 %v222
  %v323 = vpop.f32.mrf.mxu0
  %v324 = vadd.f32 0.0, %v323
  %v325 = vpop.f32.mrf.mxu0
  %v326 = vadd.f32 0.0, %v325
  %327 = vdwg.mxu0
  %v328 = vld [vmem:[%s2] sm:$0x1]
  %v330 = vperm.slane %v328, 0
  %v380 = vunpack.c.l.b16 %v23
  %v381 = vunpack.c.h.b16 %v23
  %v382 = vunpack.c.l.b16 %v24
  %v383 = vunpack.c.h.b16 %v24
  %v384 = vunpack.c.l.b16 %v25
  %v385 = vunpack.c.l.b16 %v26
  %v386 = vunpack.c.h.b16 %v26
  %v387 = vunpack.c.l.b16 %v27
  %v388 = vunpack.c.h.b16 %v27
  %v389 = vunpack.c.l.b16 %v28
  %v390 = vunpack.c.l.b16 %v29
  %v391 = vunpack.c.h.b16 %v29
  %v392 = vunpack.c.l.b16 %v30
  %v393 = vunpack.c.h.b16 %v30
  %v394 = vunpack.c.l.b16 %v31
  %v395 = vunpack.c.l.b16 %v32
  %v396 = vunpack.c.h.b16 %v32
  %v397 = vunpack.c.l.b16 %v33
  %v398 = vunpack.c.h.b16 %v33
  %v399 = vunpack.c.l.b16 %v34
  %v400 = vunpack.c.l.b16 %v35
  %v401 = vunpack.c.h.b16 %v35
  %v402 = vunpack.c.l.b16 %v36
  %v403 = vunpack.c.h.b16 %v36
  %v404 = vunpack.c.l.b16 %v37
  %v405 = vunpack.c.l.b16 %v38
  %v406 = vunpack.c.h.b16 %v38
  %v407 = vunpack.c.l.b16 %v39
  %v408 = vunpack.c.h.b16 %v39
  %v409 = vunpack.c.l.b16 %v40
  %v410 = vunpack.c.l.b16 %v41
  %v411 = vunpack.c.h.b16 %v41
  %v412 = vunpack.c.l.b16 %v42
  %v413 = vunpack.c.h.b16 %v42
  %v414 = vunpack.c.l.b16 %v43
  %v415 = vunpack.c.l.b16 %v44
  %v416 = vunpack.c.h.b16 %v44
  %v417 = vunpack.c.l.b16 %v45
  %v418 = vunpack.c.h.b16 %v45
  %v419 = vunpack.c.l.b16 %v46
  %v420 = vunpack.c.l.b16 %v47
  %v421 = vunpack.c.h.b16 %v47
  %v422 = vunpack.c.l.b16 %v48
  %v423 = vunpack.c.h.b16 %v48
  %v424 = vunpack.c.l.b16 %v49
  %v425 = vunpack.c.l.b16 %v50
  %v426 = vunpack.c.h.b16 %v50
  %v427 = vunpack.c.l.b16 %v51
  %v428 = vunpack.c.h.b16 %v51
  %v429 = vunpack.c.l.b16 %v52
  %v430 = vunpack.c.l.b16 %v53
  %v431 = vunpack.c.h.b16 %v53
  %v432 = vunpack.c.l.b16 %v54
  %v433 = vunpack.c.h.b16 %v54
  %v434 = vunpack.c.l.b16 %v55
  %v435 = vunpack.c.l.b16 %v56
  %v436 = vunpack.c.h.b16 %v56
  %v437 = vunpack.c.l.b16 %v57
  %v438 = vunpack.c.h.b16 %v57
  %v439 = vunpack.c.l.b16 %v58
  %v440 = vunpack.c.l.b16 %v59
  %v441 = vunpack.c.h.b16 %v59
  %v442 = vunpack.c.l.b16 %v60
  %v443 = vunpack.c.h.b16 %v60
  %v444 = vunpack.c.l.b16 %v61
  %v445 = vunpack.c.l.b16 %v62
  %v446 = vunpack.c.h.b16 %v62
  %v447 = vunpack.c.l.b16 %v63
  %v448 = vunpack.c.h.b16 %v63
  %v449 = vunpack.c.l.b16 %v64
  %v450 = vunpack.c.l.b16 %v65
  %v451 = vunpack.c.h.b16 %v65
  %v452 = vunpack.c.l.b16 %v66
  %v453 = vunpack.c.h.b16 %v66
  %v454 = vunpack.c.l.b16 %v67
  %v455 = vunpack.c.l.b16 %v68
  %v456 = vunpack.c.h.b16 %v68
  %v457 = vunpack.c.l.b16 %v69
  %v458 = vunpack.c.h.b16 %v69
  %v459 = vunpack.c.l.b16 %v70
  %v460 = vpack.c.b16 %v385, %v380
  %v461 = vpack.c.b16 %v386, %v381
  %v462 = vpack.c.b16 %v387, %v382
  %v463 = vpack.c.b16 %v388, %v383
  %v464 = vpack.c.b16 %v389, %v384
  %v465 = vpack.c.b16 %v395, %v390
  %v466 = vpack.c.b16 %v396, %v391
  %v467 = vpack.c.b16 %v397, %v392
  %v468 = vpack.c.b16 %v398, %v393
  %v469 = vpack.c.b16 %v399, %v394
  %v470 = vpack.c.b16 %v405, %v400
  %v471 = vpack.c.b16 %v406, %v401
  %v472 = vpack.c.b16 %v407, %v402
  %v473 = vpack.c.b16 %v408, %v403
  %v474 = vpack.c.b16 %v409, %v404
  %v475 = vpack.c.b16 %v415, %v410
  %v476 = vpack.c.b16 %v416, %v411
  %v477 = vpack.c.b16 %v417, %v412
  %v478 = vpack.c.b16 %v418, %v413
  %v479 = vpack.c.b16 %v419, %v414
  %v480 = vpack.c.b16 %v425, %v420
  %v481 = vpack.c.b16 %v426, %v421
  %v482 = vpack.c.b16 %v427, %v422
  %v483 = vpack.c.b16 %v428, %v423
  %v484 = vpack.c.b16 %v429, %v424
  %v485 = vpack.c.b16 %v435, %v430
  %v486 = vpack.c.b16 %v436, %v431
  %v487 = vpack.c.b16 %v437, %v432
  %v488 = vpack.c.b16 %v438, %v433
  %v489 = vpack.c.b16 %v439, %v434
  %v490 = vpack.c.b16 %v445, %v440
  %v491 = vpack.c.b16 %v446, %v441
  %v492 = vpack.c.b16 %v447, %v442
  %v493 = vpack.c.b16 %v448, %v443
  %v494 = vpack.c.b16 %v449, %v444
  %v495 = vpack.c.b16 %v455, %v450
  %v496 = vpack.c.b16 %v456, %v451
  %v497 = vpack.c.b16 %v457, %v452
  %v498 = vpack.c.b16 %v458, %v453
  %v499 = vpack.c.b16 %v459, %v454
  %v620 = vunpack.c.l.b16 %v71
  %v621 = vunpack.c.l.b16 %v72
  %v622 = vunpack.c.l.b16 %v73
  %v623 = vunpack.c.l.b16 %v74
  %v624 = vunpack.c.l.b16 %v75
  %v625 = vunpack.c.l.b16 %v76
  %v626 = vunpack.c.l.b16 %v77
  %v627 = vunpack.c.l.b16 %v78
  %v628 = vunpack.c.l.b16 %v79
  %v629 = vunpack.c.l.b16 %v80
  %v630 = vunpack.c.l.b16 %v81
  %v631 = vunpack.c.l.b16 %v82
  %v632 = vunpack.c.l.b16 %v83
  %v633 = vunpack.c.l.b16 %v84
  %v634 = vunpack.c.l.b16 %v85
  %v635 = vunpack.c.l.b16 %v86
  %v636 = vunpack.c.l.b16 %v87
  %v637 = vunpack.c.l.b16 %v88
  %v638 = vunpack.c.l.b16 %v89
  %v639 = vunpack.c.l.b16 %v90
  %v640 = vunpack.c.l.b16 %v91
  %v641 = vunpack.c.l.b16 %v92
  %v642 = vunpack.c.l.b16 %v93
  %v643 = vunpack.c.l.b16 %v94
  %v644 = vunpack.c.l.b16 %v95
  %v645 = vunpack.c.l.b16 %v96
  %v646 = vunpack.c.l.b16 %v97
  %v647 = vunpack.c.l.b16 %v98
  %v648 = vunpack.c.l.b16 %v99
  %v649 = vunpack.c.l.b16 %v100
  %v650 = vunpack.c.l.b16 %v101
  %v651 = vunpack.c.l.b16 %v102
  %v652 = vunpack.c.l.b16 %v103
  %v653 = vunpack.c.l.b16 %v104
  %v654 = vunpack.c.l.b16 %v105
  %v655 = vunpack.c.l.b16 %v106
  %v656 = vunpack.c.l.b16 %v107
  %v657 = vunpack.c.l.b16 %v108
  %v658 = vunpack.c.l.b16 %v109
  %v659 = vunpack.c.l.b16 %v110
  %v660 = vunpack.c.l.b16 %v111
  %v661 = vunpack.c.l.b16 %v112
  %v662 = vunpack.c.l.b16 %v113
  %v663 = vunpack.c.l.b16 %v114
  %v664 = vunpack.c.l.b16 %v115
  %v665 = vunpack.c.l.b16 %v116
  %v666 = vunpack.c.l.b16 %v117
  %v667 = vunpack.c.l.b16 %v118
  %v668 = vunpack.c.l.b16 %v119
  %v669 = vunpack.c.l.b16 %v120
  %v670 = vunpack.c.l.b16 %v121
  %v671 = vunpack.c.l.b16 %v122
  %v672 = vunpack.c.l.b16 %v123
  %v673 = vunpack.c.l.b16 %v124
  %v674 = vunpack.c.l.b16 %v125
  %v675 = vunpack.c.l.b16 %v126
  %v676 = vunpack.c.l.b16 %v127
  %v677 = vunpack.c.l.b16 %v128
  %v678 = vunpack.c.l.b16 %v129
  %v679 = vunpack.c.l.b16 %v130
  %v680 = vunpack.c.l.b16 %v131
  %v681 = vunpack.c.l.b16 %v132
  %v682 = vunpack.c.l.b16 %v133
  %v683 = vunpack.c.l.b16 %v134
  %v684 = vunpack.c.l.b16 %v135
  %v685 = vunpack.c.l.b16 %v136
  %v686 = vunpack.c.l.b16 %v137
  %v687 = vunpack.c.l.b16 %v138
  %v688 = vunpack.c.l.b16 %v139
  %v689 = vunpack.c.l.b16 %v140
  %v690 = vunpack.c.l.b16 %v141
  %v691 = vunpack.c.l.b16 %v142
  %v692 = vunpack.c.l.b16 %v143
  %v693 = vunpack.c.l.b16 %v144
  %v694 = vunpack.c.l.b16 %v145
  %v695 = vunpack.c.l.b16 %v146
  %v696 = vunpack.c.l.b16 %v147
  %v697 = vunpack.c.l.b16 %v148
  %v698 = vunpack.c.l.b16 %v149
  %v699 = vunpack.c.l.b16 %v150
  %v700 = vpack.c.b16 %v621, %v620
  %v701 = vpack.c.b16 %v623, %v622
  %v702 = vpack.c.b16 %v625, %v624
  %v703 = vpack.c.b16 %v627, %v626
  %v704 = vpack.c.b16 %v629, %v628
  %v705 = vpack.c.b16 %v631, %v630
  %v706 = vpack.c.b16 %v633, %v632
  %v707 = vpack.c.b16 %v635, %v634
  %v708 = vpack.c.b16 %v637, %v636
  %v709 = vpack.c.b16 %v639, %v638
  %v710 = vpack.c.b16 %v641, %v640
  %v711 = vpack.c.b16 %v643, %v642
  %v712 = vpack.c.b16 %v645, %v644
  %v713 = vpack.c.b16 %v647, %v646
  %v714 = vpack.c.b16 %v649, %v648
  %v715 = vpack.c.b16 %v651, %v650
  %v716 = vpack.c.b16 %v653, %v652
  %v717 = vpack.c.b16 %v655, %v654
  %v718 = vpack.c.b16 %v657, %v656
  %v719 = vpack.c.b16 %v659, %v658
  %v720 = vpack.c.b16 %v661, %v660
  %v721 = vpack.c.b16 %v663, %v662
  %v722 = vpack.c.b16 %v665, %v664
  %v723 = vpack.c.b16 %v667, %v666
  %v724 = vpack.c.b16 %v669, %v668
  %v725 = vpack.c.b16 %v671, %v670
  %v726 = vpack.c.b16 %v673, %v672
  %v727 = vpack.c.b16 %v675, %v674
  %v728 = vpack.c.b16 %v677, %v676
  %v729 = vpack.c.b16 %v679, %v678
  %v730 = vpack.c.b16 %v681, %v680
  %v731 = vpack.c.b16 %v683, %v682
  %v732 = vpack.c.b16 %v685, %v684
  %v733 = vpack.c.b16 %v687, %v686
  %v734 = vpack.c.b16 %v689, %v688
  %v735 = vpack.c.b16 %v691, %v690
  %v736 = vpack.c.b16 %v693, %v692
  %v737 = vpack.c.b16 %v695, %v694
  %v738 = vpack.c.b16 %v697, %v696
  %v739 = vpack.c.b16 %v699, %v698
  %780 = vmatpush.bf16.msra.mxu0 %v707
  %781 = vmatpush.bf16.msra.mxu0 %v706
  %782 = vmatpush.bf16.msra.mxu0 %v705
  %783 = vmatpush.bf16.msra.mxu0 %v704
  %784 = vmatpush.bf16.msra.mxu0 %v703
  %785 = vmatpush.bf16.msra.mxu0 %v702
  %786 = vmatpush.bf16.msra.mxu0 %v701
  %787 = vmatpush.bf16.msra.mxu0 %v700
  %788 = vmatmul.bf16.gmra.mxu0 %v460
  %v789 = vpop.f32.mrf.mxu0
  %v790 = vadd.f32 %v330, %v789
  %v791 = vpop.f32.mrf.mxu0
  %v792 = vadd.f32 %v330, %v791
  %793 = vmatmul.bf16.gmra.mxu0 %v465
  %v794 = vpop.f32.mrf.mxu0
  %v795 = vadd.f32 %v330, %v794
  %v796 = vpop.f32.mrf.mxu0
  %v797 = vadd.f32 %v330, %v796
  %798 = vmatmul.bf16.gmra.mxu0 %v470
  %v799 = vpop.f32.mrf.mxu0
  %v800 = vadd.f32 %v330, %v799
  %v801 = vpop.f32.mrf.mxu0
  %v802 = vadd.f32 %v330, %v801
  %803 = vmatmul.bf16.gmra.mxu0 %v475
  %v804 = vpop.f32.mrf.mxu0
  %v805 = vadd.f32 %v330, %v804
  %v806 = vpop.f32.mrf.mxu0
  %v807 = vadd.f32 %v330, %v806
  %808 = vmatmul.bf16.gmra.mxu0 %v480
  %v809 = vpop.f32.mrf.mxu0
  %v810 = vadd.f32 %v330, %v809
  %v811 = vpop.f32.mrf.mxu0
  %v812 = vadd.f32 %v330, %v811
  %813 = vmatmul.bf16.gmra.mxu0 %v485
  %v814 = vpop.f32.mrf.mxu0
  %v815 = vadd.f32 %v330, %v814
  %v816 = vpop.f32.mrf.mxu0
  %v817 = vadd.f32 %v330, %v816
  %818 = vmatmul.bf16.gmra.mxu0 %v490
  %v819 = vpop.f32.mrf.mxu0
  %v820 = vadd.f32 %v330, %v819
  %v821 = vpop.f32.mrf.mxu0
  %v822 = vadd.f32 %v330, %v821
  %823 = vmatmul.bf16.gmra.mxu0 %v495
  %v824 = vpop.f32.mrf.mxu0
  %v825 = vadd.f32 %v330, %v824
  %v826 = vpop.f32.mrf.mxu0
  %v827 = vadd.f32 %v330, %v826
  %828 = vdwg.mxu0
  %829 = vmatpush.bf16.msra.mxu0 %v715
  %830 = vmatpush.bf16.msra.mxu0 %v714
  %831 = vmatpush.bf16.msra.mxu0 %v713
  %832 = vmatpush.bf16.msra.mxu0 %v712
  %833 = vmatpush.bf16.msra.mxu0 %v711
  %834 = vmatpush.bf16.msra.mxu0 %v710
  %835 = vmatpush.bf16.msra.mxu0 %v709
  %836 = vmatpush.bf16.msra.mxu0 %v708
  %837 = vmatmul.bf16.gmra.mxu0 %v461
  %v838 = vpop.f32.mrf.mxu0
  %v839 = vadd.f32 %v790, %v838
  %v840 = vpop.f32.mrf.mxu0
  %v841 = vadd.f32 %v792, %v840
  %842 = vmatmul.bf16.gmra.mxu0 %v466
  %v843 = vpop.f32.mrf.mxu0
  %v844 = vadd.f32 %v795, %v843
  %v845 = vpop.f32.mrf.mxu0
  %v846 = vadd.f32 %v797, %v845
  %847 = vmatmul.bf16.gmra.mxu0 %v471
  %v848 = vpop.f32.mrf.mxu0
  %v849 = vadd.f32 %v800, %v848
  %v850 = vpop.f32.mrf.mxu0
  %v851 = vadd.f32 %v802, %v850
  %852 = vmatmul.bf16.gmra.mxu0 %v476
  %v853 = vpop.f32.mrf.mxu0
  %v854 = vadd.f32 %v805, %v853
  %v855 = vpop.f32.mrf.mxu0
  %v856 = vadd.f32 %v807, %v855
  %857 = vmatmul.bf16.gmra.mxu0 %v481
  %v858 = vpop.f32.mrf.mxu0
  %v859 = vadd.f32 %v810, %v858
  %v860 = vpop.f32.mrf.mxu0
  %v861 = vadd.f32 %v812, %v860
  %862 = vmatmul.bf16.gmra.mxu0 %v486
  %v863 = vpop.f32.mrf.mxu0
  %v864 = vadd.f32 %v815, %v863
  %v865 = vpop.f32.mrf.mxu0
  %v866 = vadd.f32 %v817, %v865
  %867 = vmatmul.bf16.gmra.mxu0 %v491
  %v868 = vpop.f32.mrf.mxu0
  %v869 = vadd.f32 %v820, %v868
  %v870 = vpop.f32.mrf.mxu0
  %v871 = vadd.f32 %v822, %v870
  %872 = vmatmul.bf16.gmra.mxu0 %v496
  %v873 = vpop.f32.mrf.mxu0
  %v874 = vadd.f32 %v825, %v873
  %v875 = vpop.f32.mrf.mxu0
  %v876 = vadd.f32 %v827, %v875
  %877 = vdwg.mxu0
  %878 = vmatpush.bf16.msra.mxu0 %v723
  %879 = vmatpush.bf16.msra.mxu0 %v722
  %880 = vmatpush.bf16.msra.mxu0 %v721
  %881 = vmatpush.bf16.msra.mxu0 %v720
  %882 = vmatpush.bf16.msra.mxu0 %v719
  %883 = vmatpush.bf16.msra.mxu0 %v718
  %884 = vmatpush.bf16.msra.mxu0 %v717
  %885 = vmatpush.bf16.msra.mxu0 %v716
  %886 = vmatmul.bf16.gmra.mxu0 %v462
  %v887 = vpop.f32.mrf.mxu0
  %v888 = vadd.f32 %v839, %v887
  %v889 = vpop.f32.mrf.mxu0
  %v890 = vadd.f32 %v841, %v889
  %891 = vmatmul.bf16.gmra.mxu0 %v467
  %v892 = vpop.f32.mrf.mxu0
  %v893 = vadd.f32 %v844, %v892
  %v894 = vpop.f32.mrf.mxu0
  %v895 = vadd.f32 %v846, %v894
  %896 = vmatmul.bf16.gmra.mxu0 %v472
  %v897 = vpop.f32.mrf.mxu0
  %v898 = vadd.f32 %v849, %v897
  %v899 = vpop.f32.mrf.mxu0
  %v900 = vadd.f32 %v851, %v899
  %901 = vmatmul.bf16.gmra.mxu0 %v477
  %v902 = vpop.f32.mrf.mxu0
  %v903 = vadd.f32 %v854, %v902
  %v904 = vpop.f32.mrf.mxu0
  %v905 = vadd.f32 %v856, %v904
  %906 = vmatmul.bf16.gmra.mxu0 %v482
  %v907 = vpop.f32.mrf.mxu0
  %v908 = vadd.f32 %v859, %v907
  %v909 = vpop.f32.mrf.mxu0
  %v910 = vadd.f32 %v861, %v909
  %911 = vmatmul.bf16.gmra.mxu0 %v487
  %v912 = vpop.f32.mrf.mxu0
  %v913 = vadd.f32 %v864, %v912
  %v914 = vpop.f32.mrf.mxu0
  %v915 = vadd.f32 %v866, %v914
  %916 = vmatmul.bf16.gmra.mxu0 %v492
  %v917 = vpop.f32.mrf.mxu0
  %v918 = vadd.f32 %v869, %v917
  %v919 = vpop.f32.mrf.mxu0
  %v920 = vadd.f32 %v871, %v919
  %921 = vmatmul.bf16.gmra.mxu0 %v497
  %v922 = vpop.f32.mrf.mxu0
  %v923 = vadd.f32 %v874, %v922
  %v924 = vpop.f32.mrf.mxu0
  %v925 = vadd.f32 %v876, %v924
  %926 = vdwg.mxu0
  %927 = vmatpush.bf16.msra.mxu0 %v731
  %928 = vmatpush.bf16.msra.mxu0 %v730
  %929 = vmatpush.bf16.msra.mxu0 %v729
  %930 = vmatpush.bf16.msra.mxu0 %v728
  %931 = vmatpush.bf16.msra.mxu0 %v727
  %932 = vmatpush.bf16.msra.mxu0 %v726
  %933 = vmatpush.bf16.msra.mxu0 %v725
  %934 = vmatpush.bf16.msra.mxu0 %v724
  %935 = vmatmul.bf16.gmra.mxu0 %v463
  %v936 = vpop.f32.mrf.mxu0
  %v937 = vadd.f32 %v888, %v936
  %v938 = vpop.f32.mrf.mxu0
  %v939 = vadd.f32 %v890, %v938
  %940 = vmatmul.bf16.gmra.mxu0 %v468
  %v941 = vpop.f32.mrf.mxu0
  %v942 = vadd.f32 %v893, %v941
  %v943 = vpop.f32.mrf.mxu0
  %v944 = vadd.f32 %v895, %v943
  %945 = vmatmul.bf16.gmra.mxu0 %v473
  %v946 = vpop.f32.mrf.mxu0
  %v947 = vadd.f32 %v898, %v946
  %v948 = vpop.f32.mrf.mxu0
  %v949 = vadd.f32 %v900, %v948
  %950 = vmatmul.bf16.gmra.mxu0 %v478
  %v951 = vpop.f32.mrf.mxu0
  %v952 = vadd.f32 %v903, %v951
  %v953 = vpop.f32.mrf.mxu0
  %v954 = vadd.f32 %v905, %v953
  %955 = vmatmul.bf16.gmra.mxu0 %v483
  %v956 = vpop.f32.mrf.mxu0
  %v957 = vadd.f32 %v908, %v956
  %v958 = vpop.f32.mrf.mxu0
  %v959 = vadd.f32 %v910, %v958
  %960 = vmatmul.bf16.gmra.mxu0 %v488
  %v961 = vpop.f32.mrf.mxu0
  %v962 = vadd.f32 %v913, %v961
  %v963 = vpop.f32.mrf.mxu0
  %v964 = vadd.f32 %v915, %v963
  %965 = vmatmul.bf16.gmra.mxu0 %v493
  %v966 = vpop.f32.mrf.mxu0
  %v967 = vadd.f32 %v918, %v966
  %v968 = vpop.f32.mrf.mxu0
  %v969 = vadd.f32 %v920, %v968
  %970 = vmatmul.bf16.gmra.mxu0 %v498
  %v971 = vpop.f32.mrf.mxu0
  %v972 = vadd.f32 %v923, %v971
  %v973 = vpop.f32.mrf.mxu0
  %v974 = vadd.f32 %v925, %v973
  %975 = vdwg.mxu0
  %976 = vmatpush.bf16.msra.mxu0 %v739
  %977 = vmatpush.bf16.msra.mxu0 %v738
  %978 = vmatpush.bf16.msra.mxu0 %v737
  %979 = vmatpush.bf16.msra.mxu0 %v736
  %980 = vmatpush.bf16.msra.mxu0 %v735
  %981 = vmatpush.bf16.msra.mxu0 %v734
  %982 = vmatpush.bf16.msra.mxu0 %v733
  %983 = vmatpush.bf16.msra.mxu0 %v732
  %984 = vmatmul.bf16.gmra.mxu0 %v464
  %v985 = vpop.f32.mrf.mxu0
  %v986 = vadd.f32 %v937, %v985
  %v987 = vpop.f32.mrf.mxu0
  %v988 = vadd.f32 %v939, %v987
  %989 = vmatmul.bf16.gmra.mxu0 %v469
  %v990 = vpop.f32.mrf.mxu0
  %v991 = vadd.f32 %v942, %v990
  %v992 = vpop.f32.mrf.mxu0
  %v993 = vadd.f32 %v944, %v992
  %994 = vmatmul.bf16.gmra.mxu0 %v474
  %v995 = vpop.f32.mrf.mxu0
  %v996 = vadd.f32 %v947, %v995
  %v997 = vpop.f32.mrf.mxu0
  %v998 = vadd.f32 %v949, %v997
  %999 = vmatmul.bf16.gmra.mxu0 %v479
  %v1000 = vpop.f32.mrf.mxu0
  %v1001 = vadd.f32 %v952, %v1000
  %v1002 = vpop.f32.mrf.mxu0
  %v1003 = vadd.f32 %v954, %v1002
  %1004 = vmatmul.bf16.gmra.mxu0 %v484
  %v1005 = vpop.f32.mrf.mxu0
  %v1006 = vadd.f32 %v957, %v1005
  %v1007 = vpop.f32.mrf.mxu0
  %v1008 = vadd.f32 %v959, %v1007
  %1009 = vmatmul.bf16.gmra.mxu0 %v489
  %v1010 = vpop.f32.mrf.mxu0
  %v1011 = vadd.f32 %v962, %v1010
  %v1012 = vpop.f32.mrf.mxu0
  %v1013 = vadd.f32 %v964, %v1012
  %1014 = vmatmul.bf16.gmra.mxu0 %v494
  %v1015 = vpop.f32.mrf.mxu0
  %v1016 = vadd.f32 %v967, %v1015
  %v1017 = vpop.f32.mrf.mxu0
  %v1018 = vadd.f32 %v969, %v1017
  %1019 = vmatmul.bf16.gmra.mxu0 %v499
  %v1020 = vpop.f32.mrf.mxu0
  %v1021 = vadd.f32 %v972, %v1020
  %v1022 = vpop.f32.mrf.mxu0
  %v1023 = vadd.f32 %v974, %v1022
  %1024 = vdwg.mxu0
  %v1025 = vadd.f32 %v986, %v289
  %v1026 = vadd.f32 %v988, %v291
  %v1027 = vadd.f32 %v991, %v294
  %v1028 = vadd.f32 %v993, %v296
  %v1029 = vadd.f32 %v996, %v299
  %v1030 = vadd.f32 %v998, %v301
  %v1031 = vadd.f32 %v1001, %v304
  %v1032 = vadd.f32 %v1003, %v306
  %v1033 = vadd.f32 %v1006, %v309
  %v1034 = vadd.f32 %v1008, %v311
  %v1035 = vadd.f32 %v1011, %v314
  %v1036 = vadd.f32 %v1013, %v316
  %v1037 = vadd.f32 %v1016, %v319
  %v1038 = vadd.f32 %v1018, %v321
  %v1039 = vadd.f32 %v1021, %v324
  %v1040 = vadd.f32 %v1023, %v326
  %v1041 = vld [vmem:[%s5] sm:$0x1]
  %v1043 = vperm.slane %v1041, 0
  %v1045 = vadd.f32 %v1025, %v1043
  %v1046 = vadd.f32 %v1026, %v1043
  %v1047 = vadd.f32 %v1027, %v1043
  %v1048 = vadd.f32 %v1028, %v1043
  %v1049 = vadd.f32 %v1029, %v1043
  %v1050 = vadd.f32 %v1030, %v1043
  %v1051 = vadd.f32 %v1031, %v1043
  %v1052 = vadd.f32 %v1032, %v1043
  %v1053 = vadd.f32 %v1033, %v1043
  %v1054 = vadd.f32 %v1034, %v1043
  %v1055 = vadd.f32 %v1035, %v1043
  %v1056 = vadd.f32 %v1036, %v1043
  %v1057 = vadd.f32 %v1037, %v1043
  %v1058 = vadd.f32 %v1038, %v1043
  %v1059 = vadd.f32 %v1039, %v1043
  %v1060 = vadd.f32 %v1040, %v1043
  %v1061 = vmax.f32 %v1045, 0.0
  %v1062 = vmax.f32 %v1046, 0.0
  %v1063 = vmax.f32 %v1047, 0.0
  %v1064 = vmax.f32 %v1048, 0.0
  %v1065 = vmax.f32 %v1049, 0.0
  %v1066 = vmax.f32 %v1050, 0.0
  %v1067 = vmax.f32 %v1051, 0.0
  %v1068 = vmax.f32 %v1052, 0.0
  %v1069 = vmax.f32 %v1053, 0.0
  %v1070 = vmax.f32 %v1054, 0.0
  %v1071 = vmax.f32 %v1055, 0.0
  %v1072 = vmax.f32 %v1056, 0.0
  %v1073 = vmax.f32 %v1057, 0.0
  %v1074 = vmax.f32 %v1058, 0.0
  %v1075 = vmax.f32 %v1059, 0.0
  %v1076 = vmax.f32 %v1060, 0.0
  %v1077 = vpack.c.bf16 %v1061, %v1061
  %v1078 = vpack.c.bf16 %v1062, %v1062
  %v1079 = vpack.c.bf16 %v1063, %v1063
  %v1080 = vpack.c.bf16 %v1064, %v1064
  %v1081 = vpack.c.bf16 %v1065, %v1065
  %v1082 = vpack.c.bf16 %v1066, %v1066
  %v1083 = vpack.c.bf16 %v1067, %v1067
  %v1084 = vpack.c.bf16 %v1068, %v1068
  %v1085 = vpack.c.bf16 %v1069, %v1069
  %v1086 = vpack.c.bf16 %v1070, %v1070
  %v1087 = vpack.c.bf16 %v1071, %v1071
  %v1088 = vpack.c.bf16 %v1072, %v1072
  %v1089 = vpack.c.bf16 %v1073, %v1073
  %v1090 = vpack.c.bf16 %v1074, %v1074
  %v1091 = vpack.c.bf16 %v1075, %v1075
  %v1092 = vpack.c.bf16 %v1076, %v1076
  %1093 = vst [vmem:[%s6] sm:$0xf] %v1077
  %1094 = vst [vmem:[%s6 + $0x4] sm:$0xf] %v1078
  %1095 = vst [vmem:[%s6 + $0x8] sm:$0xf] %v1079
  %1096 = vst [vmem:[%s6 + $0xc] sm:$0xf] %v1080
  %1097 = vst [vmem:[%s6 + $0x10] sm:$0xf] %v1081
  %1098 = vst [vmem:[%s6 + $0x14] sm:$0xf] %v1082
  %1099 = vst [vmem:[%s6 + $0x18] sm:$0xf] %v1083
  %1100 = vst [vmem:[%s6 + $0x1c] sm:$0xf] %v1084
  %1101 = vst [vmem:[%s6 + $0x20] sm:$0xf] %v1085
  %1102 = vst [vmem:[%s6 + $0x24] sm:$0xf] %v1086
  %1103 = vst [vmem:[%s6 + $0x28] sm:$0xf] %v1087
  %1104 = vst [vmem:[%s6 + $0x2c] sm:$0xf] %v1088
  %1105 = vst [vmem:[%s6 + $0x30] sm:$0xf] %v1089
  %1106 = vst [vmem:[%s6 + $0x34] sm:$0xf] %v1090
  %1107 = vst [vmem:[%s6 + $0x38] sm:$0xf] %v1091
  %1108 = vst [vmem:[%s6 + $0x3c] sm:$0xf] %v1092
  // Predicated region
  $region26: #{resnet_forward.16} parent=0 // pred_check
    _
  $region27: #{resnet_forward.16} parent=0 // pred_check_branch
    %1110 = sbr.rel (0) target = $region29
  $region28: #{resnet_forward.16} parent=0 // pred_region
    _
  $region29: #{resnet_forward.16} parent=0 // pred_fallthru
    _
  // Predicated region
  $region30: #{resnet_forward.16} parent=0 // pred_check
    _
  $region31: #{resnet_forward.16} parent=0 // pred_check_branch
    %1112 = sbr.rel (0) target = $region33
  $region32: #{resnet_forward.16} parent=0 // pred_region
    _
  $region33: #{resnet_forward.16} parent=0 // pred_fallthru
    _

// kernel: resnet_forward.17
$region0: #{resnet_forward.17}
  #allocation0 [shape = 'u32[]', space=smem, size = 0x4, offset = 0x4, fixed_abs, tag = 'smem constant byte address 0x4 - core index']
  #allocation1 [shape = 'u32[72,128]{1,0:T(1,128)}', space=vmem, size = 0x9000, scoped, tag = 'internal scratch']
  %s0 = inlined_call_operand.vmem [shape: bf16[128,640], index: 0, kind: input, shape index: {}]
  %s1 = inlined_call_operand.vmem [shape: bf16[640,128], index: 1, kind: input, shape index: {}]
  %s2 = inlined_call_operand.vmem [shape: f32[1,128], index: 2, kind: input, shape index: {}]
  %s3 = inlined_call_operand.vmem [shape: bf16[128,128], index: 3, kind: output, shape index: {}]
  %s4 = sld [smem:[#allocation0]]
  $region22: #{resnet_forward.17} parent=0
    _
  %s6 = ssub.s32 1, %s4
  %s7 = scalar_select 0, %s6, %s4
  // Predicated region
  $region2: #{resnet_forward.17} parent=0 // pred_check
    _
  $region3: #{resnet_forward.17} parent=0 // pred_check_branch
    %9 = sbr.rel (0) target = $region5
  $region4: #{resnet_forward.17} parent=0 // pred_region
    _
  $region5: #{resnet_forward.17} parent=0 // pred_fallthru
    _
  // Predicated region
  $region6: #{resnet_forward.17} parent=0 // pred_check
    _
  $region7: #{resnet_forward.17} parent=0 // pred_check_branch
    %11 = sbr.rel (0) target = $region9
  $region8: #{resnet_forward.17} parent=0 // pred_region
    _
  $region9: #{resnet_forward.17} parent=0 // pred_fallthru
    _
  // Predicated region
  $region10: #{resnet_forward.17} parent=0 // pred_check
    _
  $region11: #{resnet_forward.17} parent=0 // pred_check_branch
    %13 = sbr.rel (0) target = $region13
  $region12: #{resnet_forward.17} parent=0 // pred_region
    _
  $region13: #{resnet_forward.17} parent=0 // pred_fallthru
    _
  %v14 = vld [vmem:[%s0] sm:$0xff]
  %v15 = vld [vmem:[%s0 + $0x8] sm:$0xff]
  %v16 = vld [vmem:[%s0 + $0x10] sm:$0xf]
  %v17 = vld [vmem:[%s0 + $0x14] sm:$0xff]
  %v18 = vld [vmem:[%s0 + $0x1c] sm:$0xff]
  %v19 = vld [vmem:[%s0 + $0x24] sm:$0xf]
  %v20 = vld [vmem:[%s0 + $0x28] sm:$0xff]
  %v21 = vld [vmem:[%s0 + $0x30] sm:$0xff]
  %v22 = vld [vmem:[%s0 + $0x38] sm:$0xf]
  %v23 = vld [vmem:[%s0 + $0x3c] sm:$0xff]
  %v24 = vld [vmem:[%s0 + $0x44] sm:$0xff]
  %v25 = vld [vmem:[%s0 + $0x4c] sm:$0xf]
  %v26 = vld [vmem:[%s0 + $0x50] sm:$0xff]
  %v27 = vld [vmem:[%s0 + $0x58] sm:$0xff]
  %v28 = vld [vmem:[%s0 + $0x60] sm:$0xf]
  %v29 = vld [vmem:[%s0 + $0x64] sm:$0xff]
  %v30 = vld [vmem:[%s0 + $0x6c] sm:$0xff]
  %v31 = vld [vmem:[%s0 + $0x74] sm:$0xf]
  %v32 = vld [vmem:[%s0 + $0x78] sm:$0xff]
  %v33 = vld [vmem:[%s0 + $0x80] sm:$0xff]
  %v34 = vld [vmem:[%s0 + $0x88] sm:$0xf]
  %v35 = vld [vmem:[%s0 + $0x8c] sm:$0xff]
  %v36 = vld [vmem:[%s0 + $0x94] sm:$0xff]
  %v37 = vld [vmem:[%s0 + $0x9c] sm:$0xf]
  %v38 = vld [vmem:[%s0 + $0xa0] sm:$0xff]
  %v39 = vld [vmem:[%s0 + $0xa8] sm:$0xff]
  %v40 = vld [vmem:[%s0 + $0xb0] sm:$0xf]
  %v41 = vld [vmem:[%s0 + $0xb4] sm:$0xff]
  %v42 = vld [vmem:[%s0 + $0xbc] sm:$0xff]
  %v43 = vld [vmem:[%s0 + $0xc4] sm:$0xf]
  %v44 = vld [vmem:[%s0 + $0xc8] sm:$0xff]
  %v45 = vld [vmem:[%s0 + $0xd0] sm:$0xff]
  %v46 = vld [vmem:[%s0 + $0xd8] sm:$0xf]
  %v47 = vld [vmem:[%s0 + $0xdc] sm:$0xff]
  %v48 = vld [vmem:[%s0 + $0xe4] sm:$0xff]
  %v49 = vld [vmem:[%s0 + $0xec] sm:$0xf]
  %v50 = vld [vmem:[%s0 + $0xf0] sm:$0xff]
  %v51 = vld [vmem:[%s0 + $0xf8] sm:$0xff]
  %v52 = vld [vmem:[%s0 + $0x100] sm:$0xf]
  %v53 = vld [vmem:[%s0 + $0x104] sm:$0xff]
  %v54 = vld [vmem:[%s0 + $0x10c] sm:$0xff]
  %v55 = vld [vmem:[%s0 + $0x114] sm:$0xf]
  %v56 = vld [vmem:[%s0 + $0x118] sm:$0xff]
  %v57 = vld [vmem:[%s0 + $0x120] sm:$0xff]
  %v58 = vld [vmem:[%s0 + $0x128] sm:$0xf]
  %v59 = vld [vmem:[%s0 + $0x12c] sm:$0xff]
  %v60 = vld [vmem:[%s0 + $0x134] sm:$0xff]
  %v61 = vld [vmem:[%s0 + $0x13c] sm:$0xf]
  %v62 = vld [vmem:[%s1] sm:$0xf]
  %v63 = vld [vmem:[%s1 + $0x4] sm:$0xf]
  %v64 = vld [vmem:[%s1 + $0x8] sm:$0xf]
  %v65 = vld [vmem:[%s1 + $0xc] sm:$0xf]
  %v66 = vld [vmem:[%s1 + $0x10] sm:$0xf]
  %v67 = vld [vmem:[%s1 + $0x14] sm:$0xf]
  %v68 = vld [vmem:[%s1 + $0x18] sm:$0xf]
  %v69 = vld [vmem:[%s1 + $0x1c] sm:$0xf]
  %v70 = vld [vmem:[%s1 + $0x20] sm:$0xf]
  %v71 = vld [vmem:[%s1 + $0x24] sm:$0xf]
  %v72 = vld [vmem:[%s1 + $0x28] sm:$0xf]
  %v73 = vld [vmem:[%s1 + $0x2c] sm:$0xf]
  %v74 = vld [vmem:[%s1 + $0x30] sm:$0xf]
  %v75 = vld [vmem:[%s1 + $0x34] sm:$0xf]
  %v76 = vld [vmem:[%s1 + $0x38] sm:$0xf]
  %v77 = vld [vmem:[%s1 + $0x3c] sm:$0xf]
  %v78 = vld [vmem:[%s1 + $0x40] sm:$0xf]
  %v79 = vld [vmem:[%s1 + $0x44] sm:$0xf]
  %v80 = vld [vmem:[%s1 + $0x48] sm:$0xf]
  %v81 = vld [vmem:[%s1 + $0x4c] sm:$0xf]
  %v82 = vld [vmem:[%s1 + $0x50] sm:$0xf]
  %v83 = vld [vmem:[%s1 + $0x54] sm:$0xf]
  %v84 = vld [vmem:[%s1 + $0x58] sm:$0xf]
  %v85 = vld [vmem:[%s1 + $0x5c] sm:$0xf]
  %v86 = vld [vmem:[%s1 + $0x60] sm:$0xf]
  %v87 = vld [vmem:[%s1 + $0x64] sm:$0xf]
  %v88 = vld [vmem:[%s1 + $0x68] sm:$0xf]
  %v89 = vld [vmem:[%s1 + $0x6c] sm:$0xf]
  %v90 = vld [vmem:[%s1 + $0x70] sm:$0xf]
  %v91 = vld [vmem:[%s1 + $0x74] sm:$0xf]
  %v92 = vld [vmem:[%s1 + $0x78] sm:$0xf]
  %v93 = vld [vmem:[%s1 + $0x7c] sm:$0xf]
  %v94 = vld [vmem:[%s1 + $0x80] sm:$0xf]
  %v95 = vld [vmem:[%s1 + $0x84] sm:$0xf]
  %v96 = vld [vmem:[%s1 + $0x88] sm:$0xf]
  %v97 = vld [vmem:[%s1 + $0x8c] sm:$0xf]
  %v98 = vld [vmem:[%s1 + $0x90] sm:$0xf]
  %v99 = vld [vmem:[%s1 + $0x94] sm:$0xf]
  %v100 = vld [vmem:[%s1 + $0x98] sm:$0xf]
  %v101 = vld [vmem:[%s1 + $0x9c] sm:$0xf]
  %v102 = vld [vmem:[%s1 + $0xa0] sm:$0xf]
  %v103 = vld [vmem:[%s1 + $0xa4] sm:$0xf]
  %v104 = vld [vmem:[%s1 + $0xa8] sm:$0xf]
  %v105 = vld [vmem:[%s1 + $0xac] sm:$0xf]
  %v106 = vld [vmem:[%s1 + $0xb0] sm:$0xf]
  %v107 = vld [vmem:[%s1 + $0xb4] sm:$0xf]
  %v108 = vld [vmem:[%s1 + $0xb8] sm:$0xf]
  %v109 = vld [vmem:[%s1 + $0xbc] sm:$0xf]
  %v110 = vld [vmem:[%s1 + $0xc0] sm:$0xf]
  %v111 = vld [vmem:[%s1 + $0xc4] sm:$0xf]
  %v112 = vld [vmem:[%s1 + $0xc8] sm:$0xf]
  %v113 = vld [vmem:[%s1 + $0xcc] sm:$0xf]
  %v114 = vld [vmem:[%s1 + $0xd0] sm:$0xf]
  %v115 = vld [vmem:[%s1 + $0xd4] sm:$0xf]
  %v116 = vld [vmem:[%s1 + $0xd8] sm:$0xf]
  %v117 = vld [vmem:[%s1 + $0xdc] sm:$0xf]
  %v118 = vld [vmem:[%s1 + $0xe0] sm:$0xf]
  %v119 = vld [vmem:[%s1 + $0xe4] sm:$0xf]
  %v120 = vld [vmem:[%s1 + $0xe8] sm:$0xf]
  %v121 = vld [vmem:[%s1 + $0xec] sm:$0xf]
  %v122 = vld [vmem:[%s1 + $0xf0] sm:$0xf]
  %v123 = vld [vmem:[%s1 + $0xf4] sm:$0xf]
  %v124 = vld [vmem:[%s1 + $0xf8] sm:$0xf]
  %v125 = vld [vmem:[%s1 + $0xfc] sm:$0xf]
  %v126 = vld [vmem:[%s1 + $0x100] sm:$0xf]
  %v127 = vld [vmem:[%s1 + $0x104] sm:$0xf]
  %v128 = vld [vmem:[%s1 + $0x108] sm:$0xf]
  %v129 = vld [vmem:[%s1 + $0x10c] sm:$0xf]
  %v130 = vld [vmem:[%s1 + $0x110] sm:$0xf]
  %v131 = vld [vmem:[%s1 + $0x114] sm:$0xf]
  %v132 = vld [vmem:[%s1 + $0x118] sm:$0xf]
  %v133 = vld [vmem:[%s1 + $0x11c] sm:$0xf]
  %v134 = vld [vmem:[%s1 + $0x120] sm:$0xf]
  %v135 = vld [vmem:[%s1 + $0x124] sm:$0xf]
  %v136 = vld [vmem:[%s1 + $0x128] sm:$0xf]
  %v137 = vld [vmem:[%s1 + $0x12c] sm:$0xf]
  %v138 = vld [vmem:[%s1 + $0x130] sm:$0xf]
  %v139 = vld [vmem:[%s1 + $0x134] sm:$0xf]
  %v140 = vld [vmem:[%s1 + $0x138] sm:$0xf]
  %v141 = vld [vmem:[%s1 + $0x13c] sm:$0xf]
  %v142 = vld [vmem:[%s2] sm:$0x1]
  %v144 = vperm.slane %v142, 0
  %v194 = vunpack.c.l.b16 %v14
  %v195 = vunpack.c.h.b16 %v14
  %v196 = vunpack.c.l.b16 %v15
  %v197 = vunpack.c.h.b16 %v15
  %v198 = vunpack.c.l.b16 %v16
  %v199 = vunpack.c.l.b16 %v17
  %v200 = vunpack.c.h.b16 %v17
  %v201 = vunpack.c.l.b16 %v18
  %v202 = vunpack.c.h.b16 %v18
  %v203 = vunpack.c.l.b16 %v19
  %v204 = vunpack.c.l.b16 %v20
  %v205 = vunpack.c.h.b16 %v20
  %v206 = vunpack.c.l.b16 %v21
  %v207 = vunpack.c.h.b16 %v21
  %v208 = vunpack.c.l.b16 %v22
  %v209 = vunpack.c.l.b16 %v23
  %v210 = vunpack.c.h.b16 %v23
  %v211 = vunpack.c.l.b16 %v24
  %v212 = vunpack.c.h.b16 %v24
  %v213 = vunpack.c.l.b16 %v25
  %v214 = vunpack.c.l.b16 %v26
  %v215 = vunpack.c.h.b16 %v26
  %v216 = vunpack.c.l.b16 %v27
  %v217 = vunpack.c.h.b16 %v27
  %v218 = vunpack.c.l.b16 %v28
  %v219 = vunpack.c.l.b16 %v29
  %v220 = vunpack.c.h.b16 %v29
  %v221 = vunpack.c.l.b16 %v30
  %v222 = vunpack.c.h.b16 %v30
  %v223 = vunpack.c.l.b16 %v31
  %v224 = vunpack.c.l.b16 %v32
  %v225 = vunpack.c.h.b16 %v32
  %v226 = vunpack.c.l.b16 %v33
  %v227 = vunpack.c.h.b16 %v33
  %v228 = vunpack.c.l.b16 %v34
  %v229 = vunpack.c.l.b16 %v35
  %v230 = vunpack.c.h.b16 %v35
  %v231 = vunpack.c.l.b16 %v36
  %v232 = vunpack.c.h.b16 %v36
  %v233 = vunpack.c.l.b16 %v37
  %v234 = vunpack.c.l.b16 %v38
  %v235 = vunpack.c.h.b16 %v38
  %v236 = vunpack.c.l.b16 %v39
  %v237 = vunpack.c.h.b16 %v39
  %v238 = vunpack.c.l.b16 %v40
  %v239 = vunpack.c.l.b16 %v41
  %v240 = vunpack.c.h.b16 %v41
  %v241 = vunpack.c.l.b16 %v42
  %v242 = vunpack.c.h.b16 %v42
  %v243 = vunpack.c.l.b16 %v43
  %v244 = vunpack.c.l.b16 %v44
  %v245 = vunpack.c.h.b16 %v44
  %v246 = vunpack.c.l.b16 %v45
  %v247 = vunpack.c.h.b16 %v45
  %v248 = vunpack.c.l.b16 %v46
  %v249 = vunpack.c.l.b16 %v47
  %v250 = vunpack.c.h.b16 %v47
  %v251 = vunpack.c.l.b16 %v48
  %v252 = vunpack.c.h.b16 %v48
  %v253 = vunpack.c.l.b16 %v49
  %v254 = vunpack.c.l.b16 %v50
  %v255 = vunpack.c.h.b16 %v50
  %v256 = vunpack.c.l.b16 %v51
  %v257 = vunpack.c.h.b16 %v51
  %v258 = vunpack.c.l.b16 %v52
  %v259 = vunpack.c.l.b16 %v53
  %v260 = vunpack.c.h.b16 %v53
  %v261 = vunpack.c.l.b16 %v54
  %v262 = vunpack.c.h.b16 %v54
  %v263 = vunpack.c.l.b16 %v55
  %v264 = vunpack.c.l.b16 %v56
  %v265 = vunpack.c.h.b16 %v56
  %v266 = vunpack.c.l.b16 %v57
  %v267 = vunpack.c.h.b16 %v57
  %v268 = vunpack.c.l.b16 %v58
  %v269 = vunpack.c.l.b16 %v59
  %v270 = vunpack.c.h.b16 %v59
  %v271 = vunpack.c.l.b16 %v60
  %v272 = vunpack.c.h.b16 %v60
  %v273 = vunpack.c.l.b16 %v61
  %v274 = vpack.c.b16 %v199, %v194
  %v275 = vpack.c.b16 %v200, %v195
  %v276 = vpack.c.b16 %v201, %v196
  %v277 = vpack.c.b16 %v202, %v197
  %v278 = vpack.c.b16 %v203, %v198
  %v279 = vpack.c.b16 %v209, %v204
  %v280 = vpack.c.b16 %v210, %v205
  %v281 = vpack.c.b16 %v211, %v206
  %v282 = vpack.c.b16 %v212, %v207
  %v283 = vpack.c.b16 %v213, %v208
  %v284 = vpack.c.b16 %v219, %v214
  %v285 = vpack.c.b16 %v220, %v215
  %v286 = vpack.c.b16 %v221, %v216
  %v287 = vpack.c.b16 %v222, %v217
  %v288 = vpack.c.b16 %v223, %v218
  %v289 = vpack.c.b16 %v229, %v224
  %v290 = vpack.c.b16 %v230, %v225
  %v291 = vpack.c.b16 %v231, %v226
  %v292 = vpack.c.b16 %v232, %v227
  %v293 = vpack.c.b16 %v233, %v228
  %v294 = vpack.c.b16 %v239, %v234
  %v295 = vpack.c.b16 %v240, %v235
  %v296 = vpack.c.b16 %v241, %v236
  %v297 = vpack.c.b16 %v242, %v237
  %v298 = vpack.c.b16 %v243, %v238
  %v299 = vpack.c.b16 %v249, %v244
  %v300 = vpack.c.b16 %v250, %v245
  %v301 = vpack.c.b16 %v251, %v246
  %v302 = vpack.c.b16 %v252, %v247
  %v303 = vpack.c.b16 %v253, %v248
  %v304 = vpack.c.b16 %v259, %v254
  %v305 = vpack.c.b16 %v260, %v255
  %v306 = vpack.c.b16 %v261, %v256
  %v307 = vpack.c.b16 %v262, %v257
  %v308 = vpack.c.b16 %v263, %v258
  %v309 = vpack.c.b16 %v269, %v264
  %v310 = vpack.c.b16 %v270, %v265
  %v311 = vpack.c.b16 %v271, %v266
  %v312 = vpack.c.b16 %v272, %v267
  %v313 = vpack.c.b16 %v273, %v268
  %v434 = vunpack.c.l.b16 %v62
  %v435 = vunpack.c.l.b16 %v63
  %v436 = vunpack.c.l.b16 %v64
  %v437 = vunpack.c.l.b16 %v65
  %v438 = vunpack.c.l.b16 %v66
  %v439 = vunpack.c.l.b16 %v67
  %v440 = vunpack.c.l.b16 %v68
  %v441 = vunpack.c.l.b16 %v69
  %v442 = vunpack.c.l.b16 %v70
  %v443 = vunpack.c.l.b16 %v71
  %v444 = vunpack.c.l.b16 %v72
  %v445 = vunpack.c.l.b16 %v73
  %v446 = vunpack.c.l.b16 %v74
  %v447 = vunpack.c.l.b16 %v75
  %v448 = vunpack.c.l.b16 %v76
  %v449 = vunpack.c.l.b16 %v77
  %v450 = vunpack.c.l.b16 %v78
  %v451 = vunpack.c.l.b16 %v79
  %v452 = vunpack.c.l.b16 %v80
  %v453 = vunpack.c.l.b16 %v81
  %v454 = vunpack.c.l.b16 %v82
  %v455 = vunpack.c.l.b16 %v83
  %v456 = vunpack.c.l.b16 %v84
  %v457 = vunpack.c.l.b16 %v85
  %v458 = vunpack.c.l.b16 %v86
  %v459 = vunpack.c.l.b16 %v87
  %v460 = vunpack.c.l.b16 %v88
  %v461 = vunpack.c.l.b16 %v89
  %v462 = vunpack.c.l.b16 %v90
  %v463 = vunpack.c.l.b16 %v91
  %v464 = vunpack.c.l.b16 %v92
  %v465 = vunpack.c.l.b16 %v93
  %v466 = vunpack.c.l.b16 %v94
  %v467 = vunpack.c.l.b16 %v95
  %v468 = vunpack.c.l.b16 %v96
  %v469 = vunpack.c.l.b16 %v97
  %v470 = vunpack.c.l.b16 %v98
  %v471 = vunpack.c.l.b16 %v99
  %v472 = vunpack.c.l.b16 %v100
  %v473 = vunpack.c.l.b16 %v101
  %v474 = vunpack.c.l.b16 %v102
  %v475 = vunpack.c.l.b16 %v103
  %v476 = vunpack.c.l.b16 %v104
  %v477 = vunpack.c.l.b16 %v105
  %v478 = vunpack.c.l.b16 %v106
  %v479 = vunpack.c.l.b16 %v107
  %v480 = vunpack.c.l.b16 %v108
  %v481 = vunpack.c.l.b16 %v109
  %v482 = vunpack.c.l.b16 %v110
  %v483 = vunpack.c.l.b16 %v111
  %v484 = vunpack.c.l.b16 %v112
  %v485 = vunpack.c.l.b16 %v113
  %v486 = vunpack.c.l.b16 %v114
  %v487 = vunpack.c.l.b16 %v115
  %v488 = vunpack.c.l.b16 %v116
  %v489 = vunpack.c.l.b16 %v117
  %v490 = vunpack.c.l.b16 %v118
  %v491 = vunpack.c.l.b16 %v119
  %v492 = vunpack.c.l.b16 %v120
  %v493 = vunpack.c.l.b16 %v121
  %v494 = vunpack.c.l.b16 %v122
  %v495 = vunpack.c.l.b16 %v123
  %v496 = vunpack.c.l.b16 %v124
  %v497 = vunpack.c.l.b16 %v125
  %v498 = vunpack.c.l.b16 %v126
  %v499 = vunpack.c.l.b16 %v127
  %v500 = vunpack.c.l.b16 %v128
  %v501 = vunpack.c.l.b16 %v129
  %v502 = vunpack.c.l.b16 %v130
  %v503 = vunpack.c.l.b16 %v131
  %v504 = vunpack.c.l.b16 %v132
  %v505 = vunpack.c.l.b16 %v133
  %v506 = vunpack.c.l.b16 %v134
  %v507 = vunpack.c.l.b16 %v135
  %v508 = vunpack.c.l.b16 %v136
  %v509 = vunpack.c.l.b16 %v137
  %v510 = vunpack.c.l.b16 %v138
  %v511 = vunpack.c.l.b16 %v139
  %v512 = vunpack.c.l.b16 %v140
  %v513 = vunpack.c.l.b16 %v141
  %v514 = vpack.c.b16 %v435, %v434
  %v515 = vpack.c.b16 %v437, %v436
  %v516 = vpack.c.b16 %v439, %v438
  %v517 = vpack.c.b16 %v441, %v440
  %v518 = vpack.c.b16 %v443, %v442
  %v519 = vpack.c.b16 %v445, %v444
  %v520 = vpack.c.b16 %v447, %v446
  %v521 = vpack.c.b16 %v449, %v448
  %v522 = vpack.c.b16 %v451, %v450
  %v523 = vpack.c.b16 %v453, %v452
  %v524 = vpack.c.b16 %v455, %v454
  %v525 = vpack.c.b16 %v457, %v456
  %v526 = vpack.c.b16 %v459, %v458
  %v527 = vpack.c.b16 %v461, %v460
  %v528 = vpack.c.b16 %v463, %v462
  %v529 = vpack.c.b16 %v465, %v464
  %v530 = vpack.c.b16 %v467, %v466
  %v531 = vpack.c.b16 %v469, %v468
  %v532 = vpack.c.b16 %v471, %v470
  %v533 = vpack.c.b16 %v473, %v472
  %v534 = vpack.c.b16 %v475, %v474
  %v535 = vpack.c.b16 %v477, %v476
  %v536 = vpack.c.b16 %v479, %v478
  %v537 = vpack.c.b16 %v481, %v480
  %v538 = vpack.c.b16 %v483, %v482
  %v539 = vpack.c.b16 %v485, %v484
  %v540 = vpack.c.b16 %v487, %v486
  %v541 = vpack.c.b16 %v489, %v488
  %v542 = vpack.c.b16 %v491, %v490
  %v543 = vpack.c.b16 %v493, %v492
  %v544 = vpack.c.b16 %v495, %v494
  %v545 = vpack.c.b16 %v497, %v496
  %v546 = vpack.c.b16 %v499, %v498
  %v547 = vpack.c.b16 %v501, %v500
  %v548 = vpack.c.b16 %v503, %v502
  %v549 = vpack.c.b16 %v505, %v504
  %v550 = vpack.c.b16 %v507, %v506
  %v551 = vpack.c.b16 %v509, %v508
  %v552 = vpack.c.b16 %v511, %v510
  %v553 = vpack.c.b16 %v513, %v512
  %594 = vmatpush.bf16.msra.mxu0 %v521
  %595 = vmatpush.bf16.msra.mxu0 %v520
  %596 = vmatpush.bf16.msra.mxu0 %v519
  %597 = vmatpush.bf16.msra.mxu0 %v518
  %598 = vmatpush.bf16.msra.mxu0 %v517
  %599 = vmatpush.bf16.msra.mxu0 %v516
  %600 = vmatpush.bf16.msra.mxu0 %v515
  %601 = vmatpush.bf16.msra.mxu0 %v514
  %602 = vmatmul.bf16.gmra.mxu0 %v274
  %v603 = vpop.f32.mrf.mxu0
  %v604 = vadd.f32 %v144, %v603
  %v605 = vpop.f32.mrf.mxu0
  %v606 = vadd.f32 %v144, %v605
  %607 = vmatmul.bf16.gmra.mxu0 %v279
  %v608 = vpop.f32.mrf.mxu0
  %v609 = vadd.f32 %v144, %v608
  %v610 = vpop.f32.mrf.mxu0
  %v611 = vadd.f32 %v144, %v610
  %612 = vmatmul.bf16.gmra.mxu0 %v284
  %v613 = vpop.f32.mrf.mxu0
  %v614 = vadd.f32 %v144, %v613
  %v615 = vpop.f32.mrf.mxu0
  %v616 = vadd.f32 %v144, %v615
  %617 = vmatmul.bf16.gmra.mxu0 %v289
  %v618 = vpop.f32.mrf.mxu0
  %v619 = vadd.f32 %v144, %v618
  %v620 = vpop.f32.mrf.mxu0
  %v621 = vadd.f32 %v144, %v620
  %622 = vmatmul.bf16.gmra.mxu0 %v294
  %v623 = vpop.f32.mrf.mxu0
  %v624 = vadd.f32 %v144, %v623
  %v625 = vpop.f32.mrf.mxu0
  %v626 = vadd.f32 %v144, %v625
  %627 = vmatmul.bf16.gmra.mxu0 %v299
  %v628 = vpop.f32.mrf.mxu0
  %v629 = vadd.f32 %v144, %v628
  %v630 = vpop.f32.mrf.mxu0
  %v631 = vadd.f32 %v144, %v630
  %632 = vmatmul.bf16.gmra.mxu0 %v304
  %v633 = vpop.f32.mrf.mxu0
  %v634 = vadd.f32 %v144, %v633
  %v635 = vpop.f32.mrf.mxu0
  %v636 = vadd.f32 %v144, %v635
  %637 = vmatmul.bf16.gmra.mxu0 %v309
  %v638 = vpop.f32.mrf.mxu0
  %v639 = vadd.f32 %v144, %v638
  %v640 = vpop.f32.mrf.mxu0
  %v641 = vadd.f32 %v144, %v640
  %642 = vdwg.mxu0
  %643 = vmatpush.bf16.msra.mxu0 %v529
  %644 = vmatpush.bf16.msra.mxu0 %v528
  %645 = vmatpush.bf16.msra.mxu0 %v527
  %646 = vmatpush.bf16.msra.mxu0 %v526
  %647 = vmatpush.bf16.msra.mxu0 %v525
  %648 = vmatpush.bf16.msra.mxu0 %v524
  %649 = vmatpush.bf16.msra.mxu0 %v523
  %650 = vmatpush.bf16.msra.mxu0 %v522
  %651 = vmatmul.bf16.gmra.mxu0 %v275
  %v652 = vpop.f32.mrf.mxu0
  %v653 = vadd.f32 %v604, %v652
  %v654 = vpop.f32.mrf.mxu0
  %v655 = vadd.f32 %v606, %v654
  %656 = vmatmul.bf16.gmra.mxu0 %v280
  %v657 = vpop.f32.mrf.mxu0
  %v658 = vadd.f32 %v609, %v657
  %v659 = vpop.f32.mrf.mxu0
  %v660 = vadd.f32 %v611, %v659
  %661 = vmatmul.bf16.gmra.mxu0 %v285
  %v662 = vpop.f32.mrf.mxu0
  %v663 = vadd.f32 %v614, %v662
  %v664 = vpop.f32.mrf.mxu0
  %v665 = vadd.f32 %v616, %v664
  %666 = vmatmul.bf16.gmra.mxu0 %v290
  %v667 = vpop.f32.mrf.mxu0
  %v668 = vadd.f32 %v619, %v667
  %v669 = vpop.f32.mrf.mxu0
  %v670 = vadd.f32 %v621, %v669
  %671 = vmatmul.bf16.gmra.mxu0 %v295
  %v672 = vpop.f32.mrf.mxu0
  %v673 = vadd.f32 %v624, %v672
  %v674 = vpop.f32.mrf.mxu0
  %v675 = vadd.f32 %v626, %v674
  %676 = vmatmul.bf16.gmra.mxu0 %v300
  %v677 = vpop.f32.mrf.mxu0
  %v678 = vadd.f32 %v629, %v677
  %v679 = vpop.f32.mrf.mxu0
  %v680 = vadd.f32 %v631, %v679
  %681 = vmatmul.bf16.gmra.mxu0 %v305
  %v682 = vpop.f32.mrf.mxu0
  %v683 = vadd.f32 %v634, %v682
  %v684 = vpop.f32.mrf.mxu0
  %v685 = vadd.f32 %v636, %v684
  %686 = vmatmul.bf16.gmra.mxu0 %v310
  %v687 = vpop.f32.mrf.mxu0
  %v688 = vadd.f32 %v639, %v687
  %v689 = vpop.f32.mrf.mxu0
  %v690 = vadd.f32 %v641, %v689
  %691 = vdwg.mxu0
  %692 = vmatpush.bf16.msra.mxu0 %v537
  %693 = vmatpush.bf16.msra.mxu0 %v536
  %694 = vmatpush.bf16.msra.mxu0 %v535
  %695 = vmatpush.bf16.msra.mxu0 %v534
  %696 = vmatpush.bf16.msra.mxu0 %v533
  %697 = vmatpush.bf16.msra.mxu0 %v532
  %698 = vmatpush.bf16.msra.mxu0 %v531
  %699 = vmatpush.bf16.msra.mxu0 %v530
  %700 = vmatmul.bf16.gmra.mxu0 %v276
  %v701 = vpop.f32.mrf.mxu0
  %v702 = vadd.f32 %v653, %v701
  %v703 = vpop.f32.mrf.mxu0
  %v704 = vadd.f32 %v655, %v703
  %705 = vmatmul.bf16.gmra.mxu0 %v281
  %v706 = vpop.f32.mrf.mxu0
  %v707 = vadd.f32 %v658, %v706
  %v708 = vpop.f32.mrf.mxu0
  %v709 = vadd.f32 %v660, %v708
  %710 = vmatmul.bf16.gmra.mxu0 %v286
  %v711 = vpop.f32.mrf.mxu0
  %v712 = vadd.f32 %v663, %v711
  %v713 = vpop.f32.mrf.mxu0
  %v714 = vadd.f32 %v665, %v713
  %715 = vmatmul.bf16.gmra.mxu0 %v291
  %v716 = vpop.f32.mrf.mxu0
  %v717 = vadd.f32 %v668, %v716
  %v718 = vpop.f32.mrf.mxu0
  %v719 = vadd.f32 %v670, %v718
  %720 = vmatmul.bf16.gmra.mxu0 %v296
  %v721 = vpop.f32.mrf.mxu0
  %v722 = vadd.f32 %v673, %v721
  %v723 = vpop.f32.mrf.mxu0
  %v724 = vadd.f32 %v675, %v723
  %725 = vmatmul.bf16.gmra.mxu0 %v301
  %v726 = vpop.f32.mrf.mxu0
  %v727 = vadd.f32 %v678, %v726
  %v728 = vpop.f32.mrf.mxu0
  %v729 = vadd.f32 %v680, %v728
  %730 = vmatmul.bf16.gmra.mxu0 %v306
  %v731 = vpop.f32.mrf.mxu0
  %v732 = vadd.f32 %v683, %v731
  %v733 = vpop.f32.mrf.mxu0
  %v734 = vadd.f32 %v685, %v733
  %735 = vmatmul.bf16.gmra.mxu0 %v311
  %v736 = vpop.f32.mrf.mxu0
  %v737 = vadd.f32 %v688, %v736
  %v738 = vpop.f32.mrf.mxu0
  %v739 = vadd.f32 %v690, %v738
  %740 = vdwg.mxu0
  %741 = vmatpush.bf16.msra.mxu0 %v545
  %742 = vmatpush.bf16.msra.mxu0 %v544
  %743 = vmatpush.bf16.msra.mxu0 %v543
  %744 = vmatpush.bf16.msra.mxu0 %v542
  %745 = vmatpush.bf16.msra.mxu0 %v541
  %746 = vmatpush.bf16.msra.mxu0 %v540
  %747 = vmatpush.bf16.msra.mxu0 %v539
  %748 = vmatpush.bf16.msra.mxu0 %v538
  %749 = vmatmul.bf16.gmra.mxu0 %v277
  %v750 = vpop.f32.mrf.mxu0
  %v751 = vadd.f32 %v702, %v750
  %v752 = vpop.f32.mrf.mxu0
  %v753 = vadd.f32 %v704, %v752
  %754 = vmatmul.bf16.gmra.mxu0 %v282
  %v755 = vpop.f32.mrf.mxu0
  %v756 = vadd.f32 %v707, %v755
  %v757 = vpop.f32.mrf.mxu0
  %v758 = vadd.f32 %v709, %v757
  %759 = vmatmul.bf16.gmra.mxu0 %v287
  %v760 = vpop.f32.mrf.mxu0
  %v761 = vadd.f32 %v712, %v760
  %v762 = vpop.f32.mrf.mxu0
  %v763 = vadd.f32 %v714, %v762
  %764 = vmatmul.bf16.gmra.mxu0 %v292
  %v765 = vpop.f32.mrf.mxu0
  %v766 = vadd.f32 %v717, %v765
  %v767 = vpop.f32.mrf.mxu0
  %v768 = vadd.f32 %v719, %v767
  %769 = vmatmul.bf16.gmra.mxu0 %v297
  %v770 = vpop.f32.mrf.mxu0
  %v771 = vadd.f32 %v722, %v770
  %v772 = vpop.f32.mrf.mxu0
  %v773 = vadd.f32 %v724, %v772
  %774 = vmatmul.bf16.gmra.mxu0 %v302
  %v775 = vpop.f32.mrf.mxu0
  %v776 = vadd.f32 %v727, %v775
  %v777 = vpop.f32.mrf.mxu0
  %v778 = vadd.f32 %v729, %v777
  %779 = vmatmul.bf16.gmra.mxu0 %v307
  %v780 = vpop.f32.mrf.mxu0
  %v781 = vadd.f32 %v732, %v780
  %v782 = vpop.f32.mrf.mxu0
  %v783 = vadd.f32 %v734, %v782
  %784 = vmatmul.bf16.gmra.mxu0 %v312
  %v785 = vpop.f32.mrf.mxu0
  %v786 = vadd.f32 %v737, %v785
  %v787 = vpop.f32.mrf.mxu0
  %v788 = vadd.f32 %v739, %v787
  %789 = vdwg.mxu0
  %790 = vmatpush.bf16.msra.mxu0 %v553
  %791 = vmatpush.bf16.msra.mxu0 %v552
  %792 = vmatpush.bf16.msra.mxu0 %v551
  %793 = vmatpush.bf16.msra.mxu0 %v550
  %794 = vmatpush.bf16.msra.mxu0 %v549
  %795 = vmatpush.bf16.msra.mxu0 %v548
  %796 = vmatpush.bf16.msra.mxu0 %v547
  %797 = vmatpush.bf16.msra.mxu0 %v546
  %798 = vmatmul.bf16.gmra.mxu0 %v278
  %v799 = vpop.f32.mrf.mxu0
  %v800 = vadd.f32 %v751, %v799
  %v801 = vpop.f32.mrf.mxu0
  %v802 = vadd.f32 %v753, %v801
  %803 = vmatmul.bf16.gmra.mxu0 %v283
  %v804 = vpop.f32.mrf.mxu0
  %v805 = vadd.f32 %v756, %v804
  %v806 = vpop.f32.mrf.mxu0
  %v807 = vadd.f32 %v758, %v806
  %808 = vmatmul.bf16.gmra.mxu0 %v288
  %v809 = vpop.f32.mrf.mxu0
  %v810 = vadd.f32 %v761, %v809
  %v811 = vpop.f32.mrf.mxu0
  %v812 = vadd.f32 %v763, %v811
  %813 = vmatmul.bf16.gmra.mxu0 %v293
  %v814 = vpop.f32.mrf.mxu0
  %v815 = vadd.f32 %v766, %v814
  %v816 = vpop.f32.mrf.mxu0
  %v817 = vadd.f32 %v768, %v816
  %818 = vmatmul.bf16.gmra.mxu0 %v298
  %v819 = vpop.f32.mrf.mxu0
  %v820 = vadd.f32 %v771, %v819
  %v821 = vpop.f32.mrf.mxu0
  %v822 = vadd.f32 %v773, %v821
  %823 = vmatmul.bf16.gmra.mxu0 %v303
  %v824 = vpop.f32.mrf.mxu0
  %v825 = vadd.f32 %v776, %v824
  %v826 = vpop.f32.mrf.mxu0
  %v827 = vadd.f32 %v778, %v826
  %828 = vmatmul.bf16.gmra.mxu0 %v308
  %v829 = vpop.f32.mrf.mxu0
  %v830 = vadd.f32 %v781, %v829
  %v831 = vpop.f32.mrf.mxu0
  %v832 = vadd.f32 %v783, %v831
  %833 = vmatmul.bf16.gmra.mxu0 %v313
  %v834 = vpop.f32.mrf.mxu0
  %v835 = vadd.f32 %v786, %v834
  %v836 = vpop.f32.mrf.mxu0
  %v837 = vadd.f32 %v788, %v836
  %838 = vdwg.mxu0
  %v839 = vmax.f32 %v800, 0.0
  %v840 = vmax.f32 %v802, 0.0
  %v841 = vmax.f32 %v805, 0.0
  %v842 = vmax.f32 %v807, 0.0
  %v843 = vmax.f32 %v810, 0.0
  %v844 = vmax.f32 %v812, 0.0
  %v845 = vmax.f32 %v815, 0.0
  %v846 = vmax.f32 %v817, 0.0
  %v847 = vmax.f32 %v820, 0.0
  %v848 = vmax.f32 %v822, 0.0
  %v849 = vmax.f32 %v825, 0.0
  %v850 = vmax.f32 %v827, 0.0
  %v851 = vmax.f32 %v830, 0.0
  %v852 = vmax.f32 %v832, 0.0
  %v853 = vmax.f32 %v835, 0.0
  %v854 = vmax.f32 %v837, 0.0
  %v855 = vpack.c.bf16 %v839, %v839
  %v856 = vpack.c.bf16 %v840, %v840
  %v857 = vpack.c.bf16 %v841, %v841
  %v858 = vpack.c.bf16 %v842, %v842
  %v859 = vpack.c.bf16 %v843, %v843
  %v860 = vpack.c.bf16 %v844, %v844
  %v861 = vpack.c.bf16 %v845, %v845
  %v862 = vpack.c.bf16 %v846, %v846
  %v863 = vpack.c.bf16 %v847, %v847
  %v864 = vpack.c.bf16 %v848, %v848
  %v865 = vpack.c.bf16 %v849, %v849
  %v866 = vpack.c.bf16 %v850, %v850
  %v867 = vpack.c.bf16 %v851, %v851
  %v868 = vpack.c.bf16 %v852, %v852
  %v869 = vpack.c.bf16 %v853, %v853
  %v870 = vpack.c.bf16 %v854, %v854
  %871 = vst [vmem:[%s3] sm:$0xf] %v855
  %872 = vst [vmem:[%s3 + $0x4] sm:$0xf] %v856
  %873 = vst [vmem:[%s3 + $0x8] sm:$0xf] %v857
  %874 = vst [vmem:[%s3 + $0xc] sm:$0xf] %v858
  %875 = vst [vmem:[%s3 + $0x10] sm:$0xf] %v859
  %876 = vst [vmem:[%s3 + $0x14] sm:$0xf] %v860
  %877 = vst [vmem:[%s3 + $0x18] sm:$0xf] %v861
  %878 = vst [vmem:[%s3 + $0x1c] sm:$0xf] %v862
  %879 = vst [vmem:[%s3 + $0x20] sm:$0xf] %v863
  %880 = vst [vmem:[%s3 + $0x24] sm:$0xf] %v864
  %881 = vst [vmem:[%s3 + $0x28] sm:$0xf] %v865
  %882 = vst [vmem:[%s3 + $0x2c] sm:$0xf] %v866
  %883 = vst [vmem:[%s3 + $0x30] sm:$0xf] %v867
  %884 = vst [vmem:[%s3 + $0x34] sm:$0xf] %v868
  %885 = vst [vmem:[%s3 + $0x38] sm:$0xf] %v869
  %886 = vst [vmem:[%s3 + $0x3c] sm:$0xf] %v870
  // Predicated region
  $region14: #{resnet_forward.17} parent=0 // pred_check
    _
  $region15: #{resnet_forward.17} parent=0 // pred_check_branch
    %888 = sbr.rel (0) target = $region17
  $region16: #{resnet_forward.17} parent=0 // pred_region
    _
  $region17: #{resnet_forward.17} parent=0 // pred_fallthru
    _
  // Predicated region
  $region18: #{resnet_forward.17} parent=0 // pred_check
    _
  $region19: #{resnet_forward.17} parent=0 // pred_check_branch
    %890 = sbr.rel (0) target = $region21
  $region20: #{resnet_forward.17} parent=0 // pred_region
    _
  $region21: #{resnet_forward.17} parent=0 // pred_fallthru
    _

// kernel: resnet_forward.19
$region0: #{resnet_forward.19}
  #allocation0 [shape = 'u32[]', space=smem, size = 0x4, offset = 0x4, fixed_abs, tag = 'smem constant byte address 0x4 - core index']
  #allocation1 [shape = 'u32[72,128]{1,0:T(1,128)}', space=vmem, size = 0x9000, scoped, tag = 'internal scratch']
  %s0 = inlined_call_operand.vmem [shape: bf16[2,16,128], index: 0, kind: input, shape index: {}]
  %s1 = inlined_call_operand.vmem [shape: f32[128,128], index: 1, kind: input, shape index: {}]
  %s2 = inlined_call_operand.vmem [shape: f32[1,128], index: 2, kind: input, shape index: {}]
  %s3 = inlined_call_operand.hbm [shape: f32[2,128], index: 3, kind: output, shape index: {}]
  %s4 = sld [smem:[#allocation0]]
  $region22: #{resnet_forward.19} parent=0
    _
  %s6 = ssub.s32 1, %s4
  %s7 = scalar_select 0, %s6, %s4
  $region1: #{resnet_forward.19} parent=0
    #allocation2 [shape = 'u8[1024]{0}', space=vmem, size = 0x400, scoped, tag = 'output window, operand 0, single buffered']
    #allocation3 [shape = 's32[1]{0}', space=sflag, size = 0x4, scoped, tag = 'scoped memory for resnet_forward.19']
    %8 = vsyncpa [#allocation3], 0
    // Predicated region
    $region2: #{resnet_forward.19} parent=1 // pred_check
      _
    $region3: #{resnet_forward.19} parent=1 // pred_check_branch
      %10 = sbr.rel (0) target = $region5
    $region4: #{resnet_forward.19} parent=1 // pred_region
      _
    $region5: #{resnet_forward.19} parent=1 // pred_fallthru
      _
    // Predicated region
    $region6: #{resnet_forward.19} parent=1 // pred_check
      _
    $region7: #{resnet_forward.19} parent=1 // pred_check_branch
      %12 = sbr.rel (0) target = $region9
    $region8: #{resnet_forward.19} parent=1 // pred_region
      _
    $region9: #{resnet_forward.19} parent=1 // pred_fallthru
      _
    // Predicated region
    $region10: #{resnet_forward.19} parent=1 // pred_check
      _
    $region11: #{resnet_forward.19} parent=1 // pred_check_branch
      %14 = sbr.rel (0) target = $region13
    $region12: #{resnet_forward.19} parent=1 // pred_region
      _
    $region13: #{resnet_forward.19} parent=1 // pred_fallthru
      _
    %v15 = vld [vmem:[%s0] sm:$0xf]
    %v16 = vld [vmem:[%s0 + $0x4] sm:$0xf]
    %v17 = vld [vmem:[%s0 + $0x8] sm:$0xf]
    %v18 = vld [vmem:[%s0 + $0xc] sm:$0xf]
    %v19 = vunpack.c.l.bf16 %v15
    %v20 = vunpack.c.l.bf16 %v16
    %v21 = vunpack.c.l.bf16 %v17
    %v22 = vunpack.c.l.bf16 %v18
    %v23 = vadd.f32 %v19, %v20
    %v24 = vrot.slane %v23, 4
    %v25 = vadd.f32 %v23, %v24
    %v26 = vrot.slane %v25, 2
    %v27 = vadd.f32 %v25, %v26
    %v28 = vrot.slane %v27, 1
    %v29 = vadd.f32 %v27, %v28
    %v30 = vadd.f32 %v21, %v22
    %v31 = vrot.slane %v30, 4
    %v32 = vadd.f32 %v30, %v31
    %v33 = vrot.slane %v32, 2
    %v34 = vadd.f32 %v32, %v33
    %v35 = vrot.slane %v34, 1
    %v36 = vadd.f32 %v34, %v35
    %v37 = vrcp.pop 16.0
    %v38 = vmul.f32 16.0, %v37
    %v39 = vsub.f32 1.0, %v38
    %v40 = vmul.f32 %v37, %v39
    %v41 = vadd.f32 %v37, %v40
    %vm42 = vweird.f32 %v37
    %v43 = vsel %vm42, %v37, %v41
    %v44 = vmul.f32 %v29, %v43
    %v45 = vmul.f32 %v36, %v43
    %v46 = vld [vmem:[%s1] sm:$0xff]
    %v47 = vld [vmem:[%s1 + $0x8] sm:$0xff]
    %v48 = vld [vmem:[%s1 + $0x10] sm:$0xff]
    %v49 = vld [vmem:[%s1 + $0x18] sm:$0xff]
    %v50 = vld [vmem:[%s1 + $0x20] sm:$0xff]
    %v51 = vld [vmem:[%s1 + $0x28] sm:$0xff]
    %v52 = vld [vmem:[%s1 + $0x30] sm:$0xff]
    %v53 = vld [vmem:[%s1 + $0x38] sm:$0xff]
    %v54 = vld [vmem:[%s1 + $0x40] sm:$0xff]
    %v55 = vld [vmem:[%s1 + $0x48] sm:$0xff]
    %v56 = vld [vmem:[%s1 + $0x50] sm:$0xff]
    %v57 = vld [vmem:[%s1 + $0x58] sm:$0xff]
    %v58 = vld [vmem:[%s1 + $0x60] sm:$0xff]
    %v59 = vld [vmem:[%s1 + $0x68] sm:$0xff]
    %v60 = vld [vmem:[%s1 + $0x70] sm:$0xff]
    %v61 = vld [vmem:[%s1 + $0x78] sm:$0xff]
    %v62 = vld [vmem:[%s2] sm:$0x1]
    %v64 = vperm.slane %v62, 0
    %vm68 = vcmask 1041409
    %v69 = vsel %vm68, %v45, %v44
    %71 = vmatpush.msra.mxu0 %v61
    %72 = vmatpush.msra.mxu0 %v60
    %73 = vmatpush.msra.mxu0 %v59
    %74 = vmatpush.msra.mxu0 %v58
    %75 = vmatpush.msra.mxu0 %v57
    %76 = vmatpush.msra.mxu0 %v56
    %77 = vmatpush.msra.mxu0 %v55
    %78 = vmatpush.msra.mxu0 %v54
    %79 = vmatpush.msra.mxu0 %v53
    %80 = vmatpush.msra.mxu0 %v52
    %81 = vmatpush.msra.mxu0 %v51
    %82 = vmatpush.msra.mxu0 %v50
    %83 = vmatpush.msra.mxu0 %v49
    %84 = vmatpush.msra.mxu0 %v48
    %85 = vmatpush.msra.mxu0 %v47
    %86 = vmatpush.msra.mxu0 %v46
    %87 = vmatmul.f32.gmra.mxu0 %v69
    %v88 = vpop.f32.mrf.mxu0
    %v89 = vadd.f32 %v64, %v88
    %90 = vdwg.mxu0
    %91 = vst [vmem:[#allocation2] sm:$0x3] %v89
    // Predicated region
    $region14: #{resnet_forward.19} parent=1 // pred_check
      _
    $region15: #{resnet_forward.19} parent=1 // pred_check_branch
      %93 = sbr.rel (0) target = $region17
    $region16: #{resnet_forward.19} parent=1 // pred_region
      %95 = vsyncadd [#allocation3], 0
      %s97 = sshll.u32 [#allocation2], 4
      %s98 = int_to_ptr.vmem [resolvable:$true] %s97
      %s99 = sshll.u32 %s3, 4
      %s100 = int_to_ptr.hbm [resolvable:$true] %s99
      %102 = dma.vmem_to_hbm [thread:$0]  %s98, 32, %s100, [#allocation3]
    $region17: #{resnet_forward.19} parent=1 // pred_fallthru
      _
    // Predicated region
    $region18: #{resnet_forward.19} parent=1 // pred_check
      _
    $region19: #{resnet_forward.19} parent=1 // pred_check_branch
      %104 = sbr.rel (0) target = $region21
    $region20: #{resnet_forward.19} parent=1 // pred_region
      %106 = dma.done [#allocation3], 32
    $region21: #{resnet_forward.19} parent=1 // pred_fallthru
      _
    %107 = vsyncpa [#allocation3], 1

// kernel: resnet_forward.18
$region0: #{resnet_forward.18}
  #allocation0 [shape = 'u32[]', space=smem, size = 0x4, offset = 0x4, fixed_abs, tag = 'smem constant byte address 0x4 - core index']
  #allocation1 [shape = 'u32[72,128]{1,0:T(1,128)}', space=vmem, size = 0x9000, scoped, tag = 'internal scratch']
  %s0 = inlined_call_operand.vmem [shape: bf16[32,1152], index: 0, kind: input, shape index: {}]
  %s1 = inlined_call_operand.vmem [shape: bf16[1152,128], index: 1, kind: input, shape index: {}]
  %s2 = inlined_call_operand.vmem [shape: f32[1,128], index: 2, kind: input, shape index: {}]
  %s3 = inlined_call_operand.vmem [shape: bf16[32,128], index: 3, kind: input, shape index: {}]
  %s4 = inlined_call_operand.vmem [shape: bf16[128,128], index: 4, kind: input, shape index: {}]
  %s5 = inlined_call_operand.vmem [shape: f32[1,128], index: 5, kind: input, shape index: {}]
  %s6 = inlined_call_operand.vmem [shape: bf16[32,128], index: 6, kind: output, shape index: {}]
  %s7 = sld [smem:[#allocation0]]
  $region34: #{resnet_forward.18} parent=0
    _
  %s9 = ssub.s32 1, %s7
  %s10 = scalar_select 0, %s9, %s7
  // Predicated region
  $region2: #{resnet_forward.18} parent=0 // pred_check
    _
  $region3: #{resnet_forward.18} parent=0 // pred_check_branch
    %12 = sbr.rel (0) target = $region5
  $region4: #{resnet_forward.18} parent=0 // pred_region
    _
  $region5: #{resnet_forward.18} parent=0 // pred_fallthru
    _
  // Predicated region
  $region6: #{resnet_forward.18} parent=0 // pred_check
    _
  $region7: #{resnet_forward.18} parent=0 // pred_check_branch
    %14 = sbr.rel (0) target = $region9
  $region8: #{resnet_forward.18} parent=0 // pred_region
    _
  $region9: #{resnet_forward.18} parent=0 // pred_fallthru
    _
  // Predicated region
  $region10: #{resnet_forward.18} parent=0 // pred_check
    _
  $region11: #{resnet_forward.18} parent=0 // pred_check_branch
    %16 = sbr.rel (0) target = $region13
  $region12: #{resnet_forward.18} parent=0 // pred_region
    _
  $region13: #{resnet_forward.18} parent=0 // pred_fallthru
    _
  // Predicated region
  $region14: #{resnet_forward.18} parent=0 // pred_check
    _
  $region15: #{resnet_forward.18} parent=0 // pred_check_branch
    %18 = sbr.rel (0) target = $region17
  $region16: #{resnet_forward.18} parent=0 // pred_region
    _
  $region17: #{resnet_forward.18} parent=0 // pred_fallthru
    _
  // Predicated region
  $region18: #{resnet_forward.18} parent=0 // pred_check
    _
  $region19: #{resnet_forward.18} parent=0 // pred_check_branch
    %20 = sbr.rel (0) target = $region21
  $region20: #{resnet_forward.18} parent=0 // pred_region
    _
  $region21: #{resnet_forward.18} parent=0 // pred_fallthru
    _
  // Predicated region
  $region22: #{resnet_forward.18} parent=0 // pred_check
    _
  $region23: #{resnet_forward.18} parent=0 // pred_check_branch
    %22 = sbr.rel (0) target = $region25
  $region24: #{resnet_forward.18} parent=0 // pred_region
    _
  $region25: #{resnet_forward.18} parent=0 // pred_fallthru
    _
  %v23 = vld [vmem:[%s0] sm:$0xff]
  %v24 = vld [vmem:[%s0 + $0x8] sm:$0xff]
  %v25 = vld [vmem:[%s0 + $0x10] sm:$0xff]
  %v26 = vld [vmem:[%s0 + $0x18] sm:$0xff]
  %v27 = vld [vmem:[%s0 + $0x20] sm:$0xf]
  %v28 = vld [vmem:[%s0 + $0x24] sm:$0xff]
  %v29 = vld [vmem:[%s0 + $0x2c] sm:$0xff]
  %v30 = vld [vmem:[%s0 + $0x34] sm:$0xff]
  %v31 = vld [vmem:[%s0 + $0x3c] sm:$0xff]
  %v32 = vld [vmem:[%s0 + $0x44] sm:$0xf]
  %v33 = vld [vmem:[%s0 + $0x48] sm:$0xff]
  %v34 = vld [vmem:[%s0 + $0x50] sm:$0xff]
  %v35 = vld [vmem:[%s0 + $0x58] sm:$0xff]
  %v36 = vld [vmem:[%s0 + $0x60] sm:$0xff]
  %v37 = vld [vmem:[%s0 + $0x68] sm:$0xf]
  %v38 = vld [vmem:[%s0 + $0x6c] sm:$0xff]
  %v39 = vld [vmem:[%s0 + $0x74] sm:$0xff]
  %v40 = vld [vmem:[%s0 + $0x7c] sm:$0xff]
  %v41 = vld [vmem:[%s0 + $0x84] sm:$0xff]
  %v42 = vld [vmem:[%s0 + $0x8c] sm:$0xf]
  %v43 = vld [vmem:[%s1] sm:$0xf]
  %v44 = vld [vmem:[%s1 + $0x4] sm:$0xf]
  %v45 = vld [vmem:[%s1 + $0x8] sm:$0xf]
  %v46 = vld [vmem:[%s1 + $0xc] sm:$0xf]
  %v47 = vld [vmem:[%s1 + $0x10] sm:$0xf]
  %v48 = vld [vmem:[%s1 + $0x14] sm:$0xf]
  %v49 = vld [vmem:[%s1 + $0x18] sm:$0xf]
  %v50 = vld [vmem:[%s1 + $0x1c] sm:$0xf]
  %v51 = vld [vmem:[%s1 + $0x20] sm:$0xf]
  %v52 = vld [vmem:[%s1 + $0x24] sm:$0xf]
  %v53 = vld [vmem:[%s1 + $0x28] sm:$0xf]
  %v54 = vld [vmem:[%s1 + $0x2c] sm:$0xf]
  %v55 = vld [vmem:[%s1 + $0x30] sm:$0xf]
  %v56 = vld [vmem:[%s1 + $0x34] sm:$0xf]
  %v57 = vld [vmem:[%s1 + $0x38] sm:$0xf]
  %v58 = vld [vmem:[%s1 + $0x3c] sm:$0xf]
  %v59 = vld [vmem:[%s1 + $0x40] sm:$0xf]
  %v60 = vld [vmem:[%s1 + $0x44] sm:$0xf]
  %v61 = vld [vmem:[%s1 + $0x48] sm:$0xf]
  %v62 = vld [vmem:[%s1 + $0x4c] sm:$0xf]
  %v63 = vld [vmem:[%s1 + $0x50] sm:$0xf]
  %v64 = vld [vmem:[%s1 + $0x54] sm:$0xf]
  %v65 = vld [vmem:[%s1 + $0x58] sm:$0xf]
  %v66 = vld [vmem:[%s1 + $0x5c] sm:$0xf]
  %v67 = vld [vmem:[%s1 + $0x60] sm:$0xf]
  %v68 = vld [vmem:[%s1 + $0x64] sm:$0xf]
  %v69 = vld [vmem:[%s1 + $0x68] sm:$0xf]
  %v70 = vld [vmem:[%s1 + $0x6c] sm:$0xf]
  %v71 = vld [vmem:[%s1 + $0x70] sm:$0xf]
  %v72 = vld [vmem:[%s1 + $0x74] sm:$0xf]
  %v73 = vld [vmem:[%s1 + $0x78] sm:$0xf]
  %v74 = vld [vmem:[%s1 + $0x7c] sm:$0xf]
  %v75 = vld [vmem:[%s1 + $0x80] sm:$0xf]
  %v76 = vld [vmem:[%s1 + $0x84] sm:$0xf]
  %v77 = vld [vmem:[%s1 + $0x88] sm:$0xf]
  %v78 = vld [vmem:[%s1 + $0x8c] sm:$0xf]
  %v79 = vld [vmem:[%s1 + $0x90] sm:$0xf]
  %v80 = vld [vmem:[%s1 + $0x94] sm:$0xf]
  %v81 = vld [vmem:[%s1 + $0x98] sm:$0xf]
  %v82 = vld [vmem:[%s1 + $0x9c] sm:$0xf]
  %v83 = vld [vmem:[%s1 + $0xa0] sm:$0xf]
  %v84 = vld [vmem:[%s1 + $0xa4] sm:$0xf]
  %v85 = vld [vmem:[%s1 + $0xa8] sm:$0xf]
  %v86 = vld [vmem:[%s1 + $0xac] sm:$0xf]
  %v87 = vld [vmem:[%s1 + $0xb0] sm:$0xf]
  %v88 = vld [vmem:[%s1 + $0xb4] sm:$0xf]
  %v89 = vld [vmem:[%s1 + $0xb8] sm:$0xf]
  %v90 = vld [vmem:[%s1 + $0xbc] sm:$0xf]
  %v91 = vld [vmem:[%s1 + $0xc0] sm:$0xf]
  %v92 = vld [vmem:[%s1 + $0xc4] sm:$0xf]
  %v93 = vld [vmem:[%s1 + $0xc8] sm:$0xf]
  %v94 = vld [vmem:[%s1 + $0xcc] sm:$0xf]
  %v95 = vld [vmem:[%s1 + $0xd0] sm:$0xf]
  %v96 = vld [vmem:[%s1 + $0xd4] sm:$0xf]
  %v97 = vld [vmem:[%s1 + $0xd8] sm:$0xf]
  %v98 = vld [vmem:[%s1 + $0xdc] sm:$0xf]
  %v99 = vld [vmem:[%s1 + $0xe0] sm:$0xf]
  %v100 = vld [vmem:[%s1 + $0xe4] sm:$0xf]
  %v101 = vld [vmem:[%s1 + $0xe8] sm:$0xf]
  %v102 = vld [vmem:[%s1 + $0xec] sm:$0xf]
  %v103 = vld [vmem:[%s1 + $0xf0] sm:$0xf]
  %v104 = vld [vmem:[%s1 + $0xf4] sm:$0xf]
  %v105 = vld [vmem:[%s1 + $0xf8] sm:$0xf]
  %v106 = vld [vmem:[%s1 + $0xfc] sm:$0xf]
  %v107 = vld [vmem:[%s1 + $0x100] sm:$0xf]
  %v108 = vld [vmem:[%s1 + $0x104] sm:$0xf]
  %v109 = vld [vmem:[%s1 + $0x108] sm:$0xf]
  %v110 = vld [vmem:[%s1 + $0x10c] sm:$0xf]
  %v111 = vld [vmem:[%s1 + $0x110] sm:$0xf]
  %v112 = vld [vmem:[%s1 + $0x114] sm:$0xf]
  %v113 = vld [vmem:[%s1 + $0x118] sm:$0xf]
  %v114 = vld [vmem:[%s1 + $0x11c] sm:$0xf]
  %v115 = vld [vmem:[%s1 + $0x120] sm:$0xf]
  %v116 = vld [vmem:[%s1 + $0x124] sm:$0xf]
  %v117 = vld [vmem:[%s1 + $0x128] sm:$0xf]
  %v118 = vld [vmem:[%s1 + $0x12c] sm:$0xf]
  %v119 = vld [vmem:[%s1 + $0x130] sm:$0xf]
  %v120 = vld [vmem:[%s1 + $0x134] sm:$0xf]
  %v121 = vld [vmem:[%s1 + $0x138] sm:$0xf]
  %v122 = vld [vmem:[%s1 + $0x13c] sm:$0xf]
  %v123 = vld [vmem:[%s1 + $0x140] sm:$0xf]
  %v124 = vld [vmem:[%s1 + $0x144] sm:$0xf]
  %v125 = vld [vmem:[%s1 + $0x148] sm:$0xf]
  %v126 = vld [vmem:[%s1 + $0x14c] sm:$0xf]
  %v127 = vld [vmem:[%s1 + $0x150] sm:$0xf]
  %v128 = vld [vmem:[%s1 + $0x154] sm:$0xf]
  %v129 = vld [vmem:[%s1 + $0x158] sm:$0xf]
  %v130 = vld [vmem:[%s1 + $0x15c] sm:$0xf]
  %v131 = vld [vmem:[%s1 + $0x160] sm:$0xf]
  %v132 = vld [vmem:[%s1 + $0x164] sm:$0xf]
  %v133 = vld [vmem:[%s1 + $0x168] sm:$0xf]
  %v134 = vld [vmem:[%s1 + $0x16c] sm:$0xf]
  %v135 = vld [vmem:[%s1 + $0x170] sm:$0xf]
  %v136 = vld [vmem:[%s1 + $0x174] sm:$0xf]
  %v137 = vld [vmem:[%s1 + $0x178] sm:$0xf]
  %v138 = vld [vmem:[%s1 + $0x17c] sm:$0xf]
  %v139 = vld [vmem:[%s1 + $0x180] sm:$0xf]
  %v140 = vld [vmem:[%s1 + $0x184] sm:$0xf]
  %v141 = vld [vmem:[%s1 + $0x188] sm:$0xf]
  %v142 = vld [vmem:[%s1 + $0x18c] sm:$0xf]
  %v143 = vld [vmem:[%s1 + $0x190] sm:$0xf]
  %v144 = vld [vmem:[%s1 + $0x194] sm:$0xf]
  %v145 = vld [vmem:[%s1 + $0x198] sm:$0xf]
  %v146 = vld [vmem:[%s1 + $0x19c] sm:$0xf]
  %v147 = vld [vmem:[%s1 + $0x1a0] sm:$0xf]
  %v148 = vld [vmem:[%s1 + $0x1a4] sm:$0xf]
  %v149 = vld [vmem:[%s1 + $0x1a8] sm:$0xf]
  %v150 = vld [vmem:[%s1 + $0x1ac] sm:$0xf]
  %v151 = vld [vmem:[%s1 + $0x1b0] sm:$0xf]
  %v152 = vld [vmem:[%s1 + $0x1b4] sm:$0xf]
  %v153 = vld [vmem:[%s1 + $0x1b8] sm:$0xf]
  %v154 = vld [vmem:[%s1 + $0x1bc] sm:$0xf]
  %v155 = vld [vmem:[%s1 + $0x1c0] sm:$0xf]
  %v156 = vld [vmem:[%s1 + $0x1c4] sm:$0xf]
  %v157 = vld [vmem:[%s1 + $0x1c8] sm:$0xf]
  %v158 = vld [vmem:[%s1 + $0x1cc] sm:$0xf]
  %v159 = vld [vmem:[%s1 + $0x1d0] sm:$0xf]
  %v160 = vld [vmem:[%s1 + $0x1d4] sm:$0xf]
  %v161 = vld [vmem:[%s1 + $0x1d8] sm:$0xf]
  %v162 = vld [vmem:[%s1 + $0x1dc] sm:$0xf]
  %v163 = vld [vmem:[%s1 + $0x1e0] sm:$0xf]
  %v164 = vld [vmem:[%s1 + $0x1e4] sm:$0xf]
  %v165 = vld [vmem:[%s1 + $0x1e8] sm:$0xf]
  %v166 = vld [vmem:[%s1 + $0x1ec] sm:$0xf]
  %v167 = vld [vmem:[%s1 + $0x1f0] sm:$0xf]
  %v168 = vld [vmem:[%s1 + $0x1f4] sm:$0xf]
  %v169 = vld [vmem:[%s1 + $0x1f8] sm:$0xf]
  %v170 = vld [vmem:[%s1 + $0x1fc] sm:$0xf]
  %v171 = vld [vmem:[%s1 + $0x200] sm:$0xf]
  %v172 = vld [vmem:[%s1 + $0x204] sm:$0xf]
  %v173 = vld [vmem:[%s1 + $0x208] sm:$0xf]
  %v174 = vld [vmem:[%s1 + $0x20c] sm:$0xf]
  %v175 = vld [vmem:[%s1 + $0x210] sm:$0xf]
  %v176 = vld [vmem:[%s1 + $0x214] sm:$0xf]
  %v177 = vld [vmem:[%s1 + $0x218] sm:$0xf]
  %v178 = vld [vmem:[%s1 + $0x21c] sm:$0xf]
  %v179 = vld [vmem:[%s1 + $0x220] sm:$0xf]
  %v180 = vld [vmem:[%s1 + $0x224] sm:$0xf]
  %v181 = vld [vmem:[%s1 + $0x228] sm:$0xf]
  %v182 = vld [vmem:[%s1 + $0x22c] sm:$0xf]
  %v183 = vld [vmem:[%s1 + $0x230] sm:$0xf]
  %v184 = vld [vmem:[%s1 + $0x234] sm:$0xf]
  %v185 = vld [vmem:[%s1 + $0x238] sm:$0xf]
  %v186 = vld [vmem:[%s1 + $0x23c] sm:$0xf]
  %v187 = vld [vmem:[%s3] sm:$0xf]
  %v188 = vld [vmem:[%s3 + $0x4] sm:$0xf]
  %v189 = vld [vmem:[%s3 + $0x8] sm:$0xf]
  %v190 = vld [vmem:[%s3 + $0xc] sm:$0xf]
  %v191 = vld [vmem:[%s4] sm:$0xf]
  %v192 = vld [vmem:[%s4 + $0x4] sm:$0xf]
  %v193 = vld [vmem:[%s4 + $0x8] sm:$0xf]
  %v194 = vld [vmem:[%s4 + $0xc] sm:$0xf]
  %v195 = vld [vmem:[%s4 + $0x10] sm:$0xf]
  %v196 = vld [vmem:[%s4 + $0x14] sm:$0xf]
  %v197 = vld [vmem:[%s4 + $0x18] sm:$0xf]
  %v198 = vld [vmem:[%s4 + $0x1c] sm:$0xf]
  %v199 = vld [vmem:[%s4 + $0x20] sm:$0xf]
  %v200 = vld [vmem:[%s4 + $0x24] sm:$0xf]
  %v201 = vld [vmem:[%s4 + $0x28] sm:$0xf]
  %v202 = vld [vmem:[%s4 + $0x2c] sm:$0xf]
  %v203 = vld [vmem:[%s4 + $0x30] sm:$0xf]
  %v204 = vld [vmem:[%s4 + $0x34] sm:$0xf]
  %v205 = vld [vmem:[%s4 + $0x38] sm:$0xf]
  %v206 = vld [vmem:[%s4 + $0x3c] sm:$0xf]
  %v211 = vunpack.c.l.b16 %v187
  %v212 = vunpack.c.l.b16 %v188
  %v213 = vunpack.c.l.b16 %v189
  %v214 = vunpack.c.l.b16 %v190
  %v215 = vpack.c.b16 %v212, %v211
  %v216 = vpack.c.b16 %v214, %v213
  %v235 = vunpack.c.l.b16 %v191
  %v236 = vunpack.c.l.b16 %v192
  %v237 = vunpack.c.l.b16 %v193
  %v238 = vunpack.c.l.b16 %v194
  %v239 = vunpack.c.l.b16 %v195
  %v240 = vunpack.c.l.b16 %v196
  %v241 = vunpack.c.l.b16 %v197
  %v242 = vunpack.c.l.b16 %v198
  %v243 = vunpack.c.l.b16 %v199
  %v244 = vunpack.c.l.b16 %v200
  %v245 = vunpack.c.l.b16 %v201
  %v246 = vunpack.c.l.b16 %v202
  %v247 = vunpack.c.l.b16 %v203
  %v248 = vunpack.c.l.b16 %v204
  %v249 = vunpack.c.l.b16 %v205
  %v250 = vunpack.c.l.b16 %v206
  %v251 = vpack.c.b16 %v236, %v235
  %v252 = vpack.c.b16 %v238, %v237
  %v253 = vpack.c.b16 %v240, %v239
  %v254 = vpack.c.b16 %v242, %v241
  %v255 = vpack.c.b16 %v244, %v243
  %v256 = vpack.c.b16 %v246, %v245
  %v257 = vpack.c.b16 %v248, %v247
  %v258 = vpack.c.b16 %v250, %v249
  %267 = vmatpush.bf16.msra.mxu0 %v258
  %268 = vmatpush.bf16.msra.mxu0 %v257
  %269 = vmatpush.bf16.msra.mxu0 %v256
  %270 = vmatpush.bf16.msra.mxu0 %v255
  %271 = vmatpush.bf16.msra.mxu0 %v254
  %272 = vmatpush.bf16.msra.mxu0 %v253
  %273 = vmatpush.bf16.msra.mxu0 %v252
  %274 = vmatpush.bf16.msra.mxu0 %v251
  %275 = vmatmul.bf16.gmra.mxu0 %v215
  %v276 = vpop.f32.mrf.mxu0
  %v277 = vadd.f32 0.0, %v276
  %v278 = vpop.f32.mrf.mxu0
  %v279 = vadd.f32 0.0, %v278
  %280 = vmatmul.bf16.gmra.mxu0 %v216
  %v281 = vpop.f32.mrf.mxu0
  %v282 = vadd.f32 0.0, %v281
  %v283 = vpop.f32.mrf.mxu0
  %v284 = vadd.f32 0.0, %v283
  %285 = vdwg.mxu0
  %v286 = vld [vmem:[%s2] sm:$0x1]
  %v288 = vperm.slane %v286, 0
  %v310 = vunpack.c.l.b16 %v23
  %v311 = vunpack.c.h.b16 %v23
  %v312 = vunpack.c.l.b16 %v24
  %v313 = vunpack.c.h.b16 %v24
  %v314 = vunpack.c.l.b16 %v25
  %v315 = vunpack.c.h.b16 %v25
  %v316 = vunpack.c.l.b16 %v26
  %v317 = vunpack.c.h.b16 %v26
  %v318 = vunpack.c.l.b16 %v27
  %v319 = vunpack.c.l.b16 %v28
  %v320 = vunpack.c.h.b16 %v28
  %v321 = vunpack.c.l.b16 %v29
  %v322 = vunpack.c.h.b16 %v29
  %v323 = vunpack.c.l.b16 %v30
  %v324 = vunpack.c.h.b16 %v30
  %v325 = vunpack.c.l.b16 %v31
  %v326 = vunpack.c.h.b16 %v31
  %v327 = vunpack.c.l.b16 %v32
  %v328 = vunpack.c.l.b16 %v33
  %v329 = vunpack.c.h.b16 %v33
  %v330 = vunpack.c.l.b16 %v34
  %v331 = vunpack.c.h.b16 %v34
  %v332 = vunpack.c.l.b16 %v35
  %v333 = vunpack.c.h.b16 %v35
  %v334 = vunpack.c.l.b16 %v36
  %v335 = vunpack.c.h.b16 %v36
  %v336 = vunpack.c.l.b16 %v37
  %v337 = vunpack.c.l.b16 %v38
  %v338 = vunpack.c.h.b16 %v38
  %v339 = vunpack.c.l.b16 %v39
  %v340 = vunpack.c.h.b16 %v39
  %v341 = vunpack.c.l.b16 %v40
  %v342 = vunpack.c.h.b16 %v40
  %v343 = vunpack.c.l.b16 %v41
  %v344 = vunpack.c.h.b16 %v41
  %v345 = vunpack.c.l.b16 %v42
  %v346 = vpack.c.b16 %v319, %v310
  %v347 = vpack.c.b16 %v320, %v311
  %v348 = vpack.c.b16 %v321, %v312
  %v349 = vpack.c.b16 %v322, %v313
  %v350 = vpack.c.b16 %v323, %v314
  %v351 = vpack.c.b16 %v324, %v315
  %v352 = vpack.c.b16 %v325, %v316
  %v353 = vpack.c.b16 %v326, %v317
  %v354 = vpack.c.b16 %v327, %v318
  %v355 = vpack.c.b16 %v337, %v328
  %v356 = vpack.c.b16 %v338, %v329
  %v357 = vpack.c.b16 %v339, %v330
  %v358 = vpack.c.b16 %v340, %v331
  %v359 = vpack.c.b16 %v341, %v332
  %v360 = vpack.c.b16 %v342, %v333
  %v361 = vpack.c.b16 %v343, %v334
  %v362 = vpack.c.b16 %v344, %v335
  %v363 = vpack.c.b16 %v345, %v336
  %v526 = vunpack.c.l.b16 %v43
  %v527 = vunpack.c.l.b16 %v44
  %v528 = vunpack.c.l.b16 %v45
  %v529 = vunpack.c.l.b16 %v46
  %v530 = vunpack.c.l.b16 %v47
  %v531 = vunpack.c.l.b16 %v48
  %v532 = vunpack.c.l.b16 %v49
  %v533 = vunpack.c.l.b16 %v50
  %v534 = vunpack.c.l.b16 %v51
  %v535 = vunpack.c.l.b16 %v52
  %v536 = vunpack.c.l.b16 %v53
  %v537 = vunpack.c.l.b16 %v54
  %v538 = vunpack.c.l.b16 %v55
  %v539 = vunpack.c.l.b16 %v56
  %v540 = vunpack.c.l.b16 %v57
  %v541 = vunpack.c.l.b16 %v58
  %v542 = vunpack.c.l.b16 %v59
  %v543 = vunpack.c.l.b16 %v60
  %v544 = vunpack.c.l.b16 %v61
  %v545 = vunpack.c.l.b16 %v62
  %v546 = vunpack.c.l.b16 %v63
  %v547 = vunpack.c.l.b16 %v64
  %v548 = vunpack.c.l.b16 %v65
  %v549 = vunpack.c.l.b16 %v66
  %v550 = vunpack.c.l.b16 %v67
  %v551 = vunpack.c.l.b16 %v68
  %v552 = vunpack.c.l.b16 %v69
  %v553 = vunpack.c.l.b16 %v70
  %v554 = vunpack.c.l.b16 %v71
  %v555 = vunpack.c.l.b16 %v72
  %v556 = vunpack.c.l.b16 %v73
  %v557 = vunpack.c.l.b16 %v74
  %v558 = vunpack.c.l.b16 %v75
  %v559 = vunpack.c.l.b16 %v76
  %v560 = vunpack.c.l.b16 %v77
  %v561 = vunpack.c.l.b16 %v78
  %v562 = vunpack.c.l.b16 %v79
  %v563 = vunpack.c.l.b16 %v80
  %v564 = vunpack.c.l.b16 %v81
  %v565 = vunpack.c.l.b16 %v82
  %v566 = vunpack.c.l.b16 %v83
  %v567 = vunpack.c.l.b16 %v84
  %v568 = vunpack.c.l.b16 %v85
  %v569 = vunpack.c.l.b16 %v86
  %v570 = vunpack.c.l.b16 %v87
  %v571 = vunpack.c.l.b16 %v88
  %v572 = vunpack.c.l.b16 %v89
  %v573 = vunpack.c.l.b16 %v90
  %v574 = vunpack.c.l.b16 %v91
  %v575 = vunpack.c.l.b16 %v92
  %v576 = vunpack.c.l.b16 %v93
  %v577 = vunpack.c.l.b16 %v94
  %v578 = vunpack.c.l.b16 %v95
  %v579 = vunpack.c.l.b16 %v96
  %v580 = vunpack.c.l.b16 %v97
  %v581 = vunpack.c.l.b16 %v98
  %v582 = vunpack.c.l.b16 %v99
  %v583 = vunpack.c.l.b16 %v100
  %v584 = vunpack.c.l.b16 %v101
  %v585 = vunpack.c.l.b16 %v102
  %v586 = vunpack.c.l.b16 %v103
  %v587 = vunpack.c.l.b16 %v104
  %v588 = vunpack.c.l.b16 %v105
  %v589 = vunpack.c.l.b16 %v106
  %v590 = vunpack.c.l.b16 %v107
  %v591 = vunpack.c.l.b16 %v108
  %v592 = vunpack.c.l.b16 %v109
  %v593 = vunpack.c.l.b16 %v110
  %v594 = vunpack.c.l.b16 %v111
  %v595 = vunpack.c.l.b16 %v112
  %v596 = vunpack.c.l.b16 %v113
  %v597 = vunpack.c.l.b16 %v114
  %v598 = vunpack.c.l.b16 %v115
  %v599 = vunpack.c.l.b16 %v116
  %v600 = vunpack.c.l.b16 %v117
  %v601 = vunpack.c.l.b16 %v118
  %v602 = vunpack.c.l.b16 %v119
  %v603 = vunpack.c.l.b16 %v120
  %v604 = vunpack.c.l.b16 %v121
  %v605 = vunpack.c.l.b16 %v122
  %v606 = vunpack.c.l.b16 %v123
  %v607 = vunpack.c.l.b16 %v124
  %v608 = vunpack.c.l.b16 %v125
  %v609 = vunpack.c.l.b16 %v126
  %v610 = vunpack.c.l.b16 %v127
  %v611 = vunpack.c.l.b16 %v128
  %v612 = vunpack.c.l.b16 %v129
  %v613 = vunpack.c.l.b16 %v130
  %v614 = vunpack.c.l.b16 %v131
  %v615 = vunpack.c.l.b16 %v132
  %v616 = vunpack.c.l.b16 %v133
  %v617 = vunpack.c.l.b16 %v134
  %v618 = vunpack.c.l.b16 %v135
  %v619 = vunpack.c.l.b16 %v136
  %v620 = vunpack.c.l.b16 %v137
  %v621 = vunpack.c.l.b16 %v138
  %v622 = vunpack.c.l.b16 %v139
  %v623 = vunpack.c.l.b16 %v140
  %v624 = vunpack.c.l.b16 %v141
  %v625 = vunpack.c.l.b16 %v142
  %v626 = vunpack.c.l.b16 %v143
  %v627 = vunpack.c.l.b16 %v144
  %v628 = vunpack.c.l.b16 %v145
  %v629 = vunpack.c.l.b16 %v146
  %v630 = vunpack.c.l.b16 %v147
  %v631 = vunpack.c.l.b16 %v148
  %v632 = vunpack.c.l.b16 %v149
  %v633 = vunpack.c.l.b16 %v150
  %v634 = vunpack.c.l.b16 %v151
  %v635 = vunpack.c.l.b16 %v152
  %v636 = vunpack.c.l.b16 %v153
  %v637 = vunpack.c.l.b16 %v154
  %v638 = vunpack.c.l.b16 %v155
  %v639 = vunpack.c.l.b16 %v156
  %v640 = vunpack.c.l.b16 %v157
  %v641 = vunpack.c.l.b16 %v158
  %v642 = vunpack.c.l.b16 %v159
  %v643 = vunpack.c.l.b16 %v160
  %v644 = vunpack.c.l.b16 %v161
  %v645 = vunpack.c.l.b16 %v162
  %v646 = vunpack.c.l.b16 %v163
  %v647 = vunpack.c.l.b16 %v164
  %v648 = vunpack.c.l.b16 %v165
  %v649 = vunpack.c.l.b16 %v166
  %v650 = vunpack.c.l.b16 %v167
  %v651 = vunpack.c.l.b16 %v168
  %v652 = vunpack.c.l.b16 %v169
  %v653 = vunpack.c.l.b16 %v170
  %v654 = vunpack.c.l.b16 %v171
  %v655 = vunpack.c.l.b16 %v172
  %v656 = vunpack.c.l.b16 %v173
  %v657 = vunpack.c.l.b16 %v174
  %v658 = vunpack.c.l.b16 %v175
  %v659 = vunpack.c.l.b16 %v176
  %v660 = vunpack.c.l.b16 %v177
  %v661 = vunpack.c.l.b16 %v178
  %v662 = vunpack.c.l.b16 %v179
  %v663 = vunpack.c.l.b16 %v180
  %v664 = vunpack.c.l.b16 %v181
  %v665 = vunpack.c.l.b16 %v182
  %v666 = vunpack.c.l.b16 %v183
  %v667 = vunpack.c.l.b16 %v184
  %v668 = vunpack.c.l.b16 %v185
  %v669 = vunpack.c.l.b16 %v186
  %v670 = vpack.c.b16 %v527, %v526
  %v671 = vpack.c.b16 %v529, %v528
  %v672 = vpack.c.b16 %v531, %v530
  %v673 = vpack.c.b16 %v533, %v532
  %v674 = vpack.c.b16 %v535, %v534
  %v675 = vpack.c.b16 %v537, %v536
  %v676 = vpack.c.b16 %v539, %v538
  %v677 = vpack.c.b16 %v541, %v540
  %v678 = vpack.c.b16 %v543, %v542
  %v679 = vpack.c.b16 %v545, %v544
  %v680 = vpack.c.b16 %v547, %v546
  %v681 = vpack.c.b16 %v549, %v548
  %v682 = vpack.c.b16 %v551, %v550
  %v683 = vpack.c.b16 %v553, %v552
  %v684 = vpack.c.b16 %v555, %v554
  %v685 = vpack.c.b16 %v557, %v556
  %v686 = vpack.c.b16 %v559, %v558
  %v687 = vpack.c.b16 %v561, %v560
  %v688 = vpack.c.b16 %v563, %v562
  %v689 = vpack.c.b16 %v565, %v564
  %v690 = vpack.c.b16 %v567, %v566
  %v691 = vpack.c.b16 %v569, %v568
  %v692 = vpack.c.b16 %v571, %v570
  %v693 = vpack.c.b16 %v573, %v572
  %v694 = vpack.c.b16 %v575, %v574
  %v695 = vpack.c.b16 %v577, %v576
  %v696 = vpack.c.b16 %v579, %v578
  %v697 = vpack.c.b16 %v581, %v580
  %v698 = vpack.c.b16 %v583, %v582
  %v699 = vpack.c.b16 %v585, %v584
  %v700 = vpack.c.b16 %v587, %v586
  %v701 = vpack.c.b16 %v589, %v588
  %v702 = vpack.c.b16 %v591, %v590
  %v703 = vpack.c.b16 %v593, %v592
  %v704 = vpack.c.b16 %v595, %v594
  %v705 = vpack.c.b16 %v597, %v596
  %v706 = vpack.c.b16 %v599, %v598
  %v707 = vpack.c.b16 %v601, %v600
  %v708 = vpack.c.b16 %v603, %v602
  %v709 = vpack.c.b16 %v605, %v604
  %v710 = vpack.c.b16 %v607, %v606
  %v711 = vpack.c.b16 %v609, %v608
  %v712 = vpack.c.b16 %v611, %v610
  %v713 = vpack.c.b16 %v613, %v612
  %v714 = vpack.c.b16 %v615, %v614
  %v715 = vpack.c.b16 %v617, %v616
  %v716 = vpack.c.b16 %v619, %v618
  %v717 = vpack.c.b16 %v621, %v620
  %v718 = vpack.c.b16 %v623, %v622
  %v719 = vpack.c.b16 %v625, %v624
  %v720 = vpack.c.b16 %v627, %v626
  %v721 = vpack.c.b16 %v629, %v628
  %v722 = vpack.c.b16 %v631, %v630
  %v723 = vpack.c.b16 %v633, %v632
  %v724 = vpack.c.b16 %v635, %v634
  %v725 = vpack.c.b16 %v637, %v636
  %v726 = vpack.c.b16 %v639, %v638
  %v727 = vpack.c.b16 %v641, %v640
  %v728 = vpack.c.b16 %v643, %v642
  %v729 = vpack.c.b16 %v645, %v644
  %v730 = vpack.c.b16 %v647, %v646
  %v731 = vpack.c.b16 %v649, %v648
  %v732 = vpack.c.b16 %v651, %v650
  %v733 = vpack.c.b16 %v653, %v652
  %v734 = vpack.c.b16 %v655, %v654
  %v735 = vpack.c.b16 %v657, %v656
  %v736 = vpack.c.b16 %v659, %v658
  %v737 = vpack.c.b16 %v661, %v660
  %v738 = vpack.c.b16 %v663, %v662
  %v739 = vpack.c.b16 %v665, %v664
  %v740 = vpack.c.b16 %v667, %v666
  %v741 = vpack.c.b16 %v669, %v668
  %814 = vmatpush.bf16.msra.mxu0 %v677
  %815 = vmatpush.bf16.msra.mxu0 %v676
  %816 = vmatpush.bf16.msra.mxu0 %v675
  %817 = vmatpush.bf16.msra.mxu0 %v674
  %818 = vmatpush.bf16.msra.mxu0 %v673
  %819 = vmatpush.bf16.msra.mxu0 %v672
  %820 = vmatpush.bf16.msra.mxu0 %v671
  %821 = vmatpush.bf16.msra.mxu0 %v670
  %822 = vmatmul.bf16.gmra.mxu0 %v346
  %v823 = vpop.f32.mrf.mxu0
  %v824 = vadd.f32 %v288, %v823
  %v825 = vpop.f32.mrf.mxu0
  %v826 = vadd.f32 %v288, %v825
  %827 = vmatmul.bf16.gmra.mxu0 %v355
  %v828 = vpop.f32.mrf.mxu0
  %v829 = vadd.f32 %v288, %v828
  %v830 = vpop.f32.mrf.mxu0
  %v831 = vadd.f32 %v288, %v830
  %832 = vdwg.mxu0
  %833 = vmatpush.bf16.msra.mxu0 %v685
  %834 = vmatpush.bf16.msra.mxu0 %v684
  %835 = vmatpush.bf16.msra.mxu0 %v683
  %836 = vmatpush.bf16.msra.mxu0 %v682
  %837 = vmatpush.bf16.msra.mxu0 %v681
  %838 = vmatpush.bf16.msra.mxu0 %v680
  %839 = vmatpush.bf16.msra.mxu0 %v679
  %840 = vmatpush.bf16.msra.mxu0 %v678
  %841 = vmatmul.bf16.gmra.mxu0 %v347
  %v842 = vpop.f32.mrf.mxu0
  %v843 = vadd.f32 %v824, %v842
  %v844 = vpop.f32.mrf.mxu0
  %v845 = vadd.f32 %v826, %v844
  %846 = vmatmul.bf16.gmra.mxu0 %v356
  %v847 = vpop.f32.mrf.mxu0
  %v848 = vadd.f32 %v829, %v847
  %v849 = vpop.f32.mrf.mxu0
  %v850 = vadd.f32 %v831, %v849
  %851 = vdwg.mxu0
  %852 = vmatpush.bf16.msra.mxu0 %v693
  %853 = vmatpush.bf16.msra.mxu0 %v692
  %854 = vmatpush.bf16.msra.mxu0 %v691
  %855 = vmatpush.bf16.msra.mxu0 %v690
  %856 = vmatpush.bf16.msra.mxu0 %v689
  %857 = vmatpush.bf16.msra.mxu0 %v688
  %858 = vmatpush.bf16.msra.mxu0 %v687
  %859 = vmatpush.bf16.msra.mxu0 %v686
  %860 = vmatmul.bf16.gmra.mxu0 %v348
  %v861 = vpop.f32.mrf.mxu0
  %v862 = vadd.f32 %v843, %v861
  %v863 = vpop.f32.mrf.mxu0
  %v864 = vadd.f32 %v845, %v863
  %865 = vmatmul.bf16.gmra.mxu0 %v357
  %v866 = vpop.f32.mrf.mxu0
  %v867 = vadd.f32 %v848, %v866
  %v868 = vpop.f32.mrf.mxu0
  %v869 = vadd.f32 %v850, %v868
  %870 = vdwg.mxu0
  %871 = vmatpush.bf16.msra.mxu0 %v701
  %872 = vmatpush.bf16.msra.mxu0 %v700
  %873 = vmatpush.bf16.msra.mxu0 %v699
  %874 = vmatpush.bf16.msra.mxu0 %v698
  %875 = vmatpush.bf16.msra.mxu0 %v697
  %876 = vmatpush.bf16.msra.mxu0 %v696
  %877 = vmatpush.bf16.msra.mxu0 %v695
  %878 = vmatpush.bf16.msra.mxu0 %v694
  %879 = vmatmul.bf16.gmra.mxu0 %v349
  %v880 = vpop.f32.mrf.mxu0
  %v881 = vadd.f32 %v862, %v880
  %v882 = vpop.f32.mrf.mxu0
  %v883 = vadd.f32 %v864, %v882
  %884 = vmatmul.bf16.gmra.mxu0 %v358
  %v885 = vpop.f32.mrf.mxu0
  %v886 = vadd.f32 %v867, %v885
  %v887 = vpop.f32.mrf.mxu0
  %v888 = vadd.f32 %v869, %v887
  %889 = vdwg.mxu0
  %890 = vmatpush.bf16.msra.mxu0 %v709
  %891 = vmatpush.bf16.msra.mxu0 %v708
  %892 = vmatpush.bf16.msra.mxu0 %v707
  %893 = vmatpush.bf16.msra.mxu0 %v706
  %894 = vmatpush.bf16.msra.mxu0 %v705
  %895 = vmatpush.bf16.msra.mxu0 %v704
  %896 = vmatpush.bf16.msra.mxu0 %v703
  %897 = vmatpush.bf16.msra.mxu0 %v702
  %898 = vmatmul.bf16.gmra.mxu0 %v350
  %v899 = vpop.f32.mrf.mxu0
  %v900 = vadd.f32 %v881, %v899
  %v901 = vpop.f32.mrf.mxu0
  %v902 = vadd.f32 %v883, %v901
  %903 = vmatmul.bf16.gmra.mxu0 %v359
  %v904 = vpop.f32.mrf.mxu0
  %v905 = vadd.f32 %v886, %v904
  %v906 = vpop.f32.mrf.mxu0
  %v907 = vadd.f32 %v888, %v906
  %908 = vdwg.mxu0
  %909 = vmatpush.bf16.msra.mxu0 %v717
  %910 = vmatpush.bf16.msra.mxu0 %v716
  %911 = vmatpush.bf16.msra.mxu0 %v715
  %912 = vmatpush.bf16.msra.mxu0 %v714
  %913 = vmatpush.bf16.msra.mxu0 %v713
  %914 = vmatpush.bf16.msra.mxu0 %v712
  %915 = vmatpush.bf16.msra.mxu0 %v711
  %916 = vmatpush.bf16.msra.mxu0 %v710
  %917 = vmatmul.bf16.gmra.mxu0 %v351
  %v918 = vpop.f32.mrf.mxu0
  %v919 = vadd.f32 %v900, %v918
  %v920 = vpop.f32.mrf.mxu0
  %v921 = vadd.f32 %v902, %v920
  %922 = vmatmul.bf16.gmra.mxu0 %v360
  %v923 = vpop.f32.mrf.mxu0
  %v924 = vadd.f32 %v905, %v923
  %v925 = vpop.f32.mrf.mxu0
  %v926 = vadd.f32 %v907, %v925
  %927 = vdwg.mxu0
  %928 = vmatpush.bf16.msra.mxu0 %v725
  %929 = vmatpush.bf16.msra.mxu0 %v724
  %930 = vmatpush.bf16.msra.mxu0 %v723
  %931 = vmatpush.bf16.msra.mxu0 %v722
  %932 = vmatpush.bf16.msra.mxu0 %v721
  %933 = vmatpush.bf16.msra.mxu0 %v720
  %934 = vmatpush.bf16.msra.mxu0 %v719
  %935 = vmatpush.bf16.msra.mxu0 %v718
  %936 = vmatmul.bf16.gmra.mxu0 %v352
  %v937 = vpop.f32.mrf.mxu0
  %v938 = vadd.f32 %v919, %v937
  %v939 = vpop.f32.mrf.mxu0
  %v940 = vadd.f32 %v921, %v939
  %941 = vmatmul.bf16.gmra.mxu0 %v361
  %v942 = vpop.f32.mrf.mxu0
  %v943 = vadd.f32 %v924, %v942
  %v944 = vpop.f32.mrf.mxu0
  %v945 = vadd.f32 %v926, %v944
  %946 = vdwg.mxu0
  %947 = vmatpush.bf16.msra.mxu0 %v733
  %948 = vmatpush.bf16.msra.mxu0 %v732
  %949 = vmatpush.bf16.msra.mxu0 %v731
  %950 = vmatpush.bf16.msra.mxu0 %v730
  %951 = vmatpush.bf16.msra.mxu0 %v729
  %952 = vmatpush.bf16.msra.mxu0 %v728
  %953 = vmatpush.bf16.msra.mxu0 %v727
  %954 = vmatpush.bf16.msra.mxu0 %v726
  %955 = vmatmul.bf16.gmra.mxu0 %v353
  %v956 = vpop.f32.mrf.mxu0
  %v957 = vadd.f32 %v938, %v956
  %v958 = vpop.f32.mrf.mxu0
  %v959 = vadd.f32 %v940, %v958
  %960 = vmatmul.bf16.gmra.mxu0 %v362
  %v961 = vpop.f32.mrf.mxu0
  %v962 = vadd.f32 %v943, %v961
  %v963 = vpop.f32.mrf.mxu0
  %v964 = vadd.f32 %v945, %v963
  %965 = vdwg.mxu0
  %966 = vmatpush.bf16.msra.mxu0 %v741
  %967 = vmatpush.bf16.msra.mxu0 %v740
  %968 = vmatpush.bf16.msra.mxu0 %v739
  %969 = vmatpush.bf16.msra.mxu0 %v738
  %970 = vmatpush.bf16.msra.mxu0 %v737
  %971 = vmatpush.bf16.msra.mxu0 %v736
  %972 = vmatpush.bf16.msra.mxu0 %v735
  %973 = vmatpush.bf16.msra.mxu0 %v734
  %974 = vmatmul.bf16.gmra.mxu0 %v354
  %v975 = vpop.f32.mrf.mxu0
  %v976 = vadd.f32 %v957, %v975
  %v977 = vpop.f32.mrf.mxu0
  %v978 = vadd.f32 %v959, %v977
  %979 = vmatmul.bf16.gmra.mxu0 %v363
  %v980 = vpop.f32.mrf.mxu0
  %v981 = vadd.f32 %v962, %v980
  %v982 = vpop.f32.mrf.mxu0
  %v983 = vadd.f32 %v964, %v982
  %984 = vdwg.mxu0
  %v985 = vadd.f32 %v976, %v277
  %v986 = vadd.f32 %v978, %v279
  %v987 = vadd.f32 %v981, %v282
  %v988 = vadd.f32 %v983, %v284
  %v989 = vld [vmem:[%s5] sm:$0x1]
  %v991 = vperm.slane %v989, 0
  %v993 = vadd.f32 %v985, %v991
  %v994 = vadd.f32 %v986, %v991
  %v995 = vadd.f32 %v987, %v991
  %v996 = vadd.f32 %v988, %v991
  %v997 = vmax.f32 %v993, 0.0
  %v998 = vmax.f32 %v994, 0.0
  %v999 = vmax.f32 %v995, 0.0
  %v1000 = vmax.f32 %v996, 0.0
  %v1001 = vpack.c.bf16 %v997, %v997
  %v1002 = vpack.c.bf16 %v998, %v998
  %v1003 = vpack.c.bf16 %v999, %v999
  %v1004 = vpack.c.bf16 %v1000, %v1000
  %1005 = vst [vmem:[%s6] sm:$0xf] %v1001
  %1006 = vst [vmem:[%s6 + $0x4] sm:$0xf] %v1002
  %1007 = vst [vmem:[%s6 + $0x8] sm:$0xf] %v1003
  %1008 = vst [vmem:[%s6 + $0xc] sm:$0xf] %v1004
  // Predicated region
  $region26: #{resnet_forward.18} parent=0 // pred_check
    _
  $region27: #{resnet_forward.18} parent=0 // pred_check_branch
    %1010 = sbr.rel (0) target = $region29
  $region28: #{resnet_forward.18} parent=0 // pred_region
    _
  $region29: #{resnet_forward.18} parent=0 // pred_fallthru
    _
  // Predicated region
  $region30: #{resnet_forward.18} parent=0 // pred_check
    _
  $region31: #{resnet_forward.18} parent=0 // pred_check_branch
    %1012 = sbr.rel (0) target = $region33
  $region32: #{resnet_forward.18} parent=0 // pred_region
    _
  $region33: #{resnet_forward.18} parent=0 // pred_fallthru
    _

</llo_original>
